<compile_context>
chip_gen: v5e
topology: v5e:2x2
jax: 0.10.0
libtpu: 0.0.40
codegen_flags: <defaults>
</compile_context>

<pallas_src>
import numpy as np
import jax
import jax.numpy as jnp
from jax.experimental import pallas as pl
from jax.experimental.pallas import tpu as pltpu


def ls2pr(ls):
    return 1.0 / (2.0 * ls ** 2)


# ---------------------------------------------------------------------------
# Pallas kernel: amps-weighted convolution integrals
#   F[i, s, n] = sum_q amps[i, q] * I[i, s, q, n]
# ---------------------------------------------------------------------------
def npgp_conv_pallas(ts, alphas, pgs, thetags, betags, wgs, zgs, qgs,
                     pus, thetaus, betaus, wus, zus, qus, ampu, amps, *, tn=None):
    f32 = jnp.float32
    ts = jnp.asarray(ts, f32)
    alphas = jnp.asarray(alphas, f32); pgs = jnp.asarray(pgs, f32)
    thetags = jnp.asarray(thetags, f32); betags = jnp.asarray(betags, f32)
    wgs = jnp.asarray(wgs, f32); zgs = jnp.asarray(zgs, f32)
    qgs = jnp.asarray(qgs, f32); pus = jnp.asarray(pus, f32)
    thetaus = jnp.asarray(thetaus, f32); betaus = jnp.asarray(betaus, f32)
    wus = jnp.asarray(wus, f32); zus = jnp.asarray(zus, f32)
    qus = jnp.asarray(qus, f32); amps = jnp.asarray(amps, f32)
    ampu = jnp.asarray(ampu, f32)

    N, d_in = ts.shape
    d_out = alphas.shape[0]
    Ns, Q, _, B_u = thetaus.shape
    B_g = thetags.shape[-1]
    M_g = zgs.shape[-1]
    M_u = zus.shape[0]

    if tn is None:
        tn = 512 if N >= 512 else (256 if N >= 256 else 128)
    n_pad = -(-N // tn) * tn
    n_blk = n_pad // tn
    ns_pad = -(-Ns // 8) * 8                     # MXU M dimension (>= 8)

    QB = Q * B_u
    RPP = (2 * B_g + M_g) * M_u                  # cached basis rows per input dim
    BD_ROWS = d_in * RPP                         # sample-independent rows (terms B, D)
    PHI_PER_S = 2 * d_in * QB                    # per-sample rows (terms A, C)
    TOT_ROWS = BD_ROWS + Ns * PHI_PER_S
    TOT_PAD = -(-TOT_ROWS // 128) * 128          # aligned K for the MXU matmul

    # ---- per-(output, input-dim) constants (plain JAX, TN-independent) ----
    pi = jnp.float32(np.pi)
    a = alphas
    pg = pgs
    pu = jnp.broadcast_to(pus[None, :], (d_out, d_in))
    apu, apg, atot = a + pu, a + pg, a + pg + pu

    half_sqA = 0.5 * jnp.sqrt(pi / a)
    ampB = ampu * jnp.sqrt(pi / apu)
    ampD = ampu * jnp.sqrt(pi / atot)
    r_coef = pu / apu
    e2_coef = a * pu / apu
    mu_coef = pg / apg
    inv4a = 1.0 / (4.0 * a)
    inv_atot = 1.0 / atot
    inv4apg = 1.0 / (4.0 * apg)

    gexp = jnp.exp(-thetags ** 2 / (4.0 * apu[..., None]))           # (d_out,d_in,B_g)
    cgexp = (jnp.sqrt(pi / apg)[..., None]
             * jnp.exp(-(a * pg / apg)[..., None] * zgs ** 2))       # (d_out,d_in,M_g)

    thu_sp = jnp.transpose(thetaus, (0, 2, 1, 3))                    # (Ns,d_in,Q,B_u)

    # ---- term A / C coefficients (narrow; hoisted out of the kernel) ----
    thg_e = thetags[:, None, :, None, None, :]                       # (d_out,1,d_in,1,1,B_g)
    thu_e = thu_sp[None, :, :, :, :, None]                           # (1,Ns,d_in,Q,B_u,1)
    inv4a_e = inv4a[:, None, :, None, None, None]
    em = jnp.exp(-inv4a_e * (thu_e - thg_e) ** 2)
    ep = jnp.exp(-inv4a_e * (thu_e + thg_e) ** 2)
    cos_bg = jnp.cos(betags)
    sin_bg = jnp.sin(betags)                                         # (d_out,Ns,d_in,B_g)
    cA = jnp.einsum('ispqba,ispa->ispqb', em + ep, wgs * cos_bg)
    sA = jnp.einsum('ispqba,ispa->ispqb', ep - em, wgs * sin_bg)

    eu = jnp.exp(-inv4apg[:, None, :, None, None] * thu_sp[None] ** 2)
    ang = (mu_coef[:, None, :, None, None, None]
           * zgs[:, None, :, None, None, :]
           * thu_sp[None, :, :, :, :, None])                         # (d_out,Ns,d_in,Q,B_u,M_g)
    cqg = qgs * cgexp[:, None]                                       # (d_out,Ns,d_in,M_g)
    cC = jnp.einsum('ispqbg,ispg->ispqb', jnp.cos(ang), cqg)
    sC = jnp.einsum('ispqbg,ispg->ispqb', jnp.sin(ang), cqg)

    wu_e = wus[None, :, None, :, :]                                  # (1,Ns,1,Q,B_u)
    hA = half_sqA[:, None, :, None, None]
    coef_c = wu_e * (hA * cA + eu * cC)
    coef_s = wu_e * (hA * sA + eu * sC)
    amps_e = amps[:, None, None, :, None]                            # (d_out,1,1,Q,1)
    wac = jnp.stack([amps_e * coef_c, amps_e * coef_s], axis=3)      # (d_out,Ns,d_in,2,Q,B_u)
    wac = wac.reshape(d_out, Ns, PHI_PER_S)

    # ---- term B / D weights (amps + q-sum folded in) ----
    quw = jnp.einsum('iq,sqm->ism', amps, qus)                       # (d_out,Ns,M_u)
    wB_c = ampB[:, None, :, None] * gexp[:, None] * wgs * cos_bg     # (d_out,Ns,d_in,B_g)
    wB_s = -ampB[:, None, :, None] * gexp[:, None] * wgs * sin_bg
    wD = ampD[:, None, :, None] * qgs                                # (d_out,Ns,d_in,M_g)
    coef_k = jnp.concatenate([wB_c, wB_s, wD], axis=3)               # (d_out,Ns,d_in,2B_g+M_g)
    wbd = (coef_k[..., None] * quw[:, :, None, None, :]).reshape(d_out, Ns, BD_ROWS)

    # block-diagonal-over-samples layout for the per-sample (phi) rows
    eye = jnp.eye(Ns, dtype=f32)
    w_phi = (eye[None, :, :, None] * wac[:, :, None, :]).reshape(d_out, Ns, Ns * PHI_PER_S)
    w_all = jnp.concatenate([wbd, w_phi], axis=-1)                   # (d_out,Ns,TOT_ROWS)
    w_full = jnp.zeros((d_out, ns_pad, TOT_PAD), f32).at[:, :Ns, :TOT_ROWS].set(w_all)

    # ---- small scalar table + column-layout kernel inputs ----
    cst = jnp.stack([e2_coef, r_coef, pu, inv_atot], axis=-1).reshape(d_out * d_in, 4)
    thg_c = thetags[..., None]                                       # (d_out,d_in,B_g,1)
    linz_c = (pg[..., None] * zgs)[..., None]                        # (d_out,d_in,M_g,1)
    npz2_c = (-pg[..., None] * zgs ** 2)[..., None]                  # (d_out,d_in,M_g,1)
    zu_c = zus.T[..., None]                                          # (d_in,M_u,1)
    thu_col = thu_sp.reshape(Ns, d_in, QB, 1)
    bu_col = jnp.broadcast_to(betaus.reshape(Ns, 1, QB, 1), (Ns, d_in, QB, 1))
    ts_v = jnp.zeros((d_in, n_pad), f32).at[:, :N].set(ts.T)

    def kernel(cst_ref, t_ref, zu_ref, thg_ref, linz_ref, npz2_ref,
               thu_ref, bu_ref, w_ref, out_ref, basis_ref):
        i = pl.program_id(0)
        t_all = t_ref[...]                                           # (d_in, tn)
        zu_all = zu_ref[...]                                         # (d_in, M_u, 1)
        thg_all = thg_ref[0]                                         # (d_in, B_g, 1)
        linz_all = linz_ref[0]                                       # (d_in, M_g, 1)
        npz_all = npz2_ref[0]                                        # (d_in, M_g, 1)

        # zero the matmul K-padding rows once (weights there are zero anyway,
        # this just avoids 0 * stale-NaN)
        if TOT_PAD > TOT_ROWS:
            basis_ref[TOT_ROWS:TOT_PAD, :] = jnp.zeros(
                (TOT_PAD - TOT_ROWS, tn), jnp.float32)

        # --- sample-independent basis rows (terms B & D), built once per step ---
        for p in range(d_in):
            row = i * d_in + p
            e2c = cst_ref[row, 0]
            rc = cst_ref[row, 1]
            pu_s = cst_ref[row, 2]
            inv_at = cst_ref[row, 3]

            t2 = t_all[p:p + 1]                                      # (1, tn)
            c = t2 - zu_all[p]                                       # (M_u, tn)
            c2 = c * c
            e2 = jnp.exp(-e2c * c2)                                  # (M_u, tn)
            r = rc * c

            base = p * RPP
            # term-B basis: e2 * cos/sin(theta_g * r)   (beta_g folded into weights)
            arg = thg_all[p][:, :, None] * r[None]                   # (B_g, M_u, tn)
            basis_ref[base:base + B_g * M_u, :] = (
                e2[None] * jnp.cos(arg)).reshape(B_g * M_u, tn)
            basis_ref[base + B_g * M_u:base + 2 * B_g * M_u, :] = (
                e2[None] * jnp.sin(arg)).reshape(B_g * M_u, tn)
            # term-D basis: exp(lin^2/atot - pg*zg^2 - pu*c^2)
            lin = linz_all[p][:, :, None] + pu_s * c[None]           # (M_g, M_u, tn)
            expo = lin * lin * inv_at + npz_all[p][:, :, None] - pu_s * c2[None]
            basis_ref[base + 2 * B_g * M_u:base + RPP, :] = (
                jnp.exp(expo)).reshape(M_g * M_u, tn)

        # --- per-sample RFF rows (terms A & C): cos/sin(theta_u * t + beta_u) ---
        thu_all = thu_ref[...]                                       # (Ns, d_in, QB, 1)
        bu_all = bu_ref[...]
        for s in range(Ns):
            for p in range(d_in):
                phi = thu_all[s, p] * t_all[p:p + 1] + bu_all[s, p]  # (QB, tn)
                off = BD_ROWS + (s * d_in + p) * 2 * QB
                basis_ref[off:off + QB, :] = jnp.cos(phi)
                basis_ref[off + QB:off + 2 * QB, :] = jnp.sin(phi)

        # --- single aligned MXU contraction over all basis rows ---
        out_ref[...] = jnp.dot(w_ref[0], basis_ref[...],
                               preferred_element_type=jnp.float32)[None]

    smem = pl.BlockSpec(memory_space=pltpu.MemorySpace.SMEM)
    grid = (d_out, n_blk)
    out = pl.pallas_call(
        kernel,
        out_shape=jax.ShapeDtypeStruct((d_out, ns_pad, n_pad), f32),
        grid=grid,
        in_specs=[
            smem,                                                         # cst
            pl.BlockSpec((d_in, tn), lambda i, nb: (0, nb)),              # ts
            pl.BlockSpec((d_in, M_u, 1), lambda i, nb: (0, 0, 0)),        # zus
            pl.BlockSpec((1, d_in, B_g, 1), lambda i, nb: (i, 0, 0, 0)),  # thetags
            pl.BlockSpec((1, d_in, M_g, 1), lambda i, nb: (i, 0, 0, 0)),  # pg*zg
            pl.BlockSpec((1, d_in, M_g, 1), lambda i, nb: (i, 0, 0, 0)),  # -pg*zg^2
            pl.BlockSpec((Ns, d_in, QB, 1), lambda i, nb: (0, 0, 0, 0)),  # thetaus
            pl.BlockSpec((Ns, d_in, QB, 1), lambda i, nb: (0, 0, 0, 0)),  # betaus
            pl.BlockSpec((1, ns_pad, TOT_PAD), lambda i, nb: (i, 0, 0)),  # weights
        ],
        out_specs=pl.BlockSpec((1, ns_pad, tn), lambda i, nb: (i, 0, nb)),
        scratch_shapes=[pltpu.VMEM((TOT_PAD, tn), jnp.float32)],
        compiler_params=pltpu.CompilerParams(
            dimension_semantics=("parallel", "parallel")),
    )(cst, ts_v, zu_c, thg_c, linz_c, npz2_c, thu_col, bu_col, w_full)
    return out[:, :Ns, :N]                                            # (d_out, Ns, N)


# ---------------------------------------------------------------------------
# Pure-numpy reference of the analytic integrals (for verification)
# ---------------------------------------------------------------------------
def full_I_reference(ts, alphas, pgs, thetags, betags, wgs, zgs, qgs,
                     pus, thetaus, betaus, wus, zus, qus, ampu):
    g = lambda x: np.asarray(jax.device_get(x), dtype=np.float64)
    ts, alphas, pgs = g(ts), g(alphas), g(pgs)
    thetags, betags, wgs, zgs, qgs = g(thetags), g(betags), g(wgs), g(zgs), g(qgs)
    pus, thetaus, betaus, wus, zus, qus = (g(pus), g(thetaus), g(betaus),
                                           g(wus), g(zus), g(qus))
    ampu = float(ampu)
    d_out, d_in = alphas.shape
    Ns, Q, _, _ = thetaus.shape
    N = ts.shape[0]
    out = np.zeros((d_out, Ns, Q, N))
    for i in range(d_out):
        for s in range(Ns):
            for q in range(Q):
                for p in range(d_in):
                    alpha, pg, pu = alphas[i, p], pgs[i, p], pus[p]
                    t = ts[:, p]
                    thg, bg, wg = thetags[i, p], betags[i, s, p], wgs[i, s, p]
                    zg, qg = zgs[i, p], qgs[i, s, p]
                    thu, bu, wu = thetaus[s, q, p], betaus[s, q], wus[s, q]
                    zu, qu = zus[:, p], qus[s, q]
                    apu, apg, atot = alpha + pu, alpha + pg, alpha + pg + pu
                    phi = thu[:, None] * t[None, :] + bu[:, None]
                    Em = np.exp(-(thg[None, :] - thu[:, None]) ** 2 / (4 * alpha))
                    Ep = np.exp(-(thg[None, :] + thu[:, None]) ** 2 / (4 * alpha))
                    IA = 0.5 * np.sqrt(np.pi / alpha) * (
                        Em[:, :, None] * np.cos(bg[None, :, None] + phi[:, None, :])
                        + Ep[:, :, None] * np.cos(bg[None, :, None] - phi[:, None, :]))
                    A = np.einsum('b,a,ban->n', wu, wg, IA)
                    c = t[None, :] - zu[:, None]
                    IB = (ampu * np.sqrt(np.pi / apu)
                          * np.exp(-alpha * pu * c[None] ** 2 / apu)
                          * np.exp(-thg[:, None, None] ** 2 / (4 * apu))
                          * np.cos(thg[:, None, None] * pu * c[None] / apu
                                   + bg[:, None, None]))
                    B = np.einsum('a,m,amn->n', wg, qu, IB)
                    mug = pg * zg / apg
                    IC = (np.sqrt(np.pi / apg)
                          * np.exp(-alpha * pg * zg[:, None, None] ** 2 / apg)
                          * np.exp(-thu[None, :, None] ** 2 / (4 * apg))
                          * np.cos(thu[None, :, None]
                                   * (t[None, None, :] - mug[:, None, None])
                                   + bu[None, :, None]))
                    C = np.einsum('g,b,gbn->n', qg, wu, IC)
                    lin = pg * zg[:, None, None] + pu * c[None]
                    ID = ampu * np.sqrt(np.pi / atot) * np.exp(
                        lin ** 2 / atot
                        - pg * zg[:, None, None] ** 2 - pu * c[None] ** 2)
                    D = np.einsum('g,m,gmn->n', qg, qu, ID)
                    out[i, s, q] += A + B + C + D
    return out


# ---------------------------------------------------------------------------
# NPGPLayer.forward composition (glue in plain JAX, hot path in Pallas)
# ---------------------------------------------------------------------------
def npgp_layer_forward(ts, params):
    amps = jnp.exp(params['log_amps'])                       # (d_out, Q)
    # hot path: amps-weighted convolution integrals, fused in the kernel
    F = npgp_conv_pallas(ts, params['alphas'], params['pgs'], params['thetags'],
                         params['betags'], params['wgs'], params['zgs'],
                         params['qgs'], params['pus'], params['thetaus'],
                         params['betaus'], params['wus'], params['zus'],
                         params['qus'], params['ampu'], amps)   # (d_out, Ns, N)
    layer_out = jnp.transpose(F, (1, 2, 0))                  # (Ns, N, d_out)
    # is_final_layer == False and W is None -> residual (assumes d_out == d_in)
    return layer_out + jnp.asarray(ts, layer_out.dtype)[None]


if __name__ == "__main__":
    key = jax.random.PRNGKey(0)
    d_in, d_out = 2, 2
    Q = d_out                 # num_u_functions defaults to d_out
    Ns = 3                    # pathwise basis samples
    N = 128                   # number of layer input points (one lane-dense tile)
    M_g = 10                  # num_filter_points
    M_u = 8                   # num u inducing points
    B_g, B_u = 8, 8           # RFF basis sizes
    beta = 0.5
    init_filter_width = 1.0
    init_transform_lengthscale = 1.5
    init_amp = 1.0

    # __init__-style deterministic hyper-parameters
    g_z = init_filter_width * np.linspace(-1.0, 1.0, M_g)       # filter inducing inputs
    g_ls = float(g_z[1] - g_z[0])                                # init_g_lengthscale
    u_ls = beta * g_ls                                           # init_u_lengthscale
    alpha0 = 1.0 / (2.0 * (0.5 * init_filter_width) ** 2)        # filter window precision
    pg0 = ls2pr(g_ls)
    cross_ls = float(np.sqrt(u_ls ** 2 + init_transform_lengthscale ** 2))
    pu0 = ls2pr(cross_ls)
    ampu = float(u_ls / cross_ls)

    normaliser = (2.0 * alpha0 / np.pi) ** 0.25
    log_amps = jnp.asarray(np.log(init_amp) + np.log(normaliser)
                           + np.zeros((d_out, Q)), jnp.float32)

    alphas = jnp.full((d_out, d_in), alpha0, jnp.float32)
    pgs = jnp.full((d_out, d_in), pg0, jnp.float32)
    pus = jnp.full((d_in,), pu0, jnp.float32)
    zgs = jnp.asarray(np.broadcast_to(g_z, (d_out, d_in, M_g)).copy(), jnp.float32)

    ks = jax.random.split(key, 10)
    zus = jax.random.uniform(ks[0], (M_u, d_in), jnp.float32, -2.0, 2.0)
    thetags = (jnp.sqrt(2.0 * pgs)[..., None]
               * jax.random.normal(ks[1], (d_out, d_in, B_g), jnp.float32))
    betags = jax.random.uniform(ks[2], (d_out, Ns, d_in, B_g), jnp.float32,
                                0.0, 2.0 * np.pi)
    wgs = np.sqrt(2.0 / B_g) * jax.random.normal(ks[3], (d_out, Ns, d_in, B_g),
                                                 jnp.float32)
    qgs = 0.3 * jax.random.normal(ks[4], (d_out, Ns, d_in, M_g), jnp.float32)
    thetaus = (jnp.sqrt(2.0 * pus)[None, None, :, None]
               * jax.random.normal(ks[5], (Ns, Q, d_in, B_u), jnp.float32))
    betaus = jax.random.uniform(ks[6], (Ns, Q, B_u), jnp.float32, 0.0, 2.0 * np.pi)
    wus = np.sqrt(2.0 / B_u) * jax.random.normal(ks[7], (Ns, Q, B_u), jnp.float32)
    qus = 0.3 * jax.random.normal(ks[8], (Ns, Q, M_u), jnp.float32)
    ts = jax.random.uniform(ks[9], (N, d_in), jnp.float32, -3.0, 3.0)

    params = dict(alphas=alphas, pgs=pgs, thetags=thetags, betags=betags, wgs=wgs,
                  zgs=zgs, qgs=qgs, pus=pus, thetaus=thetaus, betaus=betaus,
                  wus=wus, zus=zus, qus=qus, ampu=ampu, log_amps=log_amps)

    # hot path: Pallas kernel computing the amps-weighted integral tensor
    amps = jnp.exp(log_amps)
    F_kernel = jax.block_until_ready(
        npgp_conv_pallas(ts, alphas, pgs, thetags, betags, wgs, zgs, qgs,
                         pus, thetaus, betaus, wus, zus, qus, ampu, amps))
    I_ref = full_I_reference(ts, alphas, pgs, thetags, betags, wgs, zgs, qgs,
                             pus, thetaus, betaus, wus, zus, qus, ampu)
    amps64 = np.asarray(jax.device_get(amps), np.float64)
    F_ref = np.einsum('isqn,iq->isn', I_ref, amps64)
    np.testing.assert_allclose(np.asarray(F_kernel), F_ref, rtol=3e-3, atol=3e-3)

    out = jax.block_until_ready(npgp_layer_forward(ts, params))
    assert out.shape == (Ns, N, d_out)
    print("KERNEL_OK")
</pallas_src>

<mosaic_0001>
module attributes {stable_mosaic.version = 11 : i64} {
  func.func @kernel(%arg0: i32, %arg1: i32, %arg2: memref<4x4xf32, #tpu.memory_space<smem>>, %arg3: memref<2x128xf32, #tpu.memory_space<vmem>>, %arg4: memref<2x8x1xf32, #tpu.memory_space<vmem>>, %arg5: memref<1x2x8x1xf32, #tpu.memory_space<vmem>>, %arg6: memref<1x2x10x1xf32, #tpu.memory_space<vmem>>, %arg7: memref<1x2x10x1xf32, #tpu.memory_space<vmem>>, %arg8: memref<3x2x16x1xf32, #tpu.memory_space<vmem>>, %arg9: memref<3x2x16x1xf32, #tpu.memory_space<vmem>>, %arg10: memref<1x8x640xf32, #tpu.memory_space<vmem>>, %arg11: memref<1x8x128xf32, #tpu.memory_space<vmem>>, %arg12: memref<640x128xf32, #tpu.memory_space<vmem>>) attributes {dimension_semantics = [#tpu.dimension_semantics<parallel>, #tpu.dimension_semantics<parallel>], iteration_bounds = array<i64: 2, 1>, scalar_prefetch = 0 : i64, scratch_operands = 1 : i64, tpu.core_type = #tpu.core_type<tc>, window_params = [{transform_indices = @transform_0, window_bounds = array<i64: 4, 4>}, {transform_indices = @transform_1, window_bounds = array<i64: 2, 128>}, {pipeline_mode = #tpu.pipeline_mode<synchronous>, transform_indices = @transform_2, window_bounds = array<i64: 2, 8, 1>}, {transform_indices = @transform_3, window_bounds = array<i64: 1, 2, 8, 1>}, {transform_indices = @transform_4, window_bounds = array<i64: 1, 2, 10, 1>}, {transform_indices = @transform_5, window_bounds = array<i64: 1, 2, 10, 1>}, {pipeline_mode = #tpu.pipeline_mode<synchronous>, transform_indices = @transform_6, window_bounds = array<i64: 3, 2, 16, 1>}, {pipeline_mode = #tpu.pipeline_mode<synchronous>, transform_indices = @transform_7, window_bounds = array<i64: 3, 2, 16, 1>}, {transform_indices = @transform_8, window_bounds = array<i64: 1, 8, 640>}, {transform_indices = @transform_9, window_bounds = array<i64: 1, 8, 128>}]} {
    %c0 = arith.constant 0 : index
    %c0_0 = arith.constant 0 : index
    %0 = vector.load %arg3[%c0, %c0_0] : memref<2x128xf32, #tpu.memory_space<vmem>>, vector<2x128xf32>
    %c0_1 = arith.constant 0 : index
    %c0_2 = arith.constant 0 : index
    %c0_3 = arith.constant 0 : index
    %1 = vector.load %arg4[%c0_1, %c0_2, %c0_3] : memref<2x8x1xf32, #tpu.memory_space<vmem>>, vector<2x8x1xf32>
    %c0_4 = arith.constant 0 : index
    %c0_5 = arith.constant 0 : index
    %c0_6 = arith.constant 0 : index
    %c0_7 = arith.constant 0 : index
    %2 = vector.load %arg5[%c0_4, %c0_5, %c0_6, %c0_7] : memref<1x2x8x1xf32, #tpu.memory_space<vmem>>, vector<1x2x8x1xf32>
    %3 = vector.shape_cast %2 : vector<1x2x8x1xf32> to vector<2x8x1xf32>
    %c0_8 = arith.constant 0 : index
    %c0_9 = arith.constant 0 : index
    %c0_10 = arith.constant 0 : index
    %c0_11 = arith.constant 0 : index
    %4 = vector.load %arg6[%c0_8, %c0_9, %c0_10, %c0_11] : memref<1x2x10x1xf32, #tpu.memory_space<vmem>>, vector<1x2x10x1xf32>
    %5 = vector.shape_cast %4 : vector<1x2x10x1xf32> to vector<2x10x1xf32>
    %c0_12 = arith.constant 0 : index
    %c0_13 = arith.constant 0 : index
    %c0_14 = arith.constant 0 : index
    %c0_15 = arith.constant 0 : index
    %6 = vector.load %arg7[%c0_12, %c0_13, %c0_14, %c0_15] : memref<1x2x10x1xf32, #tpu.memory_space<vmem>>, vector<1x2x10x1xf32>
    %7 = vector.shape_cast %6 : vector<1x2x10x1xf32> to vector<2x10x1xf32>
    %cst = arith.constant 0.000000e+00 : f32
    %8 = vector.broadcast %cst : f32 to vector<32x128xf32>
    %c608 = arith.constant 608 : index
    %c0_16 = arith.constant 0 : index
    %9 = vector.load %arg12[%c608, %c0_16] : memref<640x128xf32, #tpu.memory_space<vmem>>, vector<32x128xf32>
    tpu.vector_store %arg12[%c608, %c0_16], %8 {strides = array<i32>} : memref<640x128xf32, #tpu.memory_space<vmem>>, vector<32x128xf32>,
    %c2_i32 = arith.constant 2 : i32
    %10 = arith.muli %arg0, %c2_i32 : i32
    %c0_i32 = arith.constant 0 : i32
    %11 = arith.addi %10, %c0_i32 : i32
    %12 = arith.index_cast %11 : i32 to index
    %c0_17 = arith.constant 0 : index
    %13 = memref.load %arg2[%12, %c0_17] : memref<4x4xf32, #tpu.memory_space<smem>>
    %14 = arith.index_cast %11 : i32 to index
    %c1 = arith.constant 1 : index
    %15 = memref.load %arg2[%14, %c1] : memref<4x4xf32, #tpu.memory_space<smem>>
    %16 = arith.index_cast %11 : i32 to index
    %c2 = arith.constant 2 : index
    %17 = memref.load %arg2[%16, %c2] : memref<4x4xf32, #tpu.memory_space<smem>>
    %18 = arith.index_cast %11 : i32 to index
    %c3 = arith.constant 3 : index
    %19 = memref.load %arg2[%18, %c3] : memref<4x4xf32, #tpu.memory_space<smem>>
    %20 = vector.extract_strided_slice %0 {offsets = [0, 0], sizes = [1, 128], strides = [1, 1]} : vector<2x128xf32> to vector<1x128xf32>
    %21 = vector.extract_strided_slice %1 {offsets = [0, 0, 0], sizes = [1, 8, 1], strides = [1, 1, 1]} : vector<2x8x1xf32> to vector<1x8x1xf32>
    %22 = vector.shape_cast %21 : vector<1x8x1xf32> to vector<8x1xf32>
    %23 = vector.broadcast %20 : vector<1x128xf32> to vector<8x128xf32>
    %24 = vector.broadcast %22 : vector<8x1xf32> to vector<8x128xf32>
    %25 = arith.subf %23, %24 : vector<8x128xf32>
    %26 = arith.mulf %25, %25 : vector<8x128xf32>
    %cst_18 = arith.constant 0.000000e+00 : f32
    %27 = arith.subf %cst_18, %13 : f32
    %28 = vector.broadcast %27 : f32 to vector<8x128xf32>
    %29 = arith.mulf %28, %26 : vector<8x128xf32>
    %30 = math.exp %29 : vector<8x128xf32>
    %31 = vector.broadcast %15 : f32 to vector<8x128xf32>
    %32 = arith.mulf %31, %25 : vector<8x128xf32>
    %33 = vector.extract_strided_slice %3 {offsets = [0, 0, 0], sizes = [1, 8, 1], strides = [1, 1, 1]} : vector<2x8x1xf32> to vector<1x8x1xf32>
    %34 = vector.shape_cast %33 : vector<1x8x1xf32> to vector<8x1xf32>
    %35 = vector.shape_cast %34 : vector<8x1xf32> to vector<8x1x1xf32>
    %36 = vector.shape_cast %32 : vector<8x128xf32> to vector<1x8x128xf32>
    %37 = vector.broadcast %35 : vector<8x1x1xf32> to vector<8x8x128xf32>
    %38 = vector.broadcast %36 : vector<1x8x128xf32> to vector<8x8x128xf32>
    %39 = arith.mulf %37, %38 : vector<8x8x128xf32>
    %40 = vector.shape_cast %30 : vector<8x128xf32> to vector<1x8x128xf32>
    %41 = math.cos %39 : vector<8x8x128xf32>
    %42 = vector.broadcast %40 : vector<1x8x128xf32> to vector<8x8x128xf32>
    %43 = arith.mulf %42, %41 : vector<8x8x128xf32>
    %44 = vector.shape_cast %43 : vector<8x8x128xf32> to vector<64x128xf32>
    %c0_19 = arith.constant 0 : index
    %c0_20 = arith.constant 0 : index
    %45 = vector.load %arg12[%c0_19, %c0_20] : memref<640x128xf32, #tpu.memory_space<vmem>>, vector<64x128xf32>
    tpu.vector_store %arg12[%c0_19, %c0_20], %44 {strides = array<i32>} : memref<640x128xf32, #tpu.memory_space<vmem>>, vector<64x128xf32>,
    %46 = vector.shape_cast %30 : vector<8x128xf32> to vector<1x8x128xf32>
    %47 = math.sin %39 : vector<8x8x128xf32>
    %48 = vector.broadcast %46 : vector<1x8x128xf32> to vector<8x8x128xf32>
    %49 = arith.mulf %48, %47 : vector<8x8x128xf32>
    %50 = vector.shape_cast %49 : vector<8x8x128xf32> to vector<64x128xf32>
    %c64 = arith.constant 64 : index
    %c0_21 = arith.constant 0 : index
    %51 = vector.load %arg12[%c64, %c0_21] : memref<640x128xf32, #tpu.memory_space<vmem>>, vector<64x128xf32>
    tpu.vector_store %arg12[%c64, %c0_21], %50 {strides = array<i32>} : memref<640x128xf32, #tpu.memory_space<vmem>>, vector<64x128xf32>,
    %52 = vector.extract_strided_slice %5 {offsets = [0, 0, 0], sizes = [1, 10, 1], strides = [1, 1, 1]} : vector<2x10x1xf32> to vector<1x10x1xf32>
    %53 = vector.shape_cast %52 : vector<1x10x1xf32> to vector<10x1xf32>
    %54 = vector.shape_cast %53 : vector<10x1xf32> to vector<10x1x1xf32>
    %55 = vector.shape_cast %25 : vector<8x128xf32> to vector<1x8x128xf32>
    %56 = vector.broadcast %17 : f32 to vector<1x8x128xf32>
    %57 = arith.mulf %56, %55 : vector<1x8x128xf32>
    %58 = vector.broadcast %54 : vector<10x1x1xf32> to vector<10x8x128xf32>
    %59 = vector.broadcast %57 : vector<1x8x128xf32> to vector<10x8x128xf32>
    %60 = arith.addf %58, %59 : vector<10x8x128xf32>
    %61 = arith.mulf %60, %60 : vector<10x8x128xf32>
    %62 = vector.broadcast %19 : f32 to vector<10x8x128xf32>
    %63 = arith.mulf %61, %62 : vector<10x8x128xf32>
    %64 = vector.extract_strided_slice %7 {offsets = [0, 0, 0], sizes = [1, 10, 1], strides = [1, 1, 1]} : vector<2x10x1xf32> to vector<1x10x1xf32>
    %65 = vector.shape_cast %64 : vector<1x10x1xf32> to vector<10x1xf32>
    %66 = vector.shape_cast %65 : vector<10x1xf32> to vector<10x1x1xf32>
    %67 = vector.broadcast %66 : vector<10x1x1xf32> to vector<10x8x128xf32>
    %68 = arith.addf %63, %67 : vector<10x8x128xf32>
    %69 = vector.shape_cast %26 : vector<8x128xf32> to vector<1x8x128xf32>
    %70 = vector.broadcast %17 : f32 to vector<1x8x128xf32>
    %71 = arith.mulf %70, %69 : vector<1x8x128xf32>
    %72 = vector.broadcast %71 : vector<1x8x128xf32> to vector<10x8x128xf32>
    %73 = arith.subf %68, %72 : vector<10x8x128xf32>
    %74 = math.exp %73 : vector<10x8x128xf32>
    %75 = vector.shape_cast %74 : vector<10x8x128xf32> to vector<80x128xf32>
    %c128 = arith.constant 128 : index
    %c0_22 = arith.constant 0 : index
    %76 = vector.load %arg12[%c128, %c0_22] : memref<640x128xf32, #tpu.memory_space<vmem>>, vector<80x128xf32>
    tpu.vector_store %arg12[%c128, %c0_22], %75 {strides = array<i32>} : memref<640x128xf32, #tpu.memory_space<vmem>>, vector<80x128xf32>,
    %c2_i32_23 = arith.constant 2 : i32
    %77 = arith.muli %arg0, %c2_i32_23 : i32
    %c1_i32 = arith.constant 1 : i32
    %78 = arith.addi %77, %c1_i32 : i32
    %79 = arith.index_cast %78 : i32 to index
    %c0_24 = arith.constant 0 : index
    %80 = memref.load %arg2[%79, %c0_24] : memref<4x4xf32, #tpu.memory_space<smem>>
    %81 = arith.index_cast %78 : i32 to index
    %c1_25 = arith.constant 1 : index
    %82 = memref.load %arg2[%81, %c1_25] : memref<4x4xf32, #tpu.memory_space<smem>>
    %83 = arith.index_cast %78 : i32 to index
    %c2_26 = arith.constant 2 : index
    %84 = memref.load %arg2[%83, %c2_26] : memref<4x4xf32, #tpu.memory_space<smem>>
    %85 = arith.index_cast %78 : i32 to index
    %c3_27 = arith.constant 3 : index
    %86 = memref.load %arg2[%85, %c3_27] : memref<4x4xf32, #tpu.memory_space<smem>>
    %87 = vector.extract_strided_slice %0 {offsets = [1, 0], sizes = [1, 128], strides = [1, 1]} : vector<2x128xf32> to vector<1x128xf32>
    %88 = vector.extract_strided_slice %1 {offsets = [1, 0, 0], sizes = [1, 8, 1], strides = [1, 1, 1]} : vector<2x8x1xf32> to vector<1x8x1xf32>
    %89 = vector.shape_cast %88 : vector<1x8x1xf32> to vector<8x1xf32>
    %90 = vector.broadcast %87 : vector<1x128xf32> to vector<8x128xf32>
    %91 = vector.broadcast %89 : vector<8x1xf32> to vector<8x128xf32>
    %92 = arith.subf %90, %91 : vector<8x128xf32>
    %93 = arith.mulf %92, %92 : vector<8x128xf32>
    %cst_28 = arith.constant 0.000000e+00 : f32
    %94 = arith.subf %cst_28, %80 : f32
    %95 = vector.broadcast %94 : f32 to vector<8x128xf32>
    %96 = arith.mulf %95, %93 : vector<8x128xf32>
    %97 = math.exp %96 : vector<8x128xf32>
    %98 = vector.broadcast %82 : f32 to vector<8x128xf32>
    %99 = arith.mulf %98, %92 : vector<8x128xf32>
    %100 = vector.extract_strided_slice %3 {offsets = [1, 0, 0], sizes = [1, 8, 1], strides = [1, 1, 1]} : vector<2x8x1xf32> to vector<1x8x1xf32>
    %101 = vector.shape_cast %100 : vector<1x8x1xf32> to vector<8x1xf32>
    %102 = vector.shape_cast %101 : vector<8x1xf32> to vector<8x1x1xf32>
    %103 = vector.shape_cast %99 : vector<8x128xf32> to vector<1x8x128xf32>
    %104 = vector.broadcast %102 : vector<8x1x1xf32> to vector<8x8x128xf32>
    %105 = vector.broadcast %103 : vector<1x8x128xf32> to vector<8x8x128xf32>
    %106 = arith.mulf %104, %105 : vector<8x8x128xf32>
    %107 = vector.shape_cast %97 : vector<8x128xf32> to vector<1x8x128xf32>
    %108 = math.cos %106 : vector<8x8x128xf32>
    %109 = vector.broadcast %107 : vector<1x8x128xf32> to vector<8x8x128xf32>
    %110 = arith.mulf %109, %108 : vector<8x8x128xf32>
    %111 = vector.shape_cast %110 : vector<8x8x128xf32> to vector<64x128xf32>
    %c208 = arith.constant 208 : index
    %c0_29 = arith.constant 0 : index
    %112 = vector.load %arg12[%c208, %c0_29] : memref<640x128xf32, #tpu.memory_space<vmem>>, vector<64x128xf32>
    tpu.vector_store %arg12[%c208, %c0_29], %111 {strides = array<i32>} : memref<640x128xf32, #tpu.memory_space<vmem>>, vector<64x128xf32>,
    %113 = vector.shape_cast %97 : vector<8x128xf32> to vector<1x8x128xf32>
    %114 = math.sin %106 : vector<8x8x128xf32>
    %115 = vector.broadcast %113 : vector<1x8x128xf32> to vector<8x8x128xf32>
    %116 = arith.mulf %115, %114 : vector<8x8x128xf32>
    %117 = vector.shape_cast %116 : vector<8x8x128xf32> to vector<64x128xf32>
    %c272 = arith.constant 272 : index
    %c0_30 = arith.constant 0 : index
    %118 = vector.load %arg12[%c272, %c0_30] : memref<640x128xf32, #tpu.memory_space<vmem>>, vector<64x128xf32>
    tpu.vector_store %arg12[%c272, %c0_30], %117 {strides = array<i32>} : memref<640x128xf32, #tpu.memory_space<vmem>>, vector<64x128xf32>,
    %119 = vector.extract_strided_slice %5 {offsets = [1, 0, 0], sizes = [1, 10, 1], strides = [1, 1, 1]} : vector<2x10x1xf32> to vector<1x10x1xf32>
    %120 = vector.shape_cast %119 : vector<1x10x1xf32> to vector<10x1xf32>
    %121 = vector.shape_cast %120 : vector<10x1xf32> to vector<10x1x1xf32>
    %122 = vector.shape_cast %92 : vector<8x128xf32> to vector<1x8x128xf32>
    %123 = vector.broadcast %84 : f32 to vector<1x8x128xf32>
    %124 = arith.mulf %123, %122 : vector<1x8x128xf32>
    %125 = vector.broadcast %121 : vector<10x1x1xf32> to vector<10x8x128xf32>
    %126 = vector.broadcast %124 : vector<1x8x128xf32> to vector<10x8x128xf32>
    %127 = arith.addf %125, %126 : vector<10x8x128xf32>
    %128 = arith.mulf %127, %127 : vector<10x8x128xf32>
    %129 = vector.broadcast %86 : f32 to vector<10x8x128xf32>
    %130 = arith.mulf %128, %129 : vector<10x8x128xf32>
    %131 = vector.extract_strided_slice %7 {offsets = [1, 0, 0], sizes = [1, 10, 1], strides = [1, 1, 1]} : vector<2x10x1xf32> to vector<1x10x1xf32>
    %132 = vector.shape_cast %131 : vector<1x10x1xf32> to vector<10x1xf32>
    %133 = vector.shape_cast %132 : vector<10x1xf32> to vector<10x1x1xf32>
    %134 = vector.broadcast %133 : vector<10x1x1xf32> to vector<10x8x128xf32>
    %135 = arith.addf %130, %134 : vector<10x8x128xf32>
    %136 = vector.shape_cast %93 : vector<8x128xf32> to vector<1x8x128xf32>
    %137 = vector.broadcast %84 : f32 to vector<1x8x128xf32>
    %138 = arith.mulf %137, %136 : vector<1x8x128xf32>
    %139 = vector.broadcast %138 : vector<1x8x128xf32> to vector<10x8x128xf32>
    %140 = arith.subf %135, %139 : vector<10x8x128xf32>
    %141 = math.exp %140 : vector<10x8x128xf32>
    %142 = vector.shape_cast %141 : vector<10x8x128xf32> to vector<80x128xf32>
    %c336 = arith.constant 336 : index
    %c0_31 = arith.constant 0 : index
    %143 = vector.load %arg12[%c336, %c0_31] : memref<640x128xf32, #tpu.memory_space<vmem>>, vector<80x128xf32>
    tpu.vector_store %arg12[%c336, %c0_31], %142 {strides = array<i32>} : memref<640x128xf32, #tpu.memory_space<vmem>>, vector<80x128xf32>,
    %c0_32 = arith.constant 0 : index
    %c0_33 = arith.constant 0 : index
    %c0_34 = arith.constant 0 : index
    %c0_35 = arith.constant 0 : index
    %144 = vector.load %arg8[%c0_32, %c0_33, %c0_34, %c0_35] : memref<3x2x16x1xf32, #tpu.memory_space<vmem>>, vector<3x2x16x1xf32>
    %c0_36 = arith.constant 0 : index
    %c0_37 = arith.constant 0 : index
    %c0_38 = arith.constant 0 : index
    %c0_39 = arith.constant 0 : index
    %145 = vector.load %arg9[%c0_36, %c0_37, %c0_38, %c0_39] : memref<3x2x16x1xf32, #tpu.memory_space<vmem>>, vector<3x2x16x1xf32>
    %146 = vector.extract_strided_slice %144 {offsets = [0, 0, 0, 0], sizes = [1, 1, 16, 1], strides = [1, 1, 1, 1]} : vector<3x2x16x1xf32> to vector<1x1x16x1xf32>
    %147 = vector.shape_cast %146 : vector<1x1x16x1xf32> to vector<16x1xf32>
    %148 = vector.extract_strided_slice %0 {offsets = [0, 0], sizes = [1, 128], strides = [1, 1]} : vector<2x128xf32> to vector<1x128xf32>
    %149 = vector.broadcast %147 : vector<16x1xf32> to vector<16x128xf32>
    %150 = vector.broadcast %148 : vector<1x128xf32> to vector<16x128xf32>
    %151 = arith.mulf %149, %150 : vector<16x128xf32>
    %152 = vector.extract_strided_slice %145 {offsets = [0, 0, 0, 0], sizes = [1, 1, 16, 1], strides = [1, 1, 1, 1]} : vector<3x2x16x1xf32> to vector<1x1x16x1xf32>
    %153 = vector.shape_cast %152 : vector<1x1x16x1xf32> to vector<16x1xf32>
    %154 = vector.broadcast %153 : vector<16x1xf32> to vector<16x128xf32>
    %155 = arith.addf %151, %154 : vector<16x128xf32>
    %156 = math.cos %155 : vector<16x128xf32>
    %c416 = arith.constant 416 : index
    %c0_40 = arith.constant 0 : index
    %157 = vector.load %arg12[%c416, %c0_40] : memref<640x128xf32, #tpu.memory_space<vmem>>, vector<16x128xf32>
    tpu.vector_store %arg12[%c416, %c0_40], %156 {strides = array<i32>} : memref<640x128xf32, #tpu.memory_space<vmem>>, vector<16x128xf32>,
    %158 = math.sin %155 : vector<16x128xf32>
    %c432 = arith.constant 432 : index
    %c0_41 = arith.constant 0 : index
    %159 = vector.load %arg12[%c432, %c0_41] : memref<640x128xf32, #tpu.memory_space<vmem>>, vector<16x128xf32>
    tpu.vector_store %arg12[%c432, %c0_41], %158 {strides = array<i32>} : memref<640x128xf32, #tpu.memory_space<vmem>>, vector<16x128xf32>,
    %160 = vector.extract_strided_slice %144 {offsets = [0, 1, 0, 0], sizes = [1, 1, 16, 1], strides = [1, 1, 1, 1]} : vector<3x2x16x1xf32> to vector<1x1x16x1xf32>
    %161 = vector.shape_cast %160 : vector<1x1x16x1xf32> to vector<16x1xf32>
    %162 = vector.extract_strided_slice %0 {offsets = [1, 0], sizes = [1, 128], strides = [1, 1]} : vector<2x128xf32> to vector<1x128xf32>
    %163 = vector.broadcast %161 : vector<16x1xf32> to vector<16x128xf32>
    %164 = vector.broadcast %162 : vector<1x128xf32> to vector<16x128xf32>
    %165 = arith.mulf %163, %164 : vector<16x128xf32>
    %166 = vector.extract_strided_slice %145 {offsets = [0, 1, 0, 0], sizes = [1, 1, 16, 1], strides = [1, 1, 1, 1]} : vector<3x2x16x1xf32> to vector<1x1x16x1xf32>
    %167 = vector.shape_cast %166 : vector<1x1x16x1xf32> to vector<16x1xf32>
    %168 = vector.broadcast %167 : vector<16x1xf32> to vector<16x128xf32>
    %169 = arith.addf %165, %168 : vector<16x128xf32>
    %170 = math.cos %169 : vector<16x128xf32>
    %c448 = arith.constant 448 : index
    %c0_42 = arith.constant 0 : index
    %171 = vector.load %arg12[%c448, %c0_42] : memref<640x128xf32, #tpu.memory_space<vmem>>, vector<16x128xf32>
    tpu.vector_store %arg12[%c448, %c0_42], %170 {strides = array<i32>} : memref<640x128xf32, #tpu.memory_space<vmem>>, vector<16x128xf32>,
    %172 = math.sin %169 : vector<16x128xf32>
    %c464 = arith.constant 464 : index
    %c0_43 = arith.constant 0 : index
    %173 = vector.load %arg12[%c464, %c0_43] : memref<640x128xf32, #tpu.memory_space<vmem>>, vector<16x128xf32>
    tpu.vector_store %arg12[%c464, %c0_43], %172 {strides = array<i32>} : memref<640x128xf32, #tpu.memory_space<vmem>>, vector<16x128xf32>,
    %174 = vector.extract_strided_slice %144 {offsets = [1, 0, 0, 0], sizes = [1, 1, 16, 1], strides = [1, 1, 1, 1]} : vector<3x2x16x1xf32> to vector<1x1x16x1xf32>
    %175 = vector.shape_cast %174 : vector<1x1x16x1xf32> to vector<16x1xf32>
    %176 = vector.extract_strided_slice %0 {offsets = [0, 0], sizes = [1, 128], strides = [1, 1]} : vector<2x128xf32> to vector<1x128xf32>
    %177 = vector.broadcast %175 : vector<16x1xf32> to vector<16x128xf32>
    %178 = vector.broadcast %176 : vector<1x128xf32> to vector<16x128xf32>
    %179 = arith.mulf %177, %178 : vector<16x128xf32>
    %180 = vector.extract_strided_slice %145 {offsets = [1, 0, 0, 0], sizes = [1, 1, 16, 1], strides = [1, 1, 1, 1]} : vector<3x2x16x1xf32> to vector<1x1x16x1xf32>
    %181 = vector.shape_cast %180 : vector<1x1x16x1xf32> to vector<16x1xf32>
    %182 = vector.broadcast %181 : vector<16x1xf32> to vector<16x128xf32>
    %183 = arith.addf %179, %182 : vector<16x128xf32>
    %184 = math.cos %183 : vector<16x128xf32>
    %c480 = arith.constant 480 : index
    %c0_44 = arith.constant 0 : index
    %185 = vector.load %arg12[%c480, %c0_44] : memref<640x128xf32, #tpu.memory_space<vmem>>, vector<16x128xf32>
    tpu.vector_store %arg12[%c480, %c0_44], %184 {strides = array<i32>} : memref<640x128xf32, #tpu.memory_space<vmem>>, vector<16x128xf32>,
    %186 = math.sin %183 : vector<16x128xf32>
    %c496 = arith.constant 496 : index
    %c0_45 = arith.constant 0 : index
    %187 = vector.load %arg12[%c496, %c0_45] : memref<640x128xf32, #tpu.memory_space<vmem>>, vector<16x128xf32>
    tpu.vector_store %arg12[%c496, %c0_45], %186 {strides = array<i32>} : memref<640x128xf32, #tpu.memory_space<vmem>>, vector<16x128xf32>,
    %188 = vector.extract_strided_slice %144 {offsets = [1, 1, 0, 0], sizes = [1, 1, 16, 1], strides = [1, 1, 1, 1]} : vector<3x2x16x1xf32> to vector<1x1x16x1xf32>
    %189 = vector.shape_cast %188 : vector<1x1x16x1xf32> to vector<16x1xf32>
    %190 = vector.extract_strided_slice %0 {offsets = [1, 0], sizes = [1, 128], strides = [1, 1]} : vector<2x128xf32> to vector<1x128xf32>
    %191 = vector.broadcast %189 : vector<16x1xf32> to vector<16x128xf32>
    %192 = vector.broadcast %190 : vector<1x128xf32> to vector<16x128xf32>
    %193 = arith.mulf %191, %192 : vector<16x128xf32>
    %194 = vector.extract_strided_slice %145 {offsets = [1, 1, 0, 0], sizes = [1, 1, 16, 1], strides = [1, 1, 1, 1]} : vector<3x2x16x1xf32> to vector<1x1x16x1xf32>
    %195 = vector.shape_cast %194 : vector<1x1x16x1xf32> to vector<16x1xf32>
    %196 = vector.broadcast %195 : vector<16x1xf32> to vector<16x128xf32>
    %197 = arith.addf %193, %196 : vector<16x128xf32>
    %198 = math.cos %197 : vector<16x128xf32>
    %c512 = arith.constant 512 : index
    %c0_46 = arith.constant 0 : index
    %199 = vector.load %arg12[%c512, %c0_46] : memref<640x128xf32, #tpu.memory_space<vmem>>, vector<16x128xf32>
    tpu.vector_store %arg12[%c512, %c0_46], %198 {strides = array<i32>} : memref<640x128xf32, #tpu.memory_space<vmem>>, vector<16x128xf32>,
    %200 = math.sin %197 : vector<16x128xf32>
    %c528 = arith.constant 528 : index
    %c0_47 = arith.constant 0 : index
    %201 = vector.load %arg12[%c528, %c0_47] : memref<640x128xf32, #tpu.memory_space<vmem>>, vector<16x128xf32>
    tpu.vector_store %arg12[%c528, %c0_47], %200 {strides = array<i32>} : memref<640x128xf32, #tpu.memory_space<vmem>>, vector<16x128xf32>,
    %202 = vector.extract_strided_slice %144 {offsets = [2, 0, 0, 0], sizes = [1, 1, 16, 1], strides = [1, 1, 1, 1]} : vector<3x2x16x1xf32> to vector<1x1x16x1xf32>
    %203 = vector.shape_cast %202 : vector<1x1x16x1xf32> to vector<16x1xf32>
    %204 = vector.extract_strided_slice %0 {offsets = [0, 0], sizes = [1, 128], strides = [1, 1]} : vector<2x128xf32> to vector<1x128xf32>
    %205 = vector.broadcast %203 : vector<16x1xf32> to vector<16x128xf32>
    %206 = vector.broadcast %204 : vector<1x128xf32> to vector<16x128xf32>
    %207 = arith.mulf %205, %206 : vector<16x128xf32>
    %208 = vector.extract_strided_slice %145 {offsets = [2, 0, 0, 0], sizes = [1, 1, 16, 1], strides = [1, 1, 1, 1]} : vector<3x2x16x1xf32> to vector<1x1x16x1xf32>
    %209 = vector.shape_cast %208 : vector<1x1x16x1xf32> to vector<16x1xf32>
    %210 = vector.broadcast %209 : vector<16x1xf32> to vector<16x128xf32>
    %211 = arith.addf %207, %210 : vector<16x128xf32>
    %212 = math.cos %211 : vector<16x128xf32>
    %c544 = arith.constant 544 : index
    %c0_48 = arith.constant 0 : index
    %213 = vector.load %arg12[%c544, %c0_48] : memref<640x128xf32, #tpu.memory_space<vmem>>, vector<16x128xf32>
    tpu.vector_store %arg12[%c544, %c0_48], %212 {strides = array<i32>} : memref<640x128xf32, #tpu.memory_space<vmem>>, vector<16x128xf32>,
    %214 = math.sin %211 : vector<16x128xf32>
    %c560 = arith.constant 560 : index
    %c0_49 = arith.constant 0 : index
    %215 = vector.load %arg12[%c560, %c0_49] : memref<640x128xf32, #tpu.memory_space<vmem>>, vector<16x128xf32>
    tpu.vector_store %arg12[%c560, %c0_49], %214 {strides = array<i32>} : memref<640x128xf32, #tpu.memory_space<vmem>>, vector<16x128xf32>,
    %216 = vector.extract_strided_slice %144 {offsets = [2, 1, 0, 0], sizes = [1, 1, 16, 1], strides = [1, 1, 1, 1]} : vector<3x2x16x1xf32> to vector<1x1x16x1xf32>
    %217 = vector.shape_cast %216 : vector<1x1x16x1xf32> to vector<16x1xf32>
    %218 = vector.extract_strided_slice %0 {offsets = [1, 0], sizes = [1, 128], strides = [1, 1]} : vector<2x128xf32> to vector<1x128xf32>
    %219 = vector.broadcast %217 : vector<16x1xf32> to vector<16x128xf32>
    %220 = vector.broadcast %218 : vector<1x128xf32> to vector<16x128xf32>
    %221 = arith.mulf %219, %220 : vector<16x128xf32>
    %222 = vector.extract_strided_slice %145 {offsets = [2, 1, 0, 0], sizes = [1, 1, 16, 1], strides = [1, 1, 1, 1]} : vector<3x2x16x1xf32> to vector<1x1x16x1xf32>
    %223 = vector.shape_cast %222 : vector<1x1x16x1xf32> to vector<16x1xf32>
    %224 = vector.broadcast %223 : vector<16x1xf32> to vector<16x128xf32>
    %225 = arith.addf %221, %224 : vector<16x128xf32>
    %226 = math.cos %225 : vector<16x128xf32>
    %c576 = arith.constant 576 : index
    %c0_50 = arith.constant 0 : index
    %227 = vector.load %arg12[%c576, %c0_50] : memref<640x128xf32, #tpu.memory_space<vmem>>, vector<16x128xf32>
    tpu.vector_store %arg12[%c576, %c0_50], %226 {strides = array<i32>} : memref<640x128xf32, #tpu.memory_space<vmem>>, vector<16x128xf32>,
    %228 = math.sin %225 : vector<16x128xf32>
    %c592 = arith.constant 592 : index
    %c0_51 = arith.constant 0 : index
    %229 = vector.load %arg12[%c592, %c0_51] : memref<640x128xf32, #tpu.memory_space<vmem>>, vector<16x128xf32>
    tpu.vector_store %arg12[%c592, %c0_51], %228 {strides = array<i32>} : memref<640x128xf32, #tpu.memory_space<vmem>>, vector<16x128xf32>,
    %c0_52 = arith.constant 0 : index
    %c0_53 = arith.constant 0 : index
    %c0_54 = arith.constant 0 : index
    %230 = vector.load %arg10[%c0_52, %c0_53, %c0_54] : memref<1x8x640xf32, #tpu.memory_space<vmem>>, vector<1x8x640xf32>
    %231 = vector.shape_cast %230 : vector<1x8x640xf32> to vector<8x640xf32>
    %c0_55 = arith.constant 0 : index
    %c0_56 = arith.constant 0 : index
    %232 = vector.load %arg12[%c0_55, %c0_56] : memref<640x128xf32, #tpu.memory_space<vmem>>, vector<640x128xf32>
    %cst_57 = arith.constant dense<0.000000e+00> : vector<8x128xf32>
    %233 = tpu.matmul %231, %232, %cst_57 {dimension_numbers = #tpu.dot_dimension_numbers<[1], [0], [0], [1], [0, 0, 1, 1], [], []>} : vector<8x640xf32>, vector<640x128xf32>, vector<8x128xf32> -> vector<8x128xf32>
    %234 = vector.shape_cast %233 : vector<8x128xf32> to vector<1x8x128xf32>
    %c0_58 = arith.constant 0 : index
    %c0_59 = arith.constant 0 : index
    %c0_60 = arith.constant 0 : index
    %235 = vector.load %arg11[%c0_58, %c0_59, %c0_60] : memref<1x8x128xf32, #tpu.memory_space<vmem>>, vector<1x8x128xf32>
    tpu.vector_store %arg11[%c0_58, %c0_59, %c0_60], %234 {strides = array<i32>} : memref<1x8x128xf32, #tpu.memory_space<vmem>>, vector<1x8x128xf32>,
    return
  }
  func.func @transform_0(%arg0: i32, %arg1: i32) -> (i32, i32) {
    %c0_i32 = arith.constant 0 : i32
    %c0_i32_0 = arith.constant 0 : i32
    %c0_i32_1 = arith.constant 0 : i32
    return %c0_i32, %c0_i32_0 : i32, i32
  }
  func.func @transform_1(%arg0: i32, %arg1: i32) -> (i32, i32) {
    %c0_i32 = arith.constant 0 : i32
    %c0_i32_0 = arith.constant 0 : i32
    return %c0_i32, %arg1 : i32, i32
  }
  func.func @transform_2(%arg0: i32, %arg1: i32) -> (i32, i32, i32) {
    %c0_i32 = arith.constant 0 : i32
    %c0_i32_0 = arith.constant 0 : i32
    %c0_i32_1 = arith.constant 0 : i32
    %c0_i32_2 = arith.constant 0 : i32
    return %c0_i32, %c0_i32_0, %c0_i32_1 : i32, i32, i32
  }
  func.func @transform_3(%arg0: i32, %arg1: i32) -> (i32, i32, i32, i32) {
    %c0_i32 = arith.constant 0 : i32
    %c0_i32_0 = arith.constant 0 : i32
    %c0_i32_1 = arith.constant 0 : i32
    %c0_i32_2 = arith.constant 0 : i32
    return %arg0, %c0_i32, %c0_i32_0, %c0_i32_1 : i32, i32, i32, i32
  }
  func.func @transform_4(%arg0: i32, %arg1: i32) -> (i32, i32, i32, i32) {
    %c0_i32 = arith.constant 0 : i32
    %c0_i32_0 = arith.constant 0 : i32
    %c0_i32_1 = arith.constant 0 : i32
    %c0_i32_2 = arith.constant 0 : i32
    return %arg0, %c0_i32, %c0_i32_0, %c0_i32_1 : i32, i32, i32, i32
  }
  func.func @transform_5(%arg0: i32, %arg1: i32) -> (i32, i32, i32, i32) {
    %c0_i32 = arith.constant 0 : i32
    %c0_i32_0 = arith.constant 0 : i32
    %c0_i32_1 = arith.constant 0 : i32
    %c0_i32_2 = arith.constant 0 : i32
    return %arg0, %c0_i32, %c0_i32_0, %c0_i32_1 : i32, i32, i32, i32
  }
  func.func @transform_6(%arg0: i32, %arg1: i32) -> (i32, i32, i32, i32) {
    %c0_i32 = arith.constant 0 : i32
    %c0_i32_0 = arith.constant 0 : i32
    %c0_i32_1 = arith.constant 0 : i32
    %c0_i32_2 = arith.constant 0 : i32
    %c0_i32_3 = arith.constant 0 : i32
    return %c0_i32, %c0_i32_0, %c0_i32_1, %c0_i32_2 : i32, i32, i32, i32
  }
  func.func @transform_7(%arg0: i32, %arg1: i32) -> (i32, i32, i32, i32) {
    %c0_i32 = arith.constant 0 : i32
    %c0_i32_0 = arith.constant 0 : i32
    %c0_i32_1 = arith.constant 0 : i32
    %c0_i32_2 = arith.constant 0 : i32
    %c0_i32_3 = arith.constant 0 : i32
    return %c0_i32, %c0_i32_0, %c0_i32_1, %c0_i32_2 : i32, i32, i32, i32
  }
  func.func @transform_8(%arg0: i32, %arg1: i32) -> (i32, i32, i32) {
    %c0_i32 = arith.constant 0 : i32
    %c0_i32_0 = arith.constant 0 : i32
    %c0_i32_1 = arith.constant 0 : i32
    return %arg0, %c0_i32, %c0_i32_0 : i32, i32, i32
  }
  func.func @transform_9(%arg0: i32, %arg1: i32) -> (i32, i32, i32) {
    %c0_i32 = arith.constant 0 : i32
    %c0_i32_0 = arith.constant 0 : i32
    return %arg0, %c0_i32, %arg1 : i32, i32, i32
  }
}

</mosaic_0001>

<llo_original>
// kernel: tpu_custom_call.1
$region0: #{tpu_custom_call.1}
  #allocation0 [shape = 'u32[]', space=smem, size = 0x4, offset = 0x4, fixed_abs, tag = 'smem constant byte address 0x4 - core index']
  #allocation1 [shape = 'u32[72,128]{1,0:T(1,128)}', space=vmem, size = 0x9000, scoped, tag = 'internal scratch']
  #allocation2 [shape = 'f32[640,128]{1,0:T(8,128)}', space=vmem, size = 0x50000, scoped, tag = 'scratch operand']
  %s0 = inlined_call_operand.vmem [shape: f32[4,4], index: 0, kind: input, shape index: {}]
  %s1 = inlined_call_operand.vmem [shape: f32[2,128], index: 1, kind: input, shape index: {}]
  %s2 = inlined_call_operand.vmem [shape: f32[2,8,1], index: 2, kind: input, shape index: {}]
  %s3 = inlined_call_operand.vmem [shape: f32[2,2,8,1], index: 3, kind: input, shape index: {}]
  %s4 = inlined_call_operand.vmem [shape: f32[2,2,10,1], index: 4, kind: input, shape index: {}]
  %s5 = inlined_call_operand.vmem [shape: f32[2,2,10,1], index: 5, kind: input, shape index: {}]
  %s6 = inlined_call_operand.vmem [shape: f32[3,2,16,1], index: 6, kind: input, shape index: {}]
  %s7 = inlined_call_operand.vmem [shape: f32[3,2,16,1], index: 7, kind: input, shape index: {}]
  %s8 = inlined_call_operand.vmem [shape: f32[2,8,640], index: 8, kind: input, shape index: {}]
  %s9 = inlined_call_operand.hbm [shape: f32[2,8,128], index: 9, kind: output, shape index: {}]
  %s10 = sld [smem:[#allocation0]]
  $region73: #{tpu_custom_call.1} parent=0
    _
  %s12 = ssub.s32 1, %s10
  %s13 = scalar_select 0, %s12, %s10
  $region1: #{tpu_custom_call.1} parent=0
    #allocation3 [shape = 'u8[2048]{0}', space=smem, size = 0x800, scoped, tag = 'input window, operand 0, single buffered']
    #allocation4 [shape = 's32[2]{0}', space=sflag, size = 0x8, scoped, tag = 'scoped memory for tpu_custom_call.1']
    #allocation5 [shape = 's32[2]{0}', space=sflag, size = 0x8, scoped, tag = 'scoped memory for tpu_custom_call.1']
    #allocation6 [shape = 'u8[8192]{0}', space=vmem, size = 0x2000, scoped, tag = 'output window, operand 0']
    %14 = vsyncpa [#allocation5], 0
    %15 = vsyncpa [#allocation4], 0
    %s16 = scalar_lea.sflag [#allocation4], 1
    %17 = vsyncpa %s16, 0
    loop: start=0, step=1, limit=4
    $region2: #{tpu_custom_call.1} parent=1 // loop_pre_header
      _
    $region3: #{tpu_custom_call.1} parent=1 // loop_header
      %s19 = sphi 0, %s23
      %p20 = scmp.ge.s32.totalorder %s19, 4
      %s26 = sphi 0, %s38
      %s27 = sphi 0, %s34
      %s28 = sphi 0, %s26
      %s29 = sphi 0, %s27
      %s30 = sphi 0, %s28
      %s31 = sphi 0, %s29
      %s39 = sphi 0, %s39
      %s41 = sphi 0, %s39
      %s42 = sphi 0, %s41
      %s56 = sphi 0, %s42
      %s62 = sphi 0, %s64
      %s65 = sphi 0, %s62
      %s66 = sphi 0, %s65
      %s82 = sphi 0, %s66
      %s86 = sphi 0, %s86
      %s88 = sphi 0, %s86
      %s89 = sphi 0, %s88
      %s103 = sphi 0, %s89
      %s109 = sphi 0, %s111
      %s112 = sphi 0, %s109
      %s113 = sphi 0, %s112
      %s129 = sphi 0, %s113
      %s135 = sphi 0, %s137
      %s138 = sphi 0, %s135
      %s139 = sphi 0, %s138
      %s155 = sphi 0, %s139
      %s161 = sphi 0, %s163
      %s164 = sphi 0, %s161
      %s165 = sphi 0, %s164
      %s181 = sphi 0, %s165
      %s185 = sphi 0, %s185
      %s187 = sphi 0, %s185
      %s188 = sphi 0, %s187
      %s202 = sphi 0, %s188
      %s206 = sphi 0, %s206
      %s208 = sphi 0, %s206
      %s209 = sphi 0, %s208
      %s223 = sphi 0, %s209
      %s229 = sphi 0, %s231
      %s232 = sphi 0, %s229
      %s233 = sphi 0, %s232
      %s249 = sphi 0, %s233
      %s257 = sphi 0, %s259
      %s260 = sphi 0, %s257
      %s261 = sphi 0, %s260
      %s277 = sphi 0, %s261
    $region4: #{tpu_custom_call.1} parent=1 // loop_header_branch
      %22 = sbr.rel (%p20) target = $region8
    $region5: #{tpu_custom_call.1} parent=1 // loop_body
      %s24 = ssub.s32 %s19, 1
      %s25 = ssub.s32 %s19, 2
      %s32 = sadd.s32 1, %s27
      %p33 = scmp.ge.s32.totalorder %s32, 1
      %s34 = scalar_select %p33, 0, %s32
      %s35 = sadd.s32 1, %s26
      %s36 = scalar_select %p33, %s35, %s26
      %p37 = scmp.ge.s32.totalorder %s36, 2
      %s38 = scalar_select %p37, 0, %s36
      %s40 = sadd.s32 %s39, 1
      %p43 = scmp.eq.s32.totalorder %s19, 1
      %p44 = scmp.ne.s32.totalorder %s39, %s41
      %p45 = scmp.eq.s32.totalorder %s19, 0
      %p46 = por %p44, %p45
      %p47 = scmp.ne.s32.totalorder %s39, %s41
      %p48 = scmp.eq.s32.totalorder %s24, 1
      %p49 = por %p47, %p48
      %p50 = scmp.ne.s32.totalorder %s41, %s42
      %p51 = scmp.eq.s32.totalorder %s24, 0
      %p52 = por %p50, %p51
      %p53 = scmp.ne.s32.totalorder %s41, %s42
      %p54 = scmp.eq.s32.totalorder %s25, 1
      %p55 = por %p53, %p54
      %p57 = scmp.ne.s32.totalorder %s42, %s56
      %p58 = scmp.eq.s32.totalorder %s25, 0
      %p59 = por %p57, %p58
      %s60 = ssub.s32 %s27, %s34
      %p61 = scmp.eq.s32.totalorder %s60, 0
      %s63 = sadd.s32 %s62, 1
      %s64 = scalar_select %p61, %s62, %s63
      %p67 = pneg %p61
      %p68 = scmp.eq.s32.totalorder %s19, 1
      %p69 = por %p67, %p68
      %p70 = scmp.ne.s32.totalorder %s62, %s65
      %p71 = scmp.eq.s32.totalorder %s19, 0
      %p72 = por %p70, %p71
      %p73 = scmp.ne.s32.totalorder %s62, %s65
      %p74 = scmp.eq.s32.totalorder %s24, 1
      %p75 = por %p73, %p74
      %p76 = scmp.ne.s32.totalorder %s65, %s66
      %p77 = scmp.eq.s32.totalorder %s24, 0
      %p78 = por %p76, %p77
      %p79 = scmp.ne.s32.totalorder %s65, %s66
      %p80 = scmp.eq.s32.totalorder %s25, 1
      %p81 = por %p79, %p80
      %p83 = scmp.ne.s32.totalorder %s66, %s82
      %p84 = scmp.eq.s32.totalorder %s25, 0
      %p85 = por %p83, %p84
      %s87 = sadd.s32 %s86, 1
      %p90 = scmp.eq.s32.totalorder %s19, 1
      %p91 = scmp.ne.s32.totalorder %s86, %s88
      %p92 = scmp.eq.s32.totalorder %s19, 0
      %p93 = por %p91, %p92
      %p94 = scmp.ne.s32.totalorder %s86, %s88
      %p95 = scmp.eq.s32.totalorder %s24, 1
      %p96 = por %p94, %p95
      %p97 = scmp.ne.s32.totalorder %s88, %s89
      %p98 = scmp.eq.s32.totalorder %s24, 0
      %p99 = por %p97, %p98
      %p100 = scmp.ne.s32.totalorder %s88, %s89
      %p101 = scmp.eq.s32.totalorder %s25, 1
      %p102 = por %p100, %p101
      %p104 = scmp.ne.s32.totalorder %s89, %s103
      %p105 = scmp.eq.s32.totalorder %s25, 0
      %p106 = por %p104, %p105
      %s107 = ssub.s32 %s26, %s38
      %p108 = scmp.eq.s32.totalorder %s107, 0
      %s110 = sadd.s32 %s109, 1
      %s111 = scalar_select %p108, %s109, %s110
      %p114 = pneg %p108
      %p115 = scmp.eq.s32.totalorder %s19, 1
      %p116 = por %p114, %p115
      %p117 = scmp.ne.s32.totalorder %s109, %s112
      %p118 = scmp.eq.s32.totalorder %s19, 0
      %p119 = por %p117, %p118
      %p120 = scmp.ne.s32.totalorder %s109, %s112
      %p121 = scmp.eq.s32.totalorder %s24, 1
      %p122 = por %p120, %p121
      %p123 = scmp.ne.s32.totalorder %s112, %s113
      %p124 = scmp.eq.s32.totalorder %s24, 0
      %p125 = por %p123, %p124
      %p126 = scmp.ne.s32.totalorder %s112, %s113
      %p127 = scmp.eq.s32.totalorder %s25, 1
      %p128 = por %p126, %p127
      %p130 = scmp.ne.s32.totalorder %s113, %s129
      %p131 = scmp.eq.s32.totalorder %s25, 0
      %p132 = por %p130, %p131
      %s133 = ssub.s32 %s26, %s38
      %p134 = scmp.eq.s32.totalorder %s133, 0
      %s136 = sadd.s32 %s135, 1
      %s137 = scalar_select %p134, %s135, %s136
      %p140 = pneg %p134
      %p141 = scmp.eq.s32.totalorder %s19, 1
      %p142 = por %p140, %p141
      %p143 = scmp.ne.s32.totalorder %s135, %s138
      %p144 = scmp.eq.s32.totalorder %s19, 0
      %p145 = por %p143, %p144
      %p146 = scmp.ne.s32.totalorder %s135, %s138
      %p147 = scmp.eq.s32.totalorder %s24, 1
      %p148 = por %p146, %p147
      %p149 = scmp.ne.s32.totalorder %s138, %s139
      %p150 = scmp.eq.s32.totalorder %s24, 0
      %p151 = por %p149, %p150
      %p152 = scmp.ne.s32.totalorder %s138, %s139
      %p153 = scmp.eq.s32.totalorder %s25, 1
      %p154 = por %p152, %p153
      %p156 = scmp.ne.s32.totalorder %s139, %s155
      %p157 = scmp.eq.s32.totalorder %s25, 0
      %p158 = por %p156, %p157
      %s159 = ssub.s32 %s26, %s38
      %p160 = scmp.eq.s32.totalorder %s159, 0
      %s162 = sadd.s32 %s161, 1
      %s163 = scalar_select %p160, %s161, %s162
      %p166 = pneg %p160
      %p167 = scmp.eq.s32.totalorder %s19, 1
      %p168 = por %p166, %p167
      %p169 = scmp.ne.s32.totalorder %s161, %s164
      %p170 = scmp.eq.s32.totalorder %s19, 0
      %p171 = por %p169, %p170
      %p172 = scmp.ne.s32.totalorder %s161, %s164
      %p173 = scmp.eq.s32.totalorder %s24, 1
      %p174 = por %p172, %p173
      %p175 = scmp.ne.s32.totalorder %s164, %s165
      %p176 = scmp.eq.s32.totalorder %s24, 0
      %p177 = por %p175, %p176
      %p178 = scmp.ne.s32.totalorder %s164, %s165
      %p179 = scmp.eq.s32.totalorder %s25, 1
      %p180 = por %p178, %p179
      %p182 = scmp.ne.s32.totalorder %s165, %s181
      %p183 = scmp.eq.s32.totalorder %s25, 0
      %p184 = por %p182, %p183
      %s186 = sadd.s32 %s185, 1
      %p189 = scmp.eq.s32.totalorder %s19, 1
      %p190 = scmp.ne.s32.totalorder %s185, %s187
      %p191 = scmp.eq.s32.totalorder %s19, 0
      %p192 = por %p190, %p191
      %p193 = scmp.ne.s32.totalorder %s185, %s187
      %p194 = scmp.eq.s32.totalorder %s24, 1
      %p195 = por %p193, %p194
      %p196 = scmp.ne.s32.totalorder %s187, %s188
      %p197 = scmp.eq.s32.totalorder %s24, 0
      %p198 = por %p196, %p197
      %p199 = scmp.ne.s32.totalorder %s187, %s188
      %p200 = scmp.eq.s32.totalorder %s25, 1
      %p201 = por %p199, %p200
      %p203 = scmp.ne.s32.totalorder %s188, %s202
      %p204 = scmp.eq.s32.totalorder %s25, 0
      %p205 = por %p203, %p204
      %s207 = sadd.s32 %s206, 1
      %p210 = scmp.eq.s32.totalorder %s19, 1
      %p211 = scmp.ne.s32.totalorder %s206, %s208
      %p212 = scmp.eq.s32.totalorder %s19, 0
      %p213 = por %p211, %p212
      %p214 = scmp.ne.s32.totalorder %s206, %s208
      %p215 = scmp.eq.s32.totalorder %s24, 1
      %p216 = por %p214, %p215
      %p217 = scmp.ne.s32.totalorder %s208, %s209
      %p218 = scmp.eq.s32.totalorder %s24, 0
      %p219 = por %p217, %p218
      %p220 = scmp.ne.s32.totalorder %s208, %s209
      %p221 = scmp.eq.s32.totalorder %s25, 1
      %p222 = por %p220, %p221
      %p224 = scmp.ne.s32.totalorder %s209, %s223
      %p225 = scmp.eq.s32.totalorder %s25, 0
      %p226 = por %p224, %p225
      %s227 = ssub.s32 %s26, %s38
      %p228 = scmp.eq.s32.totalorder %s227, 0
      %s230 = sadd.s32 %s229, 1
      %s231 = scalar_select %p228, %s229, %s230
      %p234 = pneg %p228
      %p235 = scmp.eq.s32.totalorder %s19, 1
      %p236 = por %p234, %p235
      %p237 = scmp.ne.s32.totalorder %s229, %s232
      %p238 = scmp.eq.s32.totalorder %s19, 0
      %p239 = por %p237, %p238
      %p240 = scmp.ne.s32.totalorder %s229, %s232
      %p241 = scmp.eq.s32.totalorder %s24, 1
      %p242 = por %p240, %p241
      %p243 = scmp.ne.s32.totalorder %s232, %s233
      %p244 = scmp.eq.s32.totalorder %s24, 0
      %p245 = por %p243, %p244
      %p246 = scmp.ne.s32.totalorder %s232, %s233
      %p247 = scmp.eq.s32.totalorder %s25, 1
      %p248 = por %p246, %p247
      %p250 = scmp.ne.s32.totalorder %s233, %s249
      %p251 = scmp.eq.s32.totalorder %s25, 0
      %p252 = por %p250, %p251
      %s253 = ssub.s32 %s26, %s38
      %s254 = ssub.s32 %s27, %s34
      %s255 = sor.u32 %s253, %s254
      %p256 = scmp.eq.s32.totalorder %s255, 0
      %s258 = sadd.s32 %s257, 1
      %s259 = scalar_select %p256, %s257, %s258
      %p262 = pneg %p256
      %p263 = scmp.eq.s32.totalorder %s19, 1
      %p264 = por %p262, %p263
      %p265 = scmp.ne.s32.totalorder %s257, %s260
      %p266 = scmp.eq.s32.totalorder %s19, 0
      %p267 = por %p265, %p266
      %p268 = scmp.ne.s32.totalorder %s257, %s260
      %p269 = scmp.eq.s32.totalorder %s24, 1
      %p270 = por %p268, %p269
      %p271 = scmp.ne.s32.totalorder %s260, %s261
      %p272 = scmp.eq.s32.totalorder %s24, 0
      %p273 = por %p271, %p272
      %p274 = scmp.ne.s32.totalorder %s260, %s261
      %p275 = scmp.eq.s32.totalorder %s25, 1
      %p276 = por %p274, %p275
      %p278 = scmp.ne.s32.totalorder %s261, %s277
      %p279 = scmp.eq.s32.totalorder %s25, 0
      %p280 = por %p278, %p279
      %p281 = scmp.le.s32.totalorder 1, %s19
      %p282 = scmp.lt.s32.totalorder %s19, 3
      %p283 = pnand %p281, %p282
      %p284 = pneg %p283
      // Predicated region
      $region9: #{tpu_custom_call.1} parent=5 // pred_check
        _
      $region10: #{tpu_custom_call.1} parent=5 // pred_check_branch
        %286 = sbr.rel (%p283) target = $region12
      $region11: #{tpu_custom_call.1} parent=5 // pred_region
        %s287 = ssub.s32 %s19, 1
        // Predicated region
        $region13: #{tpu_custom_call.1} parent=11 // pred_check
          %p288 = pneg %p52
        $region14: #{tpu_custom_call.1} parent=11 // pred_check_branch
          %290 = sbr.rel (%p288) target = $region16
        $region15: #{tpu_custom_call.1} parent=11 // pred_region
          %292 = vsyncadd [#allocation5], 0
          %s294 = sshll.u32 %s0, 4
          %s295 = int_to_ptr.vmem [resolvable:$true] %s294
          %297 = dma.vmem_to_smem %s295, 64, [#allocation3], [#allocation5]
        $region16: #{tpu_custom_call.1} parent=11 // pred_fallthru
          _
        // Predicated region
        $region17: #{tpu_custom_call.1} parent=11 // pred_check
          %p298 = pneg %p78
        $region18: #{tpu_custom_call.1} parent=11 // pred_check_branch
          %300 = sbr.rel (%p298) target = $region20
        $region19: #{tpu_custom_call.1} parent=11 // pred_region
          %p301 = scmp.lt.s32.totalorder %s29, 0
          %s302 = scalar_select %p301, %s29, 0
          %s303 = smul.addr %s302, 2
          %s304 = scalar_lea.vmem %s1, %s303
        $region20: #{tpu_custom_call.1} parent=11 // pred_fallthru
          _
        // Predicated region
        $region21: #{tpu_custom_call.1} parent=11 // pred_check
          %p305 = pneg %p99
        $region22: #{tpu_custom_call.1} parent=11 // pred_check_branch
          %307 = sbr.rel (%p305) target = $region24
        $region23: #{tpu_custom_call.1} parent=11 // pred_region
          _
        $region24: #{tpu_custom_call.1} parent=11 // pred_fallthru
          _
        // Predicated region
        $region25: #{tpu_custom_call.1} parent=11 // pred_check
          %p308 = pneg %p198
        $region26: #{tpu_custom_call.1} parent=11 // pred_check_branch
          %310 = sbr.rel (%p308) target = $region28
        $region27: #{tpu_custom_call.1} parent=11 // pred_region
          _
        $region28: #{tpu_custom_call.1} parent=11 // pred_fallthru
          _
        // Predicated region
        $region29: #{tpu_custom_call.1} parent=11 // pred_check
          %p311 = pneg %p219
        $region30: #{tpu_custom_call.1} parent=11 // pred_check_branch
          %313 = sbr.rel (%p311) target = $region32
        $region31: #{tpu_custom_call.1} parent=11 // pred_region
          _
        $region32: #{tpu_custom_call.1} parent=11 // pred_fallthru
          _
      $region12: #{tpu_custom_call.1} parent=5 // pred_fallthru
        _
      %p314 = scmp.lt.s32.totalorder %s19, 2
      // Predicated region
      $region33: #{tpu_custom_call.1} parent=5 // pred_check
        %p315 = pneg %p314
      $region34: #{tpu_custom_call.1} parent=5 // pred_check_branch
        %317 = sbr.rel (%p315) target = $region36
      $region35: #{tpu_custom_call.1} parent=5 // pred_region
        // Predicated region
        $region37: #{tpu_custom_call.1} parent=35 // pred_check
          %p318 = pneg %p119
        $region38: #{tpu_custom_call.1} parent=35 // pred_check_branch
          %320 = sbr.rel (%p318) target = $region40
        $region39: #{tpu_custom_call.1} parent=35 // pred_region
          %p321 = scmp.lt.s32.totalorder %s26, 1
          %s322 = scalar_select %p321, %s26, 1
          %s323 = smul.addr %s322, 2
          %s324 = smul.addr %s323, 8
          %s325 = scalar_lea.vmem %s3, %s324
        $region40: #{tpu_custom_call.1} parent=35 // pred_fallthru
          _
        // Predicated region
        $region41: #{tpu_custom_call.1} parent=35 // pred_check
          %p326 = pneg %p145
        $region42: #{tpu_custom_call.1} parent=35 // pred_check_branch
          %328 = sbr.rel (%p326) target = $region44
        $region43: #{tpu_custom_call.1} parent=35 // pred_region
          %p329 = scmp.lt.s32.totalorder %s26, 1
          %s330 = scalar_select %p329, %s26, 1
          %s331 = smul.addr %s330, 4
          %s332 = smul.addr %s331, 8
          %s333 = scalar_lea.vmem %s4, %s332
        $region44: #{tpu_custom_call.1} parent=35 // pred_fallthru
          _
        // Predicated region
        $region45: #{tpu_custom_call.1} parent=35 // pred_check
          %p334 = pneg %p171
        $region46: #{tpu_custom_call.1} parent=35 // pred_check_branch
          %336 = sbr.rel (%p334) target = $region48
        $region47: #{tpu_custom_call.1} parent=35 // pred_region
          %p337 = scmp.lt.s32.totalorder %s26, 1
          %s338 = scalar_select %p337, %s26, 1
          %s339 = smul.addr %s338, 4
          %s340 = smul.addr %s339, 8
          %s341 = scalar_lea.vmem %s5, %s340
        $region48: #{tpu_custom_call.1} parent=35 // pred_fallthru
          _
        // Predicated region
        $region49: #{tpu_custom_call.1} parent=35 // pred_check
          %p342 = pneg %p239
        $region50: #{tpu_custom_call.1} parent=35 // pred_check_branch
          %344 = sbr.rel (%p342) target = $region52
        $region51: #{tpu_custom_call.1} parent=35 // pred_region
          %p345 = scmp.lt.s32.totalorder %s26, 1
          %s346 = scalar_select %p345, %s26, 1
          %s347 = smul.addr %s346, 5
          %s348 = smul.addr %s347, 8
          %s349 = scalar_lea.vmem %s8, %s348
        $region52: #{tpu_custom_call.1} parent=35 // pred_fallthru
          _
      $region36: #{tpu_custom_call.1} parent=5 // pred_fallthru
        _
      %p350 = scmp.le.s32.totalorder 1, %s19
      %p351 = scmp.lt.s32.totalorder %s19, 3
      %p352 = pnand %p350, %p351
      %p353 = pneg %p352
      // Predicated region
      $region53: #{tpu_custom_call.1} parent=5 // pred_check
        _
      $region54: #{tpu_custom_call.1} parent=5 // pred_check_branch
        %355 = sbr.rel (%p352) target = $region56
      $region55: #{tpu_custom_call.1} parent=5 // pred_region
        %s356 = ssub.s32 %s19, 1
        // Predicated region
        $region57: #{tpu_custom_call.1} parent=55 // pred_check
          %p357 = pneg %p52
        $region58: #{tpu_custom_call.1} parent=55 // pred_check_branch
          %359 = sbr.rel (%p357) target = $region60
        $region59: #{tpu_custom_call.1} parent=55 // pred_region
          %361 = dma.done [#allocation5], 64
        $region60: #{tpu_custom_call.1} parent=55 // pred_fallthru
          _
        %362 = sfence
        %p363 = pneg %p52
        %p364 = pneg %p49
        %p365 = scmp.lt.s32.totalorder %s29, 0
        %s366 = scalar_select %p365, %s29, 0
        %s367 = smul.addr %s366, 2
        %s368 = scalar_lea.vmem %s1, %s367
        %p369 = pneg %p78
        %p370 = pneg %p75
        %p371 = pneg %p99
        %p372 = pneg %p96
        %p373 = scmp.lt.s32.totalorder %s28, 1
        %s374 = scalar_select %p373, %s28, 1
        %s375 = smul.addr %s374, 2
        %s376 = smul.addr %s375, 8
        %s377 = scalar_lea.vmem %s3, %s376
        %p378 = pneg %p125
        %p379 = pneg %p122
        %p380 = scmp.lt.s32.totalorder %s28, 1
        %s381 = scalar_select %p380, %s28, 1
        %s382 = smul.addr %s381, 4
        %s383 = smul.addr %s382, 8
        %s384 = scalar_lea.vmem %s4, %s383
        %p385 = pneg %p151
        %p386 = pneg %p148
        %p387 = scmp.lt.s32.totalorder %s28, 1
        %s388 = scalar_select %p387, %s28, 1
        %s389 = smul.addr %s388, 4
        %s390 = smul.addr %s389, 8
        %s391 = scalar_lea.vmem %s5, %s390
        %p392 = pneg %p177
        %p393 = pneg %p174
        %p394 = pneg %p198
        %p395 = pneg %p195
        %p396 = pneg %p219
        %p397 = pneg %p216
        %p398 = scmp.lt.s32.totalorder %s28, 1
        %s399 = scalar_select %p398, %s28, 1
        %s400 = smul.addr %s399, 5
        %s401 = smul.addr %s400, 8
        %s402 = scalar_lea.vmem %s8, %s401
        %p403 = pneg %p245
        %p404 = pneg %p242
        %p405 = pneg %p273
        %p406 = pneg %p270
        %s407 = sand.u32 %s260, 1
        %s408 = scalar_lea.sflag [#allocation4], %s407
        %s409 = sand.u32 %s260, 1
        %s410 = smul.addr %s409, 8
        %s411 = scalar_lea.vmem [#allocation6], %s410
        %p412 = scmp.lt.s32.totalorder %s29, 0
        %s413 = scalar_select %p412, %s29, 0
        %s414 = smul.addr %s413, 2
        %s415 = scalar_lea.vmem %s1, %s414
        %p416 = scmp.lt.s32.totalorder %s28, 1
        %s417 = scalar_select %p416, %s28, 1
        %s418 = smul.addr %s417, 2
        %s419 = smul.addr %s418, 8
        %s420 = scalar_lea.vmem %s3, %s419
        %p421 = scmp.lt.s32.totalorder %s28, 1
        %s422 = scalar_select %p421, %s28, 1
        %s423 = smul.addr %s422, 4
        %s424 = smul.addr %s423, 8
        %s425 = scalar_lea.vmem %s4, %s424
        %p426 = scmp.lt.s32.totalorder %s28, 1
        %s427 = scalar_select %p426, %s28, 1
        %s428 = smul.addr %s427, 4
        %s429 = smul.addr %s428, 8
        %s430 = scalar_lea.vmem %s5, %s429
        %p431 = scmp.lt.s32.totalorder %s28, 1
        %s432 = scalar_select %p431, %s28, 1
        %s433 = smul.addr %s432, 5
        %s434 = smul.addr %s433, 8
        %s435 = scalar_lea.vmem %s8, %s434
        %v436 = vld [vmem:[%s415] sm:$0x3]
        %v437 = vld [vmem:[%s2] sm:$0xff]
        %v438 = vld [vmem:[%s2 + $0x8] sm:$0xff]
        %v439 = vld [vmem:[%s420] sm:$0xff]
        %v440 = vld [vmem:[%s420 + $0x8] sm:$0xff]
        %v441 = vld [vmem:[%s425] sm:$0xff]
        %v442 = vld [vmem:[%s425 + $0x8] sm:$0x3]
        %v443 = vld [vmem:[%s425 + $0x10] sm:$0xff]
        %v444 = vld [vmem:[%s425 + $0x18] sm:$0x3]
        %v445 = vld [vmem:[%s430] sm:$0xff]
        %v446 = vld [vmem:[%s430 + $0x8] sm:$0x3]
        %v447 = vld [vmem:[%s430 + $0x10] sm:$0xff]
        %v448 = vld [vmem:[%s430 + $0x18] sm:$0x3]
        %449 = vst [vmem:[#allocation2 + $0x260] sm:$0xff] 0.0
        %450 = vst [vmem:[#allocation2 + $0x268] sm:$0xff] 0.0
        %451 = vst [vmem:[#allocation2 + $0x270] sm:$0xff] 0.0
        %452 = vst [vmem:[#allocation2 + $0x278] sm:$0xff] 0.0
        %s453 = smul.u32 %s28, 2
        %s454 = smul.u32 %s453, 128
        %s455 = sld [smem:[#allocation3 + %s454]]
        %s456 = sadd.s32 %s454, 1
        %s457 = sld [smem:[#allocation3 + %s456]]
        %s458 = sadd.s32 %s454, 2
        %s459 = sld [smem:[#allocation3 + %s458]]
        %s460 = sadd.s32 %s454, 3
        %s461 = sld [smem:[#allocation3 + %s460]]
        %v462 = vperm.slane %v436, 0
        %464 = vset.pattern.permute.xlu0 0
        %465 = vperm.xlu0 %464, %v437
        %v466 = vpop.permute.xlu0 %465
        %v468 = vsub.f32 %v462, %v466
        %v469 = vmul.f32 %v468, %v468
        %s470 = ssub.f32 0.0, %s455
        %v471 = vstv %s470
        %v472 = vmul.f32 %v471, %v469
        %v473 = vmul.f32 %v472, 1.442695
        %v474 = vpow.pop %v473
        %v475 = vstv %s457
        %v476 = vmul.f32 %v475, %v468
        %v478 = vrot.slane %v439, 1
        %v479 = vrot.slane %v439, 2
        %v480 = vrot.slane %v439, 3
        %v481 = vrot.slane %v439, 4
        %v482 = vrot.slane %v439, 5
        %v483 = vrot.slane %v439, 6
        %v484 = vrot.slane %v439, 7
        %v485 = vperm.slane %v439, 0
        %v486 = vperm.slane %v478, 0
        %v487 = vperm.slane %v479, 0
        %v488 = vperm.slane %v480, 0
        %v489 = vperm.slane %v481, 0
        %v490 = vperm.slane %v482, 0
        %v491 = vperm.slane %v483, 0
        %v492 = vperm.slane %v484, 0
        %493 = vset.pattern.permute.xlu0 0
        %494 = vperm.xlu0 %493, %v485
        %v495 = vpop.permute.xlu0 %494
        %497 = vset.pattern.permute.xlu0 0
        %498 = vperm.xlu0 %497, %v486
        %v499 = vpop.permute.xlu0 %498
        %501 = vset.pattern.permute.xlu0 0
        %502 = vperm.xlu0 %501, %v487
        %v503 = vpop.permute.xlu0 %502
        %505 = vset.pattern.permute.xlu0 0
        %506 = vperm.xlu0 %505, %v488
        %v507 = vpop.permute.xlu0 %506
        %509 = vset.pattern.permute.xlu0 0
        %510 = vperm.xlu0 %509, %v489
        %v511 = vpop.permute.xlu0 %510
        %513 = vset.pattern.permute.xlu0 0
        %514 = vperm.xlu0 %513, %v490
        %v515 = vpop.permute.xlu0 %514
        %517 = vset.pattern.permute.xlu0 0
        %518 = vperm.xlu0 %517, %v491
        %v519 = vpop.permute.xlu0 %518
        %521 = vset.pattern.permute.xlu0 0
        %522 = vperm.xlu0 %521, %v492
        %v523 = vpop.permute.xlu0 %522
        %v525 = vmul.f32 %v495, %v476
        %v526 = vmul.f32 %v499, %v476
        %v527 = vmul.f32 %v503, %v476
        %v528 = vmul.f32 %v507, %v476
        %v529 = vmul.f32 %v511, %v476
        %v530 = vmul.f32 %v515, %v476
        %v531 = vmul.f32 %v519, %v476
        %v532 = vmul.f32 %v523, %v476
        %v533 = vand.u32 2147483647, %v525
        %vm534 = vcmp.le.f32.partialorder %v533, 0.7853982
        %vm535 = vcmp.lt.s32.totalorder %v525, 0
        %v536 = vand.u32 %v525, 2139095040
        %v537 = vshrl.u32 %v536, 23
        %v538 = vsub.s32 %v537, 127
        %v539 = vand.u32 2147483647, %v525
        %v540 = vand.u32 %v539, 8388607
        %v541 = vor.u32 %v540, 8388608
        %v542 = vsub.s32 0, %v541
        %v543 = vadd.s32 %v538, 1
        %vm544 = vcmp.gt.s32.totalorder %v543, 0
        %v545 = vsel %vm544, %v543, 0
        %v546 = vshrl.u32 %v545, 5
        %v547 = vand.u32 %v545, 31
        %v548 = vsub.s32 32, %v547
        %v549 = vshrl.u32 683565275, %v548
        %v550 = vshll.u32 683565275, %v547
        %v551 = vshrl.u32 2475754826, %v548
        %v552 = vor.u32 %v550, %v551
        %v553 = vshll.u32 2475754826, %v547
        %v554 = vshrl.u32 2131351028, %v548
        %v555 = vor.u32 %v553, %v554
        %v556 = vshll.u32 2131351028, %v547
        %v557 = vshrl.u32 2102212464, %v548
        %v558 = vor.u32 %v556, %v557
        %v559 = vshll.u32 2102212464, %v547
        %v560 = vshrl.u32 920167782, %v548
        %v561 = vor.u32 %v559, %v560
        %v562 = vshll.u32 920167782, %v547
        %v563 = vshrl.u32 1326507024, %v548
        %v564 = vor.u32 %v562, %v563
        %vm565 = vcmp.lt.s32.totalorder %v546, 1
        %vm566 = vcmp.lt.s32.totalorder %v546, 2
        %vm567 = vcmp.lt.s32.totalorder %v546, 3
        %vm568 = vcmp.lt.s32.totalorder %v546, 4
        %v569 = vsel %vm565, %v549, %v552
        %v570 = vsel %vm568, %v558, 2102212464
        %v571 = vsel %vm567, %v555, %v570
        %v572 = vsel %vm566, %v569, %v571
        %v573 = vsel %vm565, %v552, %v555
        %v574 = vsel %vm568, %v561, 920167782
        %v575 = vsel %vm567, %v558, %v574
        %v576 = vsel %vm566, %v573, %v575
        %v577 = vsel %vm565, %v555, %v558
        %v578 = vsel %vm568, %v564, 1326507024
        %v579 = vsel %vm567, %v561, %v578
        %v580 = vsel %vm566, %v577, %v579
        %v581 = vshll.u32 %v541, 8
        %v582 = vand.u32 %v581, 65535
        %v583 = vshrl.u32 %v581, 16
        %v584 = vand.u32 %v580, 65535
        %v585 = vshrl.u32 %v580, 16
        %v586 = vmul.u32 %v582, %v584
        %v587 = vmul.u32 %v582, %v585
        %v588 = vmul.u32 %v583, %v584
        %v589 = vmul.u32 %v583, %v585
        %v590 = vshll.u32 %v587, 16
        %v591 = vshrl.u32 %v587, 16
        %v592 = vshll.u32 %v588, 16
        %v593 = vshrl.u32 %v588, 16
        %vm594 = vc.u32 %v586, %v590
        %v595 = vsel %vm594, 1, 0
        %v596 = vadd.s32 %v586, %v590
        %v597 = vadd.s32 %v589, %v595
        %vm598 = vc.u32 %v596, %v592
        %v599 = vsel %vm598, 1, 0
        %v600 = vadd.s32 %v596, %v592
        %v601 = vadd.s32 %v597, %v599
        %v602 = vadd.s32 %v601, %v591
        %v603 = vadd.s32 %v602, %v593
        %v604 = vand.u32 %v581, 65535
        %v605 = vshrl.u32 %v581, 16
        %v606 = vand.u32 %v576, 65535
        %v607 = vshrl.u32 %v576, 16
        %v608 = vmul.u32 %v604, %v606
        %v609 = vmul.u32 %v604, %v607
        %v610 = vmul.u32 %v605, %v606
        %v611 = vmul.u32 %v605, %v607
        %v612 = vshll.u32 %v609, 16
        %v613 = vshrl.u32 %v609, 16
        %v614 = vshll.u32 %v610, 16
        %v615 = vshrl.u32 %v610, 16
        %vm616 = vc.u32 %v608, %v612
        %v617 = vsel %vm616, 1, 0
        %v618 = vadd.s32 %v608, %v612
        %v619 = vadd.s32 %v611, %v617
        %vm620 = vc.u32 %v618, %v614
        %v621 = vsel %vm620, 1, 0
        %v622 = vadd.s32 %v618, %v614
        %v623 = vadd.s32 %v619, %v621
        %v624 = vadd.s32 %v623, %v613
        %v625 = vadd.s32 %v624, %v615
        %v626 = vmul.u32 %v581, %v572
        %v627 = vadd.s32 %v603, %v622
        %vm628 = vc.u32 %v603, %v622
        %v629 = vadd.s32 %v625, 1
        %v630 = vsel %vm628, %v629, %v625
        %v631 = vadd.s32 %v626, %v630
        %v632 = vadd.s32 %v631, 536870912
        %v633 = vshrl.u32 %v632, 30
        %v634 = vshll.u32 %v633, 30
        %v635 = vsub.s32 %v631, %v634
        %vm636 = vcmp.lt.s32.totalorder %v635, 0
        %v637 = vsub.s32 0, %v635
        %v638 = vsel %vm636, %v637, %v635
        %v639 = vclz %v638
        %v640 = vsub.s32 %v639, 2
        %vm641 = vcmp.gt.s32.totalorder 0, %v640
        %v642 = vsel %vm641, 0, %v640
        %v643 = vsub.s32 32, %v642
        %v644 = vshll.u32 %v635, %v642
        %v645 = vshrl.u32 %v627, %v643
        %v646 = vor.u32 %v644, %v645
        %v647 = vsub.s32 4294967266, %v642
        %v648 = vadd.s32 %v647, 127
        %v649 = vshll.u32 %v648, 23
        %v650 = vor.u32 4788187, %v649
        %v651 = vand.u32 2147483647, %v650
        %v653 = vcvt.s32.f32 %v646
        %v654 = vmul.f32 %v653, %v651
        %v655 = vxor.u32 %v654, 2147483648
        %v656 = vsel %vm535, %v655, %v654
        %v657 = vsub.s32 4, %v633
        %v658 = vsel %vm535, %v657, %v633
        %v659 = vsel %vm534, %v525, %v656
        %v660 = vsel %vm534, 0, %v658
        %v661 = vmul.f32 %v659, %v659
        %v662 = vmul.f32 %v661, -0.001358992
        %v663 = vadd.f32 %v662, 0.041655596
        %v664 = vmul.f32 %v661, %v663
        %v665 = vadd.f32 %v664, -0.4999988
        %v666 = vmul.f32 %v661, %v665
        %v667 = vadd.f32 1.0, %v666
        %v668 = vmul.f32 %v659, %v659
        %v669 = vmul.f32 %v668, -0.00019511016
        %v670 = vadd.f32 %v669, 0.008332121
        %v671 = vmul.f32 %v668, %v670
        %v672 = vadd.f32 %v671, -0.16666654
        %v673 = vmul.f32 %v668, %v672
        %v674 = vadd.f32 %v673, 1.0
        %v675 = vmul.f32 %v674, %v659
        %vm676 = vweird.f32 %v525
        %v677 = vand.u32 %v660, 3
        %vm678 = vcmp.lt.s32.totalorder %v677, 2
        %vm679 = vcmp.eq.s32.totalorder %v677, 0
        %v680 = vxor.u32 %v675, 2147483648
        %v681 = vsel %vm679, %v667, %v680
        %vm682 = vcmp.eq.s32.totalorder %v677, 2
        %v683 = vxor.u32 %v667, 2147483648
        %v684 = vsel %vm682, %v683, %v675
        %v685 = vsel %vm678, %v681, %v684
        %v686 = vsel %vm676, nan, %v685
        %v687 = vand.u32 2147483647, %v526
        %vm688 = vcmp.le.f32.partialorder %v687, 0.7853982
        %vm689 = vcmp.lt.s32.totalorder %v526, 0
        %v690 = vand.u32 %v526, 2139095040
        %v691 = vshrl.u32 %v690, 23
        %v692 = vsub.s32 %v691, 127
        %v693 = vand.u32 2147483647, %v526
        %v694 = vand.u32 %v693, 8388607
        %v695 = vor.u32 %v694, 8388608
        %v696 = vsub.s32 0, %v695
        %v697 = vadd.s32 %v692, 1
        %vm698 = vcmp.gt.s32.totalorder %v697, 0
        %v699 = vsel %vm698, %v697, 0
        %v700 = vshrl.u32 %v699, 5
        %v701 = vand.u32 %v699, 31
        %v702 = vsub.s32 32, %v701
        %v703 = vshrl.u32 683565275, %v702
        %v704 = vshll.u32 683565275, %v701
        %v705 = vshrl.u32 2475754826, %v702
        %v706 = vor.u32 %v704, %v705
        %v707 = vshll.u32 2475754826, %v701
        %v708 = vshrl.u32 2131351028, %v702
        %v709 = vor.u32 %v707, %v708
        %v710 = vshll.u32 2131351028, %v701
        %v711 = vshrl.u32 2102212464, %v702
        %v712 = vor.u32 %v710, %v711
        %v713 = vshll.u32 2102212464, %v701
        %v714 = vshrl.u32 920167782, %v702
        %v715 = vor.u32 %v713, %v714
        %v716 = vshll.u32 920167782, %v701
        %v717 = vshrl.u32 1326507024, %v702
        %v718 = vor.u32 %v716, %v717
        %vm719 = vcmp.lt.s32.totalorder %v700, 1
        %vm720 = vcmp.lt.s32.totalorder %v700, 2
        %vm721 = vcmp.lt.s32.totalorder %v700, 3
        %vm722 = vcmp.lt.s32.totalorder %v700, 4
        %v723 = vsel %vm719, %v703, %v706
        %v724 = vsel %vm722, %v712, 2102212464
        %v725 = vsel %vm721, %v709, %v724
        %v726 = vsel %vm720, %v723, %v725
        %v727 = vsel %vm719, %v706, %v709
        %v728 = vsel %vm722, %v715, 920167782
        %v729 = vsel %vm721, %v712, %v728
        %v730 = vsel %vm720, %v727, %v729
        %v731 = vsel %vm719, %v709, %v712
        %v732 = vsel %vm722, %v718, 1326507024
        %v733 = vsel %vm721, %v715, %v732
        %v734 = vsel %vm720, %v731, %v733
        %v735 = vshll.u32 %v695, 8
        %v736 = vand.u32 %v735, 65535
        %v737 = vshrl.u32 %v735, 16
        %v738 = vand.u32 %v734, 65535
        %v739 = vshrl.u32 %v734, 16
        %v740 = vmul.u32 %v736, %v738
        %v741 = vmul.u32 %v736, %v739
        %v742 = vmul.u32 %v737, %v738
        %v743 = vmul.u32 %v737, %v739
        %v744 = vshll.u32 %v741, 16
        %v745 = vshrl.u32 %v741, 16
        %v746 = vshll.u32 %v742, 16
        %v747 = vshrl.u32 %v742, 16
        %vm748 = vc.u32 %v740, %v744
        %v749 = vsel %vm748, 1, 0
        %v750 = vadd.s32 %v740, %v744
        %v751 = vadd.s32 %v743, %v749
        %vm752 = vc.u32 %v750, %v746
        %v753 = vsel %vm752, 1, 0
        %v754 = vadd.s32 %v750, %v746
        %v755 = vadd.s32 %v751, %v753
        %v756 = vadd.s32 %v755, %v745
        %v757 = vadd.s32 %v756, %v747
        %v758 = vand.u32 %v735, 65535
        %v759 = vshrl.u32 %v735, 16
        %v760 = vand.u32 %v730, 65535
        %v761 = vshrl.u32 %v730, 16
        %v762 = vmul.u32 %v758, %v760
        %v763 = vmul.u32 %v758, %v761
        %v764 = vmul.u32 %v759, %v760
        %v765 = vmul.u32 %v759, %v761
        %v766 = vshll.u32 %v763, 16
        %v767 = vshrl.u32 %v763, 16
        %v768 = vshll.u32 %v764, 16
        %v769 = vshrl.u32 %v764, 16
        %vm770 = vc.u32 %v762, %v766
        %v771 = vsel %vm770, 1, 0
        %v772 = vadd.s32 %v762, %v766
        %v773 = vadd.s32 %v765, %v771
        %vm774 = vc.u32 %v772, %v768
        %v775 = vsel %vm774, 1, 0
        %v776 = vadd.s32 %v772, %v768
        %v777 = vadd.s32 %v773, %v775
        %v778 = vadd.s32 %v777, %v767
        %v779 = vadd.s32 %v778, %v769
        %v780 = vmul.u32 %v735, %v726
        %v781 = vadd.s32 %v757, %v776
        %vm782 = vc.u32 %v757, %v776
        %v783 = vadd.s32 %v779, 1
        %v784 = vsel %vm782, %v783, %v779
        %v785 = vadd.s32 %v780, %v784
        %v786 = vadd.s32 %v785, 536870912
        %v787 = vshrl.u32 %v786, 30
        %v788 = vshll.u32 %v787, 30
        %v789 = vsub.s32 %v785, %v788
        %vm790 = vcmp.lt.s32.totalorder %v789, 0
        %v791 = vsub.s32 0, %v789
        %v792 = vsel %vm790, %v791, %v789
        %v793 = vclz %v792
        %v794 = vsub.s32 %v793, 2
        %vm795 = vcmp.gt.s32.totalorder 0, %v794
        %v796 = vsel %vm795, 0, %v794
        %v797 = vsub.s32 32, %v796
        %v798 = vshll.u32 %v789, %v796
        %v799 = vshrl.u32 %v781, %v797
        %v800 = vor.u32 %v798, %v799
        %v801 = vsub.s32 4294967266, %v796
        %v802 = vadd.s32 %v801, 127
        %v803 = vshll.u32 %v802, 23
        %v804 = vor.u32 4788187, %v803
        %v805 = vand.u32 2147483647, %v804
        %v807 = vcvt.s32.f32 %v800
        %v808 = vmul.f32 %v807, %v805
        %v809 = vxor.u32 %v808, 2147483648
        %v810 = vsel %vm689, %v809, %v808
        %v811 = vsub.s32 4, %v787
        %v812 = vsel %vm689, %v811, %v787
        %v813 = vsel %vm688, %v526, %v810
        %v814 = vsel %vm688, 0, %v812
        %v815 = vmul.f32 %v813, %v813
        %v816 = vmul.f32 %v815, -0.001358992
        %v817 = vadd.f32 %v816, 0.041655596
        %v818 = vmul.f32 %v815, %v817
        %v819 = vadd.f32 %v818, -0.4999988
        %v820 = vmul.f32 %v815, %v819
        %v821 = vadd.f32 1.0, %v820
        %v822 = vmul.f32 %v813, %v813
        %v823 = vmul.f32 %v822, -0.00019511016
        %v824 = vadd.f32 %v823, 0.008332121
        %v825 = vmul.f32 %v822, %v824
        %v826 = vadd.f32 %v825, -0.16666654
        %v827 = vmul.f32 %v822, %v826
        %v828 = vadd.f32 %v827, 1.0
        %v829 = vmul.f32 %v828, %v813
        %vm830 = vweird.f32 %v526
        %v831 = vand.u32 %v814, 3
        %vm832 = vcmp.lt.s32.totalorder %v831, 2
        %vm833 = vcmp.eq.s32.totalorder %v831, 0
        %v834 = vxor.u32 %v829, 2147483648
        %v835 = vsel %vm833, %v821, %v834
        %vm836 = vcmp.eq.s32.totalorder %v831, 2
        %v837 = vxor.u32 %v821, 2147483648
        %v838 = vsel %vm836, %v837, %v829
        %v839 = vsel %vm832, %v835, %v838
        %v840 = vsel %vm830, nan, %v839
        %v841 = vand.u32 2147483647, %v527
        %vm842 = vcmp.le.f32.partialorder %v841, 0.7853982
        %vm843 = vcmp.lt.s32.totalorder %v527, 0
        %v844 = vand.u32 %v527, 2139095040
        %v845 = vshrl.u32 %v844, 23
        %v846 = vsub.s32 %v845, 127
        %v847 = vand.u32 2147483647, %v527
        %v848 = vand.u32 %v847, 8388607
        %v849 = vor.u32 %v848, 8388608
        %v850 = vsub.s32 0, %v849
        %v851 = vadd.s32 %v846, 1
        %vm852 = vcmp.gt.s32.totalorder %v851, 0
        %v853 = vsel %vm852, %v851, 0
        %v854 = vshrl.u32 %v853, 5
        %v855 = vand.u32 %v853, 31
        %v856 = vsub.s32 32, %v855
        %v857 = vshrl.u32 683565275, %v856
        %v858 = vshll.u32 683565275, %v855
        %v859 = vshrl.u32 2475754826, %v856
        %v860 = vor.u32 %v858, %v859
        %v861 = vshll.u32 2475754826, %v855
        %v862 = vshrl.u32 2131351028, %v856
        %v863 = vor.u32 %v861, %v862
        %v864 = vshll.u32 2131351028, %v855
        %v865 = vshrl.u32 2102212464, %v856
        %v866 = vor.u32 %v864, %v865
        %v867 = vshll.u32 2102212464, %v855
        %v868 = vshrl.u32 920167782, %v856
        %v869 = vor.u32 %v867, %v868
        %v870 = vshll.u32 920167782, %v855
        %v871 = vshrl.u32 1326507024, %v856
        %v872 = vor.u32 %v870, %v871
        %vm873 = vcmp.lt.s32.totalorder %v854, 1
        %vm874 = vcmp.lt.s32.totalorder %v854, 2
        %vm875 = vcmp.lt.s32.totalorder %v854, 3
        %vm876 = vcmp.lt.s32.totalorder %v854, 4
        %v877 = vsel %vm873, %v857, %v860
        %v878 = vsel %vm876, %v866, 2102212464
        %v879 = vsel %vm875, %v863, %v878
        %v880 = vsel %vm874, %v877, %v879
        %v881 = vsel %vm873, %v860, %v863
        %v882 = vsel %vm876, %v869, 920167782
        %v883 = vsel %vm875, %v866, %v882
        %v884 = vsel %vm874, %v881, %v883
        %v885 = vsel %vm873, %v863, %v866
        %v886 = vsel %vm876, %v872, 1326507024
        %v887 = vsel %vm875, %v869, %v886
        %v888 = vsel %vm874, %v885, %v887
        %v889 = vshll.u32 %v849, 8
        %v890 = vand.u32 %v889, 65535
        %v891 = vshrl.u32 %v889, 16
        %v892 = vand.u32 %v888, 65535
        %v893 = vshrl.u32 %v888, 16
        %v894 = vmul.u32 %v890, %v892
        %v895 = vmul.u32 %v890, %v893
        %v896 = vmul.u32 %v891, %v892
        %v897 = vmul.u32 %v891, %v893
        %v898 = vshll.u32 %v895, 16
        %v899 = vshrl.u32 %v895, 16
        %v900 = vshll.u32 %v896, 16
        %v901 = vshrl.u32 %v896, 16
        %vm902 = vc.u32 %v894, %v898
        %v903 = vsel %vm902, 1, 0
        %v904 = vadd.s32 %v894, %v898
        %v905 = vadd.s32 %v897, %v903
        %vm906 = vc.u32 %v904, %v900
        %v907 = vsel %vm906, 1, 0
        %v908 = vadd.s32 %v904, %v900
        %v909 = vadd.s32 %v905, %v907
        %v910 = vadd.s32 %v909, %v899
        %v911 = vadd.s32 %v910, %v901
        %v912 = vand.u32 %v889, 65535
        %v913 = vshrl.u32 %v889, 16
        %v914 = vand.u32 %v884, 65535
        %v915 = vshrl.u32 %v884, 16
        %v916 = vmul.u32 %v912, %v914
        %v917 = vmul.u32 %v912, %v915
        %v918 = vmul.u32 %v913, %v914
        %v919 = vmul.u32 %v913, %v915
        %v920 = vshll.u32 %v917, 16
        %v921 = vshrl.u32 %v917, 16
        %v922 = vshll.u32 %v918, 16
        %v923 = vshrl.u32 %v918, 16
        %vm924 = vc.u32 %v916, %v920
        %v925 = vsel %vm924, 1, 0
        %v926 = vadd.s32 %v916, %v920
        %v927 = vadd.s32 %v919, %v925
        %vm928 = vc.u32 %v926, %v922
        %v929 = vsel %vm928, 1, 0
        %v930 = vadd.s32 %v926, %v922
        %v931 = vadd.s32 %v927, %v929
        %v932 = vadd.s32 %v931, %v921
        %v933 = vadd.s32 %v932, %v923
        %v934 = vmul.u32 %v889, %v880
        %v935 = vadd.s32 %v911, %v930
        %vm936 = vc.u32 %v911, %v930
        %v937 = vadd.s32 %v933, 1
        %v938 = vsel %vm936, %v937, %v933
        %v939 = vadd.s32 %v934, %v938
        %v940 = vadd.s32 %v939, 536870912
        %v941 = vshrl.u32 %v940, 30
        %v942 = vshll.u32 %v941, 30
        %v943 = vsub.s32 %v939, %v942
        %vm944 = vcmp.lt.s32.totalorder %v943, 0
        %v945 = vsub.s32 0, %v943
        %v946 = vsel %vm944, %v945, %v943
        %v947 = vclz %v946
        %v948 = vsub.s32 %v947, 2
        %vm949 = vcmp.gt.s32.totalorder 0, %v948
        %v950 = vsel %vm949, 0, %v948
        %v951 = vsub.s32 32, %v950
        %v952 = vshll.u32 %v943, %v950
        %v953 = vshrl.u32 %v935, %v951
        %v954 = vor.u32 %v952, %v953
        %v955 = vsub.s32 4294967266, %v950
        %v956 = vadd.s32 %v955, 127
        %v957 = vshll.u32 %v956, 23
        %v958 = vor.u32 4788187, %v957
        %v959 = vand.u32 2147483647, %v958
        %v961 = vcvt.s32.f32 %v954
        %v962 = vmul.f32 %v961, %v959
        %v963 = vxor.u32 %v962, 2147483648
        %v964 = vsel %vm843, %v963, %v962
        %v965 = vsub.s32 4, %v941
        %v966 = vsel %vm843, %v965, %v941
        %v967 = vsel %vm842, %v527, %v964
        %v968 = vsel %vm842, 0, %v966
        %v969 = vmul.f32 %v967, %v967
        %v970 = vmul.f32 %v969, -0.001358992
        %v971 = vadd.f32 %v970, 0.041655596
        %v972 = vmul.f32 %v969, %v971
        %v973 = vadd.f32 %v972, -0.4999988
        %v974 = vmul.f32 %v969, %v973
        %v975 = vadd.f32 1.0, %v974
        %v976 = vmul.f32 %v967, %v967
        %v977 = vmul.f32 %v976, -0.00019511016
        %v978 = vadd.f32 %v977, 0.008332121
        %v979 = vmul.f32 %v976, %v978
        %v980 = vadd.f32 %v979, -0.16666654
        %v981 = vmul.f32 %v976, %v980
        %v982 = vadd.f32 %v981, 1.0
        %v983 = vmul.f32 %v982, %v967
        %vm984 = vweird.f32 %v527
        %v985 = vand.u32 %v968, 3
        %vm986 = vcmp.lt.s32.totalorder %v985, 2
        %vm987 = vcmp.eq.s32.totalorder %v985, 0
        %v988 = vxor.u32 %v983, 2147483648
        %v989 = vsel %vm987, %v975, %v988
        %vm990 = vcmp.eq.s32.totalorder %v985, 2
        %v991 = vxor.u32 %v975, 2147483648
        %v992 = vsel %vm990, %v991, %v983
        %v993 = vsel %vm986, %v989, %v992
        %v994 = vsel %vm984, nan, %v993
        %v995 = vand.u32 2147483647, %v528
        %vm996 = vcmp.le.f32.partialorder %v995, 0.7853982
        %vm997 = vcmp.lt.s32.totalorder %v528, 0
        %v998 = vand.u32 %v528, 2139095040
        %v999 = vshrl.u32 %v998, 23
        %v1000 = vsub.s32 %v999, 127
        %v1001 = vand.u32 2147483647, %v528
        %v1002 = vand.u32 %v1001, 8388607
        %v1003 = vor.u32 %v1002, 8388608
        %v1004 = vsub.s32 0, %v1003
        %v1005 = vadd.s32 %v1000, 1
        %vm1006 = vcmp.gt.s32.totalorder %v1005, 0
        %v1007 = vsel %vm1006, %v1005, 0
        %v1008 = vshrl.u32 %v1007, 5
        %v1009 = vand.u32 %v1007, 31
        %v1010 = vsub.s32 32, %v1009
        %v1011 = vshrl.u32 683565275, %v1010
        %v1012 = vshll.u32 683565275, %v1009
        %v1013 = vshrl.u32 2475754826, %v1010
        %v1014 = vor.u32 %v1012, %v1013
        %v1015 = vshll.u32 2475754826, %v1009
        %v1016 = vshrl.u32 2131351028, %v1010
        %v1017 = vor.u32 %v1015, %v1016
        %v1018 = vshll.u32 2131351028, %v1009
        %v1019 = vshrl.u32 2102212464, %v1010
        %v1020 = vor.u32 %v1018, %v1019
        %v1021 = vshll.u32 2102212464, %v1009
        %v1022 = vshrl.u32 920167782, %v1010
        %v1023 = vor.u32 %v1021, %v1022
        %v1024 = vshll.u32 920167782, %v1009
        %v1025 = vshrl.u32 1326507024, %v1010
        %v1026 = vor.u32 %v1024, %v1025
        %vm1027 = vcmp.lt.s32.totalorder %v1008, 1
        %vm1028 = vcmp.lt.s32.totalorder %v1008, 2
        %vm1029 = vcmp.lt.s32.totalorder %v1008, 3
        %vm1030 = vcmp.lt.s32.totalorder %v1008, 4
        %v1031 = vsel %vm1027, %v1011, %v1014
        %v1032 = vsel %vm1030, %v1020, 2102212464
        %v1033 = vsel %vm1029, %v1017, %v1032
        %v1034 = vsel %vm1028, %v1031, %v1033
        %v1035 = vsel %vm1027, %v1014, %v1017
        %v1036 = vsel %vm1030, %v1023, 920167782
        %v1037 = vsel %vm1029, %v1020, %v1036
        %v1038 = vsel %vm1028, %v1035, %v1037
        %v1039 = vsel %vm1027, %v1017, %v1020
        %v1040 = vsel %vm1030, %v1026, 1326507024
        %v1041 = vsel %vm1029, %v1023, %v1040
        %v1042 = vsel %vm1028, %v1039, %v1041
        %v1043 = vshll.u32 %v1003, 8
        %v1044 = vand.u32 %v1043, 65535
        %v1045 = vshrl.u32 %v1043, 16
        %v1046 = vand.u32 %v1042, 65535
        %v1047 = vshrl.u32 %v1042, 16
        %v1048 = vmul.u32 %v1044, %v1046
        %v1049 = vmul.u32 %v1044, %v1047
        %v1050 = vmul.u32 %v1045, %v1046
        %v1051 = vmul.u32 %v1045, %v1047
        %v1052 = vshll.u32 %v1049, 16
        %v1053 = vshrl.u32 %v1049, 16
        %v1054 = vshll.u32 %v1050, 16
        %v1055 = vshrl.u32 %v1050, 16
        %vm1056 = vc.u32 %v1048, %v1052
        %v1057 = vsel %vm1056, 1, 0
        %v1058 = vadd.s32 %v1048, %v1052
        %v1059 = vadd.s32 %v1051, %v1057
        %vm1060 = vc.u32 %v1058, %v1054
        %v1061 = vsel %vm1060, 1, 0
        %v1062 = vadd.s32 %v1058, %v1054
        %v1063 = vadd.s32 %v1059, %v1061
        %v1064 = vadd.s32 %v1063, %v1053
        %v1065 = vadd.s32 %v1064, %v1055
        %v1066 = vand.u32 %v1043, 65535
        %v1067 = vshrl.u32 %v1043, 16
        %v1068 = vand.u32 %v1038, 65535
        %v1069 = vshrl.u32 %v1038, 16
        %v1070 = vmul.u32 %v1066, %v1068
        %v1071 = vmul.u32 %v1066, %v1069
        %v1072 = vmul.u32 %v1067, %v1068
        %v1073 = vmul.u32 %v1067, %v1069
        %v1074 = vshll.u32 %v1071, 16
        %v1075 = vshrl.u32 %v1071, 16
        %v1076 = vshll.u32 %v1072, 16
        %v1077 = vshrl.u32 %v1072, 16
        %vm1078 = vc.u32 %v1070, %v1074
        %v1079 = vsel %vm1078, 1, 0
        %v1080 = vadd.s32 %v1070, %v1074
        %v1081 = vadd.s32 %v1073, %v1079
        %vm1082 = vc.u32 %v1080, %v1076
        %v1083 = vsel %vm1082, 1, 0
        %v1084 = vadd.s32 %v1080, %v1076
        %v1085 = vadd.s32 %v1081, %v1083
        %v1086 = vadd.s32 %v1085, %v1075
        %v1087 = vadd.s32 %v1086, %v1077
        %v1088 = vmul.u32 %v1043, %v1034
        %v1089 = vadd.s32 %v1065, %v1084
        %vm1090 = vc.u32 %v1065, %v1084
        %v1091 = vadd.s32 %v1087, 1
        %v1092 = vsel %vm1090, %v1091, %v1087
        %v1093 = vadd.s32 %v1088, %v1092
        %v1094 = vadd.s32 %v1093, 536870912
        %v1095 = vshrl.u32 %v1094, 30
        %v1096 = vshll.u32 %v1095, 30
        %v1097 = vsub.s32 %v1093, %v1096
        %vm1098 = vcmp.lt.s32.totalorder %v1097, 0
        %v1099 = vsub.s32 0, %v1097
        %v1100 = vsel %vm1098, %v1099, %v1097
        %v1101 = vclz %v1100
        %v1102 = vsub.s32 %v1101, 2
        %vm1103 = vcmp.gt.s32.totalorder 0, %v1102
        %v1104 = vsel %vm1103, 0, %v1102
        %v1105 = vsub.s32 32, %v1104
        %v1106 = vshll.u32 %v1097, %v1104
        %v1107 = vshrl.u32 %v1089, %v1105
        %v1108 = vor.u32 %v1106, %v1107
        %v1109 = vsub.s32 4294967266, %v1104
        %v1110 = vadd.s32 %v1109, 127
        %v1111 = vshll.u32 %v1110, 23
        %v1112 = vor.u32 4788187, %v1111
        %v1113 = vand.u32 2147483647, %v1112
        %v1115 = vcvt.s32.f32 %v1108
        %v1116 = vmul.f32 %v1115, %v1113
        %v1117 = vxor.u32 %v1116, 2147483648
        %v1118 = vsel %vm997, %v1117, %v1116
        %v1119 = vsub.s32 4, %v1095
        %v1120 = vsel %vm997, %v1119, %v1095
        %v1121 = vsel %vm996, %v528, %v1118
        %v1122 = vsel %vm996, 0, %v1120
        %v1123 = vmul.f32 %v1121, %v1121
        %v1124 = vmul.f32 %v1123, -0.001358992
        %v1125 = vadd.f32 %v1124, 0.041655596
        %v1126 = vmul.f32 %v1123, %v1125
        %v1127 = vadd.f32 %v1126, -0.4999988
        %v1128 = vmul.f32 %v1123, %v1127
        %v1129 = vadd.f32 1.0, %v1128
        %v1130 = vmul.f32 %v1121, %v1121
        %v1131 = vmul.f32 %v1130, -0.00019511016
        %v1132 = vadd.f32 %v1131, 0.008332121
        %v1133 = vmul.f32 %v1130, %v1132
        %v1134 = vadd.f32 %v1133, -0.16666654
        %v1135 = vmul.f32 %v1130, %v1134
        %v1136 = vadd.f32 %v1135, 1.0
        %v1137 = vmul.f32 %v1136, %v1121
        %vm1138 = vweird.f32 %v528
        %v1139 = vand.u32 %v1122, 3
        %vm1140 = vcmp.lt.s32.totalorder %v1139, 2
        %vm1141 = vcmp.eq.s32.totalorder %v1139, 0
        %v1142 = vxor.u32 %v1137, 2147483648
        %v1143 = vsel %vm1141, %v1129, %v1142
        %vm1144 = vcmp.eq.s32.totalorder %v1139, 2
        %v1145 = vxor.u32 %v1129, 2147483648
        %v1146 = vsel %vm1144, %v1145, %v1137
        %v1147 = vsel %vm1140, %v1143, %v1146
        %v1148 = vsel %vm1138, nan, %v1147
        %v1149 = vand.u32 2147483647, %v529
        %vm1150 = vcmp.le.f32.partialorder %v1149, 0.7853982
        %vm1151 = vcmp.lt.s32.totalorder %v529, 0
        %v1152 = vand.u32 %v529, 2139095040
        %v1153 = vshrl.u32 %v1152, 23
        %v1154 = vsub.s32 %v1153, 127
        %v1155 = vand.u32 2147483647, %v529
        %v1156 = vand.u32 %v1155, 8388607
        %v1157 = vor.u32 %v1156, 8388608
        %v1158 = vsub.s32 0, %v1157
        %v1159 = vadd.s32 %v1154, 1
        %vm1160 = vcmp.gt.s32.totalorder %v1159, 0
        %v1161 = vsel %vm1160, %v1159, 0
        %v1162 = vshrl.u32 %v1161, 5
        %v1163 = vand.u32 %v1161, 31
        %v1164 = vsub.s32 32, %v1163
        %v1165 = vshrl.u32 683565275, %v1164
        %v1166 = vshll.u32 683565275, %v1163
        %v1167 = vshrl.u32 2475754826, %v1164
        %v1168 = vor.u32 %v1166, %v1167
        %v1169 = vshll.u32 2475754826, %v1163
        %v1170 = vshrl.u32 2131351028, %v1164
        %v1171 = vor.u32 %v1169, %v1170
        %v1172 = vshll.u32 2131351028, %v1163
        %v1173 = vshrl.u32 2102212464, %v1164
        %v1174 = vor.u32 %v1172, %v1173
        %v1175 = vshll.u32 2102212464, %v1163
        %v1176 = vshrl.u32 920167782, %v1164
        %v1177 = vor.u32 %v1175, %v1176
        %v1178 = vshll.u32 920167782, %v1163
        %v1179 = vshrl.u32 1326507024, %v1164
        %v1180 = vor.u32 %v1178, %v1179
        %vm1181 = vcmp.lt.s32.totalorder %v1162, 1
        %vm1182 = vcmp.lt.s32.totalorder %v1162, 2
        %vm1183 = vcmp.lt.s32.totalorder %v1162, 3
        %vm1184 = vcmp.lt.s32.totalorder %v1162, 4
        %v1185 = vsel %vm1181, %v1165, %v1168
        %v1186 = vsel %vm1184, %v1174, 2102212464
        %v1187 = vsel %vm1183, %v1171, %v1186
        %v1188 = vsel %vm1182, %v1185, %v1187
        %v1189 = vsel %vm1181, %v1168, %v1171
        %v1190 = vsel %vm1184, %v1177, 920167782
        %v1191 = vsel %vm1183, %v1174, %v1190
        %v1192 = vsel %vm1182, %v1189, %v1191
        %v1193 = vsel %vm1181, %v1171, %v1174
        %v1194 = vsel %vm1184, %v1180, 1326507024
        %v1195 = vsel %vm1183, %v1177, %v1194
        %v1196 = vsel %vm1182, %v1193, %v1195
        %v1197 = vshll.u32 %v1157, 8
        %v1198 = vand.u32 %v1197, 65535
        %v1199 = vshrl.u32 %v1197, 16
        %v1200 = vand.u32 %v1196, 65535
        %v1201 = vshrl.u32 %v1196, 16
        %v1202 = vmul.u32 %v1198, %v1200
        %v1203 = vmul.u32 %v1198, %v1201
        %v1204 = vmul.u32 %v1199, %v1200
        %v1205 = vmul.u32 %v1199, %v1201
        %v1206 = vshll.u32 %v1203, 16
        %v1207 = vshrl.u32 %v1203, 16
        %v1208 = vshll.u32 %v1204, 16
        %v1209 = vshrl.u32 %v1204, 16
        %vm1210 = vc.u32 %v1202, %v1206
        %v1211 = vsel %vm1210, 1, 0
        %v1212 = vadd.s32 %v1202, %v1206
        %v1213 = vadd.s32 %v1205, %v1211
        %vm1214 = vc.u32 %v1212, %v1208
        %v1215 = vsel %vm1214, 1, 0
        %v1216 = vadd.s32 %v1212, %v1208
        %v1217 = vadd.s32 %v1213, %v1215
        %v1218 = vadd.s32 %v1217, %v1207
        %v1219 = vadd.s32 %v1218, %v1209
        %v1220 = vand.u32 %v1197, 65535
        %v1221 = vshrl.u32 %v1197, 16
        %v1222 = vand.u32 %v1192, 65535
        %v1223 = vshrl.u32 %v1192, 16
        %v1224 = vmul.u32 %v1220, %v1222
        %v1225 = vmul.u32 %v1220, %v1223
        %v1226 = vmul.u32 %v1221, %v1222
        %v1227 = vmul.u32 %v1221, %v1223
        %v1228 = vshll.u32 %v1225, 16
        %v1229 = vshrl.u32 %v1225, 16
        %v1230 = vshll.u32 %v1226, 16
        %v1231 = vshrl.u32 %v1226, 16
        %vm1232 = vc.u32 %v1224, %v1228
        %v1233 = vsel %vm1232, 1, 0
        %v1234 = vadd.s32 %v1224, %v1228
        %v1235 = vadd.s32 %v1227, %v1233
        %vm1236 = vc.u32 %v1234, %v1230
        %v1237 = vsel %vm1236, 1, 0
        %v1238 = vadd.s32 %v1234, %v1230
        %v1239 = vadd.s32 %v1235, %v1237
        %v1240 = vadd.s32 %v1239, %v1229
        %v1241 = vadd.s32 %v1240, %v1231
        %v1242 = vmul.u32 %v1197, %v1188
        %v1243 = vadd.s32 %v1219, %v1238
        %vm1244 = vc.u32 %v1219, %v1238
        %v1245 = vadd.s32 %v1241, 1
        %v1246 = vsel %vm1244, %v1245, %v1241
        %v1247 = vadd.s32 %v1242, %v1246
        %v1248 = vadd.s32 %v1247, 536870912
        %v1249 = vshrl.u32 %v1248, 30
        %v1250 = vshll.u32 %v1249, 30
        %v1251 = vsub.s32 %v1247, %v1250
        %vm1252 = vcmp.lt.s32.totalorder %v1251, 0
        %v1253 = vsub.s32 0, %v1251
        %v1254 = vsel %vm1252, %v1253, %v1251
        %v1255 = vclz %v1254
        %v1256 = vsub.s32 %v1255, 2
        %vm1257 = vcmp.gt.s32.totalorder 0, %v1256
        %v1258 = vsel %vm1257, 0, %v1256
        %v1259 = vsub.s32 32, %v1258
        %v1260 = vshll.u32 %v1251, %v1258
        %v1261 = vshrl.u32 %v1243, %v1259
        %v1262 = vor.u32 %v1260, %v1261
        %v1263 = vsub.s32 4294967266, %v1258
        %v1264 = vadd.s32 %v1263, 127
        %v1265 = vshll.u32 %v1264, 23
        %v1266 = vor.u32 4788187, %v1265
        %v1267 = vand.u32 2147483647, %v1266
        %v1269 = vcvt.s32.f32 %v1262
        %v1270 = vmul.f32 %v1269, %v1267
        %v1271 = vxor.u32 %v1270, 2147483648
        %v1272 = vsel %vm1151, %v1271, %v1270
        %v1273 = vsub.s32 4, %v1249
        %v1274 = vsel %vm1151, %v1273, %v1249
        %v1275 = vsel %vm1150, %v529, %v1272
        %v1276 = vsel %vm1150, 0, %v1274
        %v1277 = vmul.f32 %v1275, %v1275
        %v1278 = vmul.f32 %v1277, -0.001358992
        %v1279 = vadd.f32 %v1278, 0.041655596
        %v1280 = vmul.f32 %v1277, %v1279
        %v1281 = vadd.f32 %v1280, -0.4999988
        %v1282 = vmul.f32 %v1277, %v1281
        %v1283 = vadd.f32 1.0, %v1282
        %v1284 = vmul.f32 %v1275, %v1275
        %v1285 = vmul.f32 %v1284, -0.00019511016
        %v1286 = vadd.f32 %v1285, 0.008332121
        %v1287 = vmul.f32 %v1284, %v1286
        %v1288 = vadd.f32 %v1287, -0.16666654
        %v1289 = vmul.f32 %v1284, %v1288
        %v1290 = vadd.f32 %v1289, 1.0
        %v1291 = vmul.f32 %v1290, %v1275
        %vm1292 = vweird.f32 %v529
        %v1293 = vand.u32 %v1276, 3
        %vm1294 = vcmp.lt.s32.totalorder %v1293, 2
        %vm1295 = vcmp.eq.s32.totalorder %v1293, 0
        %v1296 = vxor.u32 %v1291, 2147483648
        %v1297 = vsel %vm1295, %v1283, %v1296
        %vm1298 = vcmp.eq.s32.totalorder %v1293, 2
        %v1299 = vxor.u32 %v1283, 2147483648
        %v1300 = vsel %vm1298, %v1299, %v1291
        %v1301 = vsel %vm1294, %v1297, %v1300
        %v1302 = vsel %vm1292, nan, %v1301
        %v1303 = vand.u32 2147483647, %v530
        %vm1304 = vcmp.le.f32.partialorder %v1303, 0.7853982
        %vm1305 = vcmp.lt.s32.totalorder %v530, 0
        %v1306 = vand.u32 %v530, 2139095040
        %v1307 = vshrl.u32 %v1306, 23
        %v1308 = vsub.s32 %v1307, 127
        %v1309 = vand.u32 2147483647, %v530
        %v1310 = vand.u32 %v1309, 8388607
        %v1311 = vor.u32 %v1310, 8388608
        %v1312 = vsub.s32 0, %v1311
        %v1313 = vadd.s32 %v1308, 1
        %vm1314 = vcmp.gt.s32.totalorder %v1313, 0
        %v1315 = vsel %vm1314, %v1313, 0
        %v1316 = vshrl.u32 %v1315, 5
        %v1317 = vand.u32 %v1315, 31
        %v1318 = vsub.s32 32, %v1317
        %v1319 = vshrl.u32 683565275, %v1318
        %v1320 = vshll.u32 683565275, %v1317
        %v1321 = vshrl.u32 2475754826, %v1318
        %v1322 = vor.u32 %v1320, %v1321
        %v1323 = vshll.u32 2475754826, %v1317
        %v1324 = vshrl.u32 2131351028, %v1318
        %v1325 = vor.u32 %v1323, %v1324
        %v1326 = vshll.u32 2131351028, %v1317
        %v1327 = vshrl.u32 2102212464, %v1318
        %v1328 = vor.u32 %v1326, %v1327
        %v1329 = vshll.u32 2102212464, %v1317
        %v1330 = vshrl.u32 920167782, %v1318
        %v1331 = vor.u32 %v1329, %v1330
        %v1332 = vshll.u32 920167782, %v1317
        %v1333 = vshrl.u32 1326507024, %v1318
        %v1334 = vor.u32 %v1332, %v1333
        %vm1335 = vcmp.lt.s32.totalorder %v1316, 1
        %vm1336 = vcmp.lt.s32.totalorder %v1316, 2
        %vm1337 = vcmp.lt.s32.totalorder %v1316, 3
        %vm1338 = vcmp.lt.s32.totalorder %v1316, 4
        %v1339 = vsel %vm1335, %v1319, %v1322
        %v1340 = vsel %vm1338, %v1328, 2102212464
        %v1341 = vsel %vm1337, %v1325, %v1340
        %v1342 = vsel %vm1336, %v1339, %v1341
        %v1343 = vsel %vm1335, %v1322, %v1325
        %v1344 = vsel %vm1338, %v1331, 920167782
        %v1345 = vsel %vm1337, %v1328, %v1344
        %v1346 = vsel %vm1336, %v1343, %v1345
        %v1347 = vsel %vm1335, %v1325, %v1328
        %v1348 = vsel %vm1338, %v1334, 1326507024
        %v1349 = vsel %vm1337, %v1331, %v1348
        %v1350 = vsel %vm1336, %v1347, %v1349
        %v1351 = vshll.u32 %v1311, 8
        %v1352 = vand.u32 %v1351, 65535
        %v1353 = vshrl.u32 %v1351, 16
        %v1354 = vand.u32 %v1350, 65535
        %v1355 = vshrl.u32 %v1350, 16
        %v1356 = vmul.u32 %v1352, %v1354
        %v1357 = vmul.u32 %v1352, %v1355
        %v1358 = vmul.u32 %v1353, %v1354
        %v1359 = vmul.u32 %v1353, %v1355
        %v1360 = vshll.u32 %v1357, 16
        %v1361 = vshrl.u32 %v1357, 16
        %v1362 = vshll.u32 %v1358, 16
        %v1363 = vshrl.u32 %v1358, 16
        %vm1364 = vc.u32 %v1356, %v1360
        %v1365 = vsel %vm1364, 1, 0
        %v1366 = vadd.s32 %v1356, %v1360
        %v1367 = vadd.s32 %v1359, %v1365
        %vm1368 = vc.u32 %v1366, %v1362
        %v1369 = vsel %vm1368, 1, 0
        %v1370 = vadd.s32 %v1366, %v1362
        %v1371 = vadd.s32 %v1367, %v1369
        %v1372 = vadd.s32 %v1371, %v1361
        %v1373 = vadd.s32 %v1372, %v1363
        %v1374 = vand.u32 %v1351, 65535
        %v1375 = vshrl.u32 %v1351, 16
        %v1376 = vand.u32 %v1346, 65535
        %v1377 = vshrl.u32 %v1346, 16
        %v1378 = vmul.u32 %v1374, %v1376
        %v1379 = vmul.u32 %v1374, %v1377
        %v1380 = vmul.u32 %v1375, %v1376
        %v1381 = vmul.u32 %v1375, %v1377
        %v1382 = vshll.u32 %v1379, 16
        %v1383 = vshrl.u32 %v1379, 16
        %v1384 = vshll.u32 %v1380, 16
        %v1385 = vshrl.u32 %v1380, 16
        %vm1386 = vc.u32 %v1378, %v1382
        %v1387 = vsel %vm1386, 1, 0
        %v1388 = vadd.s32 %v1378, %v1382
        %v1389 = vadd.s32 %v1381, %v1387
        %vm1390 = vc.u32 %v1388, %v1384
        %v1391 = vsel %vm1390, 1, 0
        %v1392 = vadd.s32 %v1388, %v1384
        %v1393 = vadd.s32 %v1389, %v1391
        %v1394 = vadd.s32 %v1393, %v1383
        %v1395 = vadd.s32 %v1394, %v1385
        %v1396 = vmul.u32 %v1351, %v1342
        %v1397 = vadd.s32 %v1373, %v1392
        %vm1398 = vc.u32 %v1373, %v1392
        %v1399 = vadd.s32 %v1395, 1
        %v1400 = vsel %vm1398, %v1399, %v1395
        %v1401 = vadd.s32 %v1396, %v1400
        %v1402 = vadd.s32 %v1401, 536870912
        %v1403 = vshrl.u32 %v1402, 30
        %v1404 = vshll.u32 %v1403, 30
        %v1405 = vsub.s32 %v1401, %v1404
        %vm1406 = vcmp.lt.s32.totalorder %v1405, 0
        %v1407 = vsub.s32 0, %v1405
        %v1408 = vsel %vm1406, %v1407, %v1405
        %v1409 = vclz %v1408
        %v1410 = vsub.s32 %v1409, 2
        %vm1411 = vcmp.gt.s32.totalorder 0, %v1410
        %v1412 = vsel %vm1411, 0, %v1410
        %v1413 = vsub.s32 32, %v1412
        %v1414 = vshll.u32 %v1405, %v1412
        %v1415 = vshrl.u32 %v1397, %v1413
        %v1416 = vor.u32 %v1414, %v1415
        %v1417 = vsub.s32 4294967266, %v1412
        %v1418 = vadd.s32 %v1417, 127
        %v1419 = vshll.u32 %v1418, 23
        %v1420 = vor.u32 4788187, %v1419
        %v1421 = vand.u32 2147483647, %v1420
        %v1423 = vcvt.s32.f32 %v1416
        %v1424 = vmul.f32 %v1423, %v1421
        %v1425 = vxor.u32 %v1424, 2147483648
        %v1426 = vsel %vm1305, %v1425, %v1424
        %v1427 = vsub.s32 4, %v1403
        %v1428 = vsel %vm1305, %v1427, %v1403
        %v1429 = vsel %vm1304, %v530, %v1426
        %v1430 = vsel %vm1304, 0, %v1428
        %v1431 = vmul.f32 %v1429, %v1429
        %v1432 = vmul.f32 %v1431, -0.001358992
        %v1433 = vadd.f32 %v1432, 0.041655596
        %v1434 = vmul.f32 %v1431, %v1433
        %v1435 = vadd.f32 %v1434, -0.4999988
        %v1436 = vmul.f32 %v1431, %v1435
        %v1437 = vadd.f32 1.0, %v1436
        %v1438 = vmul.f32 %v1429, %v1429
        %v1439 = vmul.f32 %v1438, -0.00019511016
        %v1440 = vadd.f32 %v1439, 0.008332121
        %v1441 = vmul.f32 %v1438, %v1440
        %v1442 = vadd.f32 %v1441, -0.16666654
        %v1443 = vmul.f32 %v1438, %v1442
        %v1444 = vadd.f32 %v1443, 1.0
        %v1445 = vmul.f32 %v1444, %v1429
        %vm1446 = vweird.f32 %v530
        %v1447 = vand.u32 %v1430, 3
        %vm1448 = vcmp.lt.s32.totalorder %v1447, 2
        %vm1449 = vcmp.eq.s32.totalorder %v1447, 0
        %v1450 = vxor.u32 %v1445, 2147483648
        %v1451 = vsel %vm1449, %v1437, %v1450
        %vm1452 = vcmp.eq.s32.totalorder %v1447, 2
        %v1453 = vxor.u32 %v1437, 2147483648
        %v1454 = vsel %vm1452, %v1453, %v1445
        %v1455 = vsel %vm1448, %v1451, %v1454
        %v1456 = vsel %vm1446, nan, %v1455
        %v1457 = vand.u32 2147483647, %v531
        %vm1458 = vcmp.le.f32.partialorder %v1457, 0.7853982
        %vm1459 = vcmp.lt.s32.totalorder %v531, 0
        %v1460 = vand.u32 %v531, 2139095040
        %v1461 = vshrl.u32 %v1460, 23
        %v1462 = vsub.s32 %v1461, 127
        %v1463 = vand.u32 2147483647, %v531
        %v1464 = vand.u32 %v1463, 8388607
        %v1465 = vor.u32 %v1464, 8388608
        %v1466 = vsub.s32 0, %v1465
        %v1467 = vadd.s32 %v1462, 1
        %vm1468 = vcmp.gt.s32.totalorder %v1467, 0
        %v1469 = vsel %vm1468, %v1467, 0
        %v1470 = vshrl.u32 %v1469, 5
        %v1471 = vand.u32 %v1469, 31
        %v1472 = vsub.s32 32, %v1471
        %v1473 = vshrl.u32 683565275, %v1472
        %v1474 = vshll.u32 683565275, %v1471
        %v1475 = vshrl.u32 2475754826, %v1472
        %v1476 = vor.u32 %v1474, %v1475
        %v1477 = vshll.u32 2475754826, %v1471
        %v1478 = vshrl.u32 2131351028, %v1472
        %v1479 = vor.u32 %v1477, %v1478
        %v1480 = vshll.u32 2131351028, %v1471
        %v1481 = vshrl.u32 2102212464, %v1472
        %v1482 = vor.u32 %v1480, %v1481
        %v1483 = vshll.u32 2102212464, %v1471
        %v1484 = vshrl.u32 920167782, %v1472
        %v1485 = vor.u32 %v1483, %v1484
        %v1486 = vshll.u32 920167782, %v1471
        %v1487 = vshrl.u32 1326507024, %v1472
        %v1488 = vor.u32 %v1486, %v1487
        %vm1489 = vcmp.lt.s32.totalorder %v1470, 1
        %vm1490 = vcmp.lt.s32.totalorder %v1470, 2
        %vm1491 = vcmp.lt.s32.totalorder %v1470, 3
        %vm1492 = vcmp.lt.s32.totalorder %v1470, 4
        %v1493 = vsel %vm1489, %v1473, %v1476
        %v1494 = vsel %vm1492, %v1482, 2102212464
        %v1495 = vsel %vm1491, %v1479, %v1494
        %v1496 = vsel %vm1490, %v1493, %v1495
        %v1497 = vsel %vm1489, %v1476, %v1479
        %v1498 = vsel %vm1492, %v1485, 920167782
        %v1499 = vsel %vm1491, %v1482, %v1498
        %v1500 = vsel %vm1490, %v1497, %v1499
        %v1501 = vsel %vm1489, %v1479, %v1482
        %v1502 = vsel %vm1492, %v1488, 1326507024
        %v1503 = vsel %vm1491, %v1485, %v1502
        %v1504 = vsel %vm1490, %v1501, %v1503
        %v1505 = vshll.u32 %v1465, 8
        %v1506 = vand.u32 %v1505, 65535
        %v1507 = vshrl.u32 %v1505, 16
        %v1508 = vand.u32 %v1504, 65535
        %v1509 = vshrl.u32 %v1504, 16
        %v1510 = vmul.u32 %v1506, %v1508
        %v1511 = vmul.u32 %v1506, %v1509
        %v1512 = vmul.u32 %v1507, %v1508
        %v1513 = vmul.u32 %v1507, %v1509
        %v1514 = vshll.u32 %v1511, 16
        %v1515 = vshrl.u32 %v1511, 16
        %v1516 = vshll.u32 %v1512, 16
        %v1517 = vshrl.u32 %v1512, 16
        %vm1518 = vc.u32 %v1510, %v1514
        %v1519 = vsel %vm1518, 1, 0
        %v1520 = vadd.s32 %v1510, %v1514
        %v1521 = vadd.s32 %v1513, %v1519
        %vm1522 = vc.u32 %v1520, %v1516
        %v1523 = vsel %vm1522, 1, 0
        %v1524 = vadd.s32 %v1520, %v1516
        %v1525 = vadd.s32 %v1521, %v1523
        %v1526 = vadd.s32 %v1525, %v1515
        %v1527 = vadd.s32 %v1526, %v1517
        %v1528 = vand.u32 %v1505, 65535
        %v1529 = vshrl.u32 %v1505, 16
        %v1530 = vand.u32 %v1500, 65535
        %v1531 = vshrl.u32 %v1500, 16
        %v1532 = vmul.u32 %v1528, %v1530
        %v1533 = vmul.u32 %v1528, %v1531
        %v1534 = vmul.u32 %v1529, %v1530
        %v1535 = vmul.u32 %v1529, %v1531
        %v1536 = vshll.u32 %v1533, 16
        %v1537 = vshrl.u32 %v1533, 16
        %v1538 = vshll.u32 %v1534, 16
        %v1539 = vshrl.u32 %v1534, 16
        %vm1540 = vc.u32 %v1532, %v1536
        %v1541 = vsel %vm1540, 1, 0
        %v1542 = vadd.s32 %v1532, %v1536
        %v1543 = vadd.s32 %v1535, %v1541
        %vm1544 = vc.u32 %v1542, %v1538
        %v1545 = vsel %vm1544, 1, 0
        %v1546 = vadd.s32 %v1542, %v1538
        %v1547 = vadd.s32 %v1543, %v1545
        %v1548 = vadd.s32 %v1547, %v1537
        %v1549 = vadd.s32 %v1548, %v1539
        %v1550 = vmul.u32 %v1505, %v1496
        %v1551 = vadd.s32 %v1527, %v1546
        %vm1552 = vc.u32 %v1527, %v1546
        %v1553 = vadd.s32 %v1549, 1
        %v1554 = vsel %vm1552, %v1553, %v1549
        %v1555 = vadd.s32 %v1550, %v1554
        %v1556 = vadd.s32 %v1555, 536870912
        %v1557 = vshrl.u32 %v1556, 30
        %v1558 = vshll.u32 %v1557, 30
        %v1559 = vsub.s32 %v1555, %v1558
        %vm1560 = vcmp.lt.s32.totalorder %v1559, 0
        %v1561 = vsub.s32 0, %v1559
        %v1562 = vsel %vm1560, %v1561, %v1559
        %v1563 = vclz %v1562
        %v1564 = vsub.s32 %v1563, 2
        %vm1565 = vcmp.gt.s32.totalorder 0, %v1564
        %v1566 = vsel %vm1565, 0, %v1564
        %v1567 = vsub.s32 32, %v1566
        %v1568 = vshll.u32 %v1559, %v1566
        %v1569 = vshrl.u32 %v1551, %v1567
        %v1570 = vor.u32 %v1568, %v1569
        %v1571 = vsub.s32 4294967266, %v1566
        %v1572 = vadd.s32 %v1571, 127
        %v1573 = vshll.u32 %v1572, 23
        %v1574 = vor.u32 4788187, %v1573
        %v1575 = vand.u32 2147483647, %v1574
        %v1577 = vcvt.s32.f32 %v1570
        %v1578 = vmul.f32 %v1577, %v1575
        %v1579 = vxor.u32 %v1578, 2147483648
        %v1580 = vsel %vm1459, %v1579, %v1578
        %v1581 = vsub.s32 4, %v1557
        %v1582 = vsel %vm1459, %v1581, %v1557
        %v1583 = vsel %vm1458, %v531, %v1580
        %v1584 = vsel %vm1458, 0, %v1582
        %v1585 = vmul.f32 %v1583, %v1583
        %v1586 = vmul.f32 %v1585, -0.001358992
        %v1587 = vadd.f32 %v1586, 0.041655596
        %v1588 = vmul.f32 %v1585, %v1587
        %v1589 = vadd.f32 %v1588, -0.4999988
        %v1590 = vmul.f32 %v1585, %v1589
        %v1591 = vadd.f32 1.0, %v1590
        %v1592 = vmul.f32 %v1583, %v1583
        %v1593 = vmul.f32 %v1592, -0.00019511016
        %v1594 = vadd.f32 %v1593, 0.008332121
        %v1595 = vmul.f32 %v1592, %v1594
        %v1596 = vadd.f32 %v1595, -0.16666654
        %v1597 = vmul.f32 %v1592, %v1596
        %v1598 = vadd.f32 %v1597, 1.0
        %v1599 = vmul.f32 %v1598, %v1583
        %vm1600 = vweird.f32 %v531
        %v1601 = vand.u32 %v1584, 3
        %vm1602 = vcmp.lt.s32.totalorder %v1601, 2
        %vm1603 = vcmp.eq.s32.totalorder %v1601, 0
        %v1604 = vxor.u32 %v1599, 2147483648
        %v1605 = vsel %vm1603, %v1591, %v1604
        %vm1606 = vcmp.eq.s32.totalorder %v1601, 2
        %v1607 = vxor.u32 %v1591, 2147483648
        %v1608 = vsel %vm1606, %v1607, %v1599
        %v1609 = vsel %vm1602, %v1605, %v1608
        %v1610 = vsel %vm1600, nan, %v1609
        %v1611 = vand.u32 2147483647, %v532
        %vm1612 = vcmp.le.f32.partialorder %v1611, 0.7853982
        %vm1613 = vcmp.lt.s32.totalorder %v532, 0
        %v1614 = vand.u32 %v532, 2139095040
        %v1615 = vshrl.u32 %v1614, 23
        %v1616 = vsub.s32 %v1615, 127
        %v1617 = vand.u32 2147483647, %v532
        %v1618 = vand.u32 %v1617, 8388607
        %v1619 = vor.u32 %v1618, 8388608
        %v1620 = vsub.s32 0, %v1619
        %v1621 = vadd.s32 %v1616, 1
        %vm1622 = vcmp.gt.s32.totalorder %v1621, 0
        %v1623 = vsel %vm1622, %v1621, 0
        %v1624 = vshrl.u32 %v1623, 5
        %v1625 = vand.u32 %v1623, 31
        %v1626 = vsub.s32 32, %v1625
        %v1627 = vshrl.u32 683565275, %v1626
        %v1628 = vshll.u32 683565275, %v1625
        %v1629 = vshrl.u32 2475754826, %v1626
        %v1630 = vor.u32 %v1628, %v1629
        %v1631 = vshll.u32 2475754826, %v1625
        %v1632 = vshrl.u32 2131351028, %v1626
        %v1633 = vor.u32 %v1631, %v1632
        %v1634 = vshll.u32 2131351028, %v1625
        %v1635 = vshrl.u32 2102212464, %v1626
        %v1636 = vor.u32 %v1634, %v1635
        %v1637 = vshll.u32 2102212464, %v1625
        %v1638 = vshrl.u32 920167782, %v1626
        %v1639 = vor.u32 %v1637, %v1638
        %v1640 = vshll.u32 920167782, %v1625
        %v1641 = vshrl.u32 1326507024, %v1626
        %v1642 = vor.u32 %v1640, %v1641
        %vm1643 = vcmp.lt.s32.totalorder %v1624, 1
        %vm1644 = vcmp.lt.s32.totalorder %v1624, 2
        %vm1645 = vcmp.lt.s32.totalorder %v1624, 3
        %vm1646 = vcmp.lt.s32.totalorder %v1624, 4
        %v1647 = vsel %vm1643, %v1627, %v1630
        %v1648 = vsel %vm1646, %v1636, 2102212464
        %v1649 = vsel %vm1645, %v1633, %v1648
        %v1650 = vsel %vm1644, %v1647, %v1649
        %v1651 = vsel %vm1643, %v1630, %v1633
        %v1652 = vsel %vm1646, %v1639, 920167782
        %v1653 = vsel %vm1645, %v1636, %v1652
        %v1654 = vsel %vm1644, %v1651, %v1653
        %v1655 = vsel %vm1643, %v1633, %v1636
        %v1656 = vsel %vm1646, %v1642, 1326507024
        %v1657 = vsel %vm1645, %v1639, %v1656
        %v1658 = vsel %vm1644, %v1655, %v1657
        %v1659 = vshll.u32 %v1619, 8
        %v1660 = vand.u32 %v1659, 65535
        %v1661 = vshrl.u32 %v1659, 16
        %v1662 = vand.u32 %v1658, 65535
        %v1663 = vshrl.u32 %v1658, 16
        %v1664 = vmul.u32 %v1660, %v1662
        %v1665 = vmul.u32 %v1660, %v1663
        %v1666 = vmul.u32 %v1661, %v1662
        %v1667 = vmul.u32 %v1661, %v1663
        %v1668 = vshll.u32 %v1665, 16
        %v1669 = vshrl.u32 %v1665, 16
        %v1670 = vshll.u32 %v1666, 16
        %v1671 = vshrl.u32 %v1666, 16
        %vm1672 = vc.u32 %v1664, %v1668
        %v1673 = vsel %vm1672, 1, 0
        %v1674 = vadd.s32 %v1664, %v1668
        %v1675 = vadd.s32 %v1667, %v1673
        %vm1676 = vc.u32 %v1674, %v1670
        %v1677 = vsel %vm1676, 1, 0
        %v1678 = vadd.s32 %v1674, %v1670
        %v1679 = vadd.s32 %v1675, %v1677
        %v1680 = vadd.s32 %v1679, %v1669
        %v1681 = vadd.s32 %v1680, %v1671
        %v1682 = vand.u32 %v1659, 65535
        %v1683 = vshrl.u32 %v1659, 16
        %v1684 = vand.u32 %v1654, 65535
        %v1685 = vshrl.u32 %v1654, 16
        %v1686 = vmul.u32 %v1682, %v1684
        %v1687 = vmul.u32 %v1682, %v1685
        %v1688 = vmul.u32 %v1683, %v1684
        %v1689 = vmul.u32 %v1683, %v1685
        %v1690 = vshll.u32 %v1687, 16
        %v1691 = vshrl.u32 %v1687, 16
        %v1692 = vshll.u32 %v1688, 16
        %v1693 = vshrl.u32 %v1688, 16
        %vm1694 = vc.u32 %v1686, %v1690
        %v1695 = vsel %vm1694, 1, 0
        %v1696 = vadd.s32 %v1686, %v1690
        %v1697 = vadd.s32 %v1689, %v1695
        %vm1698 = vc.u32 %v1696, %v1692
        %v1699 = vsel %vm1698, 1, 0
        %v1700 = vadd.s32 %v1696, %v1692
        %v1701 = vadd.s32 %v1697, %v1699
        %v1702 = vadd.s32 %v1701, %v1691
        %v1703 = vadd.s32 %v1702, %v1693
        %v1704 = vmul.u32 %v1659, %v1650
        %v1705 = vadd.s32 %v1681, %v1700
        %vm1706 = vc.u32 %v1681, %v1700
        %v1707 = vadd.s32 %v1703, 1
        %v1708 = vsel %vm1706, %v1707, %v1703
        %v1709 = vadd.s32 %v1704, %v1708
        %v1710 = vadd.s32 %v1709, 536870912
        %v1711 = vshrl.u32 %v1710, 30
        %v1712 = vshll.u32 %v1711, 30
        %v1713 = vsub.s32 %v1709, %v1712
        %vm1714 = vcmp.lt.s32.totalorder %v1713, 0
        %v1715 = vsub.s32 0, %v1713
        %v1716 = vsel %vm1714, %v1715, %v1713
        %v1717 = vclz %v1716
        %v1718 = vsub.s32 %v1717, 2
        %vm1719 = vcmp.gt.s32.totalorder 0, %v1718
        %v1720 = vsel %vm1719, 0, %v1718
        %v1721 = vsub.s32 32, %v1720
        %v1722 = vshll.u32 %v1713, %v1720
        %v1723 = vshrl.u32 %v1705, %v1721
        %v1724 = vor.u32 %v1722, %v1723
        %v1725 = vsub.s32 4294967266, %v1720
        %v1726 = vadd.s32 %v1725, 127
        %v1727 = vshll.u32 %v1726, 23
        %v1728 = vor.u32 4788187, %v1727
        %v1729 = vand.u32 2147483647, %v1728
        %v1731 = vcvt.s32.f32 %v1724
        %v1732 = vmul.f32 %v1731, %v1729
        %v1733 = vxor.u32 %v1732, 2147483648
        %v1734 = vsel %vm1613, %v1733, %v1732
        %v1735 = vsub.s32 4, %v1711
        %v1736 = vsel %vm1613, %v1735, %v1711
        %v1737 = vsel %vm1612, %v532, %v1734
        %v1738 = vsel %vm1612, 0, %v1736
        %v1739 = vmul.f32 %v1737, %v1737
        %v1740 = vmul.f32 %v1739, -0.001358992
        %v1741 = vadd.f32 %v1740, 0.041655596
        %v1742 = vmul.f32 %v1739, %v1741
        %v1743 = vadd.f32 %v1742, -0.4999988
        %v1744 = vmul.f32 %v1739, %v1743
        %v1745 = vadd.f32 1.0, %v1744
        %v1746 = vmul.f32 %v1737, %v1737
        %v1747 = vmul.f32 %v1746, -0.00019511016
        %v1748 = vadd.f32 %v1747, 0.008332121
        %v1749 = vmul.f32 %v1746, %v1748
        %v1750 = vadd.f32 %v1749, -0.16666654
        %v1751 = vmul.f32 %v1746, %v1750
        %v1752 = vadd.f32 %v1751, 1.0
        %v1753 = vmul.f32 %v1752, %v1737
        %vm1754 = vweird.f32 %v532
        %v1755 = vand.u32 %v1738, 3
        %vm1756 = vcmp.lt.s32.totalorder %v1755, 2
        %vm1757 = vcmp.eq.s32.totalorder %v1755, 0
        %v1758 = vxor.u32 %v1753, 2147483648
        %v1759 = vsel %vm1757, %v1745, %v1758
        %vm1760 = vcmp.eq.s32.totalorder %v1755, 2
        %v1761 = vxor.u32 %v1745, 2147483648
        %v1762 = vsel %vm1760, %v1761, %v1753
        %v1763 = vsel %vm1756, %v1759, %v1762
        %v1764 = vsel %vm1754, nan, %v1763
        %v1765 = vmul.f32 %v474, %v686
        %v1766 = vmul.f32 %v474, %v840
        %v1767 = vmul.f32 %v474, %v994
        %v1768 = vmul.f32 %v474, %v1148
        %v1769 = vmul.f32 %v474, %v1302
        %v1770 = vmul.f32 %v474, %v1456
        %v1771 = vmul.f32 %v474, %v1610
        %v1772 = vmul.f32 %v474, %v1764
        %1773 = vst [vmem:[#allocation2] sm:$0xff] %v1765
        %1774 = vst [vmem:[#allocation2 + $0x8] sm:$0xff] %v1766
        %1775 = vst [vmem:[#allocation2 + $0x10] sm:$0xff] %v1767
        %1776 = vst [vmem:[#allocation2 + $0x18] sm:$0xff] %v1768
        %1777 = vst [vmem:[#allocation2 + $0x20] sm:$0xff] %v1769
        %1778 = vst [vmem:[#allocation2 + $0x28] sm:$0xff] %v1770
        %1779 = vst [vmem:[#allocation2 + $0x30] sm:$0xff] %v1771
        %1780 = vst [vmem:[#allocation2 + $0x38] sm:$0xff] %v1772
        %v1781 = vand.u32 2147483647, %v525
        %vm1782 = vcmp.le.f32.partialorder %v1781, 0.7853982
        %vm1783 = vcmp.lt.s32.totalorder %v525, 0
        %v1784 = vand.u32 %v525, 2139095040
        %v1785 = vshrl.u32 %v1784, 23
        %v1786 = vsub.s32 %v1785, 127
        %v1787 = vand.u32 2147483647, %v525
        %v1788 = vand.u32 %v1787, 8388607
        %v1789 = vor.u32 %v1788, 8388608
        %v1790 = vsub.s32 0, %v1789
        %v1791 = vadd.s32 %v1786, 1
        %vm1792 = vcmp.gt.s32.totalorder %v1791, 0
        %v1793 = vsel %vm1792, %v1791, 0
        %v1794 = vshrl.u32 %v1793, 5
        %v1795 = vand.u32 %v1793, 31
        %v1796 = vsub.s32 32, %v1795
        %v1797 = vshrl.u32 683565275, %v1796
        %v1798 = vshll.u32 683565275, %v1795
        %v1799 = vshrl.u32 2475754826, %v1796
        %v1800 = vor.u32 %v1798, %v1799
        %v1801 = vshll.u32 2475754826, %v1795
        %v1802 = vshrl.u32 2131351028, %v1796
        %v1803 = vor.u32 %v1801, %v1802
        %v1804 = vshll.u32 2131351028, %v1795
        %v1805 = vshrl.u32 2102212464, %v1796
        %v1806 = vor.u32 %v1804, %v1805
        %v1807 = vshll.u32 2102212464, %v1795
        %v1808 = vshrl.u32 920167782, %v1796
        %v1809 = vor.u32 %v1807, %v1808
        %v1810 = vshll.u32 920167782, %v1795
        %v1811 = vshrl.u32 1326507024, %v1796
        %v1812 = vor.u32 %v1810, %v1811
        %vm1813 = vcmp.lt.s32.totalorder %v1794, 1
        %vm1814 = vcmp.lt.s32.totalorder %v1794, 2
        %vm1815 = vcmp.lt.s32.totalorder %v1794, 3
        %vm1816 = vcmp.lt.s32.totalorder %v1794, 4
        %v1817 = vsel %vm1813, %v1797, %v1800
        %v1818 = vsel %vm1816, %v1806, 2102212464
        %v1819 = vsel %vm1815, %v1803, %v1818
        %v1820 = vsel %vm1814, %v1817, %v1819
        %v1821 = vsel %vm1813, %v1800, %v1803
        %v1822 = vsel %vm1816, %v1809, 920167782
        %v1823 = vsel %vm1815, %v1806, %v1822
        %v1824 = vsel %vm1814, %v1821, %v1823
        %v1825 = vsel %vm1813, %v1803, %v1806
        %v1826 = vsel %vm1816, %v1812, 1326507024
        %v1827 = vsel %vm1815, %v1809, %v1826
        %v1828 = vsel %vm1814, %v1825, %v1827
        %v1829 = vshll.u32 %v1789, 8
        %v1830 = vand.u32 %v1829, 65535
        %v1831 = vshrl.u32 %v1829, 16
        %v1832 = vand.u32 %v1828, 65535
        %v1833 = vshrl.u32 %v1828, 16
        %v1834 = vmul.u32 %v1830, %v1832
        %v1835 = vmul.u32 %v1830, %v1833
        %v1836 = vmul.u32 %v1831, %v1832
        %v1837 = vmul.u32 %v1831, %v1833
        %v1838 = vshll.u32 %v1835, 16
        %v1839 = vshrl.u32 %v1835, 16
        %v1840 = vshll.u32 %v1836, 16
        %v1841 = vshrl.u32 %v1836, 16
        %vm1842 = vc.u32 %v1834, %v1838
        %v1843 = vsel %vm1842, 1, 0
        %v1844 = vadd.s32 %v1834, %v1838
        %v1845 = vadd.s32 %v1837, %v1843
        %vm1846 = vc.u32 %v1844, %v1840
        %v1847 = vsel %vm1846, 1, 0
        %v1848 = vadd.s32 %v1844, %v1840
        %v1849 = vadd.s32 %v1845, %v1847
        %v1850 = vadd.s32 %v1849, %v1839
        %v1851 = vadd.s32 %v1850, %v1841
        %v1852 = vand.u32 %v1829, 65535
        %v1853 = vshrl.u32 %v1829, 16
        %v1854 = vand.u32 %v1824, 65535
        %v1855 = vshrl.u32 %v1824, 16
        %v1856 = vmul.u32 %v1852, %v1854
        %v1857 = vmul.u32 %v1852, %v1855
        %v1858 = vmul.u32 %v1853, %v1854
        %v1859 = vmul.u32 %v1853, %v1855
        %v1860 = vshll.u32 %v1857, 16
        %v1861 = vshrl.u32 %v1857, 16
        %v1862 = vshll.u32 %v1858, 16
        %v1863 = vshrl.u32 %v1858, 16
        %vm1864 = vc.u32 %v1856, %v1860
        %v1865 = vsel %vm1864, 1, 0
        %v1866 = vadd.s32 %v1856, %v1860
        %v1867 = vadd.s32 %v1859, %v1865
        %vm1868 = vc.u32 %v1866, %v1862
        %v1869 = vsel %vm1868, 1, 0
        %v1870 = vadd.s32 %v1866, %v1862
        %v1871 = vadd.s32 %v1867, %v1869
        %v1872 = vadd.s32 %v1871, %v1861
        %v1873 = vadd.s32 %v1872, %v1863
        %v1874 = vmul.u32 %v1829, %v1820
        %v1875 = vadd.s32 %v1851, %v1870
        %vm1876 = vc.u32 %v1851, %v1870
        %v1877 = vadd.s32 %v1873, 1
        %v1878 = vsel %vm1876, %v1877, %v1873
        %v1879 = vadd.s32 %v1874, %v1878
        %v1880 = vadd.s32 %v1879, 536870912
        %v1881 = vshrl.u32 %v1880, 30
        %v1882 = vshll.u32 %v1881, 30
        %v1883 = vsub.s32 %v1879, %v1882
        %vm1884 = vcmp.lt.s32.totalorder %v1883, 0
        %v1885 = vsub.s32 0, %v1883
        %v1886 = vsel %vm1884, %v1885, %v1883
        %v1887 = vclz %v1886
        %v1888 = vsub.s32 %v1887, 2
        %vm1889 = vcmp.gt.s32.totalorder 0, %v1888
        %v1890 = vsel %vm1889, 0, %v1888
        %v1891 = vsub.s32 32, %v1890
        %v1892 = vshll.u32 %v1883, %v1890
        %v1893 = vshrl.u32 %v1875, %v1891
        %v1894 = vor.u32 %v1892, %v1893
        %v1895 = vsub.s32 4294967266, %v1890
        %v1896 = vadd.s32 %v1895, 127
        %v1897 = vshll.u32 %v1896, 23
        %v1898 = vor.u32 4788187, %v1897
        %v1899 = vand.u32 2147483647, %v1898
        %v1901 = vcvt.s32.f32 %v1894
        %v1902 = vmul.f32 %v1901, %v1899
        %v1903 = vxor.u32 %v1902, 2147483648
        %v1904 = vsel %vm1783, %v1903, %v1902
        %v1905 = vsub.s32 4, %v1881
        %v1906 = vsel %vm1783, %v1905, %v1881
        %v1907 = vsel %vm1782, %v525, %v1904
        %v1908 = vsel %vm1782, 0, %v1906
        %v1909 = vmul.f32 %v1907, %v1907
        %v1910 = vmul.f32 %v1909, -0.001358992
        %v1911 = vadd.f32 %v1910, 0.041655596
        %v1912 = vmul.f32 %v1909, %v1911
        %v1913 = vadd.f32 %v1912, -0.4999988
        %v1914 = vmul.f32 %v1909, %v1913
        %v1915 = vadd.f32 1.0, %v1914
        %v1916 = vmul.f32 %v1907, %v1907
        %v1917 = vmul.f32 %v1916, -0.00019511016
        %v1918 = vadd.f32 %v1917, 0.008332121
        %v1919 = vmul.f32 %v1916, %v1918
        %v1920 = vadd.f32 %v1919, -0.16666654
        %v1921 = vmul.f32 %v1916, %v1920
        %v1922 = vadd.f32 %v1921, 1.0
        %v1923 = vmul.f32 %v1922, %v1907
        %vm1924 = vweird.f32 %v525
        %v1925 = vadd.s32 %v1908, 3
        %v1926 = vand.u32 %v1925, 3
        %vm1927 = vcmp.lt.s32.totalorder %v1926, 2
        %vm1928 = vcmp.eq.s32.totalorder %v1926, 0
        %v1929 = vxor.u32 %v1923, 2147483648
        %v1930 = vsel %vm1928, %v1915, %v1929
        %vm1931 = vcmp.eq.s32.totalorder %v1926, 2
        %v1932 = vxor.u32 %v1915, 2147483648
        %v1933 = vsel %vm1931, %v1932, %v1923
        %v1934 = vsel %vm1927, %v1930, %v1933
        %v1935 = vsel %vm1924, nan, %v1934
        %v1936 = vand.u32 2147483647, %v526
        %vm1937 = vcmp.le.f32.partialorder %v1936, 0.7853982
        %vm1938 = vcmp.lt.s32.totalorder %v526, 0
        %v1939 = vand.u32 %v526, 2139095040
        %v1940 = vshrl.u32 %v1939, 23
        %v1941 = vsub.s32 %v1940, 127
        %v1942 = vand.u32 2147483647, %v526
        %v1943 = vand.u32 %v1942, 8388607
        %v1944 = vor.u32 %v1943, 8388608
        %v1945 = vsub.s32 0, %v1944
        %v1946 = vadd.s32 %v1941, 1
        %vm1947 = vcmp.gt.s32.totalorder %v1946, 0
        %v1948 = vsel %vm1947, %v1946, 0
        %v1949 = vshrl.u32 %v1948, 5
        %v1950 = vand.u32 %v1948, 31
        %v1951 = vsub.s32 32, %v1950
        %v1952 = vshrl.u32 683565275, %v1951
        %v1953 = vshll.u32 683565275, %v1950
        %v1954 = vshrl.u32 2475754826, %v1951
        %v1955 = vor.u32 %v1953, %v1954
        %v1956 = vshll.u32 2475754826, %v1950
        %v1957 = vshrl.u32 2131351028, %v1951
        %v1958 = vor.u32 %v1956, %v1957
        %v1959 = vshll.u32 2131351028, %v1950
        %v1960 = vshrl.u32 2102212464, %v1951
        %v1961 = vor.u32 %v1959, %v1960
        %v1962 = vshll.u32 2102212464, %v1950
        %v1963 = vshrl.u32 920167782, %v1951
        %v1964 = vor.u32 %v1962, %v1963
        %v1965 = vshll.u32 920167782, %v1950
        %v1966 = vshrl.u32 1326507024, %v1951
        %v1967 = vor.u32 %v1965, %v1966
        %vm1968 = vcmp.lt.s32.totalorder %v1949, 1
        %vm1969 = vcmp.lt.s32.totalorder %v1949, 2
        %vm1970 = vcmp.lt.s32.totalorder %v1949, 3
        %vm1971 = vcmp.lt.s32.totalorder %v1949, 4
        %v1972 = vsel %vm1968, %v1952, %v1955
        %v1973 = vsel %vm1971, %v1961, 2102212464
        %v1974 = vsel %vm1970, %v1958, %v1973
        %v1975 = vsel %vm1969, %v1972, %v1974
        %v1976 = vsel %vm1968, %v1955, %v1958
        %v1977 = vsel %vm1971, %v1964, 920167782
        %v1978 = vsel %vm1970, %v1961, %v1977
        %v1979 = vsel %vm1969, %v1976, %v1978
        %v1980 = vsel %vm1968, %v1958, %v1961
        %v1981 = vsel %vm1971, %v1967, 1326507024
        %v1982 = vsel %vm1970, %v1964, %v1981
        %v1983 = vsel %vm1969, %v1980, %v1982
        %v1984 = vshll.u32 %v1944, 8
        %v1985 = vand.u32 %v1984, 65535
        %v1986 = vshrl.u32 %v1984, 16
        %v1987 = vand.u32 %v1983, 65535
        %v1988 = vshrl.u32 %v1983, 16
        %v1989 = vmul.u32 %v1985, %v1987
        %v1990 = vmul.u32 %v1985, %v1988
        %v1991 = vmul.u32 %v1986, %v1987
        %v1992 = vmul.u32 %v1986, %v1988
        %v1993 = vshll.u32 %v1990, 16
        %v1994 = vshrl.u32 %v1990, 16
        %v1995 = vshll.u32 %v1991, 16
        %v1996 = vshrl.u32 %v1991, 16
        %vm1997 = vc.u32 %v1989, %v1993
        %v1998 = vsel %vm1997, 1, 0
        %v1999 = vadd.s32 %v1989, %v1993
        %v2000 = vadd.s32 %v1992, %v1998
        %vm2001 = vc.u32 %v1999, %v1995
        %v2002 = vsel %vm2001, 1, 0
        %v2003 = vadd.s32 %v1999, %v1995
        %v2004 = vadd.s32 %v2000, %v2002
        %v2005 = vadd.s32 %v2004, %v1994
        %v2006 = vadd.s32 %v2005, %v1996
        %v2007 = vand.u32 %v1984, 65535
        %v2008 = vshrl.u32 %v1984, 16
        %v2009 = vand.u32 %v1979, 65535
        %v2010 = vshrl.u32 %v1979, 16
        %v2011 = vmul.u32 %v2007, %v2009
        %v2012 = vmul.u32 %v2007, %v2010
        %v2013 = vmul.u32 %v2008, %v2009
        %v2014 = vmul.u32 %v2008, %v2010
        %v2015 = vshll.u32 %v2012, 16
        %v2016 = vshrl.u32 %v2012, 16
        %v2017 = vshll.u32 %v2013, 16
        %v2018 = vshrl.u32 %v2013, 16
        %vm2019 = vc.u32 %v2011, %v2015
        %v2020 = vsel %vm2019, 1, 0
        %v2021 = vadd.s32 %v2011, %v2015
        %v2022 = vadd.s32 %v2014, %v2020
        %vm2023 = vc.u32 %v2021, %v2017
        %v2024 = vsel %vm2023, 1, 0
        %v2025 = vadd.s32 %v2021, %v2017
        %v2026 = vadd.s32 %v2022, %v2024
        %v2027 = vadd.s32 %v2026, %v2016
        %v2028 = vadd.s32 %v2027, %v2018
        %v2029 = vmul.u32 %v1984, %v1975
        %v2030 = vadd.s32 %v2006, %v2025
        %vm2031 = vc.u32 %v2006, %v2025
        %v2032 = vadd.s32 %v2028, 1
        %v2033 = vsel %vm2031, %v2032, %v2028
        %v2034 = vadd.s32 %v2029, %v2033
        %v2035 = vadd.s32 %v2034, 536870912
        %v2036 = vshrl.u32 %v2035, 30
        %v2037 = vshll.u32 %v2036, 30
        %v2038 = vsub.s32 %v2034, %v2037
        %vm2039 = vcmp.lt.s32.totalorder %v2038, 0
        %v2040 = vsub.s32 0, %v2038
        %v2041 = vsel %vm2039, %v2040, %v2038
        %v2042 = vclz %v2041
        %v2043 = vsub.s32 %v2042, 2
        %vm2044 = vcmp.gt.s32.totalorder 0, %v2043
        %v2045 = vsel %vm2044, 0, %v2043
        %v2046 = vsub.s32 32, %v2045
        %v2047 = vshll.u32 %v2038, %v2045
        %v2048 = vshrl.u32 %v2030, %v2046
        %v2049 = vor.u32 %v2047, %v2048
        %v2050 = vsub.s32 4294967266, %v2045
        %v2051 = vadd.s32 %v2050, 127
        %v2052 = vshll.u32 %v2051, 23
        %v2053 = vor.u32 4788187, %v2052
        %v2054 = vand.u32 2147483647, %v2053
        %v2056 = vcvt.s32.f32 %v2049
        %v2057 = vmul.f32 %v2056, %v2054
        %v2058 = vxor.u32 %v2057, 2147483648
        %v2059 = vsel %vm1938, %v2058, %v2057
        %v2060 = vsub.s32 4, %v2036
        %v2061 = vsel %vm1938, %v2060, %v2036
        %v2062 = vsel %vm1937, %v526, %v2059
        %v2063 = vsel %vm1937, 0, %v2061
        %v2064 = vmul.f32 %v2062, %v2062
        %v2065 = vmul.f32 %v2064, -0.001358992
        %v2066 = vadd.f32 %v2065, 0.041655596
        %v2067 = vmul.f32 %v2064, %v2066
        %v2068 = vadd.f32 %v2067, -0.4999988
        %v2069 = vmul.f32 %v2064, %v2068
        %v2070 = vadd.f32 1.0, %v2069
        %v2071 = vmul.f32 %v2062, %v2062
        %v2072 = vmul.f32 %v2071, -0.00019511016
        %v2073 = vadd.f32 %v2072, 0.008332121
        %v2074 = vmul.f32 %v2071, %v2073
        %v2075 = vadd.f32 %v2074, -0.16666654
        %v2076 = vmul.f32 %v2071, %v2075
        %v2077 = vadd.f32 %v2076, 1.0
        %v2078 = vmul.f32 %v2077, %v2062
        %vm2079 = vweird.f32 %v526
        %v2080 = vadd.s32 %v2063, 3
        %v2081 = vand.u32 %v2080, 3
        %vm2082 = vcmp.lt.s32.totalorder %v2081, 2
        %vm2083 = vcmp.eq.s32.totalorder %v2081, 0
        %v2084 = vxor.u32 %v2078, 2147483648
        %v2085 = vsel %vm2083, %v2070, %v2084
        %vm2086 = vcmp.eq.s32.totalorder %v2081, 2
        %v2087 = vxor.u32 %v2070, 2147483648
        %v2088 = vsel %vm2086, %v2087, %v2078
        %v2089 = vsel %vm2082, %v2085, %v2088
        %v2090 = vsel %vm2079, nan, %v2089
        %v2091 = vand.u32 2147483647, %v527
        %vm2092 = vcmp.le.f32.partialorder %v2091, 0.7853982
        %vm2093 = vcmp.lt.s32.totalorder %v527, 0
        %v2094 = vand.u32 %v527, 2139095040
        %v2095 = vshrl.u32 %v2094, 23
        %v2096 = vsub.s32 %v2095, 127
        %v2097 = vand.u32 2147483647, %v527
        %v2098 = vand.u32 %v2097, 8388607
        %v2099 = vor.u32 %v2098, 8388608
        %v2100 = vsub.s32 0, %v2099
        %v2101 = vadd.s32 %v2096, 1
        %vm2102 = vcmp.gt.s32.totalorder %v2101, 0
        %v2103 = vsel %vm2102, %v2101, 0
        %v2104 = vshrl.u32 %v2103, 5
        %v2105 = vand.u32 %v2103, 31
        %v2106 = vsub.s32 32, %v2105
        %v2107 = vshrl.u32 683565275, %v2106
        %v2108 = vshll.u32 683565275, %v2105
        %v2109 = vshrl.u32 2475754826, %v2106
        %v2110 = vor.u32 %v2108, %v2109
        %v2111 = vshll.u32 2475754826, %v2105
        %v2112 = vshrl.u32 2131351028, %v2106
        %v2113 = vor.u32 %v2111, %v2112
        %v2114 = vshll.u32 2131351028, %v2105
        %v2115 = vshrl.u32 2102212464, %v2106
        %v2116 = vor.u32 %v2114, %v2115
        %v2117 = vshll.u32 2102212464, %v2105
        %v2118 = vshrl.u32 920167782, %v2106
        %v2119 = vor.u32 %v2117, %v2118
        %v2120 = vshll.u32 920167782, %v2105
        %v2121 = vshrl.u32 1326507024, %v2106
        %v2122 = vor.u32 %v2120, %v2121
        %vm2123 = vcmp.lt.s32.totalorder %v2104, 1
        %vm2124 = vcmp.lt.s32.totalorder %v2104, 2
        %vm2125 = vcmp.lt.s32.totalorder %v2104, 3
        %vm2126 = vcmp.lt.s32.totalorder %v2104, 4
        %v2127 = vsel %vm2123, %v2107, %v2110
        %v2128 = vsel %vm2126, %v2116, 2102212464
        %v2129 = vsel %vm2125, %v2113, %v2128
        %v2130 = vsel %vm2124, %v2127, %v2129
        %v2131 = vsel %vm2123, %v2110, %v2113
        %v2132 = vsel %vm2126, %v2119, 920167782
        %v2133 = vsel %vm2125, %v2116, %v2132
        %v2134 = vsel %vm2124, %v2131, %v2133
        %v2135 = vsel %vm2123, %v2113, %v2116
        %v2136 = vsel %vm2126, %v2122, 1326507024
        %v2137 = vsel %vm2125, %v2119, %v2136
        %v2138 = vsel %vm2124, %v2135, %v2137
        %v2139 = vshll.u32 %v2099, 8
        %v2140 = vand.u32 %v2139, 65535
        %v2141 = vshrl.u32 %v2139, 16
        %v2142 = vand.u32 %v2138, 65535
        %v2143 = vshrl.u32 %v2138, 16
        %v2144 = vmul.u32 %v2140, %v2142
        %v2145 = vmul.u32 %v2140, %v2143
        %v2146 = vmul.u32 %v2141, %v2142
        %v2147 = vmul.u32 %v2141, %v2143
        %v2148 = vshll.u32 %v2145, 16
        %v2149 = vshrl.u32 %v2145, 16
        %v2150 = vshll.u32 %v2146, 16
        %v2151 = vshrl.u32 %v2146, 16
        %vm2152 = vc.u32 %v2144, %v2148
        %v2153 = vsel %vm2152, 1, 0
        %v2154 = vadd.s32 %v2144, %v2148
        %v2155 = vadd.s32 %v2147, %v2153
        %vm2156 = vc.u32 %v2154, %v2150
        %v2157 = vsel %vm2156, 1, 0
        %v2158 = vadd.s32 %v2154, %v2150
        %v2159 = vadd.s32 %v2155, %v2157
        %v2160 = vadd.s32 %v2159, %v2149
        %v2161 = vadd.s32 %v2160, %v2151
        %v2162 = vand.u32 %v2139, 65535
        %v2163 = vshrl.u32 %v2139, 16
        %v2164 = vand.u32 %v2134, 65535
        %v2165 = vshrl.u32 %v2134, 16
        %v2166 = vmul.u32 %v2162, %v2164
        %v2167 = vmul.u32 %v2162, %v2165
        %v2168 = vmul.u32 %v2163, %v2164
        %v2169 = vmul.u32 %v2163, %v2165
        %v2170 = vshll.u32 %v2167, 16
        %v2171 = vshrl.u32 %v2167, 16
        %v2172 = vshll.u32 %v2168, 16
        %v2173 = vshrl.u32 %v2168, 16
        %vm2174 = vc.u32 %v2166, %v2170
        %v2175 = vsel %vm2174, 1, 0
        %v2176 = vadd.s32 %v2166, %v2170
        %v2177 = vadd.s32 %v2169, %v2175
        %vm2178 = vc.u32 %v2176, %v2172
        %v2179 = vsel %vm2178, 1, 0
        %v2180 = vadd.s32 %v2176, %v2172
        %v2181 = vadd.s32 %v2177, %v2179
        %v2182 = vadd.s32 %v2181, %v2171
        %v2183 = vadd.s32 %v2182, %v2173
        %v2184 = vmul.u32 %v2139, %v2130
        %v2185 = vadd.s32 %v2161, %v2180
        %vm2186 = vc.u32 %v2161, %v2180
        %v2187 = vadd.s32 %v2183, 1
        %v2188 = vsel %vm2186, %v2187, %v2183
        %v2189 = vadd.s32 %v2184, %v2188
        %v2190 = vadd.s32 %v2189, 536870912
        %v2191 = vshrl.u32 %v2190, 30
        %v2192 = vshll.u32 %v2191, 30
        %v2193 = vsub.s32 %v2189, %v2192
        %vm2194 = vcmp.lt.s32.totalorder %v2193, 0
        %v2195 = vsub.s32 0, %v2193
        %v2196 = vsel %vm2194, %v2195, %v2193
        %v2197 = vclz %v2196
        %v2198 = vsub.s32 %v2197, 2
        %vm2199 = vcmp.gt.s32.totalorder 0, %v2198
        %v2200 = vsel %vm2199, 0, %v2198
        %v2201 = vsub.s32 32, %v2200
        %v2202 = vshll.u32 %v2193, %v2200
        %v2203 = vshrl.u32 %v2185, %v2201
        %v2204 = vor.u32 %v2202, %v2203
        %v2205 = vsub.s32 4294967266, %v2200
        %v2206 = vadd.s32 %v2205, 127
        %v2207 = vshll.u32 %v2206, 23
        %v2208 = vor.u32 4788187, %v2207
        %v2209 = vand.u32 2147483647, %v2208
        %v2211 = vcvt.s32.f32 %v2204
        %v2212 = vmul.f32 %v2211, %v2209
        %v2213 = vxor.u32 %v2212, 2147483648
        %v2214 = vsel %vm2093, %v2213, %v2212
        %v2215 = vsub.s32 4, %v2191
        %v2216 = vsel %vm2093, %v2215, %v2191
        %v2217 = vsel %vm2092, %v527, %v2214
        %v2218 = vsel %vm2092, 0, %v2216
        %v2219 = vmul.f32 %v2217, %v2217
        %v2220 = vmul.f32 %v2219, -0.001358992
        %v2221 = vadd.f32 %v2220, 0.041655596
        %v2222 = vmul.f32 %v2219, %v2221
        %v2223 = vadd.f32 %v2222, -0.4999988
        %v2224 = vmul.f32 %v2219, %v2223
        %v2225 = vadd.f32 1.0, %v2224
        %v2226 = vmul.f32 %v2217, %v2217
        %v2227 = vmul.f32 %v2226, -0.00019511016
        %v2228 = vadd.f32 %v2227, 0.008332121
        %v2229 = vmul.f32 %v2226, %v2228
        %v2230 = vadd.f32 %v2229, -0.16666654
        %v2231 = vmul.f32 %v2226, %v2230
        %v2232 = vadd.f32 %v2231, 1.0
        %v2233 = vmul.f32 %v2232, %v2217
        %vm2234 = vweird.f32 %v527
        %v2235 = vadd.s32 %v2218, 3
        %v2236 = vand.u32 %v2235, 3
        %vm2237 = vcmp.lt.s32.totalorder %v2236, 2
        %vm2238 = vcmp.eq.s32.totalorder %v2236, 0
        %v2239 = vxor.u32 %v2233, 2147483648
        %v2240 = vsel %vm2238, %v2225, %v2239
        %vm2241 = vcmp.eq.s32.totalorder %v2236, 2
        %v2242 = vxor.u32 %v2225, 2147483648
        %v2243 = vsel %vm2241, %v2242, %v2233
        %v2244 = vsel %vm2237, %v2240, %v2243
        %v2245 = vsel %vm2234, nan, %v2244
        %v2246 = vand.u32 2147483647, %v528
        %vm2247 = vcmp.le.f32.partialorder %v2246, 0.7853982
        %vm2248 = vcmp.lt.s32.totalorder %v528, 0
        %v2249 = vand.u32 %v528, 2139095040
        %v2250 = vshrl.u32 %v2249, 23
        %v2251 = vsub.s32 %v2250, 127
        %v2252 = vand.u32 2147483647, %v528
        %v2253 = vand.u32 %v2252, 8388607
        %v2254 = vor.u32 %v2253, 8388608
        %v2255 = vsub.s32 0, %v2254
        %v2256 = vadd.s32 %v2251, 1
        %vm2257 = vcmp.gt.s32.totalorder %v2256, 0
        %v2258 = vsel %vm2257, %v2256, 0
        %v2259 = vshrl.u32 %v2258, 5
        %v2260 = vand.u32 %v2258, 31
        %v2261 = vsub.s32 32, %v2260
        %v2262 = vshrl.u32 683565275, %v2261
        %v2263 = vshll.u32 683565275, %v2260
        %v2264 = vshrl.u32 2475754826, %v2261
        %v2265 = vor.u32 %v2263, %v2264
        %v2266 = vshll.u32 2475754826, %v2260
        %v2267 = vshrl.u32 2131351028, %v2261
        %v2268 = vor.u32 %v2266, %v2267
        %v2269 = vshll.u32 2131351028, %v2260
        %v2270 = vshrl.u32 2102212464, %v2261
        %v2271 = vor.u32 %v2269, %v2270
        %v2272 = vshll.u32 2102212464, %v2260
        %v2273 = vshrl.u32 920167782, %v2261
        %v2274 = vor.u32 %v2272, %v2273
        %v2275 = vshll.u32 920167782, %v2260
        %v2276 = vshrl.u32 1326507024, %v2261
        %v2277 = vor.u32 %v2275, %v2276
        %vm2278 = vcmp.lt.s32.totalorder %v2259, 1
        %vm2279 = vcmp.lt.s32.totalorder %v2259, 2
        %vm2280 = vcmp.lt.s32.totalorder %v2259, 3
        %vm2281 = vcmp.lt.s32.totalorder %v2259, 4
        %v2282 = vsel %vm2278, %v2262, %v2265
        %v2283 = vsel %vm2281, %v2271, 2102212464
        %v2284 = vsel %vm2280, %v2268, %v2283
        %v2285 = vsel %vm2279, %v2282, %v2284
        %v2286 = vsel %vm2278, %v2265, %v2268
        %v2287 = vsel %vm2281, %v2274, 920167782
        %v2288 = vsel %vm2280, %v2271, %v2287
        %v2289 = vsel %vm2279, %v2286, %v2288
        %v2290 = vsel %vm2278, %v2268, %v2271
        %v2291 = vsel %vm2281, %v2277, 1326507024
        %v2292 = vsel %vm2280, %v2274, %v2291
        %v2293 = vsel %vm2279, %v2290, %v2292
        %v2294 = vshll.u32 %v2254, 8
        %v2295 = vand.u32 %v2294, 65535
        %v2296 = vshrl.u32 %v2294, 16
        %v2297 = vand.u32 %v2293, 65535
        %v2298 = vshrl.u32 %v2293, 16
        %v2299 = vmul.u32 %v2295, %v2297
        %v2300 = vmul.u32 %v2295, %v2298
        %v2301 = vmul.u32 %v2296, %v2297
        %v2302 = vmul.u32 %v2296, %v2298
        %v2303 = vshll.u32 %v2300, 16
        %v2304 = vshrl.u32 %v2300, 16
        %v2305 = vshll.u32 %v2301, 16
        %v2306 = vshrl.u32 %v2301, 16
        %vm2307 = vc.u32 %v2299, %v2303
        %v2308 = vsel %vm2307, 1, 0
        %v2309 = vadd.s32 %v2299, %v2303
        %v2310 = vadd.s32 %v2302, %v2308
        %vm2311 = vc.u32 %v2309, %v2305
        %v2312 = vsel %vm2311, 1, 0
        %v2313 = vadd.s32 %v2309, %v2305
        %v2314 = vadd.s32 %v2310, %v2312
        %v2315 = vadd.s32 %v2314, %v2304
        %v2316 = vadd.s32 %v2315, %v2306
        %v2317 = vand.u32 %v2294, 65535
        %v2318 = vshrl.u32 %v2294, 16
        %v2319 = vand.u32 %v2289, 65535
        %v2320 = vshrl.u32 %v2289, 16
        %v2321 = vmul.u32 %v2317, %v2319
        %v2322 = vmul.u32 %v2317, %v2320
        %v2323 = vmul.u32 %v2318, %v2319
        %v2324 = vmul.u32 %v2318, %v2320
        %v2325 = vshll.u32 %v2322, 16
        %v2326 = vshrl.u32 %v2322, 16
        %v2327 = vshll.u32 %v2323, 16
        %v2328 = vshrl.u32 %v2323, 16
        %vm2329 = vc.u32 %v2321, %v2325
        %v2330 = vsel %vm2329, 1, 0
        %v2331 = vadd.s32 %v2321, %v2325
        %v2332 = vadd.s32 %v2324, %v2330
        %vm2333 = vc.u32 %v2331, %v2327
        %v2334 = vsel %vm2333, 1, 0
        %v2335 = vadd.s32 %v2331, %v2327
        %v2336 = vadd.s32 %v2332, %v2334
        %v2337 = vadd.s32 %v2336, %v2326
        %v2338 = vadd.s32 %v2337, %v2328
        %v2339 = vmul.u32 %v2294, %v2285
        %v2340 = vadd.s32 %v2316, %v2335
        %vm2341 = vc.u32 %v2316, %v2335
        %v2342 = vadd.s32 %v2338, 1
        %v2343 = vsel %vm2341, %v2342, %v2338
        %v2344 = vadd.s32 %v2339, %v2343
        %v2345 = vadd.s32 %v2344, 536870912
        %v2346 = vshrl.u32 %v2345, 30
        %v2347 = vshll.u32 %v2346, 30
        %v2348 = vsub.s32 %v2344, %v2347
        %vm2349 = vcmp.lt.s32.totalorder %v2348, 0
        %v2350 = vsub.s32 0, %v2348
        %v2351 = vsel %vm2349, %v2350, %v2348
        %v2352 = vclz %v2351
        %v2353 = vsub.s32 %v2352, 2
        %vm2354 = vcmp.gt.s32.totalorder 0, %v2353
        %v2355 = vsel %vm2354, 0, %v2353
        %v2356 = vsub.s32 32, %v2355
        %v2357 = vshll.u32 %v2348, %v2355
        %v2358 = vshrl.u32 %v2340, %v2356
        %v2359 = vor.u32 %v2357, %v2358
        %v2360 = vsub.s32 4294967266, %v2355
        %v2361 = vadd.s32 %v2360, 127
        %v2362 = vshll.u32 %v2361, 23
        %v2363 = vor.u32 4788187, %v2362
        %v2364 = vand.u32 2147483647, %v2363
        %v2366 = vcvt.s32.f32 %v2359
        %v2367 = vmul.f32 %v2366, %v2364
        %v2368 = vxor.u32 %v2367, 2147483648
        %v2369 = vsel %vm2248, %v2368, %v2367
        %v2370 = vsub.s32 4, %v2346
        %v2371 = vsel %vm2248, %v2370, %v2346
        %v2372 = vsel %vm2247, %v528, %v2369
        %v2373 = vsel %vm2247, 0, %v2371
        %v2374 = vmul.f32 %v2372, %v2372
        %v2375 = vmul.f32 %v2374, -0.001358992
        %v2376 = vadd.f32 %v2375, 0.041655596
        %v2377 = vmul.f32 %v2374, %v2376
        %v2378 = vadd.f32 %v2377, -0.4999988
        %v2379 = vmul.f32 %v2374, %v2378
        %v2380 = vadd.f32 1.0, %v2379
        %v2381 = vmul.f32 %v2372, %v2372
        %v2382 = vmul.f32 %v2381, -0.00019511016
        %v2383 = vadd.f32 %v2382, 0.008332121
        %v2384 = vmul.f32 %v2381, %v2383
        %v2385 = vadd.f32 %v2384, -0.16666654
        %v2386 = vmul.f32 %v2381, %v2385
        %v2387 = vadd.f32 %v2386, 1.0
        %v2388 = vmul.f32 %v2387, %v2372
        %vm2389 = vweird.f32 %v528
        %v2390 = vadd.s32 %v2373, 3
        %v2391 = vand.u32 %v2390, 3
        %vm2392 = vcmp.lt.s32.totalorder %v2391, 2
        %vm2393 = vcmp.eq.s32.totalorder %v2391, 0
        %v2394 = vxor.u32 %v2388, 2147483648
        %v2395 = vsel %vm2393, %v2380, %v2394
        %vm2396 = vcmp.eq.s32.totalorder %v2391, 2
        %v2397 = vxor.u32 %v2380, 2147483648
        %v2398 = vsel %vm2396, %v2397, %v2388
        %v2399 = vsel %vm2392, %v2395, %v2398
        %v2400 = vsel %vm2389, nan, %v2399
        %v2401 = vand.u32 2147483647, %v529
        %vm2402 = vcmp.le.f32.partialorder %v2401, 0.7853982
        %vm2403 = vcmp.lt.s32.totalorder %v529, 0
        %v2404 = vand.u32 %v529, 2139095040
        %v2405 = vshrl.u32 %v2404, 23
        %v2406 = vsub.s32 %v2405, 127
        %v2407 = vand.u32 2147483647, %v529
        %v2408 = vand.u32 %v2407, 8388607
        %v2409 = vor.u32 %v2408, 8388608
        %v2410 = vsub.s32 0, %v2409
        %v2411 = vadd.s32 %v2406, 1
        %vm2412 = vcmp.gt.s32.totalorder %v2411, 0
        %v2413 = vsel %vm2412, %v2411, 0
        %v2414 = vshrl.u32 %v2413, 5
        %v2415 = vand.u32 %v2413, 31
        %v2416 = vsub.s32 32, %v2415
        %v2417 = vshrl.u32 683565275, %v2416
        %v2418 = vshll.u32 683565275, %v2415
        %v2419 = vshrl.u32 2475754826, %v2416
        %v2420 = vor.u32 %v2418, %v2419
        %v2421 = vshll.u32 2475754826, %v2415
        %v2422 = vshrl.u32 2131351028, %v2416
        %v2423 = vor.u32 %v2421, %v2422
        %v2424 = vshll.u32 2131351028, %v2415
        %v2425 = vshrl.u32 2102212464, %v2416
        %v2426 = vor.u32 %v2424, %v2425
        %v2427 = vshll.u32 2102212464, %v2415
        %v2428 = vshrl.u32 920167782, %v2416
        %v2429 = vor.u32 %v2427, %v2428
        %v2430 = vshll.u32 920167782, %v2415
        %v2431 = vshrl.u32 1326507024, %v2416
        %v2432 = vor.u32 %v2430, %v2431
        %vm2433 = vcmp.lt.s32.totalorder %v2414, 1
        %vm2434 = vcmp.lt.s32.totalorder %v2414, 2
        %vm2435 = vcmp.lt.s32.totalorder %v2414, 3
        %vm2436 = vcmp.lt.s32.totalorder %v2414, 4
        %v2437 = vsel %vm2433, %v2417, %v2420
        %v2438 = vsel %vm2436, %v2426, 2102212464
        %v2439 = vsel %vm2435, %v2423, %v2438
        %v2440 = vsel %vm2434, %v2437, %v2439
        %v2441 = vsel %vm2433, %v2420, %v2423
        %v2442 = vsel %vm2436, %v2429, 920167782
        %v2443 = vsel %vm2435, %v2426, %v2442
        %v2444 = vsel %vm2434, %v2441, %v2443
        %v2445 = vsel %vm2433, %v2423, %v2426
        %v2446 = vsel %vm2436, %v2432, 1326507024
        %v2447 = vsel %vm2435, %v2429, %v2446
        %v2448 = vsel %vm2434, %v2445, %v2447
        %v2449 = vshll.u32 %v2409, 8
        %v2450 = vand.u32 %v2449, 65535
        %v2451 = vshrl.u32 %v2449, 16
        %v2452 = vand.u32 %v2448, 65535
        %v2453 = vshrl.u32 %v2448, 16
        %v2454 = vmul.u32 %v2450, %v2452
        %v2455 = vmul.u32 %v2450, %v2453
        %v2456 = vmul.u32 %v2451, %v2452
        %v2457 = vmul.u32 %v2451, %v2453
        %v2458 = vshll.u32 %v2455, 16
        %v2459 = vshrl.u32 %v2455, 16
        %v2460 = vshll.u32 %v2456, 16
        %v2461 = vshrl.u32 %v2456, 16
        %vm2462 = vc.u32 %v2454, %v2458
        %v2463 = vsel %vm2462, 1, 0
        %v2464 = vadd.s32 %v2454, %v2458
        %v2465 = vadd.s32 %v2457, %v2463
        %vm2466 = vc.u32 %v2464, %v2460
        %v2467 = vsel %vm2466, 1, 0
        %v2468 = vadd.s32 %v2464, %v2460
        %v2469 = vadd.s32 %v2465, %v2467
        %v2470 = vadd.s32 %v2469, %v2459
        %v2471 = vadd.s32 %v2470, %v2461
        %v2472 = vand.u32 %v2449, 65535
        %v2473 = vshrl.u32 %v2449, 16
        %v2474 = vand.u32 %v2444, 65535
        %v2475 = vshrl.u32 %v2444, 16
        %v2476 = vmul.u32 %v2472, %v2474
        %v2477 = vmul.u32 %v2472, %v2475
        %v2478 = vmul.u32 %v2473, %v2474
        %v2479 = vmul.u32 %v2473, %v2475
        %v2480 = vshll.u32 %v2477, 16
        %v2481 = vshrl.u32 %v2477, 16
        %v2482 = vshll.u32 %v2478, 16
        %v2483 = vshrl.u32 %v2478, 16
        %vm2484 = vc.u32 %v2476, %v2480
        %v2485 = vsel %vm2484, 1, 0
        %v2486 = vadd.s32 %v2476, %v2480
        %v2487 = vadd.s32 %v2479, %v2485
        %vm2488 = vc.u32 %v2486, %v2482
        %v2489 = vsel %vm2488, 1, 0
        %v2490 = vadd.s32 %v2486, %v2482
        %v2491 = vadd.s32 %v2487, %v2489
        %v2492 = vadd.s32 %v2491, %v2481
        %v2493 = vadd.s32 %v2492, %v2483
        %v2494 = vmul.u32 %v2449, %v2440
        %v2495 = vadd.s32 %v2471, %v2490
        %vm2496 = vc.u32 %v2471, %v2490
        %v2497 = vadd.s32 %v2493, 1
        %v2498 = vsel %vm2496, %v2497, %v2493
        %v2499 = vadd.s32 %v2494, %v2498
        %v2500 = vadd.s32 %v2499, 536870912
        %v2501 = vshrl.u32 %v2500, 30
        %v2502 = vshll.u32 %v2501, 30
        %v2503 = vsub.s32 %v2499, %v2502
        %vm2504 = vcmp.lt.s32.totalorder %v2503, 0
        %v2505 = vsub.s32 0, %v2503
        %v2506 = vsel %vm2504, %v2505, %v2503
        %v2507 = vclz %v2506
        %v2508 = vsub.s32 %v2507, 2
        %vm2509 = vcmp.gt.s32.totalorder 0, %v2508
        %v2510 = vsel %vm2509, 0, %v2508
        %v2511 = vsub.s32 32, %v2510
        %v2512 = vshll.u32 %v2503, %v2510
        %v2513 = vshrl.u32 %v2495, %v2511
        %v2514 = vor.u32 %v2512, %v2513
        %v2515 = vsub.s32 4294967266, %v2510
        %v2516 = vadd.s32 %v2515, 127
        %v2517 = vshll.u32 %v2516, 23
        %v2518 = vor.u32 4788187, %v2517
        %v2519 = vand.u32 2147483647, %v2518
        %v2521 = vcvt.s32.f32 %v2514
        %v2522 = vmul.f32 %v2521, %v2519
        %v2523 = vxor.u32 %v2522, 2147483648
        %v2524 = vsel %vm2403, %v2523, %v2522
        %v2525 = vsub.s32 4, %v2501
        %v2526 = vsel %vm2403, %v2525, %v2501
        %v2527 = vsel %vm2402, %v529, %v2524
        %v2528 = vsel %vm2402, 0, %v2526
        %v2529 = vmul.f32 %v2527, %v2527
        %v2530 = vmul.f32 %v2529, -0.001358992
        %v2531 = vadd.f32 %v2530, 0.041655596
        %v2532 = vmul.f32 %v2529, %v2531
        %v2533 = vadd.f32 %v2532, -0.4999988
        %v2534 = vmul.f32 %v2529, %v2533
        %v2535 = vadd.f32 1.0, %v2534
        %v2536 = vmul.f32 %v2527, %v2527
        %v2537 = vmul.f32 %v2536, -0.00019511016
        %v2538 = vadd.f32 %v2537, 0.008332121
        %v2539 = vmul.f32 %v2536, %v2538
        %v2540 = vadd.f32 %v2539, -0.16666654
        %v2541 = vmul.f32 %v2536, %v2540
        %v2542 = vadd.f32 %v2541, 1.0
        %v2543 = vmul.f32 %v2542, %v2527
        %vm2544 = vweird.f32 %v529
        %v2545 = vadd.s32 %v2528, 3
        %v2546 = vand.u32 %v2545, 3
        %vm2547 = vcmp.lt.s32.totalorder %v2546, 2
        %vm2548 = vcmp.eq.s32.totalorder %v2546, 0
        %v2549 = vxor.u32 %v2543, 2147483648
        %v2550 = vsel %vm2548, %v2535, %v2549
        %vm2551 = vcmp.eq.s32.totalorder %v2546, 2
        %v2552 = vxor.u32 %v2535, 2147483648
        %v2553 = vsel %vm2551, %v2552, %v2543
        %v2554 = vsel %vm2547, %v2550, %v2553
        %v2555 = vsel %vm2544, nan, %v2554
        %v2556 = vand.u32 2147483647, %v530
        %vm2557 = vcmp.le.f32.partialorder %v2556, 0.7853982
        %vm2558 = vcmp.lt.s32.totalorder %v530, 0
        %v2559 = vand.u32 %v530, 2139095040
        %v2560 = vshrl.u32 %v2559, 23
        %v2561 = vsub.s32 %v2560, 127
        %v2562 = vand.u32 2147483647, %v530
        %v2563 = vand.u32 %v2562, 8388607
        %v2564 = vor.u32 %v2563, 8388608
        %v2565 = vsub.s32 0, %v2564
        %v2566 = vadd.s32 %v2561, 1
        %vm2567 = vcmp.gt.s32.totalorder %v2566, 0
        %v2568 = vsel %vm2567, %v2566, 0
        %v2569 = vshrl.u32 %v2568, 5
        %v2570 = vand.u32 %v2568, 31
        %v2571 = vsub.s32 32, %v2570
        %v2572 = vshrl.u32 683565275, %v2571
        %v2573 = vshll.u32 683565275, %v2570
        %v2574 = vshrl.u32 2475754826, %v2571
        %v2575 = vor.u32 %v2573, %v2574
        %v2576 = vshll.u32 2475754826, %v2570
        %v2577 = vshrl.u32 2131351028, %v2571
        %v2578 = vor.u32 %v2576, %v2577
        %v2579 = vshll.u32 2131351028, %v2570
        %v2580 = vshrl.u32 2102212464, %v2571
        %v2581 = vor.u32 %v2579, %v2580
        %v2582 = vshll.u32 2102212464, %v2570
        %v2583 = vshrl.u32 920167782, %v2571
        %v2584 = vor.u32 %v2582, %v2583
        %v2585 = vshll.u32 920167782, %v2570
        %v2586 = vshrl.u32 1326507024, %v2571
        %v2587 = vor.u32 %v2585, %v2586
        %vm2588 = vcmp.lt.s32.totalorder %v2569, 1
        %vm2589 = vcmp.lt.s32.totalorder %v2569, 2
        %vm2590 = vcmp.lt.s32.totalorder %v2569, 3
        %vm2591 = vcmp.lt.s32.totalorder %v2569, 4
        %v2592 = vsel %vm2588, %v2572, %v2575
        %v2593 = vsel %vm2591, %v2581, 2102212464
        %v2594 = vsel %vm2590, %v2578, %v2593
        %v2595 = vsel %vm2589, %v2592, %v2594
        %v2596 = vsel %vm2588, %v2575, %v2578
        %v2597 = vsel %vm2591, %v2584, 920167782
        %v2598 = vsel %vm2590, %v2581, %v2597
        %v2599 = vsel %vm2589, %v2596, %v2598
        %v2600 = vsel %vm2588, %v2578, %v2581
        %v2601 = vsel %vm2591, %v2587, 1326507024
        %v2602 = vsel %vm2590, %v2584, %v2601
        %v2603 = vsel %vm2589, %v2600, %v2602
        %v2604 = vshll.u32 %v2564, 8
        %v2605 = vand.u32 %v2604, 65535
        %v2606 = vshrl.u32 %v2604, 16
        %v2607 = vand.u32 %v2603, 65535
        %v2608 = vshrl.u32 %v2603, 16
        %v2609 = vmul.u32 %v2605, %v2607
        %v2610 = vmul.u32 %v2605, %v2608
        %v2611 = vmul.u32 %v2606, %v2607
        %v2612 = vmul.u32 %v2606, %v2608
        %v2613 = vshll.u32 %v2610, 16
        %v2614 = vshrl.u32 %v2610, 16
        %v2615 = vshll.u32 %v2611, 16
        %v2616 = vshrl.u32 %v2611, 16
        %vm2617 = vc.u32 %v2609, %v2613
        %v2618 = vsel %vm2617, 1, 0
        %v2619 = vadd.s32 %v2609, %v2613
        %v2620 = vadd.s32 %v2612, %v2618
        %vm2621 = vc.u32 %v2619, %v2615
        %v2622 = vsel %vm2621, 1, 0
        %v2623 = vadd.s32 %v2619, %v2615
        %v2624 = vadd.s32 %v2620, %v2622
        %v2625 = vadd.s32 %v2624, %v2614
        %v2626 = vadd.s32 %v2625, %v2616
        %v2627 = vand.u32 %v2604, 65535
        %v2628 = vshrl.u32 %v2604, 16
        %v2629 = vand.u32 %v2599, 65535
        %v2630 = vshrl.u32 %v2599, 16
        %v2631 = vmul.u32 %v2627, %v2629
        %v2632 = vmul.u32 %v2627, %v2630
        %v2633 = vmul.u32 %v2628, %v2629
        %v2634 = vmul.u32 %v2628, %v2630
        %v2635 = vshll.u32 %v2632, 16
        %v2636 = vshrl.u32 %v2632, 16
        %v2637 = vshll.u32 %v2633, 16
        %v2638 = vshrl.u32 %v2633, 16
        %vm2639 = vc.u32 %v2631, %v2635
        %v2640 = vsel %vm2639, 1, 0
        %v2641 = vadd.s32 %v2631, %v2635
        %v2642 = vadd.s32 %v2634, %v2640
        %vm2643 = vc.u32 %v2641, %v2637
        %v2644 = vsel %vm2643, 1, 0
        %v2645 = vadd.s32 %v2641, %v2637
        %v2646 = vadd.s32 %v2642, %v2644
        %v2647 = vadd.s32 %v2646, %v2636
        %v2648 = vadd.s32 %v2647, %v2638
        %v2649 = vmul.u32 %v2604, %v2595
        %v2650 = vadd.s32 %v2626, %v2645
        %vm2651 = vc.u32 %v2626, %v2645
        %v2652 = vadd.s32 %v2648, 1
        %v2653 = vsel %vm2651, %v2652, %v2648
        %v2654 = vadd.s32 %v2649, %v2653
        %v2655 = vadd.s32 %v2654, 536870912
        %v2656 = vshrl.u32 %v2655, 30
        %v2657 = vshll.u32 %v2656, 30
        %v2658 = vsub.s32 %v2654, %v2657
        %vm2659 = vcmp.lt.s32.totalorder %v2658, 0
        %v2660 = vsub.s32 0, %v2658
        %v2661 = vsel %vm2659, %v2660, %v2658
        %v2662 = vclz %v2661
        %v2663 = vsub.s32 %v2662, 2
        %vm2664 = vcmp.gt.s32.totalorder 0, %v2663
        %v2665 = vsel %vm2664, 0, %v2663
        %v2666 = vsub.s32 32, %v2665
        %v2667 = vshll.u32 %v2658, %v2665
        %v2668 = vshrl.u32 %v2650, %v2666
        %v2669 = vor.u32 %v2667, %v2668
        %v2670 = vsub.s32 4294967266, %v2665
        %v2671 = vadd.s32 %v2670, 127
        %v2672 = vshll.u32 %v2671, 23
        %v2673 = vor.u32 4788187, %v2672
        %v2674 = vand.u32 2147483647, %v2673
        %v2676 = vcvt.s32.f32 %v2669
        %v2677 = vmul.f32 %v2676, %v2674
        %v2678 = vxor.u32 %v2677, 2147483648
        %v2679 = vsel %vm2558, %v2678, %v2677
        %v2680 = vsub.s32 4, %v2656
        %v2681 = vsel %vm2558, %v2680, %v2656
        %v2682 = vsel %vm2557, %v530, %v2679
        %v2683 = vsel %vm2557, 0, %v2681
        %v2684 = vmul.f32 %v2682, %v2682
        %v2685 = vmul.f32 %v2684, -0.001358992
        %v2686 = vadd.f32 %v2685, 0.041655596
        %v2687 = vmul.f32 %v2684, %v2686
        %v2688 = vadd.f32 %v2687, -0.4999988
        %v2689 = vmul.f32 %v2684, %v2688
        %v2690 = vadd.f32 1.0, %v2689
        %v2691 = vmul.f32 %v2682, %v2682
        %v2692 = vmul.f32 %v2691, -0.00019511016
        %v2693 = vadd.f32 %v2692, 0.008332121
        %v2694 = vmul.f32 %v2691, %v2693
        %v2695 = vadd.f32 %v2694, -0.16666654
        %v2696 = vmul.f32 %v2691, %v2695
        %v2697 = vadd.f32 %v2696, 1.0
        %v2698 = vmul.f32 %v2697, %v2682
        %vm2699 = vweird.f32 %v530
        %v2700 = vadd.s32 %v2683, 3
        %v2701 = vand.u32 %v2700, 3
        %vm2702 = vcmp.lt.s32.totalorder %v2701, 2
        %vm2703 = vcmp.eq.s32.totalorder %v2701, 0
        %v2704 = vxor.u32 %v2698, 2147483648
        %v2705 = vsel %vm2703, %v2690, %v2704
        %vm2706 = vcmp.eq.s32.totalorder %v2701, 2
        %v2707 = vxor.u32 %v2690, 2147483648
        %v2708 = vsel %vm2706, %v2707, %v2698
        %v2709 = vsel %vm2702, %v2705, %v2708
        %v2710 = vsel %vm2699, nan, %v2709
        %v2711 = vand.u32 2147483647, %v531
        %vm2712 = vcmp.le.f32.partialorder %v2711, 0.7853982
        %vm2713 = vcmp.lt.s32.totalorder %v531, 0
        %v2714 = vand.u32 %v531, 2139095040
        %v2715 = vshrl.u32 %v2714, 23
        %v2716 = vsub.s32 %v2715, 127
        %v2717 = vand.u32 2147483647, %v531
        %v2718 = vand.u32 %v2717, 8388607
        %v2719 = vor.u32 %v2718, 8388608
        %v2720 = vsub.s32 0, %v2719
        %v2721 = vadd.s32 %v2716, 1
        %vm2722 = vcmp.gt.s32.totalorder %v2721, 0
        %v2723 = vsel %vm2722, %v2721, 0
        %v2724 = vshrl.u32 %v2723, 5
        %v2725 = vand.u32 %v2723, 31
        %v2726 = vsub.s32 32, %v2725
        %v2727 = vshrl.u32 683565275, %v2726
        %v2728 = vshll.u32 683565275, %v2725
        %v2729 = vshrl.u32 2475754826, %v2726
        %v2730 = vor.u32 %v2728, %v2729
        %v2731 = vshll.u32 2475754826, %v2725
        %v2732 = vshrl.u32 2131351028, %v2726
        %v2733 = vor.u32 %v2731, %v2732
        %v2734 = vshll.u32 2131351028, %v2725
        %v2735 = vshrl.u32 2102212464, %v2726
        %v2736 = vor.u32 %v2734, %v2735
        %v2737 = vshll.u32 2102212464, %v2725
        %v2738 = vshrl.u32 920167782, %v2726
        %v2739 = vor.u32 %v2737, %v2738
        %v2740 = vshll.u32 920167782, %v2725
        %v2741 = vshrl.u32 1326507024, %v2726
        %v2742 = vor.u32 %v2740, %v2741
        %vm2743 = vcmp.lt.s32.totalorder %v2724, 1
        %vm2744 = vcmp.lt.s32.totalorder %v2724, 2
        %vm2745 = vcmp.lt.s32.totalorder %v2724, 3
        %vm2746 = vcmp.lt.s32.totalorder %v2724, 4
        %v2747 = vsel %vm2743, %v2727, %v2730
        %v2748 = vsel %vm2746, %v2736, 2102212464
        %v2749 = vsel %vm2745, %v2733, %v2748
        %v2750 = vsel %vm2744, %v2747, %v2749
        %v2751 = vsel %vm2743, %v2730, %v2733
        %v2752 = vsel %vm2746, %v2739, 920167782
        %v2753 = vsel %vm2745, %v2736, %v2752
        %v2754 = vsel %vm2744, %v2751, %v2753
        %v2755 = vsel %vm2743, %v2733, %v2736
        %v2756 = vsel %vm2746, %v2742, 1326507024
        %v2757 = vsel %vm2745, %v2739, %v2756
        %v2758 = vsel %vm2744, %v2755, %v2757
        %v2759 = vshll.u32 %v2719, 8
        %v2760 = vand.u32 %v2759, 65535
        %v2761 = vshrl.u32 %v2759, 16
        %v2762 = vand.u32 %v2758, 65535
        %v2763 = vshrl.u32 %v2758, 16
        %v2764 = vmul.u32 %v2760, %v2762
        %v2765 = vmul.u32 %v2760, %v2763
        %v2766 = vmul.u32 %v2761, %v2762
        %v2767 = vmul.u32 %v2761, %v2763
        %v2768 = vshll.u32 %v2765, 16
        %v2769 = vshrl.u32 %v2765, 16
        %v2770 = vshll.u32 %v2766, 16
        %v2771 = vshrl.u32 %v2766, 16
        %vm2772 = vc.u32 %v2764, %v2768
        %v2773 = vsel %vm2772, 1, 0
        %v2774 = vadd.s32 %v2764, %v2768
        %v2775 = vadd.s32 %v2767, %v2773
        %vm2776 = vc.u32 %v2774, %v2770
        %v2777 = vsel %vm2776, 1, 0
        %v2778 = vadd.s32 %v2774, %v2770
        %v2779 = vadd.s32 %v2775, %v2777
        %v2780 = vadd.s32 %v2779, %v2769
        %v2781 = vadd.s32 %v2780, %v2771
        %v2782 = vand.u32 %v2759, 65535
        %v2783 = vshrl.u32 %v2759, 16
        %v2784 = vand.u32 %v2754, 65535
        %v2785 = vshrl.u32 %v2754, 16
        %v2786 = vmul.u32 %v2782, %v2784
        %v2787 = vmul.u32 %v2782, %v2785
        %v2788 = vmul.u32 %v2783, %v2784
        %v2789 = vmul.u32 %v2783, %v2785
        %v2790 = vshll.u32 %v2787, 16
        %v2791 = vshrl.u32 %v2787, 16
        %v2792 = vshll.u32 %v2788, 16
        %v2793 = vshrl.u32 %v2788, 16
        %vm2794 = vc.u32 %v2786, %v2790
        %v2795 = vsel %vm2794, 1, 0
        %v2796 = vadd.s32 %v2786, %v2790
        %v2797 = vadd.s32 %v2789, %v2795
        %vm2798 = vc.u32 %v2796, %v2792
        %v2799 = vsel %vm2798, 1, 0
        %v2800 = vadd.s32 %v2796, %v2792
        %v2801 = vadd.s32 %v2797, %v2799
        %v2802 = vadd.s32 %v2801, %v2791
        %v2803 = vadd.s32 %v2802, %v2793
        %v2804 = vmul.u32 %v2759, %v2750
        %v2805 = vadd.s32 %v2781, %v2800
        %vm2806 = vc.u32 %v2781, %v2800
        %v2807 = vadd.s32 %v2803, 1
        %v2808 = vsel %vm2806, %v2807, %v2803
        %v2809 = vadd.s32 %v2804, %v2808
        %v2810 = vadd.s32 %v2809, 536870912
        %v2811 = vshrl.u32 %v2810, 30
        %v2812 = vshll.u32 %v2811, 30
        %v2813 = vsub.s32 %v2809, %v2812
        %vm2814 = vcmp.lt.s32.totalorder %v2813, 0
        %v2815 = vsub.s32 0, %v2813
        %v2816 = vsel %vm2814, %v2815, %v2813
        %v2817 = vclz %v2816
        %v2818 = vsub.s32 %v2817, 2
        %vm2819 = vcmp.gt.s32.totalorder 0, %v2818
        %v2820 = vsel %vm2819, 0, %v2818
        %v2821 = vsub.s32 32, %v2820
        %v2822 = vshll.u32 %v2813, %v2820
        %v2823 = vshrl.u32 %v2805, %v2821
        %v2824 = vor.u32 %v2822, %v2823
        %v2825 = vsub.s32 4294967266, %v2820
        %v2826 = vadd.s32 %v2825, 127
        %v2827 = vshll.u32 %v2826, 23
        %v2828 = vor.u32 4788187, %v2827
        %v2829 = vand.u32 2147483647, %v2828
        %v2831 = vcvt.s32.f32 %v2824
        %v2832 = vmul.f32 %v2831, %v2829
        %v2833 = vxor.u32 %v2832, 2147483648
        %v2834 = vsel %vm2713, %v2833, %v2832
        %v2835 = vsub.s32 4, %v2811
        %v2836 = vsel %vm2713, %v2835, %v2811
        %v2837 = vsel %vm2712, %v531, %v2834
        %v2838 = vsel %vm2712, 0, %v2836
        %v2839 = vmul.f32 %v2837, %v2837
        %v2840 = vmul.f32 %v2839, -0.001358992
        %v2841 = vadd.f32 %v2840, 0.041655596
        %v2842 = vmul.f32 %v2839, %v2841
        %v2843 = vadd.f32 %v2842, -0.4999988
        %v2844 = vmul.f32 %v2839, %v2843
        %v2845 = vadd.f32 1.0, %v2844
        %v2846 = vmul.f32 %v2837, %v2837
        %v2847 = vmul.f32 %v2846, -0.00019511016
        %v2848 = vadd.f32 %v2847, 0.008332121
        %v2849 = vmul.f32 %v2846, %v2848
        %v2850 = vadd.f32 %v2849, -0.16666654
        %v2851 = vmul.f32 %v2846, %v2850
        %v2852 = vadd.f32 %v2851, 1.0
        %v2853 = vmul.f32 %v2852, %v2837
        %vm2854 = vweird.f32 %v531
        %v2855 = vadd.s32 %v2838, 3
        %v2856 = vand.u32 %v2855, 3
        %vm2857 = vcmp.lt.s32.totalorder %v2856, 2
        %vm2858 = vcmp.eq.s32.totalorder %v2856, 0
        %v2859 = vxor.u32 %v2853, 2147483648
        %v2860 = vsel %vm2858, %v2845, %v2859
        %vm2861 = vcmp.eq.s32.totalorder %v2856, 2
        %v2862 = vxor.u32 %v2845, 2147483648
        %v2863 = vsel %vm2861, %v2862, %v2853
        %v2864 = vsel %vm2857, %v2860, %v2863
        %v2865 = vsel %vm2854, nan, %v2864
        %v2866 = vand.u32 2147483647, %v532
        %vm2867 = vcmp.le.f32.partialorder %v2866, 0.7853982
        %vm2868 = vcmp.lt.s32.totalorder %v532, 0
        %v2869 = vand.u32 %v532, 2139095040
        %v2870 = vshrl.u32 %v2869, 23
        %v2871 = vsub.s32 %v2870, 127
        %v2872 = vand.u32 2147483647, %v532
        %v2873 = vand.u32 %v2872, 8388607
        %v2874 = vor.u32 %v2873, 8388608
        %v2875 = vsub.s32 0, %v2874
        %v2876 = vadd.s32 %v2871, 1
        %vm2877 = vcmp.gt.s32.totalorder %v2876, 0
        %v2878 = vsel %vm2877, %v2876, 0
        %v2879 = vshrl.u32 %v2878, 5
        %v2880 = vand.u32 %v2878, 31
        %v2881 = vsub.s32 32, %v2880
        %v2882 = vshrl.u32 683565275, %v2881
        %v2883 = vshll.u32 683565275, %v2880
        %v2884 = vshrl.u32 2475754826, %v2881
        %v2885 = vor.u32 %v2883, %v2884
        %v2886 = vshll.u32 2475754826, %v2880
        %v2887 = vshrl.u32 2131351028, %v2881
        %v2888 = vor.u32 %v2886, %v2887
        %v2889 = vshll.u32 2131351028, %v2880
        %v2890 = vshrl.u32 2102212464, %v2881
        %v2891 = vor.u32 %v2889, %v2890
        %v2892 = vshll.u32 2102212464, %v2880
        %v2893 = vshrl.u32 920167782, %v2881
        %v2894 = vor.u32 %v2892, %v2893
        %v2895 = vshll.u32 920167782, %v2880
        %v2896 = vshrl.u32 1326507024, %v2881
        %v2897 = vor.u32 %v2895, %v2896
        %vm2898 = vcmp.lt.s32.totalorder %v2879, 1
        %vm2899 = vcmp.lt.s32.totalorder %v2879, 2
        %vm2900 = vcmp.lt.s32.totalorder %v2879, 3
        %vm2901 = vcmp.lt.s32.totalorder %v2879, 4
        %v2902 = vsel %vm2898, %v2882, %v2885
        %v2903 = vsel %vm2901, %v2891, 2102212464
        %v2904 = vsel %vm2900, %v2888, %v2903
        %v2905 = vsel %vm2899, %v2902, %v2904
        %v2906 = vsel %vm2898, %v2885, %v2888
        %v2907 = vsel %vm2901, %v2894, 920167782
        %v2908 = vsel %vm2900, %v2891, %v2907
        %v2909 = vsel %vm2899, %v2906, %v2908
        %v2910 = vsel %vm2898, %v2888, %v2891
        %v2911 = vsel %vm2901, %v2897, 1326507024
        %v2912 = vsel %vm2900, %v2894, %v2911
        %v2913 = vsel %vm2899, %v2910, %v2912
        %v2914 = vshll.u32 %v2874, 8
        %v2915 = vand.u32 %v2914, 65535
        %v2916 = vshrl.u32 %v2914, 16
        %v2917 = vand.u32 %v2913, 65535
        %v2918 = vshrl.u32 %v2913, 16
        %v2919 = vmul.u32 %v2915, %v2917
        %v2920 = vmul.u32 %v2915, %v2918
        %v2921 = vmul.u32 %v2916, %v2917
        %v2922 = vmul.u32 %v2916, %v2918
        %v2923 = vshll.u32 %v2920, 16
        %v2924 = vshrl.u32 %v2920, 16
        %v2925 = vshll.u32 %v2921, 16
        %v2926 = vshrl.u32 %v2921, 16
        %vm2927 = vc.u32 %v2919, %v2923
        %v2928 = vsel %vm2927, 1, 0
        %v2929 = vadd.s32 %v2919, %v2923
        %v2930 = vadd.s32 %v2922, %v2928
        %vm2931 = vc.u32 %v2929, %v2925
        %v2932 = vsel %vm2931, 1, 0
        %v2933 = vadd.s32 %v2929, %v2925
        %v2934 = vadd.s32 %v2930, %v2932
        %v2935 = vadd.s32 %v2934, %v2924
        %v2936 = vadd.s32 %v2935, %v2926
        %v2937 = vand.u32 %v2914, 65535
        %v2938 = vshrl.u32 %v2914, 16
        %v2939 = vand.u32 %v2909, 65535
        %v2940 = vshrl.u32 %v2909, 16
        %v2941 = vmul.u32 %v2937, %v2939
        %v2942 = vmul.u32 %v2937, %v2940
        %v2943 = vmul.u32 %v2938, %v2939
        %v2944 = vmul.u32 %v2938, %v2940
        %v2945 = vshll.u32 %v2942, 16
        %v2946 = vshrl.u32 %v2942, 16
        %v2947 = vshll.u32 %v2943, 16
        %v2948 = vshrl.u32 %v2943, 16
        %vm2949 = vc.u32 %v2941, %v2945
        %v2950 = vsel %vm2949, 1, 0
        %v2951 = vadd.s32 %v2941, %v2945
        %v2952 = vadd.s32 %v2944, %v2950
        %vm2953 = vc.u32 %v2951, %v2947
        %v2954 = vsel %vm2953, 1, 0
        %v2955 = vadd.s32 %v2951, %v2947
        %v2956 = vadd.s32 %v2952, %v2954
        %v2957 = vadd.s32 %v2956, %v2946
        %v2958 = vadd.s32 %v2957, %v2948
        %v2959 = vmul.u32 %v2914, %v2905
        %v2960 = vadd.s32 %v2936, %v2955
        %vm2961 = vc.u32 %v2936, %v2955
        %v2962 = vadd.s32 %v2958, 1
        %v2963 = vsel %vm2961, %v2962, %v2958
        %v2964 = vadd.s32 %v2959, %v2963
        %v2965 = vadd.s32 %v2964, 536870912
        %v2966 = vshrl.u32 %v2965, 30
        %v2967 = vshll.u32 %v2966, 30
        %v2968 = vsub.s32 %v2964, %v2967
        %vm2969 = vcmp.lt.s32.totalorder %v2968, 0
        %v2970 = vsub.s32 0, %v2968
        %v2971 = vsel %vm2969, %v2970, %v2968
        %v2972 = vclz %v2971
        %v2973 = vsub.s32 %v2972, 2
        %vm2974 = vcmp.gt.s32.totalorder 0, %v2973
        %v2975 = vsel %vm2974, 0, %v2973
        %v2976 = vsub.s32 32, %v2975
        %v2977 = vshll.u32 %v2968, %v2975
        %v2978 = vshrl.u32 %v2960, %v2976
        %v2979 = vor.u32 %v2977, %v2978
        %v2980 = vsub.s32 4294967266, %v2975
        %v2981 = vadd.s32 %v2980, 127
        %v2982 = vshll.u32 %v2981, 23
        %v2983 = vor.u32 4788187, %v2982
        %v2984 = vand.u32 2147483647, %v2983
        %v2986 = vcvt.s32.f32 %v2979
        %v2987 = vmul.f32 %v2986, %v2984
        %v2988 = vxor.u32 %v2987, 2147483648
        %v2989 = vsel %vm2868, %v2988, %v2987
        %v2990 = vsub.s32 4, %v2966
        %v2991 = vsel %vm2868, %v2990, %v2966
        %v2992 = vsel %vm2867, %v532, %v2989
        %v2993 = vsel %vm2867, 0, %v2991
        %v2994 = vmul.f32 %v2992, %v2992
        %v2995 = vmul.f32 %v2994, -0.001358992
        %v2996 = vadd.f32 %v2995, 0.041655596
        %v2997 = vmul.f32 %v2994, %v2996
        %v2998 = vadd.f32 %v2997, -0.4999988
        %v2999 = vmul.f32 %v2994, %v2998
        %v3000 = vadd.f32 1.0, %v2999
        %v3001 = vmul.f32 %v2992, %v2992
        %v3002 = vmul.f32 %v3001, -0.00019511016
        %v3003 = vadd.f32 %v3002, 0.008332121
        %v3004 = vmul.f32 %v3001, %v3003
        %v3005 = vadd.f32 %v3004, -0.16666654
        %v3006 = vmul.f32 %v3001, %v3005
        %v3007 = vadd.f32 %v3006, 1.0
        %v3008 = vmul.f32 %v3007, %v2992
        %vm3009 = vweird.f32 %v532
        %v3010 = vadd.s32 %v2993, 3
        %v3011 = vand.u32 %v3010, 3
        %vm3012 = vcmp.lt.s32.totalorder %v3011, 2
        %vm3013 = vcmp.eq.s32.totalorder %v3011, 0
        %v3014 = vxor.u32 %v3008, 2147483648
        %v3015 = vsel %vm3013, %v3000, %v3014
        %vm3016 = vcmp.eq.s32.totalorder %v3011, 2
        %v3017 = vxor.u32 %v3000, 2147483648
        %v3018 = vsel %vm3016, %v3017, %v3008
        %v3019 = vsel %vm3012, %v3015, %v3018
        %v3020 = vsel %vm3009, nan, %v3019
        %v3021 = vmul.f32 %v474, %v1935
        %v3022 = vmul.f32 %v474, %v2090
        %v3023 = vmul.f32 %v474, %v2245
        %v3024 = vmul.f32 %v474, %v2400
        %v3025 = vmul.f32 %v474, %v2555
        %v3026 = vmul.f32 %v474, %v2710
        %v3027 = vmul.f32 %v474, %v2865
        %v3028 = vmul.f32 %v474, %v3020
        %3029 = vst [vmem:[#allocation2 + $0x40] sm:$0xff] %v3021
        %3030 = vst [vmem:[#allocation2 + $0x48] sm:$0xff] %v3022
        %3031 = vst [vmem:[#allocation2 + $0x50] sm:$0xff] %v3023
        %3032 = vst [vmem:[#allocation2 + $0x58] sm:$0xff] %v3024
        %3033 = vst [vmem:[#allocation2 + $0x60] sm:$0xff] %v3025
        %3034 = vst [vmem:[#allocation2 + $0x68] sm:$0xff] %v3026
        %3035 = vst [vmem:[#allocation2 + $0x70] sm:$0xff] %v3027
        %3036 = vst [vmem:[#allocation2 + $0x78] sm:$0xff] %v3028
        %v3039 = vrot.slane %v441, 1
        %v3040 = vrot.slane %v441, 2
        %v3041 = vrot.slane %v441, 3
        %v3042 = vrot.slane %v441, 4
        %v3043 = vrot.slane %v441, 5
        %v3044 = vrot.slane %v441, 6
        %v3045 = vrot.slane %v441, 7
        %v3046 = vrot.slane %v442, 1
        %v3047 = vstv %s459
        %v3048 = vmul.f32 %v3047, %v468
        %v3049 = vperm.slane %v441, 0
        %v3050 = vperm.slane %v3039, 0
        %v3051 = vperm.slane %v3040, 0
        %v3052 = vperm.slane %v3041, 0
        %v3053 = vperm.slane %v3042, 0
        %v3054 = vperm.slane %v3043, 0
        %v3055 = vperm.slane %v3044, 0
        %v3056 = vperm.slane %v3045, 0
        %v3057 = vperm.slane %v442, 0
        %v3058 = vperm.slane %v3046, 0
        %3059 = vset.pattern.permute.xlu0 0
        %3060 = vperm.xlu0 %3059, %v3049
        %v3061 = vpop.permute.xlu0 %3060
        %3063 = vset.pattern.permute.xlu0 0
        %3064 = vperm.xlu0 %3063, %v3050
        %v3065 = vpop.permute.xlu0 %3064
        %3067 = vset.pattern.permute.xlu0 0
        %3068 = vperm.xlu0 %3067, %v3051
        %v3069 = vpop.permute.xlu0 %3068
        %3071 = vset.pattern.permute.xlu0 0
        %3072 = vperm.xlu0 %3071, %v3052
        %v3073 = vpop.permute.xlu0 %3072
        %3075 = vset.pattern.permute.xlu0 0
        %3076 = vperm.xlu0 %3075, %v3053
        %v3077 = vpop.permute.xlu0 %3076
        %3079 = vset.pattern.permute.xlu0 0
        %3080 = vperm.xlu0 %3079, %v3054
        %v3081 = vpop.permute.xlu0 %3080
        %3083 = vset.pattern.permute.xlu0 0
        %3084 = vperm.xlu0 %3083, %v3055
        %v3085 = vpop.permute.xlu0 %3084
        %3087 = vset.pattern.permute.xlu0 0
        %3088 = vperm.xlu0 %3087, %v3056
        %v3089 = vpop.permute.xlu0 %3088
        %3091 = vset.pattern.permute.xlu0 0
        %3092 = vperm.xlu0 %3091, %v3057
        %v3093 = vpop.permute.xlu0 %3092
        %3095 = vset.pattern.permute.xlu0 0
        %3096 = vperm.xlu0 %3095, %v3058
        %v3097 = vpop.permute.xlu0 %3096
        %v3099 = vadd.f32 %v3061, %v3048
        %v3100 = vadd.f32 %v3065, %v3048
        %v3101 = vadd.f32 %v3069, %v3048
        %v3102 = vadd.f32 %v3073, %v3048
        %v3103 = vadd.f32 %v3077, %v3048
        %v3104 = vadd.f32 %v3081, %v3048
        %v3105 = vadd.f32 %v3085, %v3048
        %v3106 = vadd.f32 %v3089, %v3048
        %v3107 = vadd.f32 %v3093, %v3048
        %v3108 = vadd.f32 %v3097, %v3048
        %v3109 = vmul.f32 %v3099, %v3099
        %v3110 = vmul.f32 %v3100, %v3100
        %v3111 = vmul.f32 %v3101, %v3101
        %v3112 = vmul.f32 %v3102, %v3102
        %v3113 = vmul.f32 %v3103, %v3103
        %v3114 = vmul.f32 %v3104, %v3104
        %v3115 = vmul.f32 %v3105, %v3105
        %v3116 = vmul.f32 %v3106, %v3106
        %v3117 = vmul.f32 %v3107, %v3107
        %v3118 = vmul.f32 %v3108, %v3108
        %v3119 = vstv %s461
        %v3120 = vmul.f32 %v3109, %v3119
        %v3121 = vmul.f32 %v3110, %v3119
        %v3122 = vmul.f32 %v3111, %v3119
        %v3123 = vmul.f32 %v3112, %v3119
        %v3124 = vmul.f32 %v3113, %v3119
        %v3125 = vmul.f32 %v3114, %v3119
        %v3126 = vmul.f32 %v3115, %v3119
        %v3127 = vmul.f32 %v3116, %v3119
        %v3128 = vmul.f32 %v3117, %v3119
        %v3129 = vmul.f32 %v3118, %v3119
        %v3132 = vrot.slane %v445, 1
        %v3133 = vrot.slane %v445, 2
        %v3134 = vrot.slane %v445, 3
        %v3135 = vrot.slane %v445, 4
        %v3136 = vrot.slane %v445, 5
        %v3137 = vrot.slane %v445, 6
        %v3138 = vrot.slane %v445, 7
        %v3139 = vrot.slane %v446, 1
        %v3140 = vperm.slane %v445, 0
        %v3141 = vperm.slane %v3132, 0
        %v3142 = vperm.slane %v3133, 0
        %v3143 = vperm.slane %v3134, 0
        %v3144 = vperm.slane %v3135, 0
        %v3145 = vperm.slane %v3136, 0
        %v3146 = vperm.slane %v3137, 0
        %v3147 = vperm.slane %v3138, 0
        %v3148 = vperm.slane %v446, 0
        %v3149 = vperm.slane %v3139, 0
        %3150 = vset.pattern.permute.xlu0 0
        %3151 = vperm.xlu0 %3150, %v3140
        %v3152 = vpop.permute.xlu0 %3151
        %3154 = vset.pattern.permute.xlu0 0
        %3155 = vperm.xlu0 %3154, %v3141
        %v3156 = vpop.permute.xlu0 %3155
        %3158 = vset.pattern.permute.xlu0 0
        %3159 = vperm.xlu0 %3158, %v3142
        %v3160 = vpop.permute.xlu0 %3159
        %3162 = vset.pattern.permute.xlu0 0
        %3163 = vperm.xlu0 %3162, %v3143
        %v3164 = vpop.permute.xlu0 %3163
        %3166 = vset.pattern.permute.xlu0 0
        %3167 = vperm.xlu0 %3166, %v3144
        %v3168 = vpop.permute.xlu0 %3167
        %3170 = vset.pattern.permute.xlu0 0
        %3171 = vperm.xlu0 %3170, %v3145
        %v3172 = vpop.permute.xlu0 %3171
        %3174 = vset.pattern.permute.xlu0 0
        %3175 = vperm.xlu0 %3174, %v3146
        %v3176 = vpop.permute.xlu0 %3175
        %3178 = vset.pattern.permute.xlu0 0
        %3179 = vperm.xlu0 %3178, %v3147
        %v3180 = vpop.permute.xlu0 %3179
        %3182 = vset.pattern.permute.xlu0 0
        %3183 = vperm.xlu0 %3182, %v3148
        %v3184 = vpop.permute.xlu0 %3183
        %3186 = vset.pattern.permute.xlu0 0
        %3187 = vperm.xlu0 %3186, %v3149
        %v3188 = vpop.permute.xlu0 %3187
        %v3190 = vadd.f32 %v3120, %v3152
        %v3191 = vadd.f32 %v3121, %v3156
        %v3192 = vadd.f32 %v3122, %v3160
        %v3193 = vadd.f32 %v3123, %v3164
        %v3194 = vadd.f32 %v3124, %v3168
        %v3195 = vadd.f32 %v3125, %v3172
        %v3196 = vadd.f32 %v3126, %v3176
        %v3197 = vadd.f32 %v3127, %v3180
        %v3198 = vadd.f32 %v3128, %v3184
        %v3199 = vadd.f32 %v3129, %v3188
        %v3200 = vmul.f32 %v3047, %v469
        %v3201 = vsub.f32 %v3190, %v3200
        %v3202 = vsub.f32 %v3191, %v3200
        %v3203 = vsub.f32 %v3192, %v3200
        %v3204 = vsub.f32 %v3193, %v3200
        %v3205 = vsub.f32 %v3194, %v3200
        %v3206 = vsub.f32 %v3195, %v3200
        %v3207 = vsub.f32 %v3196, %v3200
        %v3208 = vsub.f32 %v3197, %v3200
        %v3209 = vsub.f32 %v3198, %v3200
        %v3210 = vsub.f32 %v3199, %v3200
        %v3211 = vmul.f32 %v3201, 1.442695
        %v3212 = vpow.pop %v3211
        %v3213 = vmul.f32 %v3202, 1.442695
        %v3214 = vpow.pop %v3213
        %v3215 = vmul.f32 %v3203, 1.442695
        %v3216 = vpow.pop %v3215
        %v3217 = vmul.f32 %v3204, 1.442695
        %v3218 = vpow.pop %v3217
        %v3219 = vmul.f32 %v3205, 1.442695
        %v3220 = vpow.pop %v3219
        %v3221 = vmul.f32 %v3206, 1.442695
        %v3222 = vpow.pop %v3221
        %v3223 = vmul.f32 %v3207, 1.442695
        %v3224 = vpow.pop %v3223
        %v3225 = vmul.f32 %v3208, 1.442695
        %v3226 = vpow.pop %v3225
        %v3227 = vmul.f32 %v3209, 1.442695
        %v3228 = vpow.pop %v3227
        %v3229 = vmul.f32 %v3210, 1.442695
        %v3230 = vpow.pop %v3229
        %3231 = vst [vmem:[#allocation2 + $0x80] sm:$0xff] %v3212
        %3232 = vst [vmem:[#allocation2 + $0x88] sm:$0xff] %v3214
        %3233 = vst [vmem:[#allocation2 + $0x90] sm:$0xff] %v3216
        %3234 = vst [vmem:[#allocation2 + $0x98] sm:$0xff] %v3218
        %3235 = vst [vmem:[#allocation2 + $0xa0] sm:$0xff] %v3220
        %3236 = vst [vmem:[#allocation2 + $0xa8] sm:$0xff] %v3222
        %3237 = vst [vmem:[#allocation2 + $0xb0] sm:$0xff] %v3224
        %3238 = vst [vmem:[#allocation2 + $0xb8] sm:$0xff] %v3226
        %3239 = vst [vmem:[#allocation2 + $0xc0] sm:$0xff] %v3228
        %3240 = vst [vmem:[#allocation2 + $0xc8] sm:$0xff] %v3230
        %s3241 = sadd.s32 %s453, 1
        %s3242 = smul.u32 %s3241, 128
        %s3243 = sld [smem:[#allocation3 + %s3242]]
        %s3244 = sadd.s32 %s3242, 1
        %s3245 = sld [smem:[#allocation3 + %s3244]]
        %s3246 = sadd.s32 %s3242, 2
        %s3247 = sld [smem:[#allocation3 + %s3246]]
        %s3248 = sadd.s32 %s3242, 3
        %s3249 = sld [smem:[#allocation3 + %s3248]]
        %v3250 = vperm.slane %v436, 1
        %3252 = vset.pattern.permute.xlu0 0
        %3253 = vperm.xlu0 %3252, %v438
        %v3254 = vpop.permute.xlu0 %3253
        %v3256 = vsub.f32 %v3250, %v3254
        %v3257 = vmul.f32 %v3256, %v3256
        %s3258 = ssub.f32 0.0, %s3243
        %v3259 = vstv %s3258
        %v3260 = vmul.f32 %v3259, %v3257
        %v3261 = vmul.f32 %v3260, 1.442695
        %v3262 = vpow.pop %v3261
        %v3263 = vstv %s3245
        %v3264 = vmul.f32 %v3263, %v3256
        %v3266 = vrot.slane %v440, 1
        %v3267 = vrot.slane %v440, 2
        %v3268 = vrot.slane %v440, 3
        %v3269 = vrot.slane %v440, 4
        %v3270 = vrot.slane %v440, 5
        %v3271 = vrot.slane %v440, 6
        %v3272 = vrot.slane %v440, 7
        %v3273 = vperm.slane %v440, 0
        %v3274 = vperm.slane %v3266, 0
        %v3275 = vperm.slane %v3267, 0
        %v3276 = vperm.slane %v3268, 0
        %v3277 = vperm.slane %v3269, 0
        %v3278 = vperm.slane %v3270, 0
        %v3279 = vperm.slane %v3271, 0
        %v3280 = vperm.slane %v3272, 0
        %3281 = vset.pattern.permute.xlu0 0
        %3282 = vperm.xlu0 %3281, %v3273
        %v3283 = vpop.permute.xlu0 %3282
        %3285 = vset.pattern.permute.xlu0 0
        %3286 = vperm.xlu0 %3285, %v3274
        %v3287 = vpop.permute.xlu0 %3286
        %3289 = vset.pattern.permute.xlu0 0
        %3290 = vperm.xlu0 %3289, %v3275
        %v3291 = vpop.permute.xlu0 %3290
        %3293 = vset.pattern.permute.xlu0 0
        %3294 = vperm.xlu0 %3293, %v3276
        %v3295 = vpop.permute.xlu0 %3294
        %3297 = vset.pattern.permute.xlu0 0
        %3298 = vperm.xlu0 %3297, %v3277
        %v3299 = vpop.permute.xlu0 %3298
        %3301 = vset.pattern.permute.xlu0 0
        %3302 = vperm.xlu0 %3301, %v3278
        %v3303 = vpop.permute.xlu0 %3302
        %3305 = vset.pattern.permute.xlu0 0
        %3306 = vperm.xlu0 %3305, %v3279
        %v3307 = vpop.permute.xlu0 %3306
        %3309 = vset.pattern.permute.xlu0 0
        %3310 = vperm.xlu0 %3309, %v3280
        %v3311 = vpop.permute.xlu0 %3310
        %v3313 = vmul.f32 %v3283, %v3264
        %v3314 = vmul.f32 %v3287, %v3264
        %v3315 = vmul.f32 %v3291, %v3264
        %v3316 = vmul.f32 %v3295, %v3264
        %v3317 = vmul.f32 %v3299, %v3264
        %v3318 = vmul.f32 %v3303, %v3264
        %v3319 = vmul.f32 %v3307, %v3264
        %v3320 = vmul.f32 %v3311, %v3264
        %v3321 = vand.u32 2147483647, %v3313
        %vm3322 = vcmp.le.f32.partialorder %v3321, 0.7853982
        %vm3323 = vcmp.lt.s32.totalorder %v3313, 0
        %v3324 = vand.u32 %v3313, 2139095040
        %v3325 = vshrl.u32 %v3324, 23
        %v3326 = vsub.s32 %v3325, 127
        %v3327 = vand.u32 2147483647, %v3313
        %v3328 = vand.u32 %v3327, 8388607
        %v3329 = vor.u32 %v3328, 8388608
        %v3330 = vsub.s32 0, %v3329
        %v3331 = vadd.s32 %v3326, 1
        %vm3332 = vcmp.gt.s32.totalorder %v3331, 0
        %v3333 = vsel %vm3332, %v3331, 0
        %v3334 = vshrl.u32 %v3333, 5
        %v3335 = vand.u32 %v3333, 31
        %v3336 = vsub.s32 32, %v3335
        %v3337 = vshrl.u32 683565275, %v3336
        %v3338 = vshll.u32 683565275, %v3335
        %v3339 = vshrl.u32 2475754826, %v3336
        %v3340 = vor.u32 %v3338, %v3339
        %v3341 = vshll.u32 2475754826, %v3335
        %v3342 = vshrl.u32 2131351028, %v3336
        %v3343 = vor.u32 %v3341, %v3342
        %v3344 = vshll.u32 2131351028, %v3335
        %v3345 = vshrl.u32 2102212464, %v3336
        %v3346 = vor.u32 %v3344, %v3345
        %v3347 = vshll.u32 2102212464, %v3335
        %v3348 = vshrl.u32 920167782, %v3336
        %v3349 = vor.u32 %v3347, %v3348
        %v3350 = vshll.u32 920167782, %v3335
        %v3351 = vshrl.u32 1326507024, %v3336
        %v3352 = vor.u32 %v3350, %v3351
        %vm3353 = vcmp.lt.s32.totalorder %v3334, 1
        %vm3354 = vcmp.lt.s32.totalorder %v3334, 2
        %vm3355 = vcmp.lt.s32.totalorder %v3334, 3
        %vm3356 = vcmp.lt.s32.totalorder %v3334, 4
        %v3357 = vsel %vm3353, %v3337, %v3340
        %v3358 = vsel %vm3356, %v3346, 2102212464
        %v3359 = vsel %vm3355, %v3343, %v3358
        %v3360 = vsel %vm3354, %v3357, %v3359
        %v3361 = vsel %vm3353, %v3340, %v3343
        %v3362 = vsel %vm3356, %v3349, 920167782
        %v3363 = vsel %vm3355, %v3346, %v3362
        %v3364 = vsel %vm3354, %v3361, %v3363
        %v3365 = vsel %vm3353, %v3343, %v3346
        %v3366 = vsel %vm3356, %v3352, 1326507024
        %v3367 = vsel %vm3355, %v3349, %v3366
        %v3368 = vsel %vm3354, %v3365, %v3367
        %v3369 = vshll.u32 %v3329, 8
        %v3370 = vand.u32 %v3369, 65535
        %v3371 = vshrl.u32 %v3369, 16
        %v3372 = vand.u32 %v3368, 65535
        %v3373 = vshrl.u32 %v3368, 16
        %v3374 = vmul.u32 %v3370, %v3372
        %v3375 = vmul.u32 %v3370, %v3373
        %v3376 = vmul.u32 %v3371, %v3372
        %v3377 = vmul.u32 %v3371, %v3373
        %v3378 = vshll.u32 %v3375, 16
        %v3379 = vshrl.u32 %v3375, 16
        %v3380 = vshll.u32 %v3376, 16
        %v3381 = vshrl.u32 %v3376, 16
        %vm3382 = vc.u32 %v3374, %v3378
        %v3383 = vsel %vm3382, 1, 0
        %v3384 = vadd.s32 %v3374, %v3378
        %v3385 = vadd.s32 %v3377, %v3383
        %vm3386 = vc.u32 %v3384, %v3380
        %v3387 = vsel %vm3386, 1, 0
        %v3388 = vadd.s32 %v3384, %v3380
        %v3389 = vadd.s32 %v3385, %v3387
        %v3390 = vadd.s32 %v3389, %v3379
        %v3391 = vadd.s32 %v3390, %v3381
        %v3392 = vand.u32 %v3369, 65535
        %v3393 = vshrl.u32 %v3369, 16
        %v3394 = vand.u32 %v3364, 65535
        %v3395 = vshrl.u32 %v3364, 16
        %v3396 = vmul.u32 %v3392, %v3394
        %v3397 = vmul.u32 %v3392, %v3395
        %v3398 = vmul.u32 %v3393, %v3394
        %v3399 = vmul.u32 %v3393, %v3395
        %v3400 = vshll.u32 %v3397, 16
        %v3401 = vshrl.u32 %v3397, 16
        %v3402 = vshll.u32 %v3398, 16
        %v3403 = vshrl.u32 %v3398, 16
        %vm3404 = vc.u32 %v3396, %v3400
        %v3405 = vsel %vm3404, 1, 0
        %v3406 = vadd.s32 %v3396, %v3400
        %v3407 = vadd.s32 %v3399, %v3405
        %vm3408 = vc.u32 %v3406, %v3402
        %v3409 = vsel %vm3408, 1, 0
        %v3410 = vadd.s32 %v3406, %v3402
        %v3411 = vadd.s32 %v3407, %v3409
        %v3412 = vadd.s32 %v3411, %v3401
        %v3413 = vadd.s32 %v3412, %v3403
        %v3414 = vmul.u32 %v3369, %v3360
        %v3415 = vadd.s32 %v3391, %v3410
        %vm3416 = vc.u32 %v3391, %v3410
        %v3417 = vadd.s32 %v3413, 1
        %v3418 = vsel %vm3416, %v3417, %v3413
        %v3419 = vadd.s32 %v3414, %v3418
        %v3420 = vadd.s32 %v3419, 536870912
        %v3421 = vshrl.u32 %v3420, 30
        %v3422 = vshll.u32 %v3421, 30
        %v3423 = vsub.s32 %v3419, %v3422
        %vm3424 = vcmp.lt.s32.totalorder %v3423, 0
        %v3425 = vsub.s32 0, %v3423
        %v3426 = vsel %vm3424, %v3425, %v3423
        %v3427 = vclz %v3426
        %v3428 = vsub.s32 %v3427, 2
        %vm3429 = vcmp.gt.s32.totalorder 0, %v3428
        %v3430 = vsel %vm3429, 0, %v3428
        %v3431 = vsub.s32 32, %v3430
        %v3432 = vshll.u32 %v3423, %v3430
        %v3433 = vshrl.u32 %v3415, %v3431
        %v3434 = vor.u32 %v3432, %v3433
        %v3435 = vsub.s32 4294967266, %v3430
        %v3436 = vadd.s32 %v3435, 127
        %v3437 = vshll.u32 %v3436, 23
        %v3438 = vor.u32 4788187, %v3437
        %v3439 = vand.u32 2147483647, %v3438
        %v3441 = vcvt.s32.f32 %v3434
        %v3442 = vmul.f32 %v3441, %v3439
        %v3443 = vxor.u32 %v3442, 2147483648
        %v3444 = vsel %vm3323, %v3443, %v3442
        %v3445 = vsub.s32 4, %v3421
        %v3446 = vsel %vm3323, %v3445, %v3421
        %v3447 = vsel %vm3322, %v3313, %v3444
        %v3448 = vsel %vm3322, 0, %v3446
        %v3449 = vmul.f32 %v3447, %v3447
        %v3450 = vmul.f32 %v3449, -0.001358992
        %v3451 = vadd.f32 %v3450, 0.041655596
        %v3452 = vmul.f32 %v3449, %v3451
        %v3453 = vadd.f32 %v3452, -0.4999988
        %v3454 = vmul.f32 %v3449, %v3453
        %v3455 = vadd.f32 1.0, %v3454
        %v3456 = vmul.f32 %v3447, %v3447
        %v3457 = vmul.f32 %v3456, -0.00019511016
        %v3458 = vadd.f32 %v3457, 0.008332121
        %v3459 = vmul.f32 %v3456, %v3458
        %v3460 = vadd.f32 %v3459, -0.16666654
        %v3461 = vmul.f32 %v3456, %v3460
        %v3462 = vadd.f32 %v3461, 1.0
        %v3463 = vmul.f32 %v3462, %v3447
        %vm3464 = vweird.f32 %v3313
        %v3465 = vand.u32 %v3448, 3
        %vm3466 = vcmp.lt.s32.totalorder %v3465, 2
        %vm3467 = vcmp.eq.s32.totalorder %v3465, 0
        %v3468 = vxor.u32 %v3463, 2147483648
        %v3469 = vsel %vm3467, %v3455, %v3468
        %vm3470 = vcmp.eq.s32.totalorder %v3465, 2
        %v3471 = vxor.u32 %v3455, 2147483648
        %v3472 = vsel %vm3470, %v3471, %v3463
        %v3473 = vsel %vm3466, %v3469, %v3472
        %v3474 = vsel %vm3464, nan, %v3473
        %v3475 = vand.u32 2147483647, %v3314
        %vm3476 = vcmp.le.f32.partialorder %v3475, 0.7853982
        %vm3477 = vcmp.lt.s32.totalorder %v3314, 0
        %v3478 = vand.u32 %v3314, 2139095040
        %v3479 = vshrl.u32 %v3478, 23
        %v3480 = vsub.s32 %v3479, 127
        %v3481 = vand.u32 2147483647, %v3314
        %v3482 = vand.u32 %v3481, 8388607
        %v3483 = vor.u32 %v3482, 8388608
        %v3484 = vsub.s32 0, %v3483
        %v3485 = vadd.s32 %v3480, 1
        %vm3486 = vcmp.gt.s32.totalorder %v3485, 0
        %v3487 = vsel %vm3486, %v3485, 0
        %v3488 = vshrl.u32 %v3487, 5
        %v3489 = vand.u32 %v3487, 31
        %v3490 = vsub.s32 32, %v3489
        %v3491 = vshrl.u32 683565275, %v3490
        %v3492 = vshll.u32 683565275, %v3489
        %v3493 = vshrl.u32 2475754826, %v3490
        %v3494 = vor.u32 %v3492, %v3493
        %v3495 = vshll.u32 2475754826, %v3489
        %v3496 = vshrl.u32 2131351028, %v3490
        %v3497 = vor.u32 %v3495, %v3496
        %v3498 = vshll.u32 2131351028, %v3489
        %v3499 = vshrl.u32 2102212464, %v3490
        %v3500 = vor.u32 %v3498, %v3499
        %v3501 = vshll.u32 2102212464, %v3489
        %v3502 = vshrl.u32 920167782, %v3490
        %v3503 = vor.u32 %v3501, %v3502
        %v3504 = vshll.u32 920167782, %v3489
        %v3505 = vshrl.u32 1326507024, %v3490
        %v3506 = vor.u32 %v3504, %v3505
        %vm3507 = vcmp.lt.s32.totalorder %v3488, 1
        %vm3508 = vcmp.lt.s32.totalorder %v3488, 2
        %vm3509 = vcmp.lt.s32.totalorder %v3488, 3
        %vm3510 = vcmp.lt.s32.totalorder %v3488, 4
        %v3511 = vsel %vm3507, %v3491, %v3494
        %v3512 = vsel %vm3510, %v3500, 2102212464
        %v3513 = vsel %vm3509, %v3497, %v3512
        %v3514 = vsel %vm3508, %v3511, %v3513
        %v3515 = vsel %vm3507, %v3494, %v3497
        %v3516 = vsel %vm3510, %v3503, 920167782
        %v3517 = vsel %vm3509, %v3500, %v3516
        %v3518 = vsel %vm3508, %v3515, %v3517
        %v3519 = vsel %vm3507, %v3497, %v3500
        %v3520 = vsel %vm3510, %v3506, 1326507024
        %v3521 = vsel %vm3509, %v3503, %v3520
        %v3522 = vsel %vm3508, %v3519, %v3521
        %v3523 = vshll.u32 %v3483, 8
        %v3524 = vand.u32 %v3523, 65535
        %v3525 = vshrl.u32 %v3523, 16
        %v3526 = vand.u32 %v3522, 65535
        %v3527 = vshrl.u32 %v3522, 16
        %v3528 = vmul.u32 %v3524, %v3526
        %v3529 = vmul.u32 %v3524, %v3527
        %v3530 = vmul.u32 %v3525, %v3526
        %v3531 = vmul.u32 %v3525, %v3527
        %v3532 = vshll.u32 %v3529, 16
        %v3533 = vshrl.u32 %v3529, 16
        %v3534 = vshll.u32 %v3530, 16
        %v3535 = vshrl.u32 %v3530, 16
        %vm3536 = vc.u32 %v3528, %v3532
        %v3537 = vsel %vm3536, 1, 0
        %v3538 = vadd.s32 %v3528, %v3532
        %v3539 = vadd.s32 %v3531, %v3537
        %vm3540 = vc.u32 %v3538, %v3534
        %v3541 = vsel %vm3540, 1, 0
        %v3542 = vadd.s32 %v3538, %v3534
        %v3543 = vadd.s32 %v3539, %v3541
        %v3544 = vadd.s32 %v3543, %v3533
        %v3545 = vadd.s32 %v3544, %v3535
        %v3546 = vand.u32 %v3523, 65535
        %v3547 = vshrl.u32 %v3523, 16
        %v3548 = vand.u32 %v3518, 65535
        %v3549 = vshrl.u32 %v3518, 16
        %v3550 = vmul.u32 %v3546, %v3548
        %v3551 = vmul.u32 %v3546, %v3549
        %v3552 = vmul.u32 %v3547, %v3548
        %v3553 = vmul.u32 %v3547, %v3549
        %v3554 = vshll.u32 %v3551, 16
        %v3555 = vshrl.u32 %v3551, 16
        %v3556 = vshll.u32 %v3552, 16
        %v3557 = vshrl.u32 %v3552, 16
        %vm3558 = vc.u32 %v3550, %v3554
        %v3559 = vsel %vm3558, 1, 0
        %v3560 = vadd.s32 %v3550, %v3554
        %v3561 = vadd.s32 %v3553, %v3559
        %vm3562 = vc.u32 %v3560, %v3556
        %v3563 = vsel %vm3562, 1, 0
        %v3564 = vadd.s32 %v3560, %v3556
        %v3565 = vadd.s32 %v3561, %v3563
        %v3566 = vadd.s32 %v3565, %v3555
        %v3567 = vadd.s32 %v3566, %v3557
        %v3568 = vmul.u32 %v3523, %v3514
        %v3569 = vadd.s32 %v3545, %v3564
        %vm3570 = vc.u32 %v3545, %v3564
        %v3571 = vadd.s32 %v3567, 1
        %v3572 = vsel %vm3570, %v3571, %v3567
        %v3573 = vadd.s32 %v3568, %v3572
        %v3574 = vadd.s32 %v3573, 536870912
        %v3575 = vshrl.u32 %v3574, 30
        %v3576 = vshll.u32 %v3575, 30
        %v3577 = vsub.s32 %v3573, %v3576
        %vm3578 = vcmp.lt.s32.totalorder %v3577, 0
        %v3579 = vsub.s32 0, %v3577
        %v3580 = vsel %vm3578, %v3579, %v3577
        %v3581 = vclz %v3580
        %v3582 = vsub.s32 %v3581, 2
        %vm3583 = vcmp.gt.s32.totalorder 0, %v3582
        %v3584 = vsel %vm3583, 0, %v3582
        %v3585 = vsub.s32 32, %v3584
        %v3586 = vshll.u32 %v3577, %v3584
        %v3587 = vshrl.u32 %v3569, %v3585
        %v3588 = vor.u32 %v3586, %v3587
        %v3589 = vsub.s32 4294967266, %v3584
        %v3590 = vadd.s32 %v3589, 127
        %v3591 = vshll.u32 %v3590, 23
        %v3592 = vor.u32 4788187, %v3591
        %v3593 = vand.u32 2147483647, %v3592
        %v3595 = vcvt.s32.f32 %v3588
        %v3596 = vmul.f32 %v3595, %v3593
        %v3597 = vxor.u32 %v3596, 2147483648
        %v3598 = vsel %vm3477, %v3597, %v3596
        %v3599 = vsub.s32 4, %v3575
        %v3600 = vsel %vm3477, %v3599, %v3575
        %v3601 = vsel %vm3476, %v3314, %v3598
        %v3602 = vsel %vm3476, 0, %v3600
        %v3603 = vmul.f32 %v3601, %v3601
        %v3604 = vmul.f32 %v3603, -0.001358992
        %v3605 = vadd.f32 %v3604, 0.041655596
        %v3606 = vmul.f32 %v3603, %v3605
        %v3607 = vadd.f32 %v3606, -0.4999988
        %v3608 = vmul.f32 %v3603, %v3607
        %v3609 = vadd.f32 1.0, %v3608
        %v3610 = vmul.f32 %v3601, %v3601
        %v3611 = vmul.f32 %v3610, -0.00019511016
        %v3612 = vadd.f32 %v3611, 0.008332121
        %v3613 = vmul.f32 %v3610, %v3612
        %v3614 = vadd.f32 %v3613, -0.16666654
        %v3615 = vmul.f32 %v3610, %v3614
        %v3616 = vadd.f32 %v3615, 1.0
        %v3617 = vmul.f32 %v3616, %v3601
        %vm3618 = vweird.f32 %v3314
        %v3619 = vand.u32 %v3602, 3
        %vm3620 = vcmp.lt.s32.totalorder %v3619, 2
        %vm3621 = vcmp.eq.s32.totalorder %v3619, 0
        %v3622 = vxor.u32 %v3617, 2147483648
        %v3623 = vsel %vm3621, %v3609, %v3622
        %vm3624 = vcmp.eq.s32.totalorder %v3619, 2
        %v3625 = vxor.u32 %v3609, 2147483648
        %v3626 = vsel %vm3624, %v3625, %v3617
        %v3627 = vsel %vm3620, %v3623, %v3626
        %v3628 = vsel %vm3618, nan, %v3627
        %v3629 = vand.u32 2147483647, %v3315
        %vm3630 = vcmp.le.f32.partialorder %v3629, 0.7853982
        %vm3631 = vcmp.lt.s32.totalorder %v3315, 0
        %v3632 = vand.u32 %v3315, 2139095040
        %v3633 = vshrl.u32 %v3632, 23
        %v3634 = vsub.s32 %v3633, 127
        %v3635 = vand.u32 2147483647, %v3315
        %v3636 = vand.u32 %v3635, 8388607
        %v3637 = vor.u32 %v3636, 8388608
        %v3638 = vsub.s32 0, %v3637
        %v3639 = vadd.s32 %v3634, 1
        %vm3640 = vcmp.gt.s32.totalorder %v3639, 0
        %v3641 = vsel %vm3640, %v3639, 0
        %v3642 = vshrl.u32 %v3641, 5
        %v3643 = vand.u32 %v3641, 31
        %v3644 = vsub.s32 32, %v3643
        %v3645 = vshrl.u32 683565275, %v3644
        %v3646 = vshll.u32 683565275, %v3643
        %v3647 = vshrl.u32 2475754826, %v3644
        %v3648 = vor.u32 %v3646, %v3647
        %v3649 = vshll.u32 2475754826, %v3643
        %v3650 = vshrl.u32 2131351028, %v3644
        %v3651 = vor.u32 %v3649, %v3650
        %v3652 = vshll.u32 2131351028, %v3643
        %v3653 = vshrl.u32 2102212464, %v3644
        %v3654 = vor.u32 %v3652, %v3653
        %v3655 = vshll.u32 2102212464, %v3643
        %v3656 = vshrl.u32 920167782, %v3644
        %v3657 = vor.u32 %v3655, %v3656
        %v3658 = vshll.u32 920167782, %v3643
        %v3659 = vshrl.u32 1326507024, %v3644
        %v3660 = vor.u32 %v3658, %v3659
        %vm3661 = vcmp.lt.s32.totalorder %v3642, 1
        %vm3662 = vcmp.lt.s32.totalorder %v3642, 2
        %vm3663 = vcmp.lt.s32.totalorder %v3642, 3
        %vm3664 = vcmp.lt.s32.totalorder %v3642, 4
        %v3665 = vsel %vm3661, %v3645, %v3648
        %v3666 = vsel %vm3664, %v3654, 2102212464
        %v3667 = vsel %vm3663, %v3651, %v3666
        %v3668 = vsel %vm3662, %v3665, %v3667
        %v3669 = vsel %vm3661, %v3648, %v3651
        %v3670 = vsel %vm3664, %v3657, 920167782
        %v3671 = vsel %vm3663, %v3654, %v3670
        %v3672 = vsel %vm3662, %v3669, %v3671
        %v3673 = vsel %vm3661, %v3651, %v3654
        %v3674 = vsel %vm3664, %v3660, 1326507024
        %v3675 = vsel %vm3663, %v3657, %v3674
        %v3676 = vsel %vm3662, %v3673, %v3675
        %v3677 = vshll.u32 %v3637, 8
        %v3678 = vand.u32 %v3677, 65535
        %v3679 = vshrl.u32 %v3677, 16
        %v3680 = vand.u32 %v3676, 65535
        %v3681 = vshrl.u32 %v3676, 16
        %v3682 = vmul.u32 %v3678, %v3680
        %v3683 = vmul.u32 %v3678, %v3681
        %v3684 = vmul.u32 %v3679, %v3680
        %v3685 = vmul.u32 %v3679, %v3681
        %v3686 = vshll.u32 %v3683, 16
        %v3687 = vshrl.u32 %v3683, 16
        %v3688 = vshll.u32 %v3684, 16
        %v3689 = vshrl.u32 %v3684, 16
        %vm3690 = vc.u32 %v3682, %v3686
        %v3691 = vsel %vm3690, 1, 0
        %v3692 = vadd.s32 %v3682, %v3686
        %v3693 = vadd.s32 %v3685, %v3691
        %vm3694 = vc.u32 %v3692, %v3688
        %v3695 = vsel %vm3694, 1, 0
        %v3696 = vadd.s32 %v3692, %v3688
        %v3697 = vadd.s32 %v3693, %v3695
        %v3698 = vadd.s32 %v3697, %v3687
        %v3699 = vadd.s32 %v3698, %v3689
        %v3700 = vand.u32 %v3677, 65535
        %v3701 = vshrl.u32 %v3677, 16
        %v3702 = vand.u32 %v3672, 65535
        %v3703 = vshrl.u32 %v3672, 16
        %v3704 = vmul.u32 %v3700, %v3702
        %v3705 = vmul.u32 %v3700, %v3703
        %v3706 = vmul.u32 %v3701, %v3702
        %v3707 = vmul.u32 %v3701, %v3703
        %v3708 = vshll.u32 %v3705, 16
        %v3709 = vshrl.u32 %v3705, 16
        %v3710 = vshll.u32 %v3706, 16
        %v3711 = vshrl.u32 %v3706, 16
        %vm3712 = vc.u32 %v3704, %v3708
        %v3713 = vsel %vm3712, 1, 0
        %v3714 = vadd.s32 %v3704, %v3708
        %v3715 = vadd.s32 %v3707, %v3713
        %vm3716 = vc.u32 %v3714, %v3710
        %v3717 = vsel %vm3716, 1, 0
        %v3718 = vadd.s32 %v3714, %v3710
        %v3719 = vadd.s32 %v3715, %v3717
        %v3720 = vadd.s32 %v3719, %v3709
        %v3721 = vadd.s32 %v3720, %v3711
        %v3722 = vmul.u32 %v3677, %v3668
        %v3723 = vadd.s32 %v3699, %v3718
        %vm3724 = vc.u32 %v3699, %v3718
        %v3725 = vadd.s32 %v3721, 1
        %v3726 = vsel %vm3724, %v3725, %v3721
        %v3727 = vadd.s32 %v3722, %v3726
        %v3728 = vadd.s32 %v3727, 536870912
        %v3729 = vshrl.u32 %v3728, 30
        %v3730 = vshll.u32 %v3729, 30
        %v3731 = vsub.s32 %v3727, %v3730
        %vm3732 = vcmp.lt.s32.totalorder %v3731, 0
        %v3733 = vsub.s32 0, %v3731
        %v3734 = vsel %vm3732, %v3733, %v3731
        %v3735 = vclz %v3734
        %v3736 = vsub.s32 %v3735, 2
        %vm3737 = vcmp.gt.s32.totalorder 0, %v3736
        %v3738 = vsel %vm3737, 0, %v3736
        %v3739 = vsub.s32 32, %v3738
        %v3740 = vshll.u32 %v3731, %v3738
        %v3741 = vshrl.u32 %v3723, %v3739
        %v3742 = vor.u32 %v3740, %v3741
        %v3743 = vsub.s32 4294967266, %v3738
        %v3744 = vadd.s32 %v3743, 127
        %v3745 = vshll.u32 %v3744, 23
        %v3746 = vor.u32 4788187, %v3745
        %v3747 = vand.u32 2147483647, %v3746
        %v3749 = vcvt.s32.f32 %v3742
        %v3750 = vmul.f32 %v3749, %v3747
        %v3751 = vxor.u32 %v3750, 2147483648
        %v3752 = vsel %vm3631, %v3751, %v3750
        %v3753 = vsub.s32 4, %v3729
        %v3754 = vsel %vm3631, %v3753, %v3729
        %v3755 = vsel %vm3630, %v3315, %v3752
        %v3756 = vsel %vm3630, 0, %v3754
        %v3757 = vmul.f32 %v3755, %v3755
        %v3758 = vmul.f32 %v3757, -0.001358992
        %v3759 = vadd.f32 %v3758, 0.041655596
        %v3760 = vmul.f32 %v3757, %v3759
        %v3761 = vadd.f32 %v3760, -0.4999988
        %v3762 = vmul.f32 %v3757, %v3761
        %v3763 = vadd.f32 1.0, %v3762
        %v3764 = vmul.f32 %v3755, %v3755
        %v3765 = vmul.f32 %v3764, -0.00019511016
        %v3766 = vadd.f32 %v3765, 0.008332121
        %v3767 = vmul.f32 %v3764, %v3766
        %v3768 = vadd.f32 %v3767, -0.16666654
        %v3769 = vmul.f32 %v3764, %v3768
        %v3770 = vadd.f32 %v3769, 1.0
        %v3771 = vmul.f32 %v3770, %v3755
        %vm3772 = vweird.f32 %v3315
        %v3773 = vand.u32 %v3756, 3
        %vm3774 = vcmp.lt.s32.totalorder %v3773, 2
        %vm3775 = vcmp.eq.s32.totalorder %v3773, 0
        %v3776 = vxor.u32 %v3771, 2147483648
        %v3777 = vsel %vm3775, %v3763, %v3776
        %vm3778 = vcmp.eq.s32.totalorder %v3773, 2
        %v3779 = vxor.u32 %v3763, 2147483648
        %v3780 = vsel %vm3778, %v3779, %v3771
        %v3781 = vsel %vm3774, %v3777, %v3780
        %v3782 = vsel %vm3772, nan, %v3781
        %v3783 = vand.u32 2147483647, %v3316
        %vm3784 = vcmp.le.f32.partialorder %v3783, 0.7853982
        %vm3785 = vcmp.lt.s32.totalorder %v3316, 0
        %v3786 = vand.u32 %v3316, 2139095040
        %v3787 = vshrl.u32 %v3786, 23
        %v3788 = vsub.s32 %v3787, 127
        %v3789 = vand.u32 2147483647, %v3316
        %v3790 = vand.u32 %v3789, 8388607
        %v3791 = vor.u32 %v3790, 8388608
        %v3792 = vsub.s32 0, %v3791
        %v3793 = vadd.s32 %v3788, 1
        %vm3794 = vcmp.gt.s32.totalorder %v3793, 0
        %v3795 = vsel %vm3794, %v3793, 0
        %v3796 = vshrl.u32 %v3795, 5
        %v3797 = vand.u32 %v3795, 31
        %v3798 = vsub.s32 32, %v3797
        %v3799 = vshrl.u32 683565275, %v3798
        %v3800 = vshll.u32 683565275, %v3797
        %v3801 = vshrl.u32 2475754826, %v3798
        %v3802 = vor.u32 %v3800, %v3801
        %v3803 = vshll.u32 2475754826, %v3797
        %v3804 = vshrl.u32 2131351028, %v3798
        %v3805 = vor.u32 %v3803, %v3804
        %v3806 = vshll.u32 2131351028, %v3797
        %v3807 = vshrl.u32 2102212464, %v3798
        %v3808 = vor.u32 %v3806, %v3807
        %v3809 = vshll.u32 2102212464, %v3797
        %v3810 = vshrl.u32 920167782, %v3798
        %v3811 = vor.u32 %v3809, %v3810
        %v3812 = vshll.u32 920167782, %v3797
        %v3813 = vshrl.u32 1326507024, %v3798
        %v3814 = vor.u32 %v3812, %v3813
        %vm3815 = vcmp.lt.s32.totalorder %v3796, 1
        %vm3816 = vcmp.lt.s32.totalorder %v3796, 2
        %vm3817 = vcmp.lt.s32.totalorder %v3796, 3
        %vm3818 = vcmp.lt.s32.totalorder %v3796, 4
        %v3819 = vsel %vm3815, %v3799, %v3802
        %v3820 = vsel %vm3818, %v3808, 2102212464
        %v3821 = vsel %vm3817, %v3805, %v3820
        %v3822 = vsel %vm3816, %v3819, %v3821
        %v3823 = vsel %vm3815, %v3802, %v3805
        %v3824 = vsel %vm3818, %v3811, 920167782
        %v3825 = vsel %vm3817, %v3808, %v3824
        %v3826 = vsel %vm3816, %v3823, %v3825
        %v3827 = vsel %vm3815, %v3805, %v3808
        %v3828 = vsel %vm3818, %v3814, 1326507024
        %v3829 = vsel %vm3817, %v3811, %v3828
        %v3830 = vsel %vm3816, %v3827, %v3829
        %v3831 = vshll.u32 %v3791, 8
        %v3832 = vand.u32 %v3831, 65535
        %v3833 = vshrl.u32 %v3831, 16
        %v3834 = vand.u32 %v3830, 65535
        %v3835 = vshrl.u32 %v3830, 16
        %v3836 = vmul.u32 %v3832, %v3834
        %v3837 = vmul.u32 %v3832, %v3835
        %v3838 = vmul.u32 %v3833, %v3834
        %v3839 = vmul.u32 %v3833, %v3835
        %v3840 = vshll.u32 %v3837, 16
        %v3841 = vshrl.u32 %v3837, 16
        %v3842 = vshll.u32 %v3838, 16
        %v3843 = vshrl.u32 %v3838, 16
        %vm3844 = vc.u32 %v3836, %v3840
        %v3845 = vsel %vm3844, 1, 0
        %v3846 = vadd.s32 %v3836, %v3840
        %v3847 = vadd.s32 %v3839, %v3845
        %vm3848 = vc.u32 %v3846, %v3842
        %v3849 = vsel %vm3848, 1, 0
        %v3850 = vadd.s32 %v3846, %v3842
        %v3851 = vadd.s32 %v3847, %v3849
        %v3852 = vadd.s32 %v3851, %v3841
        %v3853 = vadd.s32 %v3852, %v3843
        %v3854 = vand.u32 %v3831, 65535
        %v3855 = vshrl.u32 %v3831, 16
        %v3856 = vand.u32 %v3826, 65535
        %v3857 = vshrl.u32 %v3826, 16
        %v3858 = vmul.u32 %v3854, %v3856
        %v3859 = vmul.u32 %v3854, %v3857
        %v3860 = vmul.u32 %v3855, %v3856
        %v3861 = vmul.u32 %v3855, %v3857
        %v3862 = vshll.u32 %v3859, 16
        %v3863 = vshrl.u32 %v3859, 16
        %v3864 = vshll.u32 %v3860, 16
        %v3865 = vshrl.u32 %v3860, 16
        %vm3866 = vc.u32 %v3858, %v3862
        %v3867 = vsel %vm3866, 1, 0
        %v3868 = vadd.s32 %v3858, %v3862
        %v3869 = vadd.s32 %v3861, %v3867
        %vm3870 = vc.u32 %v3868, %v3864
        %v3871 = vsel %vm3870, 1, 0
        %v3872 = vadd.s32 %v3868, %v3864
        %v3873 = vadd.s32 %v3869, %v3871
        %v3874 = vadd.s32 %v3873, %v3863
        %v3875 = vadd.s32 %v3874, %v3865
        %v3876 = vmul.u32 %v3831, %v3822
        %v3877 = vadd.s32 %v3853, %v3872
        %vm3878 = vc.u32 %v3853, %v3872
        %v3879 = vadd.s32 %v3875, 1
        %v3880 = vsel %vm3878, %v3879, %v3875
        %v3881 = vadd.s32 %v3876, %v3880
        %v3882 = vadd.s32 %v3881, 536870912
        %v3883 = vshrl.u32 %v3882, 30
        %v3884 = vshll.u32 %v3883, 30
        %v3885 = vsub.s32 %v3881, %v3884
        %vm3886 = vcmp.lt.s32.totalorder %v3885, 0
        %v3887 = vsub.s32 0, %v3885
        %v3888 = vsel %vm3886, %v3887, %v3885
        %v3889 = vclz %v3888
        %v3890 = vsub.s32 %v3889, 2
        %vm3891 = vcmp.gt.s32.totalorder 0, %v3890
        %v3892 = vsel %vm3891, 0, %v3890
        %v3893 = vsub.s32 32, %v3892
        %v3894 = vshll.u32 %v3885, %v3892
        %v3895 = vshrl.u32 %v3877, %v3893
        %v3896 = vor.u32 %v3894, %v3895
        %v3897 = vsub.s32 4294967266, %v3892
        %v3898 = vadd.s32 %v3897, 127
        %v3899 = vshll.u32 %v3898, 23
        %v3900 = vor.u32 4788187, %v3899
        %v3901 = vand.u32 2147483647, %v3900
        %v3903 = vcvt.s32.f32 %v3896
        %v3904 = vmul.f32 %v3903, %v3901
        %v3905 = vxor.u32 %v3904, 2147483648
        %v3906 = vsel %vm3785, %v3905, %v3904
        %v3907 = vsub.s32 4, %v3883
        %v3908 = vsel %vm3785, %v3907, %v3883
        %v3909 = vsel %vm3784, %v3316, %v3906
        %v3910 = vsel %vm3784, 0, %v3908
        %v3911 = vmul.f32 %v3909, %v3909
        %v3912 = vmul.f32 %v3911, -0.001358992
        %v3913 = vadd.f32 %v3912, 0.041655596
        %v3914 = vmul.f32 %v3911, %v3913
        %v3915 = vadd.f32 %v3914, -0.4999988
        %v3916 = vmul.f32 %v3911, %v3915
        %v3917 = vadd.f32 1.0, %v3916
        %v3918 = vmul.f32 %v3909, %v3909
        %v3919 = vmul.f32 %v3918, -0.00019511016
        %v3920 = vadd.f32 %v3919, 0.008332121
        %v3921 = vmul.f32 %v3918, %v3920
        %v3922 = vadd.f32 %v3921, -0.16666654
        %v3923 = vmul.f32 %v3918, %v3922
        %v3924 = vadd.f32 %v3923, 1.0
        %v3925 = vmul.f32 %v3924, %v3909
        %vm3926 = vweird.f32 %v3316
        %v3927 = vand.u32 %v3910, 3
        %vm3928 = vcmp.lt.s32.totalorder %v3927, 2
        %vm3929 = vcmp.eq.s32.totalorder %v3927, 0
        %v3930 = vxor.u32 %v3925, 2147483648
        %v3931 = vsel %vm3929, %v3917, %v3930
        %vm3932 = vcmp.eq.s32.totalorder %v3927, 2
        %v3933 = vxor.u32 %v3917, 2147483648
        %v3934 = vsel %vm3932, %v3933, %v3925
        %v3935 = vsel %vm3928, %v3931, %v3934
        %v3936 = vsel %vm3926, nan, %v3935
        %v3937 = vand.u32 2147483647, %v3317
        %vm3938 = vcmp.le.f32.partialorder %v3937, 0.7853982
        %vm3939 = vcmp.lt.s32.totalorder %v3317, 0
        %v3940 = vand.u32 %v3317, 2139095040
        %v3941 = vshrl.u32 %v3940, 23
        %v3942 = vsub.s32 %v3941, 127
        %v3943 = vand.u32 2147483647, %v3317
        %v3944 = vand.u32 %v3943, 8388607
        %v3945 = vor.u32 %v3944, 8388608
        %v3946 = vsub.s32 0, %v3945
        %v3947 = vadd.s32 %v3942, 1
        %vm3948 = vcmp.gt.s32.totalorder %v3947, 0
        %v3949 = vsel %vm3948, %v3947, 0
        %v3950 = vshrl.u32 %v3949, 5
        %v3951 = vand.u32 %v3949, 31
        %v3952 = vsub.s32 32, %v3951
        %v3953 = vshrl.u32 683565275, %v3952
        %v3954 = vshll.u32 683565275, %v3951
        %v3955 = vshrl.u32 2475754826, %v3952
        %v3956 = vor.u32 %v3954, %v3955
        %v3957 = vshll.u32 2475754826, %v3951
        %v3958 = vshrl.u32 2131351028, %v3952
        %v3959 = vor.u32 %v3957, %v3958
        %v3960 = vshll.u32 2131351028, %v3951
        %v3961 = vshrl.u32 2102212464, %v3952
        %v3962 = vor.u32 %v3960, %v3961
        %v3963 = vshll.u32 2102212464, %v3951
        %v3964 = vshrl.u32 920167782, %v3952
        %v3965 = vor.u32 %v3963, %v3964
        %v3966 = vshll.u32 920167782, %v3951
        %v3967 = vshrl.u32 1326507024, %v3952
        %v3968 = vor.u32 %v3966, %v3967
        %vm3969 = vcmp.lt.s32.totalorder %v3950, 1
        %vm3970 = vcmp.lt.s32.totalorder %v3950, 2
        %vm3971 = vcmp.lt.s32.totalorder %v3950, 3
        %vm3972 = vcmp.lt.s32.totalorder %v3950, 4
        %v3973 = vsel %vm3969, %v3953, %v3956
        %v3974 = vsel %vm3972, %v3962, 2102212464
        %v3975 = vsel %vm3971, %v3959, %v3974
        %v3976 = vsel %vm3970, %v3973, %v3975
        %v3977 = vsel %vm3969, %v3956, %v3959
        %v3978 = vsel %vm3972, %v3965, 920167782
        %v3979 = vsel %vm3971, %v3962, %v3978
        %v3980 = vsel %vm3970, %v3977, %v3979
        %v3981 = vsel %vm3969, %v3959, %v3962
        %v3982 = vsel %vm3972, %v3968, 1326507024
        %v3983 = vsel %vm3971, %v3965, %v3982
        %v3984 = vsel %vm3970, %v3981, %v3983
        %v3985 = vshll.u32 %v3945, 8
        %v3986 = vand.u32 %v3985, 65535
        %v3987 = vshrl.u32 %v3985, 16
        %v3988 = vand.u32 %v3984, 65535
        %v3989 = vshrl.u32 %v3984, 16
        %v3990 = vmul.u32 %v3986, %v3988
        %v3991 = vmul.u32 %v3986, %v3989
        %v3992 = vmul.u32 %v3987, %v3988
        %v3993 = vmul.u32 %v3987, %v3989
        %v3994 = vshll.u32 %v3991, 16
        %v3995 = vshrl.u32 %v3991, 16
        %v3996 = vshll.u32 %v3992, 16
        %v3997 = vshrl.u32 %v3992, 16
        %vm3998 = vc.u32 %v3990, %v3994
        %v3999 = vsel %vm3998, 1, 0
        %v4000 = vadd.s32 %v3990, %v3994
        %v4001 = vadd.s32 %v3993, %v3999
        %vm4002 = vc.u32 %v4000, %v3996
        %v4003 = vsel %vm4002, 1, 0
        %v4004 = vadd.s32 %v4000, %v3996
        %v4005 = vadd.s32 %v4001, %v4003
        %v4006 = vadd.s32 %v4005, %v3995
        %v4007 = vadd.s32 %v4006, %v3997
        %v4008 = vand.u32 %v3985, 65535
        %v4009 = vshrl.u32 %v3985, 16
        %v4010 = vand.u32 %v3980, 65535
        %v4011 = vshrl.u32 %v3980, 16
        %v4012 = vmul.u32 %v4008, %v4010
        %v4013 = vmul.u32 %v4008, %v4011
        %v4014 = vmul.u32 %v4009, %v4010
        %v4015 = vmul.u32 %v4009, %v4011
        %v4016 = vshll.u32 %v4013, 16
        %v4017 = vshrl.u32 %v4013, 16
        %v4018 = vshll.u32 %v4014, 16
        %v4019 = vshrl.u32 %v4014, 16
        %vm4020 = vc.u32 %v4012, %v4016
        %v4021 = vsel %vm4020, 1, 0
        %v4022 = vadd.s32 %v4012, %v4016
        %v4023 = vadd.s32 %v4015, %v4021
        %vm4024 = vc.u32 %v4022, %v4018
        %v4025 = vsel %vm4024, 1, 0
        %v4026 = vadd.s32 %v4022, %v4018
        %v4027 = vadd.s32 %v4023, %v4025
        %v4028 = vadd.s32 %v4027, %v4017
        %v4029 = vadd.s32 %v4028, %v4019
        %v4030 = vmul.u32 %v3985, %v3976
        %v4031 = vadd.s32 %v4007, %v4026
        %vm4032 = vc.u32 %v4007, %v4026
        %v4033 = vadd.s32 %v4029, 1
        %v4034 = vsel %vm4032, %v4033, %v4029
        %v4035 = vadd.s32 %v4030, %v4034
        %v4036 = vadd.s32 %v4035, 536870912
        %v4037 = vshrl.u32 %v4036, 30
        %v4038 = vshll.u32 %v4037, 30
        %v4039 = vsub.s32 %v4035, %v4038
        %vm4040 = vcmp.lt.s32.totalorder %v4039, 0
        %v4041 = vsub.s32 0, %v4039
        %v4042 = vsel %vm4040, %v4041, %v4039
        %v4043 = vclz %v4042
        %v4044 = vsub.s32 %v4043, 2
        %vm4045 = vcmp.gt.s32.totalorder 0, %v4044
        %v4046 = vsel %vm4045, 0, %v4044
        %v4047 = vsub.s32 32, %v4046
        %v4048 = vshll.u32 %v4039, %v4046
        %v4049 = vshrl.u32 %v4031, %v4047
        %v4050 = vor.u32 %v4048, %v4049
        %v4051 = vsub.s32 4294967266, %v4046
        %v4052 = vadd.s32 %v4051, 127
        %v4053 = vshll.u32 %v4052, 23
        %v4054 = vor.u32 4788187, %v4053
        %v4055 = vand.u32 2147483647, %v4054
        %v4057 = vcvt.s32.f32 %v4050
        %v4058 = vmul.f32 %v4057, %v4055
        %v4059 = vxor.u32 %v4058, 2147483648
        %v4060 = vsel %vm3939, %v4059, %v4058
        %v4061 = vsub.s32 4, %v4037
        %v4062 = vsel %vm3939, %v4061, %v4037
        %v4063 = vsel %vm3938, %v3317, %v4060
        %v4064 = vsel %vm3938, 0, %v4062
        %v4065 = vmul.f32 %v4063, %v4063
        %v4066 = vmul.f32 %v4065, -0.001358992
        %v4067 = vadd.f32 %v4066, 0.041655596
        %v4068 = vmul.f32 %v4065, %v4067
        %v4069 = vadd.f32 %v4068, -0.4999988
        %v4070 = vmul.f32 %v4065, %v4069
        %v4071 = vadd.f32 1.0, %v4070
        %v4072 = vmul.f32 %v4063, %v4063
        %v4073 = vmul.f32 %v4072, -0.00019511016
        %v4074 = vadd.f32 %v4073, 0.008332121
        %v4075 = vmul.f32 %v4072, %v4074
        %v4076 = vadd.f32 %v4075, -0.16666654
        %v4077 = vmul.f32 %v4072, %v4076
        %v4078 = vadd.f32 %v4077, 1.0
        %v4079 = vmul.f32 %v4078, %v4063
        %vm4080 = vweird.f32 %v3317
        %v4081 = vand.u32 %v4064, 3
        %vm4082 = vcmp.lt.s32.totalorder %v4081, 2
        %vm4083 = vcmp.eq.s32.totalorder %v4081, 0
        %v4084 = vxor.u32 %v4079, 2147483648
        %v4085 = vsel %vm4083, %v4071, %v4084
        %vm4086 = vcmp.eq.s32.totalorder %v4081, 2
        %v4087 = vxor.u32 %v4071, 2147483648
        %v4088 = vsel %vm4086, %v4087, %v4079
        %v4089 = vsel %vm4082, %v4085, %v4088
        %v4090 = vsel %vm4080, nan, %v4089
        %v4091 = vand.u32 2147483647, %v3318
        %vm4092 = vcmp.le.f32.partialorder %v4091, 0.7853982
        %vm4093 = vcmp.lt.s32.totalorder %v3318, 0
        %v4094 = vand.u32 %v3318, 2139095040
        %v4095 = vshrl.u32 %v4094, 23
        %v4096 = vsub.s32 %v4095, 127
        %v4097 = vand.u32 2147483647, %v3318
        %v4098 = vand.u32 %v4097, 8388607
        %v4099 = vor.u32 %v4098, 8388608
        %v4100 = vsub.s32 0, %v4099
        %v4101 = vadd.s32 %v4096, 1
        %vm4102 = vcmp.gt.s32.totalorder %v4101, 0
        %v4103 = vsel %vm4102, %v4101, 0
        %v4104 = vshrl.u32 %v4103, 5
        %v4105 = vand.u32 %v4103, 31
        %v4106 = vsub.s32 32, %v4105
        %v4107 = vshrl.u32 683565275, %v4106
        %v4108 = vshll.u32 683565275, %v4105
        %v4109 = vshrl.u32 2475754826, %v4106
        %v4110 = vor.u32 %v4108, %v4109
        %v4111 = vshll.u32 2475754826, %v4105
        %v4112 = vshrl.u32 2131351028, %v4106
        %v4113 = vor.u32 %v4111, %v4112
        %v4114 = vshll.u32 2131351028, %v4105
        %v4115 = vshrl.u32 2102212464, %v4106
        %v4116 = vor.u32 %v4114, %v4115
        %v4117 = vshll.u32 2102212464, %v4105
        %v4118 = vshrl.u32 920167782, %v4106
        %v4119 = vor.u32 %v4117, %v4118
        %v4120 = vshll.u32 920167782, %v4105
        %v4121 = vshrl.u32 1326507024, %v4106
        %v4122 = vor.u32 %v4120, %v4121
        %vm4123 = vcmp.lt.s32.totalorder %v4104, 1
        %vm4124 = vcmp.lt.s32.totalorder %v4104, 2
        %vm4125 = vcmp.lt.s32.totalorder %v4104, 3
        %vm4126 = vcmp.lt.s32.totalorder %v4104, 4
        %v4127 = vsel %vm4123, %v4107, %v4110
        %v4128 = vsel %vm4126, %v4116, 2102212464
        %v4129 = vsel %vm4125, %v4113, %v4128
        %v4130 = vsel %vm4124, %v4127, %v4129
        %v4131 = vsel %vm4123, %v4110, %v4113
        %v4132 = vsel %vm4126, %v4119, 920167782
        %v4133 = vsel %vm4125, %v4116, %v4132
        %v4134 = vsel %vm4124, %v4131, %v4133
        %v4135 = vsel %vm4123, %v4113, %v4116
        %v4136 = vsel %vm4126, %v4122, 1326507024
        %v4137 = vsel %vm4125, %v4119, %v4136
        %v4138 = vsel %vm4124, %v4135, %v4137
        %v4139 = vshll.u32 %v4099, 8
        %v4140 = vand.u32 %v4139, 65535
        %v4141 = vshrl.u32 %v4139, 16
        %v4142 = vand.u32 %v4138, 65535
        %v4143 = vshrl.u32 %v4138, 16
        %v4144 = vmul.u32 %v4140, %v4142
        %v4145 = vmul.u32 %v4140, %v4143
        %v4146 = vmul.u32 %v4141, %v4142
        %v4147 = vmul.u32 %v4141, %v4143
        %v4148 = vshll.u32 %v4145, 16
        %v4149 = vshrl.u32 %v4145, 16
        %v4150 = vshll.u32 %v4146, 16
        %v4151 = vshrl.u32 %v4146, 16
        %vm4152 = vc.u32 %v4144, %v4148
        %v4153 = vsel %vm4152, 1, 0
        %v4154 = vadd.s32 %v4144, %v4148
        %v4155 = vadd.s32 %v4147, %v4153
        %vm4156 = vc.u32 %v4154, %v4150
        %v4157 = vsel %vm4156, 1, 0
        %v4158 = vadd.s32 %v4154, %v4150
        %v4159 = vadd.s32 %v4155, %v4157
        %v4160 = vadd.s32 %v4159, %v4149
        %v4161 = vadd.s32 %v4160, %v4151
        %v4162 = vand.u32 %v4139, 65535
        %v4163 = vshrl.u32 %v4139, 16
        %v4164 = vand.u32 %v4134, 65535
        %v4165 = vshrl.u32 %v4134, 16
        %v4166 = vmul.u32 %v4162, %v4164
        %v4167 = vmul.u32 %v4162, %v4165
        %v4168 = vmul.u32 %v4163, %v4164
        %v4169 = vmul.u32 %v4163, %v4165
        %v4170 = vshll.u32 %v4167, 16
        %v4171 = vshrl.u32 %v4167, 16
        %v4172 = vshll.u32 %v4168, 16
        %v4173 = vshrl.u32 %v4168, 16
        %vm4174 = vc.u32 %v4166, %v4170
        %v4175 = vsel %vm4174, 1, 0
        %v4176 = vadd.s32 %v4166, %v4170
        %v4177 = vadd.s32 %v4169, %v4175
        %vm4178 = vc.u32 %v4176, %v4172
        %v4179 = vsel %vm4178, 1, 0
        %v4180 = vadd.s32 %v4176, %v4172
        %v4181 = vadd.s32 %v4177, %v4179
        %v4182 = vadd.s32 %v4181, %v4171
        %v4183 = vadd.s32 %v4182, %v4173
        %v4184 = vmul.u32 %v4139, %v4130
        %v4185 = vadd.s32 %v4161, %v4180
        %vm4186 = vc.u32 %v4161, %v4180
        %v4187 = vadd.s32 %v4183, 1
        %v4188 = vsel %vm4186, %v4187, %v4183
        %v4189 = vadd.s32 %v4184, %v4188
        %v4190 = vadd.s32 %v4189, 536870912
        %v4191 = vshrl.u32 %v4190, 30
        %v4192 = vshll.u32 %v4191, 30
        %v4193 = vsub.s32 %v4189, %v4192
        %vm4194 = vcmp.lt.s32.totalorder %v4193, 0
        %v4195 = vsub.s32 0, %v4193
        %v4196 = vsel %vm4194, %v4195, %v4193
        %v4197 = vclz %v4196
        %v4198 = vsub.s32 %v4197, 2
        %vm4199 = vcmp.gt.s32.totalorder 0, %v4198
        %v4200 = vsel %vm4199, 0, %v4198
        %v4201 = vsub.s32 32, %v4200
        %v4202 = vshll.u32 %v4193, %v4200
        %v4203 = vshrl.u32 %v4185, %v4201
        %v4204 = vor.u32 %v4202, %v4203
        %v4205 = vsub.s32 4294967266, %v4200
        %v4206 = vadd.s32 %v4205, 127
        %v4207 = vshll.u32 %v4206, 23
        %v4208 = vor.u32 4788187, %v4207
        %v4209 = vand.u32 2147483647, %v4208
        %v4211 = vcvt.s32.f32 %v4204
        %v4212 = vmul.f32 %v4211, %v4209
        %v4213 = vxor.u32 %v4212, 2147483648
        %v4214 = vsel %vm4093, %v4213, %v4212
        %v4215 = vsub.s32 4, %v4191
        %v4216 = vsel %vm4093, %v4215, %v4191
        %v4217 = vsel %vm4092, %v3318, %v4214
        %v4218 = vsel %vm4092, 0, %v4216
        %v4219 = vmul.f32 %v4217, %v4217
        %v4220 = vmul.f32 %v4219, -0.001358992
        %v4221 = vadd.f32 %v4220, 0.041655596
        %v4222 = vmul.f32 %v4219, %v4221
        %v4223 = vadd.f32 %v4222, -0.4999988
        %v4224 = vmul.f32 %v4219, %v4223
        %v4225 = vadd.f32 1.0, %v4224
        %v4226 = vmul.f32 %v4217, %v4217
        %v4227 = vmul.f32 %v4226, -0.00019511016
        %v4228 = vadd.f32 %v4227, 0.008332121
        %v4229 = vmul.f32 %v4226, %v4228
        %v4230 = vadd.f32 %v4229, -0.16666654
        %v4231 = vmul.f32 %v4226, %v4230
        %v4232 = vadd.f32 %v4231, 1.0
        %v4233 = vmul.f32 %v4232, %v4217
        %vm4234 = vweird.f32 %v3318
        %v4235 = vand.u32 %v4218, 3
        %vm4236 = vcmp.lt.s32.totalorder %v4235, 2
        %vm4237 = vcmp.eq.s32.totalorder %v4235, 0
        %v4238 = vxor.u32 %v4233, 2147483648
        %v4239 = vsel %vm4237, %v4225, %v4238
        %vm4240 = vcmp.eq.s32.totalorder %v4235, 2
        %v4241 = vxor.u32 %v4225, 2147483648
        %v4242 = vsel %vm4240, %v4241, %v4233
        %v4243 = vsel %vm4236, %v4239, %v4242
        %v4244 = vsel %vm4234, nan, %v4243
        %v4245 = vand.u32 2147483647, %v3319
        %vm4246 = vcmp.le.f32.partialorder %v4245, 0.7853982
        %vm4247 = vcmp.lt.s32.totalorder %v3319, 0
        %v4248 = vand.u32 %v3319, 2139095040
        %v4249 = vshrl.u32 %v4248, 23
        %v4250 = vsub.s32 %v4249, 127
        %v4251 = vand.u32 2147483647, %v3319
        %v4252 = vand.u32 %v4251, 8388607
        %v4253 = vor.u32 %v4252, 8388608
        %v4254 = vsub.s32 0, %v4253
        %v4255 = vadd.s32 %v4250, 1
        %vm4256 = vcmp.gt.s32.totalorder %v4255, 0
        %v4257 = vsel %vm4256, %v4255, 0
        %v4258 = vshrl.u32 %v4257, 5
        %v4259 = vand.u32 %v4257, 31
        %v4260 = vsub.s32 32, %v4259
        %v4261 = vshrl.u32 683565275, %v4260
        %v4262 = vshll.u32 683565275, %v4259
        %v4263 = vshrl.u32 2475754826, %v4260
        %v4264 = vor.u32 %v4262, %v4263
        %v4265 = vshll.u32 2475754826, %v4259
        %v4266 = vshrl.u32 2131351028, %v4260
        %v4267 = vor.u32 %v4265, %v4266
        %v4268 = vshll.u32 2131351028, %v4259
        %v4269 = vshrl.u32 2102212464, %v4260
        %v4270 = vor.u32 %v4268, %v4269
        %v4271 = vshll.u32 2102212464, %v4259
        %v4272 = vshrl.u32 920167782, %v4260
        %v4273 = vor.u32 %v4271, %v4272
        %v4274 = vshll.u32 920167782, %v4259
        %v4275 = vshrl.u32 1326507024, %v4260
        %v4276 = vor.u32 %v4274, %v4275
        %vm4277 = vcmp.lt.s32.totalorder %v4258, 1
        %vm4278 = vcmp.lt.s32.totalorder %v4258, 2
        %vm4279 = vcmp.lt.s32.totalorder %v4258, 3
        %vm4280 = vcmp.lt.s32.totalorder %v4258, 4
        %v4281 = vsel %vm4277, %v4261, %v4264
        %v4282 = vsel %vm4280, %v4270, 2102212464
        %v4283 = vsel %vm4279, %v4267, %v4282
        %v4284 = vsel %vm4278, %v4281, %v4283
        %v4285 = vsel %vm4277, %v4264, %v4267
        %v4286 = vsel %vm4280, %v4273, 920167782
        %v4287 = vsel %vm4279, %v4270, %v4286
        %v4288 = vsel %vm4278, %v4285, %v4287
        %v4289 = vsel %vm4277, %v4267, %v4270
        %v4290 = vsel %vm4280, %v4276, 1326507024
        %v4291 = vsel %vm4279, %v4273, %v4290
        %v4292 = vsel %vm4278, %v4289, %v4291
        %v4293 = vshll.u32 %v4253, 8
        %v4294 = vand.u32 %v4293, 65535
        %v4295 = vshrl.u32 %v4293, 16
        %v4296 = vand.u32 %v4292, 65535
        %v4297 = vshrl.u32 %v4292, 16
        %v4298 = vmul.u32 %v4294, %v4296
        %v4299 = vmul.u32 %v4294, %v4297
        %v4300 = vmul.u32 %v4295, %v4296
        %v4301 = vmul.u32 %v4295, %v4297
        %v4302 = vshll.u32 %v4299, 16
        %v4303 = vshrl.u32 %v4299, 16
        %v4304 = vshll.u32 %v4300, 16
        %v4305 = vshrl.u32 %v4300, 16
        %vm4306 = vc.u32 %v4298, %v4302
        %v4307 = vsel %vm4306, 1, 0
        %v4308 = vadd.s32 %v4298, %v4302
        %v4309 = vadd.s32 %v4301, %v4307
        %vm4310 = vc.u32 %v4308, %v4304
        %v4311 = vsel %vm4310, 1, 0
        %v4312 = vadd.s32 %v4308, %v4304
        %v4313 = vadd.s32 %v4309, %v4311
        %v4314 = vadd.s32 %v4313, %v4303
        %v4315 = vadd.s32 %v4314, %v4305
        %v4316 = vand.u32 %v4293, 65535
        %v4317 = vshrl.u32 %v4293, 16
        %v4318 = vand.u32 %v4288, 65535
        %v4319 = vshrl.u32 %v4288, 16
        %v4320 = vmul.u32 %v4316, %v4318
        %v4321 = vmul.u32 %v4316, %v4319
        %v4322 = vmul.u32 %v4317, %v4318
        %v4323 = vmul.u32 %v4317, %v4319
        %v4324 = vshll.u32 %v4321, 16
        %v4325 = vshrl.u32 %v4321, 16
        %v4326 = vshll.u32 %v4322, 16
        %v4327 = vshrl.u32 %v4322, 16
        %vm4328 = vc.u32 %v4320, %v4324
        %v4329 = vsel %vm4328, 1, 0
        %v4330 = vadd.s32 %v4320, %v4324
        %v4331 = vadd.s32 %v4323, %v4329
        %vm4332 = vc.u32 %v4330, %v4326
        %v4333 = vsel %vm4332, 1, 0
        %v4334 = vadd.s32 %v4330, %v4326
        %v4335 = vadd.s32 %v4331, %v4333
        %v4336 = vadd.s32 %v4335, %v4325
        %v4337 = vadd.s32 %v4336, %v4327
        %v4338 = vmul.u32 %v4293, %v4284
        %v4339 = vadd.s32 %v4315, %v4334
        %vm4340 = vc.u32 %v4315, %v4334
        %v4341 = vadd.s32 %v4337, 1
        %v4342 = vsel %vm4340, %v4341, %v4337
        %v4343 = vadd.s32 %v4338, %v4342
        %v4344 = vadd.s32 %v4343, 536870912
        %v4345 = vshrl.u32 %v4344, 30
        %v4346 = vshll.u32 %v4345, 30
        %v4347 = vsub.s32 %v4343, %v4346
        %vm4348 = vcmp.lt.s32.totalorder %v4347, 0
        %v4349 = vsub.s32 0, %v4347
        %v4350 = vsel %vm4348, %v4349, %v4347
        %v4351 = vclz %v4350
        %v4352 = vsub.s32 %v4351, 2
        %vm4353 = vcmp.gt.s32.totalorder 0, %v4352
        %v4354 = vsel %vm4353, 0, %v4352
        %v4355 = vsub.s32 32, %v4354
        %v4356 = vshll.u32 %v4347, %v4354
        %v4357 = vshrl.u32 %v4339, %v4355
        %v4358 = vor.u32 %v4356, %v4357
        %v4359 = vsub.s32 4294967266, %v4354
        %v4360 = vadd.s32 %v4359, 127
        %v4361 = vshll.u32 %v4360, 23
        %v4362 = vor.u32 4788187, %v4361
        %v4363 = vand.u32 2147483647, %v4362
        %v4365 = vcvt.s32.f32 %v4358
        %v4366 = vmul.f32 %v4365, %v4363
        %v4367 = vxor.u32 %v4366, 2147483648
        %v4368 = vsel %vm4247, %v4367, %v4366
        %v4369 = vsub.s32 4, %v4345
        %v4370 = vsel %vm4247, %v4369, %v4345
        %v4371 = vsel %vm4246, %v3319, %v4368
        %v4372 = vsel %vm4246, 0, %v4370
        %v4373 = vmul.f32 %v4371, %v4371
        %v4374 = vmul.f32 %v4373, -0.001358992
        %v4375 = vadd.f32 %v4374, 0.041655596
        %v4376 = vmul.f32 %v4373, %v4375
        %v4377 = vadd.f32 %v4376, -0.4999988
        %v4378 = vmul.f32 %v4373, %v4377
        %v4379 = vadd.f32 1.0, %v4378
        %v4380 = vmul.f32 %v4371, %v4371
        %v4381 = vmul.f32 %v4380, -0.00019511016
        %v4382 = vadd.f32 %v4381, 0.008332121
        %v4383 = vmul.f32 %v4380, %v4382
        %v4384 = vadd.f32 %v4383, -0.16666654
        %v4385 = vmul.f32 %v4380, %v4384
        %v4386 = vadd.f32 %v4385, 1.0
        %v4387 = vmul.f32 %v4386, %v4371
        %vm4388 = vweird.f32 %v3319
        %v4389 = vand.u32 %v4372, 3
        %vm4390 = vcmp.lt.s32.totalorder %v4389, 2
        %vm4391 = vcmp.eq.s32.totalorder %v4389, 0
        %v4392 = vxor.u32 %v4387, 2147483648
        %v4393 = vsel %vm4391, %v4379, %v4392
        %vm4394 = vcmp.eq.s32.totalorder %v4389, 2
        %v4395 = vxor.u32 %v4379, 2147483648
        %v4396 = vsel %vm4394, %v4395, %v4387
        %v4397 = vsel %vm4390, %v4393, %v4396
        %v4398 = vsel %vm4388, nan, %v4397
        %v4399 = vand.u32 2147483647, %v3320
        %vm4400 = vcmp.le.f32.partialorder %v4399, 0.7853982
        %vm4401 = vcmp.lt.s32.totalorder %v3320, 0
        %v4402 = vand.u32 %v3320, 2139095040
        %v4403 = vshrl.u32 %v4402, 23
        %v4404 = vsub.s32 %v4403, 127
        %v4405 = vand.u32 2147483647, %v3320
        %v4406 = vand.u32 %v4405, 8388607
        %v4407 = vor.u32 %v4406, 8388608
        %v4408 = vsub.s32 0, %v4407
        %v4409 = vadd.s32 %v4404, 1
        %vm4410 = vcmp.gt.s32.totalorder %v4409, 0
        %v4411 = vsel %vm4410, %v4409, 0
        %v4412 = vshrl.u32 %v4411, 5
        %v4413 = vand.u32 %v4411, 31
        %v4414 = vsub.s32 32, %v4413
        %v4415 = vshrl.u32 683565275, %v4414
        %v4416 = vshll.u32 683565275, %v4413
        %v4417 = vshrl.u32 2475754826, %v4414
        %v4418 = vor.u32 %v4416, %v4417
        %v4419 = vshll.u32 2475754826, %v4413
        %v4420 = vshrl.u32 2131351028, %v4414
        %v4421 = vor.u32 %v4419, %v4420
        %v4422 = vshll.u32 2131351028, %v4413
        %v4423 = vshrl.u32 2102212464, %v4414
        %v4424 = vor.u32 %v4422, %v4423
        %v4425 = vshll.u32 2102212464, %v4413
        %v4426 = vshrl.u32 920167782, %v4414
        %v4427 = vor.u32 %v4425, %v4426
        %v4428 = vshll.u32 920167782, %v4413
        %v4429 = vshrl.u32 1326507024, %v4414
        %v4430 = vor.u32 %v4428, %v4429
        %vm4431 = vcmp.lt.s32.totalorder %v4412, 1
        %vm4432 = vcmp.lt.s32.totalorder %v4412, 2
        %vm4433 = vcmp.lt.s32.totalorder %v4412, 3
        %vm4434 = vcmp.lt.s32.totalorder %v4412, 4
        %v4435 = vsel %vm4431, %v4415, %v4418
        %v4436 = vsel %vm4434, %v4424, 2102212464
        %v4437 = vsel %vm4433, %v4421, %v4436
        %v4438 = vsel %vm4432, %v4435, %v4437
        %v4439 = vsel %vm4431, %v4418, %v4421
        %v4440 = vsel %vm4434, %v4427, 920167782
        %v4441 = vsel %vm4433, %v4424, %v4440
        %v4442 = vsel %vm4432, %v4439, %v4441
        %v4443 = vsel %vm4431, %v4421, %v4424
        %v4444 = vsel %vm4434, %v4430, 1326507024
        %v4445 = vsel %vm4433, %v4427, %v4444
        %v4446 = vsel %vm4432, %v4443, %v4445
        %v4447 = vshll.u32 %v4407, 8
        %v4448 = vand.u32 %v4447, 65535
        %v4449 = vshrl.u32 %v4447, 16
        %v4450 = vand.u32 %v4446, 65535
        %v4451 = vshrl.u32 %v4446, 16
        %v4452 = vmul.u32 %v4448, %v4450
        %v4453 = vmul.u32 %v4448, %v4451
        %v4454 = vmul.u32 %v4449, %v4450
        %v4455 = vmul.u32 %v4449, %v4451
        %v4456 = vshll.u32 %v4453, 16
        %v4457 = vshrl.u32 %v4453, 16
        %v4458 = vshll.u32 %v4454, 16
        %v4459 = vshrl.u32 %v4454, 16
        %vm4460 = vc.u32 %v4452, %v4456
        %v4461 = vsel %vm4460, 1, 0
        %v4462 = vadd.s32 %v4452, %v4456
        %v4463 = vadd.s32 %v4455, %v4461
        %vm4464 = vc.u32 %v4462, %v4458
        %v4465 = vsel %vm4464, 1, 0
        %v4466 = vadd.s32 %v4462, %v4458
        %v4467 = vadd.s32 %v4463, %v4465
        %v4468 = vadd.s32 %v4467, %v4457
        %v4469 = vadd.s32 %v4468, %v4459
        %v4470 = vand.u32 %v4447, 65535
        %v4471 = vshrl.u32 %v4447, 16
        %v4472 = vand.u32 %v4442, 65535
        %v4473 = vshrl.u32 %v4442, 16
        %v4474 = vmul.u32 %v4470, %v4472
        %v4475 = vmul.u32 %v4470, %v4473
        %v4476 = vmul.u32 %v4471, %v4472
        %v4477 = vmul.u32 %v4471, %v4473
        %v4478 = vshll.u32 %v4475, 16
        %v4479 = vshrl.u32 %v4475, 16
        %v4480 = vshll.u32 %v4476, 16
        %v4481 = vshrl.u32 %v4476, 16
        %vm4482 = vc.u32 %v4474, %v4478
        %v4483 = vsel %vm4482, 1, 0
        %v4484 = vadd.s32 %v4474, %v4478
        %v4485 = vadd.s32 %v4477, %v4483
        %vm4486 = vc.u32 %v4484, %v4480
        %v4487 = vsel %vm4486, 1, 0
        %v4488 = vadd.s32 %v4484, %v4480
        %v4489 = vadd.s32 %v4485, %v4487
        %v4490 = vadd.s32 %v4489, %v4479
        %v4491 = vadd.s32 %v4490, %v4481
        %v4492 = vmul.u32 %v4447, %v4438
        %v4493 = vadd.s32 %v4469, %v4488
        %vm4494 = vc.u32 %v4469, %v4488
        %v4495 = vadd.s32 %v4491, 1
        %v4496 = vsel %vm4494, %v4495, %v4491
        %v4497 = vadd.s32 %v4492, %v4496
        %v4498 = vadd.s32 %v4497, 536870912
        %v4499 = vshrl.u32 %v4498, 30
        %v4500 = vshll.u32 %v4499, 30
        %v4501 = vsub.s32 %v4497, %v4500
        %vm4502 = vcmp.lt.s32.totalorder %v4501, 0
        %v4503 = vsub.s32 0, %v4501
        %v4504 = vsel %vm4502, %v4503, %v4501
        %v4505 = vclz %v4504
        %v4506 = vsub.s32 %v4505, 2
        %vm4507 = vcmp.gt.s32.totalorder 0, %v4506
        %v4508 = vsel %vm4507, 0, %v4506
        %v4509 = vsub.s32 32, %v4508
        %v4510 = vshll.u32 %v4501, %v4508
        %v4511 = vshrl.u32 %v4493, %v4509
        %v4512 = vor.u32 %v4510, %v4511
        %v4513 = vsub.s32 4294967266, %v4508
        %v4514 = vadd.s32 %v4513, 127
        %v4515 = vshll.u32 %v4514, 23
        %v4516 = vor.u32 4788187, %v4515
        %v4517 = vand.u32 2147483647, %v4516
        %v4519 = vcvt.s32.f32 %v4512
        %v4520 = vmul.f32 %v4519, %v4517
        %v4521 = vxor.u32 %v4520, 2147483648
        %v4522 = vsel %vm4401, %v4521, %v4520
        %v4523 = vsub.s32 4, %v4499
        %v4524 = vsel %vm4401, %v4523, %v4499
        %v4525 = vsel %vm4400, %v3320, %v4522
        %v4526 = vsel %vm4400, 0, %v4524
        %v4527 = vmul.f32 %v4525, %v4525
        %v4528 = vmul.f32 %v4527, -0.001358992
        %v4529 = vadd.f32 %v4528, 0.041655596
        %v4530 = vmul.f32 %v4527, %v4529
        %v4531 = vadd.f32 %v4530, -0.4999988
        %v4532 = vmul.f32 %v4527, %v4531
        %v4533 = vadd.f32 1.0, %v4532
        %v4534 = vmul.f32 %v4525, %v4525
        %v4535 = vmul.f32 %v4534, -0.00019511016
        %v4536 = vadd.f32 %v4535, 0.008332121
        %v4537 = vmul.f32 %v4534, %v4536
        %v4538 = vadd.f32 %v4537, -0.16666654
        %v4539 = vmul.f32 %v4534, %v4538
        %v4540 = vadd.f32 %v4539, 1.0
        %v4541 = vmul.f32 %v4540, %v4525
        %vm4542 = vweird.f32 %v3320
        %v4543 = vand.u32 %v4526, 3
        %vm4544 = vcmp.lt.s32.totalorder %v4543, 2
        %vm4545 = vcmp.eq.s32.totalorder %v4543, 0
        %v4546 = vxor.u32 %v4541, 2147483648
        %v4547 = vsel %vm4545, %v4533, %v4546
        %vm4548 = vcmp.eq.s32.totalorder %v4543, 2
        %v4549 = vxor.u32 %v4533, 2147483648
        %v4550 = vsel %vm4548, %v4549, %v4541
        %v4551 = vsel %vm4544, %v4547, %v4550
        %v4552 = vsel %vm4542, nan, %v4551
        %v4553 = vmul.f32 %v3262, %v3474
        %v4554 = vmul.f32 %v3262, %v3628
        %v4555 = vmul.f32 %v3262, %v3782
        %v4556 = vmul.f32 %v3262, %v3936
        %v4557 = vmul.f32 %v3262, %v4090
        %v4558 = vmul.f32 %v3262, %v4244
        %v4559 = vmul.f32 %v3262, %v4398
        %v4560 = vmul.f32 %v3262, %v4552
        %4561 = vst [vmem:[#allocation2 + $0xd0] sm:$0xff] %v4553
        %4562 = vst [vmem:[#allocation2 + $0xd8] sm:$0xff] %v4554
        %4563 = vst [vmem:[#allocation2 + $0xe0] sm:$0xff] %v4555
        %4564 = vst [vmem:[#allocation2 + $0xe8] sm:$0xff] %v4556
        %4565 = vst [vmem:[#allocation2 + $0xf0] sm:$0xff] %v4557
        %4566 = vst [vmem:[#allocation2 + $0xf8] sm:$0xff] %v4558
        %4567 = vst [vmem:[#allocation2 + $0x100] sm:$0xff] %v4559
        %4568 = vst [vmem:[#allocation2 + $0x108] sm:$0xff] %v4560
        %v4569 = vand.u32 2147483647, %v3313
        %vm4570 = vcmp.le.f32.partialorder %v4569, 0.7853982
        %vm4571 = vcmp.lt.s32.totalorder %v3313, 0
        %v4572 = vand.u32 %v3313, 2139095040
        %v4573 = vshrl.u32 %v4572, 23
        %v4574 = vsub.s32 %v4573, 127
        %v4575 = vand.u32 2147483647, %v3313
        %v4576 = vand.u32 %v4575, 8388607
        %v4577 = vor.u32 %v4576, 8388608
        %v4578 = vsub.s32 0, %v4577
        %v4579 = vadd.s32 %v4574, 1
        %vm4580 = vcmp.gt.s32.totalorder %v4579, 0
        %v4581 = vsel %vm4580, %v4579, 0
        %v4582 = vshrl.u32 %v4581, 5
        %v4583 = vand.u32 %v4581, 31
        %v4584 = vsub.s32 32, %v4583
        %v4585 = vshrl.u32 683565275, %v4584
        %v4586 = vshll.u32 683565275, %v4583
        %v4587 = vshrl.u32 2475754826, %v4584
        %v4588 = vor.u32 %v4586, %v4587
        %v4589 = vshll.u32 2475754826, %v4583
        %v4590 = vshrl.u32 2131351028, %v4584
        %v4591 = vor.u32 %v4589, %v4590
        %v4592 = vshll.u32 2131351028, %v4583
        %v4593 = vshrl.u32 2102212464, %v4584
        %v4594 = vor.u32 %v4592, %v4593
        %v4595 = vshll.u32 2102212464, %v4583
        %v4596 = vshrl.u32 920167782, %v4584
        %v4597 = vor.u32 %v4595, %v4596
        %v4598 = vshll.u32 920167782, %v4583
        %v4599 = vshrl.u32 1326507024, %v4584
        %v4600 = vor.u32 %v4598, %v4599
        %vm4601 = vcmp.lt.s32.totalorder %v4582, 1
        %vm4602 = vcmp.lt.s32.totalorder %v4582, 2
        %vm4603 = vcmp.lt.s32.totalorder %v4582, 3
        %vm4604 = vcmp.lt.s32.totalorder %v4582, 4
        %v4605 = vsel %vm4601, %v4585, %v4588
        %v4606 = vsel %vm4604, %v4594, 2102212464
        %v4607 = vsel %vm4603, %v4591, %v4606
        %v4608 = vsel %vm4602, %v4605, %v4607
        %v4609 = vsel %vm4601, %v4588, %v4591
        %v4610 = vsel %vm4604, %v4597, 920167782
        %v4611 = vsel %vm4603, %v4594, %v4610
        %v4612 = vsel %vm4602, %v4609, %v4611
        %v4613 = vsel %vm4601, %v4591, %v4594
        %v4614 = vsel %vm4604, %v4600, 1326507024
        %v4615 = vsel %vm4603, %v4597, %v4614
        %v4616 = vsel %vm4602, %v4613, %v4615
        %v4617 = vshll.u32 %v4577, 8
        %v4618 = vand.u32 %v4617, 65535
        %v4619 = vshrl.u32 %v4617, 16
        %v4620 = vand.u32 %v4616, 65535
        %v4621 = vshrl.u32 %v4616, 16
        %v4622 = vmul.u32 %v4618, %v4620
        %v4623 = vmul.u32 %v4618, %v4621
        %v4624 = vmul.u32 %v4619, %v4620
        %v4625 = vmul.u32 %v4619, %v4621
        %v4626 = vshll.u32 %v4623, 16
        %v4627 = vshrl.u32 %v4623, 16
        %v4628 = vshll.u32 %v4624, 16
        %v4629 = vshrl.u32 %v4624, 16
        %vm4630 = vc.u32 %v4622, %v4626
        %v4631 = vsel %vm4630, 1, 0
        %v4632 = vadd.s32 %v4622, %v4626
        %v4633 = vadd.s32 %v4625, %v4631
        %vm4634 = vc.u32 %v4632, %v4628
        %v4635 = vsel %vm4634, 1, 0
        %v4636 = vadd.s32 %v4632, %v4628
        %v4637 = vadd.s32 %v4633, %v4635
        %v4638 = vadd.s32 %v4637, %v4627
        %v4639 = vadd.s32 %v4638, %v4629
        %v4640 = vand.u32 %v4617, 65535
        %v4641 = vshrl.u32 %v4617, 16
        %v4642 = vand.u32 %v4612, 65535
        %v4643 = vshrl.u32 %v4612, 16
        %v4644 = vmul.u32 %v4640, %v4642
        %v4645 = vmul.u32 %v4640, %v4643
        %v4646 = vmul.u32 %v4641, %v4642
        %v4647 = vmul.u32 %v4641, %v4643
        %v4648 = vshll.u32 %v4645, 16
        %v4649 = vshrl.u32 %v4645, 16
        %v4650 = vshll.u32 %v4646, 16
        %v4651 = vshrl.u32 %v4646, 16
        %vm4652 = vc.u32 %v4644, %v4648
        %v4653 = vsel %vm4652, 1, 0
        %v4654 = vadd.s32 %v4644, %v4648
        %v4655 = vadd.s32 %v4647, %v4653
        %vm4656 = vc.u32 %v4654, %v4650
        %v4657 = vsel %vm4656, 1, 0
        %v4658 = vadd.s32 %v4654, %v4650
        %v4659 = vadd.s32 %v4655, %v4657
        %v4660 = vadd.s32 %v4659, %v4649
        %v4661 = vadd.s32 %v4660, %v4651
        %v4662 = vmul.u32 %v4617, %v4608
        %v4663 = vadd.s32 %v4639, %v4658
        %vm4664 = vc.u32 %v4639, %v4658
        %v4665 = vadd.s32 %v4661, 1
        %v4666 = vsel %vm4664, %v4665, %v4661
        %v4667 = vadd.s32 %v4662, %v4666
        %v4668 = vadd.s32 %v4667, 536870912
        %v4669 = vshrl.u32 %v4668, 30
        %v4670 = vshll.u32 %v4669, 30
        %v4671 = vsub.s32 %v4667, %v4670
        %vm4672 = vcmp.lt.s32.totalorder %v4671, 0
        %v4673 = vsub.s32 0, %v4671
        %v4674 = vsel %vm4672, %v4673, %v4671
        %v4675 = vclz %v4674
        %v4676 = vsub.s32 %v4675, 2
        %vm4677 = vcmp.gt.s32.totalorder 0, %v4676
        %v4678 = vsel %vm4677, 0, %v4676
        %v4679 = vsub.s32 32, %v4678
        %v4680 = vshll.u32 %v4671, %v4678
        %v4681 = vshrl.u32 %v4663, %v4679
        %v4682 = vor.u32 %v4680, %v4681
        %v4683 = vsub.s32 4294967266, %v4678
        %v4684 = vadd.s32 %v4683, 127
        %v4685 = vshll.u32 %v4684, 23
        %v4686 = vor.u32 4788187, %v4685
        %v4687 = vand.u32 2147483647, %v4686
        %v4689 = vcvt.s32.f32 %v4682
        %v4690 = vmul.f32 %v4689, %v4687
        %v4691 = vxor.u32 %v4690, 2147483648
        %v4692 = vsel %vm4571, %v4691, %v4690
        %v4693 = vsub.s32 4, %v4669
        %v4694 = vsel %vm4571, %v4693, %v4669
        %v4695 = vsel %vm4570, %v3313, %v4692
        %v4696 = vsel %vm4570, 0, %v4694
        %v4697 = vmul.f32 %v4695, %v4695
        %v4698 = vmul.f32 %v4697, -0.001358992
        %v4699 = vadd.f32 %v4698, 0.041655596
        %v4700 = vmul.f32 %v4697, %v4699
        %v4701 = vadd.f32 %v4700, -0.4999988
        %v4702 = vmul.f32 %v4697, %v4701
        %v4703 = vadd.f32 1.0, %v4702
        %v4704 = vmul.f32 %v4695, %v4695
        %v4705 = vmul.f32 %v4704, -0.00019511016
        %v4706 = vadd.f32 %v4705, 0.008332121
        %v4707 = vmul.f32 %v4704, %v4706
        %v4708 = vadd.f32 %v4707, -0.16666654
        %v4709 = vmul.f32 %v4704, %v4708
        %v4710 = vadd.f32 %v4709, 1.0
        %v4711 = vmul.f32 %v4710, %v4695
        %vm4712 = vweird.f32 %v3313
        %v4713 = vadd.s32 %v4696, 3
        %v4714 = vand.u32 %v4713, 3
        %vm4715 = vcmp.lt.s32.totalorder %v4714, 2
        %vm4716 = vcmp.eq.s32.totalorder %v4714, 0
        %v4717 = vxor.u32 %v4711, 2147483648
        %v4718 = vsel %vm4716, %v4703, %v4717
        %vm4719 = vcmp.eq.s32.totalorder %v4714, 2
        %v4720 = vxor.u32 %v4703, 2147483648
        %v4721 = vsel %vm4719, %v4720, %v4711
        %v4722 = vsel %vm4715, %v4718, %v4721
        %v4723 = vsel %vm4712, nan, %v4722
        %v4724 = vand.u32 2147483647, %v3314
        %vm4725 = vcmp.le.f32.partialorder %v4724, 0.7853982
        %vm4726 = vcmp.lt.s32.totalorder %v3314, 0
        %v4727 = vand.u32 %v3314, 2139095040
        %v4728 = vshrl.u32 %v4727, 23
        %v4729 = vsub.s32 %v4728, 127
        %v4730 = vand.u32 2147483647, %v3314
        %v4731 = vand.u32 %v4730, 8388607
        %v4732 = vor.u32 %v4731, 8388608
        %v4733 = vsub.s32 0, %v4732
        %v4734 = vadd.s32 %v4729, 1
        %vm4735 = vcmp.gt.s32.totalorder %v4734, 0
        %v4736 = vsel %vm4735, %v4734, 0
        %v4737 = vshrl.u32 %v4736, 5
        %v4738 = vand.u32 %v4736, 31
        %v4739 = vsub.s32 32, %v4738
        %v4740 = vshrl.u32 683565275, %v4739
        %v4741 = vshll.u32 683565275, %v4738
        %v4742 = vshrl.u32 2475754826, %v4739
        %v4743 = vor.u32 %v4741, %v4742
        %v4744 = vshll.u32 2475754826, %v4738
        %v4745 = vshrl.u32 2131351028, %v4739
        %v4746 = vor.u32 %v4744, %v4745
        %v4747 = vshll.u32 2131351028, %v4738
        %v4748 = vshrl.u32 2102212464, %v4739
        %v4749 = vor.u32 %v4747, %v4748
        %v4750 = vshll.u32 2102212464, %v4738
        %v4751 = vshrl.u32 920167782, %v4739
        %v4752 = vor.u32 %v4750, %v4751
        %v4753 = vshll.u32 920167782, %v4738
        %v4754 = vshrl.u32 1326507024, %v4739
        %v4755 = vor.u32 %v4753, %v4754
        %vm4756 = vcmp.lt.s32.totalorder %v4737, 1
        %vm4757 = vcmp.lt.s32.totalorder %v4737, 2
        %vm4758 = vcmp.lt.s32.totalorder %v4737, 3
        %vm4759 = vcmp.lt.s32.totalorder %v4737, 4
        %v4760 = vsel %vm4756, %v4740, %v4743
        %v4761 = vsel %vm4759, %v4749, 2102212464
        %v4762 = vsel %vm4758, %v4746, %v4761
        %v4763 = vsel %vm4757, %v4760, %v4762
        %v4764 = vsel %vm4756, %v4743, %v4746
        %v4765 = vsel %vm4759, %v4752, 920167782
        %v4766 = vsel %vm4758, %v4749, %v4765
        %v4767 = vsel %vm4757, %v4764, %v4766
        %v4768 = vsel %vm4756, %v4746, %v4749
        %v4769 = vsel %vm4759, %v4755, 1326507024
        %v4770 = vsel %vm4758, %v4752, %v4769
        %v4771 = vsel %vm4757, %v4768, %v4770
        %v4772 = vshll.u32 %v4732, 8
        %v4773 = vand.u32 %v4772, 65535
        %v4774 = vshrl.u32 %v4772, 16
        %v4775 = vand.u32 %v4771, 65535
        %v4776 = vshrl.u32 %v4771, 16
        %v4777 = vmul.u32 %v4773, %v4775
        %v4778 = vmul.u32 %v4773, %v4776
        %v4779 = vmul.u32 %v4774, %v4775
        %v4780 = vmul.u32 %v4774, %v4776
        %v4781 = vshll.u32 %v4778, 16
        %v4782 = vshrl.u32 %v4778, 16
        %v4783 = vshll.u32 %v4779, 16
        %v4784 = vshrl.u32 %v4779, 16
        %vm4785 = vc.u32 %v4777, %v4781
        %v4786 = vsel %vm4785, 1, 0
        %v4787 = vadd.s32 %v4777, %v4781
        %v4788 = vadd.s32 %v4780, %v4786
        %vm4789 = vc.u32 %v4787, %v4783
        %v4790 = vsel %vm4789, 1, 0
        %v4791 = vadd.s32 %v4787, %v4783
        %v4792 = vadd.s32 %v4788, %v4790
        %v4793 = vadd.s32 %v4792, %v4782
        %v4794 = vadd.s32 %v4793, %v4784
        %v4795 = vand.u32 %v4772, 65535
        %v4796 = vshrl.u32 %v4772, 16
        %v4797 = vand.u32 %v4767, 65535
        %v4798 = vshrl.u32 %v4767, 16
        %v4799 = vmul.u32 %v4795, %v4797
        %v4800 = vmul.u32 %v4795, %v4798
        %v4801 = vmul.u32 %v4796, %v4797
        %v4802 = vmul.u32 %v4796, %v4798
        %v4803 = vshll.u32 %v4800, 16
        %v4804 = vshrl.u32 %v4800, 16
        %v4805 = vshll.u32 %v4801, 16
        %v4806 = vshrl.u32 %v4801, 16
        %vm4807 = vc.u32 %v4799, %v4803
        %v4808 = vsel %vm4807, 1, 0
        %v4809 = vadd.s32 %v4799, %v4803
        %v4810 = vadd.s32 %v4802, %v4808
        %vm4811 = vc.u32 %v4809, %v4805
        %v4812 = vsel %vm4811, 1, 0
        %v4813 = vadd.s32 %v4809, %v4805
        %v4814 = vadd.s32 %v4810, %v4812
        %v4815 = vadd.s32 %v4814, %v4804
        %v4816 = vadd.s32 %v4815, %v4806
        %v4817 = vmul.u32 %v4772, %v4763
        %v4818 = vadd.s32 %v4794, %v4813
        %vm4819 = vc.u32 %v4794, %v4813
        %v4820 = vadd.s32 %v4816, 1
        %v4821 = vsel %vm4819, %v4820, %v4816
        %v4822 = vadd.s32 %v4817, %v4821
        %v4823 = vadd.s32 %v4822, 536870912
        %v4824 = vshrl.u32 %v4823, 30
        %v4825 = vshll.u32 %v4824, 30
        %v4826 = vsub.s32 %v4822, %v4825
        %vm4827 = vcmp.lt.s32.totalorder %v4826, 0
        %v4828 = vsub.s32 0, %v4826
        %v4829 = vsel %vm4827, %v4828, %v4826
        %v4830 = vclz %v4829
        %v4831 = vsub.s32 %v4830, 2
        %vm4832 = vcmp.gt.s32.totalorder 0, %v4831
        %v4833 = vsel %vm4832, 0, %v4831
        %v4834 = vsub.s32 32, %v4833
        %v4835 = vshll.u32 %v4826, %v4833
        %v4836 = vshrl.u32 %v4818, %v4834
        %v4837 = vor.u32 %v4835, %v4836
        %v4838 = vsub.s32 4294967266, %v4833
        %v4839 = vadd.s32 %v4838, 127
        %v4840 = vshll.u32 %v4839, 23
        %v4841 = vor.u32 4788187, %v4840
        %v4842 = vand.u32 2147483647, %v4841
        %v4844 = vcvt.s32.f32 %v4837
        %v4845 = vmul.f32 %v4844, %v4842
        %v4846 = vxor.u32 %v4845, 2147483648
        %v4847 = vsel %vm4726, %v4846, %v4845
        %v4848 = vsub.s32 4, %v4824
        %v4849 = vsel %vm4726, %v4848, %v4824
        %v4850 = vsel %vm4725, %v3314, %v4847
        %v4851 = vsel %vm4725, 0, %v4849
        %v4852 = vmul.f32 %v4850, %v4850
        %v4853 = vmul.f32 %v4852, -0.001358992
        %v4854 = vadd.f32 %v4853, 0.041655596
        %v4855 = vmul.f32 %v4852, %v4854
        %v4856 = vadd.f32 %v4855, -0.4999988
        %v4857 = vmul.f32 %v4852, %v4856
        %v4858 = vadd.f32 1.0, %v4857
        %v4859 = vmul.f32 %v4850, %v4850
        %v4860 = vmul.f32 %v4859, -0.00019511016
        %v4861 = vadd.f32 %v4860, 0.008332121
        %v4862 = vmul.f32 %v4859, %v4861
        %v4863 = vadd.f32 %v4862, -0.16666654
        %v4864 = vmul.f32 %v4859, %v4863
        %v4865 = vadd.f32 %v4864, 1.0
        %v4866 = vmul.f32 %v4865, %v4850
        %vm4867 = vweird.f32 %v3314
        %v4868 = vadd.s32 %v4851, 3
        %v4869 = vand.u32 %v4868, 3
        %vm4870 = vcmp.lt.s32.totalorder %v4869, 2
        %vm4871 = vcmp.eq.s32.totalorder %v4869, 0
        %v4872 = vxor.u32 %v4866, 2147483648
        %v4873 = vsel %vm4871, %v4858, %v4872
        %vm4874 = vcmp.eq.s32.totalorder %v4869, 2
        %v4875 = vxor.u32 %v4858, 2147483648
        %v4876 = vsel %vm4874, %v4875, %v4866
        %v4877 = vsel %vm4870, %v4873, %v4876
        %v4878 = vsel %vm4867, nan, %v4877
        %v4879 = vand.u32 2147483647, %v3315
        %vm4880 = vcmp.le.f32.partialorder %v4879, 0.7853982
        %vm4881 = vcmp.lt.s32.totalorder %v3315, 0
        %v4882 = vand.u32 %v3315, 2139095040
        %v4883 = vshrl.u32 %v4882, 23
        %v4884 = vsub.s32 %v4883, 127
        %v4885 = vand.u32 2147483647, %v3315
        %v4886 = vand.u32 %v4885, 8388607
        %v4887 = vor.u32 %v4886, 8388608
        %v4888 = vsub.s32 0, %v4887
        %v4889 = vadd.s32 %v4884, 1
        %vm4890 = vcmp.gt.s32.totalorder %v4889, 0
        %v4891 = vsel %vm4890, %v4889, 0
        %v4892 = vshrl.u32 %v4891, 5
        %v4893 = vand.u32 %v4891, 31
        %v4894 = vsub.s32 32, %v4893
        %v4895 = vshrl.u32 683565275, %v4894
        %v4896 = vshll.u32 683565275, %v4893
        %v4897 = vshrl.u32 2475754826, %v4894
        %v4898 = vor.u32 %v4896, %v4897
        %v4899 = vshll.u32 2475754826, %v4893
        %v4900 = vshrl.u32 2131351028, %v4894
        %v4901 = vor.u32 %v4899, %v4900
        %v4902 = vshll.u32 2131351028, %v4893
        %v4903 = vshrl.u32 2102212464, %v4894
        %v4904 = vor.u32 %v4902, %v4903
        %v4905 = vshll.u32 2102212464, %v4893
        %v4906 = vshrl.u32 920167782, %v4894
        %v4907 = vor.u32 %v4905, %v4906
        %v4908 = vshll.u32 920167782, %v4893
        %v4909 = vshrl.u32 1326507024, %v4894
        %v4910 = vor.u32 %v4908, %v4909
        %vm4911 = vcmp.lt.s32.totalorder %v4892, 1
        %vm4912 = vcmp.lt.s32.totalorder %v4892, 2
        %vm4913 = vcmp.lt.s32.totalorder %v4892, 3
        %vm4914 = vcmp.lt.s32.totalorder %v4892, 4
        %v4915 = vsel %vm4911, %v4895, %v4898
        %v4916 = vsel %vm4914, %v4904, 2102212464
        %v4917 = vsel %vm4913, %v4901, %v4916
        %v4918 = vsel %vm4912, %v4915, %v4917
        %v4919 = vsel %vm4911, %v4898, %v4901
        %v4920 = vsel %vm4914, %v4907, 920167782
        %v4921 = vsel %vm4913, %v4904, %v4920
        %v4922 = vsel %vm4912, %v4919, %v4921
        %v4923 = vsel %vm4911, %v4901, %v4904
        %v4924 = vsel %vm4914, %v4910, 1326507024
        %v4925 = vsel %vm4913, %v4907, %v4924
        %v4926 = vsel %vm4912, %v4923, %v4925
        %v4927 = vshll.u32 %v4887, 8
        %v4928 = vand.u32 %v4927, 65535
        %v4929 = vshrl.u32 %v4927, 16
        %v4930 = vand.u32 %v4926, 65535
        %v4931 = vshrl.u32 %v4926, 16
        %v4932 = vmul.u32 %v4928, %v4930
        %v4933 = vmul.u32 %v4928, %v4931
        %v4934 = vmul.u32 %v4929, %v4930
        %v4935 = vmul.u32 %v4929, %v4931
        %v4936 = vshll.u32 %v4933, 16
        %v4937 = vshrl.u32 %v4933, 16
        %v4938 = vshll.u32 %v4934, 16
        %v4939 = vshrl.u32 %v4934, 16
        %vm4940 = vc.u32 %v4932, %v4936
        %v4941 = vsel %vm4940, 1, 0
        %v4942 = vadd.s32 %v4932, %v4936
        %v4943 = vadd.s32 %v4935, %v4941
        %vm4944 = vc.u32 %v4942, %v4938
        %v4945 = vsel %vm4944, 1, 0
        %v4946 = vadd.s32 %v4942, %v4938
        %v4947 = vadd.s32 %v4943, %v4945
        %v4948 = vadd.s32 %v4947, %v4937
        %v4949 = vadd.s32 %v4948, %v4939
        %v4950 = vand.u32 %v4927, 65535
        %v4951 = vshrl.u32 %v4927, 16
        %v4952 = vand.u32 %v4922, 65535
        %v4953 = vshrl.u32 %v4922, 16
        %v4954 = vmul.u32 %v4950, %v4952
        %v4955 = vmul.u32 %v4950, %v4953
        %v4956 = vmul.u32 %v4951, %v4952
        %v4957 = vmul.u32 %v4951, %v4953
        %v4958 = vshll.u32 %v4955, 16
        %v4959 = vshrl.u32 %v4955, 16
        %v4960 = vshll.u32 %v4956, 16
        %v4961 = vshrl.u32 %v4956, 16
        %vm4962 = vc.u32 %v4954, %v4958
        %v4963 = vsel %vm4962, 1, 0
        %v4964 = vadd.s32 %v4954, %v4958
        %v4965 = vadd.s32 %v4957, %v4963
        %vm4966 = vc.u32 %v4964, %v4960
        %v4967 = vsel %vm4966, 1, 0
        %v4968 = vadd.s32 %v4964, %v4960
        %v4969 = vadd.s32 %v4965, %v4967
        %v4970 = vadd.s32 %v4969, %v4959
        %v4971 = vadd.s32 %v4970, %v4961
        %v4972 = vmul.u32 %v4927, %v4918
        %v4973 = vadd.s32 %v4949, %v4968
        %vm4974 = vc.u32 %v4949, %v4968
        %v4975 = vadd.s32 %v4971, 1
        %v4976 = vsel %vm4974, %v4975, %v4971
        %v4977 = vadd.s32 %v4972, %v4976
        %v4978 = vadd.s32 %v4977, 536870912
        %v4979 = vshrl.u32 %v4978, 30
        %v4980 = vshll.u32 %v4979, 30
        %v4981 = vsub.s32 %v4977, %v4980
        %vm4982 = vcmp.lt.s32.totalorder %v4981, 0
        %v4983 = vsub.s32 0, %v4981
        %v4984 = vsel %vm4982, %v4983, %v4981
        %v4985 = vclz %v4984
        %v4986 = vsub.s32 %v4985, 2
        %vm4987 = vcmp.gt.s32.totalorder 0, %v4986
        %v4988 = vsel %vm4987, 0, %v4986
        %v4989 = vsub.s32 32, %v4988
        %v4990 = vshll.u32 %v4981, %v4988
        %v4991 = vshrl.u32 %v4973, %v4989
        %v4992 = vor.u32 %v4990, %v4991
        %v4993 = vsub.s32 4294967266, %v4988
        %v4994 = vadd.s32 %v4993, 127
        %v4995 = vshll.u32 %v4994, 23
        %v4996 = vor.u32 4788187, %v4995
        %v4997 = vand.u32 2147483647, %v4996
        %v4999 = vcvt.s32.f32 %v4992
        %v5000 = vmul.f32 %v4999, %v4997
        %v5001 = vxor.u32 %v5000, 2147483648
        %v5002 = vsel %vm4881, %v5001, %v5000
        %v5003 = vsub.s32 4, %v4979
        %v5004 = vsel %vm4881, %v5003, %v4979
        %v5005 = vsel %vm4880, %v3315, %v5002
        %v5006 = vsel %vm4880, 0, %v5004
        %v5007 = vmul.f32 %v5005, %v5005
        %v5008 = vmul.f32 %v5007, -0.001358992
        %v5009 = vadd.f32 %v5008, 0.041655596
        %v5010 = vmul.f32 %v5007, %v5009
        %v5011 = vadd.f32 %v5010, -0.4999988
        %v5012 = vmul.f32 %v5007, %v5011
        %v5013 = vadd.f32 1.0, %v5012
        %v5014 = vmul.f32 %v5005, %v5005
        %v5015 = vmul.f32 %v5014, -0.00019511016
        %v5016 = vadd.f32 %v5015, 0.008332121
        %v5017 = vmul.f32 %v5014, %v5016
        %v5018 = vadd.f32 %v5017, -0.16666654
        %v5019 = vmul.f32 %v5014, %v5018
        %v5020 = vadd.f32 %v5019, 1.0
        %v5021 = vmul.f32 %v5020, %v5005
        %vm5022 = vweird.f32 %v3315
        %v5023 = vadd.s32 %v5006, 3
        %v5024 = vand.u32 %v5023, 3
        %vm5025 = vcmp.lt.s32.totalorder %v5024, 2
        %vm5026 = vcmp.eq.s32.totalorder %v5024, 0
        %v5027 = vxor.u32 %v5021, 2147483648
        %v5028 = vsel %vm5026, %v5013, %v5027
        %vm5029 = vcmp.eq.s32.totalorder %v5024, 2
        %v5030 = vxor.u32 %v5013, 2147483648
        %v5031 = vsel %vm5029, %v5030, %v5021
        %v5032 = vsel %vm5025, %v5028, %v5031
        %v5033 = vsel %vm5022, nan, %v5032
        %v5034 = vand.u32 2147483647, %v3316
        %vm5035 = vcmp.le.f32.partialorder %v5034, 0.7853982
        %vm5036 = vcmp.lt.s32.totalorder %v3316, 0
        %v5037 = vand.u32 %v3316, 2139095040
        %v5038 = vshrl.u32 %v5037, 23
        %v5039 = vsub.s32 %v5038, 127
        %v5040 = vand.u32 2147483647, %v3316
        %v5041 = vand.u32 %v5040, 8388607
        %v5042 = vor.u32 %v5041, 8388608
        %v5043 = vsub.s32 0, %v5042
        %v5044 = vadd.s32 %v5039, 1
        %vm5045 = vcmp.gt.s32.totalorder %v5044, 0
        %v5046 = vsel %vm5045, %v5044, 0
        %v5047 = vshrl.u32 %v5046, 5
        %v5048 = vand.u32 %v5046, 31
        %v5049 = vsub.s32 32, %v5048
        %v5050 = vshrl.u32 683565275, %v5049
        %v5051 = vshll.u32 683565275, %v5048
        %v5052 = vshrl.u32 2475754826, %v5049
        %v5053 = vor.u32 %v5051, %v5052
        %v5054 = vshll.u32 2475754826, %v5048
        %v5055 = vshrl.u32 2131351028, %v5049
        %v5056 = vor.u32 %v5054, %v5055
        %v5057 = vshll.u32 2131351028, %v5048
        %v5058 = vshrl.u32 2102212464, %v5049
        %v5059 = vor.u32 %v5057, %v5058
        %v5060 = vshll.u32 2102212464, %v5048
        %v5061 = vshrl.u32 920167782, %v5049
        %v5062 = vor.u32 %v5060, %v5061
        %v5063 = vshll.u32 920167782, %v5048
        %v5064 = vshrl.u32 1326507024, %v5049
        %v5065 = vor.u32 %v5063, %v5064
        %vm5066 = vcmp.lt.s32.totalorder %v5047, 1
        %vm5067 = vcmp.lt.s32.totalorder %v5047, 2
        %vm5068 = vcmp.lt.s32.totalorder %v5047, 3
        %vm5069 = vcmp.lt.s32.totalorder %v5047, 4
        %v5070 = vsel %vm5066, %v5050, %v5053
        %v5071 = vsel %vm5069, %v5059, 2102212464
        %v5072 = vsel %vm5068, %v5056, %v5071
        %v5073 = vsel %vm5067, %v5070, %v5072
        %v5074 = vsel %vm5066, %v5053, %v5056
        %v5075 = vsel %vm5069, %v5062, 920167782
        %v5076 = vsel %vm5068, %v5059, %v5075
        %v5077 = vsel %vm5067, %v5074, %v5076
        %v5078 = vsel %vm5066, %v5056, %v5059
        %v5079 = vsel %vm5069, %v5065, 1326507024
        %v5080 = vsel %vm5068, %v5062, %v5079
        %v5081 = vsel %vm5067, %v5078, %v5080
        %v5082 = vshll.u32 %v5042, 8
        %v5083 = vand.u32 %v5082, 65535
        %v5084 = vshrl.u32 %v5082, 16
        %v5085 = vand.u32 %v5081, 65535
        %v5086 = vshrl.u32 %v5081, 16
        %v5087 = vmul.u32 %v5083, %v5085
        %v5088 = vmul.u32 %v5083, %v5086
        %v5089 = vmul.u32 %v5084, %v5085
        %v5090 = vmul.u32 %v5084, %v5086
        %v5091 = vshll.u32 %v5088, 16
        %v5092 = vshrl.u32 %v5088, 16
        %v5093 = vshll.u32 %v5089, 16
        %v5094 = vshrl.u32 %v5089, 16
        %vm5095 = vc.u32 %v5087, %v5091
        %v5096 = vsel %vm5095, 1, 0
        %v5097 = vadd.s32 %v5087, %v5091
        %v5098 = vadd.s32 %v5090, %v5096
        %vm5099 = vc.u32 %v5097, %v5093
        %v5100 = vsel %vm5099, 1, 0
        %v5101 = vadd.s32 %v5097, %v5093
        %v5102 = vadd.s32 %v5098, %v5100
        %v5103 = vadd.s32 %v5102, %v5092
        %v5104 = vadd.s32 %v5103, %v5094
        %v5105 = vand.u32 %v5082, 65535
        %v5106 = vshrl.u32 %v5082, 16
        %v5107 = vand.u32 %v5077, 65535
        %v5108 = vshrl.u32 %v5077, 16
        %v5109 = vmul.u32 %v5105, %v5107
        %v5110 = vmul.u32 %v5105, %v5108
        %v5111 = vmul.u32 %v5106, %v5107
        %v5112 = vmul.u32 %v5106, %v5108
        %v5113 = vshll.u32 %v5110, 16
        %v5114 = vshrl.u32 %v5110, 16
        %v5115 = vshll.u32 %v5111, 16
        %v5116 = vshrl.u32 %v5111, 16
        %vm5117 = vc.u32 %v5109, %v5113
        %v5118 = vsel %vm5117, 1, 0
        %v5119 = vadd.s32 %v5109, %v5113
        %v5120 = vadd.s32 %v5112, %v5118
        %vm5121 = vc.u32 %v5119, %v5115
        %v5122 = vsel %vm5121, 1, 0
        %v5123 = vadd.s32 %v5119, %v5115
        %v5124 = vadd.s32 %v5120, %v5122
        %v5125 = vadd.s32 %v5124, %v5114
        %v5126 = vadd.s32 %v5125, %v5116
        %v5127 = vmul.u32 %v5082, %v5073
        %v5128 = vadd.s32 %v5104, %v5123
        %vm5129 = vc.u32 %v5104, %v5123
        %v5130 = vadd.s32 %v5126, 1
        %v5131 = vsel %vm5129, %v5130, %v5126
        %v5132 = vadd.s32 %v5127, %v5131
        %v5133 = vadd.s32 %v5132, 536870912
        %v5134 = vshrl.u32 %v5133, 30
        %v5135 = vshll.u32 %v5134, 30
        %v5136 = vsub.s32 %v5132, %v5135
        %vm5137 = vcmp.lt.s32.totalorder %v5136, 0
        %v5138 = vsub.s32 0, %v5136
        %v5139 = vsel %vm5137, %v5138, %v5136
        %v5140 = vclz %v5139
        %v5141 = vsub.s32 %v5140, 2
        %vm5142 = vcmp.gt.s32.totalorder 0, %v5141
        %v5143 = vsel %vm5142, 0, %v5141
        %v5144 = vsub.s32 32, %v5143
        %v5145 = vshll.u32 %v5136, %v5143
        %v5146 = vshrl.u32 %v5128, %v5144
        %v5147 = vor.u32 %v5145, %v5146
        %v5148 = vsub.s32 4294967266, %v5143
        %v5149 = vadd.s32 %v5148, 127
        %v5150 = vshll.u32 %v5149, 23
        %v5151 = vor.u32 4788187, %v5150
        %v5152 = vand.u32 2147483647, %v5151
        %v5154 = vcvt.s32.f32 %v5147
        %v5155 = vmul.f32 %v5154, %v5152
        %v5156 = vxor.u32 %v5155, 2147483648
        %v5157 = vsel %vm5036, %v5156, %v5155
        %v5158 = vsub.s32 4, %v5134
        %v5159 = vsel %vm5036, %v5158, %v5134
        %v5160 = vsel %vm5035, %v3316, %v5157
        %v5161 = vsel %vm5035, 0, %v5159
        %v5162 = vmul.f32 %v5160, %v5160
        %v5163 = vmul.f32 %v5162, -0.001358992
        %v5164 = vadd.f32 %v5163, 0.041655596
        %v5165 = vmul.f32 %v5162, %v5164
        %v5166 = vadd.f32 %v5165, -0.4999988
        %v5167 = vmul.f32 %v5162, %v5166
        %v5168 = vadd.f32 1.0, %v5167
        %v5169 = vmul.f32 %v5160, %v5160
        %v5170 = vmul.f32 %v5169, -0.00019511016
        %v5171 = vadd.f32 %v5170, 0.008332121
        %v5172 = vmul.f32 %v5169, %v5171
        %v5173 = vadd.f32 %v5172, -0.16666654
        %v5174 = vmul.f32 %v5169, %v5173
        %v5175 = vadd.f32 %v5174, 1.0
        %v5176 = vmul.f32 %v5175, %v5160
        %vm5177 = vweird.f32 %v3316
        %v5178 = vadd.s32 %v5161, 3
        %v5179 = vand.u32 %v5178, 3
        %vm5180 = vcmp.lt.s32.totalorder %v5179, 2
        %vm5181 = vcmp.eq.s32.totalorder %v5179, 0
        %v5182 = vxor.u32 %v5176, 2147483648
        %v5183 = vsel %vm5181, %v5168, %v5182
        %vm5184 = vcmp.eq.s32.totalorder %v5179, 2
        %v5185 = vxor.u32 %v5168, 2147483648
        %v5186 = vsel %vm5184, %v5185, %v5176
        %v5187 = vsel %vm5180, %v5183, %v5186
        %v5188 = vsel %vm5177, nan, %v5187
        %v5189 = vand.u32 2147483647, %v3317
        %vm5190 = vcmp.le.f32.partialorder %v5189, 0.7853982
        %vm5191 = vcmp.lt.s32.totalorder %v3317, 0
        %v5192 = vand.u32 %v3317, 2139095040
        %v5193 = vshrl.u32 %v5192, 23
        %v5194 = vsub.s32 %v5193, 127
        %v5195 = vand.u32 2147483647, %v3317
        %v5196 = vand.u32 %v5195, 8388607
        %v5197 = vor.u32 %v5196, 8388608
        %v5198 = vsub.s32 0, %v5197
        %v5199 = vadd.s32 %v5194, 1
        %vm5200 = vcmp.gt.s32.totalorder %v5199, 0
        %v5201 = vsel %vm5200, %v5199, 0
        %v5202 = vshrl.u32 %v5201, 5
        %v5203 = vand.u32 %v5201, 31
        %v5204 = vsub.s32 32, %v5203
        %v5205 = vshrl.u32 683565275, %v5204
        %v5206 = vshll.u32 683565275, %v5203
        %v5207 = vshrl.u32 2475754826, %v5204
        %v5208 = vor.u32 %v5206, %v5207
        %v5209 = vshll.u32 2475754826, %v5203
        %v5210 = vshrl.u32 2131351028, %v5204
        %v5211 = vor.u32 %v5209, %v5210
        %v5212 = vshll.u32 2131351028, %v5203
        %v5213 = vshrl.u32 2102212464, %v5204
        %v5214 = vor.u32 %v5212, %v5213
        %v5215 = vshll.u32 2102212464, %v5203
        %v5216 = vshrl.u32 920167782, %v5204
        %v5217 = vor.u32 %v5215, %v5216
        %v5218 = vshll.u32 920167782, %v5203
        %v5219 = vshrl.u32 1326507024, %v5204
        %v5220 = vor.u32 %v5218, %v5219
        %vm5221 = vcmp.lt.s32.totalorder %v5202, 1
        %vm5222 = vcmp.lt.s32.totalorder %v5202, 2
        %vm5223 = vcmp.lt.s32.totalorder %v5202, 3
        %vm5224 = vcmp.lt.s32.totalorder %v5202, 4
        %v5225 = vsel %vm5221, %v5205, %v5208
        %v5226 = vsel %vm5224, %v5214, 2102212464
        %v5227 = vsel %vm5223, %v5211, %v5226
        %v5228 = vsel %vm5222, %v5225, %v5227
        %v5229 = vsel %vm5221, %v5208, %v5211
        %v5230 = vsel %vm5224, %v5217, 920167782
        %v5231 = vsel %vm5223, %v5214, %v5230
        %v5232 = vsel %vm5222, %v5229, %v5231
        %v5233 = vsel %vm5221, %v5211, %v5214
        %v5234 = vsel %vm5224, %v5220, 1326507024
        %v5235 = vsel %vm5223, %v5217, %v5234
        %v5236 = vsel %vm5222, %v5233, %v5235
        %v5237 = vshll.u32 %v5197, 8
        %v5238 = vand.u32 %v5237, 65535
        %v5239 = vshrl.u32 %v5237, 16
        %v5240 = vand.u32 %v5236, 65535
        %v5241 = vshrl.u32 %v5236, 16
        %v5242 = vmul.u32 %v5238, %v5240
        %v5243 = vmul.u32 %v5238, %v5241
        %v5244 = vmul.u32 %v5239, %v5240
        %v5245 = vmul.u32 %v5239, %v5241
        %v5246 = vshll.u32 %v5243, 16
        %v5247 = vshrl.u32 %v5243, 16
        %v5248 = vshll.u32 %v5244, 16
        %v5249 = vshrl.u32 %v5244, 16
        %vm5250 = vc.u32 %v5242, %v5246
        %v5251 = vsel %vm5250, 1, 0
        %v5252 = vadd.s32 %v5242, %v5246
        %v5253 = vadd.s32 %v5245, %v5251
        %vm5254 = vc.u32 %v5252, %v5248
        %v5255 = vsel %vm5254, 1, 0
        %v5256 = vadd.s32 %v5252, %v5248
        %v5257 = vadd.s32 %v5253, %v5255
        %v5258 = vadd.s32 %v5257, %v5247
        %v5259 = vadd.s32 %v5258, %v5249
        %v5260 = vand.u32 %v5237, 65535
        %v5261 = vshrl.u32 %v5237, 16
        %v5262 = vand.u32 %v5232, 65535
        %v5263 = vshrl.u32 %v5232, 16
        %v5264 = vmul.u32 %v5260, %v5262
        %v5265 = vmul.u32 %v5260, %v5263
        %v5266 = vmul.u32 %v5261, %v5262
        %v5267 = vmul.u32 %v5261, %v5263
        %v5268 = vshll.u32 %v5265, 16
        %v5269 = vshrl.u32 %v5265, 16
        %v5270 = vshll.u32 %v5266, 16
        %v5271 = vshrl.u32 %v5266, 16
        %vm5272 = vc.u32 %v5264, %v5268
        %v5273 = vsel %vm5272, 1, 0
        %v5274 = vadd.s32 %v5264, %v5268
        %v5275 = vadd.s32 %v5267, %v5273
        %vm5276 = vc.u32 %v5274, %v5270
        %v5277 = vsel %vm5276, 1, 0
        %v5278 = vadd.s32 %v5274, %v5270
        %v5279 = vadd.s32 %v5275, %v5277
        %v5280 = vadd.s32 %v5279, %v5269
        %v5281 = vadd.s32 %v5280, %v5271
        %v5282 = vmul.u32 %v5237, %v5228
        %v5283 = vadd.s32 %v5259, %v5278
        %vm5284 = vc.u32 %v5259, %v5278
        %v5285 = vadd.s32 %v5281, 1
        %v5286 = vsel %vm5284, %v5285, %v5281
        %v5287 = vadd.s32 %v5282, %v5286
        %v5288 = vadd.s32 %v5287, 536870912
        %v5289 = vshrl.u32 %v5288, 30
        %v5290 = vshll.u32 %v5289, 30
        %v5291 = vsub.s32 %v5287, %v5290
        %vm5292 = vcmp.lt.s32.totalorder %v5291, 0
        %v5293 = vsub.s32 0, %v5291
        %v5294 = vsel %vm5292, %v5293, %v5291
        %v5295 = vclz %v5294
        %v5296 = vsub.s32 %v5295, 2
        %vm5297 = vcmp.gt.s32.totalorder 0, %v5296
        %v5298 = vsel %vm5297, 0, %v5296
        %v5299 = vsub.s32 32, %v5298
        %v5300 = vshll.u32 %v5291, %v5298
        %v5301 = vshrl.u32 %v5283, %v5299
        %v5302 = vor.u32 %v5300, %v5301
        %v5303 = vsub.s32 4294967266, %v5298
        %v5304 = vadd.s32 %v5303, 127
        %v5305 = vshll.u32 %v5304, 23
        %v5306 = vor.u32 4788187, %v5305
        %v5307 = vand.u32 2147483647, %v5306
        %v5309 = vcvt.s32.f32 %v5302
        %v5310 = vmul.f32 %v5309, %v5307
        %v5311 = vxor.u32 %v5310, 2147483648
        %v5312 = vsel %vm5191, %v5311, %v5310
        %v5313 = vsub.s32 4, %v5289
        %v5314 = vsel %vm5191, %v5313, %v5289
        %v5315 = vsel %vm5190, %v3317, %v5312
        %v5316 = vsel %vm5190, 0, %v5314
        %v5317 = vmul.f32 %v5315, %v5315
        %v5318 = vmul.f32 %v5317, -0.001358992
        %v5319 = vadd.f32 %v5318, 0.041655596
        %v5320 = vmul.f32 %v5317, %v5319
        %v5321 = vadd.f32 %v5320, -0.4999988
        %v5322 = vmul.f32 %v5317, %v5321
        %v5323 = vadd.f32 1.0, %v5322
        %v5324 = vmul.f32 %v5315, %v5315
        %v5325 = vmul.f32 %v5324, -0.00019511016
        %v5326 = vadd.f32 %v5325, 0.008332121
        %v5327 = vmul.f32 %v5324, %v5326
        %v5328 = vadd.f32 %v5327, -0.16666654
        %v5329 = vmul.f32 %v5324, %v5328
        %v5330 = vadd.f32 %v5329, 1.0
        %v5331 = vmul.f32 %v5330, %v5315
        %vm5332 = vweird.f32 %v3317
        %v5333 = vadd.s32 %v5316, 3
        %v5334 = vand.u32 %v5333, 3
        %vm5335 = vcmp.lt.s32.totalorder %v5334, 2
        %vm5336 = vcmp.eq.s32.totalorder %v5334, 0
        %v5337 = vxor.u32 %v5331, 2147483648
        %v5338 = vsel %vm5336, %v5323, %v5337
        %vm5339 = vcmp.eq.s32.totalorder %v5334, 2
        %v5340 = vxor.u32 %v5323, 2147483648
        %v5341 = vsel %vm5339, %v5340, %v5331
        %v5342 = vsel %vm5335, %v5338, %v5341
        %v5343 = vsel %vm5332, nan, %v5342
        %v5344 = vand.u32 2147483647, %v3318
        %vm5345 = vcmp.le.f32.partialorder %v5344, 0.7853982
        %vm5346 = vcmp.lt.s32.totalorder %v3318, 0
        %v5347 = vand.u32 %v3318, 2139095040
        %v5348 = vshrl.u32 %v5347, 23
        %v5349 = vsub.s32 %v5348, 127
        %v5350 = vand.u32 2147483647, %v3318
        %v5351 = vand.u32 %v5350, 8388607
        %v5352 = vor.u32 %v5351, 8388608
        %v5353 = vsub.s32 0, %v5352
        %v5354 = vadd.s32 %v5349, 1
        %vm5355 = vcmp.gt.s32.totalorder %v5354, 0
        %v5356 = vsel %vm5355, %v5354, 0
        %v5357 = vshrl.u32 %v5356, 5
        %v5358 = vand.u32 %v5356, 31
        %v5359 = vsub.s32 32, %v5358
        %v5360 = vshrl.u32 683565275, %v5359
        %v5361 = vshll.u32 683565275, %v5358
        %v5362 = vshrl.u32 2475754826, %v5359
        %v5363 = vor.u32 %v5361, %v5362
        %v5364 = vshll.u32 2475754826, %v5358
        %v5365 = vshrl.u32 2131351028, %v5359
        %v5366 = vor.u32 %v5364, %v5365
        %v5367 = vshll.u32 2131351028, %v5358
        %v5368 = vshrl.u32 2102212464, %v5359
        %v5369 = vor.u32 %v5367, %v5368
        %v5370 = vshll.u32 2102212464, %v5358
        %v5371 = vshrl.u32 920167782, %v5359
        %v5372 = vor.u32 %v5370, %v5371
        %v5373 = vshll.u32 920167782, %v5358
        %v5374 = vshrl.u32 1326507024, %v5359
        %v5375 = vor.u32 %v5373, %v5374
        %vm5376 = vcmp.lt.s32.totalorder %v5357, 1
        %vm5377 = vcmp.lt.s32.totalorder %v5357, 2
        %vm5378 = vcmp.lt.s32.totalorder %v5357, 3
        %vm5379 = vcmp.lt.s32.totalorder %v5357, 4
        %v5380 = vsel %vm5376, %v5360, %v5363
        %v5381 = vsel %vm5379, %v5369, 2102212464
        %v5382 = vsel %vm5378, %v5366, %v5381
        %v5383 = vsel %vm5377, %v5380, %v5382
        %v5384 = vsel %vm5376, %v5363, %v5366
        %v5385 = vsel %vm5379, %v5372, 920167782
        %v5386 = vsel %vm5378, %v5369, %v5385
        %v5387 = vsel %vm5377, %v5384, %v5386
        %v5388 = vsel %vm5376, %v5366, %v5369
        %v5389 = vsel %vm5379, %v5375, 1326507024
        %v5390 = vsel %vm5378, %v5372, %v5389
        %v5391 = vsel %vm5377, %v5388, %v5390
        %v5392 = vshll.u32 %v5352, 8
        %v5393 = vand.u32 %v5392, 65535
        %v5394 = vshrl.u32 %v5392, 16
        %v5395 = vand.u32 %v5391, 65535
        %v5396 = vshrl.u32 %v5391, 16
        %v5397 = vmul.u32 %v5393, %v5395
        %v5398 = vmul.u32 %v5393, %v5396
        %v5399 = vmul.u32 %v5394, %v5395
        %v5400 = vmul.u32 %v5394, %v5396
        %v5401 = vshll.u32 %v5398, 16
        %v5402 = vshrl.u32 %v5398, 16
        %v5403 = vshll.u32 %v5399, 16
        %v5404 = vshrl.u32 %v5399, 16
        %vm5405 = vc.u32 %v5397, %v5401
        %v5406 = vsel %vm5405, 1, 0
        %v5407 = vadd.s32 %v5397, %v5401
        %v5408 = vadd.s32 %v5400, %v5406
        %vm5409 = vc.u32 %v5407, %v5403
        %v5410 = vsel %vm5409, 1, 0
        %v5411 = vadd.s32 %v5407, %v5403
        %v5412 = vadd.s32 %v5408, %v5410
        %v5413 = vadd.s32 %v5412, %v5402
        %v5414 = vadd.s32 %v5413, %v5404
        %v5415 = vand.u32 %v5392, 65535
        %v5416 = vshrl.u32 %v5392, 16
        %v5417 = vand.u32 %v5387, 65535
        %v5418 = vshrl.u32 %v5387, 16
        %v5419 = vmul.u32 %v5415, %v5417
        %v5420 = vmul.u32 %v5415, %v5418
        %v5421 = vmul.u32 %v5416, %v5417
        %v5422 = vmul.u32 %v5416, %v5418
        %v5423 = vshll.u32 %v5420, 16
        %v5424 = vshrl.u32 %v5420, 16
        %v5425 = vshll.u32 %v5421, 16
        %v5426 = vshrl.u32 %v5421, 16
        %vm5427 = vc.u32 %v5419, %v5423
        %v5428 = vsel %vm5427, 1, 0
        %v5429 = vadd.s32 %v5419, %v5423
        %v5430 = vadd.s32 %v5422, %v5428
        %vm5431 = vc.u32 %v5429, %v5425
        %v5432 = vsel %vm5431, 1, 0
        %v5433 = vadd.s32 %v5429, %v5425
        %v5434 = vadd.s32 %v5430, %v5432
        %v5435 = vadd.s32 %v5434, %v5424
        %v5436 = vadd.s32 %v5435, %v5426
        %v5437 = vmul.u32 %v5392, %v5383
        %v5438 = vadd.s32 %v5414, %v5433
        %vm5439 = vc.u32 %v5414, %v5433
        %v5440 = vadd.s32 %v5436, 1
        %v5441 = vsel %vm5439, %v5440, %v5436
        %v5442 = vadd.s32 %v5437, %v5441
        %v5443 = vadd.s32 %v5442, 536870912
        %v5444 = vshrl.u32 %v5443, 30
        %v5445 = vshll.u32 %v5444, 30
        %v5446 = vsub.s32 %v5442, %v5445
        %vm5447 = vcmp.lt.s32.totalorder %v5446, 0
        %v5448 = vsub.s32 0, %v5446
        %v5449 = vsel %vm5447, %v5448, %v5446
        %v5450 = vclz %v5449
        %v5451 = vsub.s32 %v5450, 2
        %vm5452 = vcmp.gt.s32.totalorder 0, %v5451
        %v5453 = vsel %vm5452, 0, %v5451
        %v5454 = vsub.s32 32, %v5453
        %v5455 = vshll.u32 %v5446, %v5453
        %v5456 = vshrl.u32 %v5438, %v5454
        %v5457 = vor.u32 %v5455, %v5456
        %v5458 = vsub.s32 4294967266, %v5453
        %v5459 = vadd.s32 %v5458, 127
        %v5460 = vshll.u32 %v5459, 23
        %v5461 = vor.u32 4788187, %v5460
        %v5462 = vand.u32 2147483647, %v5461
        %v5464 = vcvt.s32.f32 %v5457
        %v5465 = vmul.f32 %v5464, %v5462
        %v5466 = vxor.u32 %v5465, 2147483648
        %v5467 = vsel %vm5346, %v5466, %v5465
        %v5468 = vsub.s32 4, %v5444
        %v5469 = vsel %vm5346, %v5468, %v5444
        %v5470 = vsel %vm5345, %v3318, %v5467
        %v5471 = vsel %vm5345, 0, %v5469
        %v5472 = vmul.f32 %v5470, %v5470
        %v5473 = vmul.f32 %v5472, -0.001358992
        %v5474 = vadd.f32 %v5473, 0.041655596
        %v5475 = vmul.f32 %v5472, %v5474
        %v5476 = vadd.f32 %v5475, -0.4999988
        %v5477 = vmul.f32 %v5472, %v5476
        %v5478 = vadd.f32 1.0, %v5477
        %v5479 = vmul.f32 %v5470, %v5470
        %v5480 = vmul.f32 %v5479, -0.00019511016
        %v5481 = vadd.f32 %v5480, 0.008332121
        %v5482 = vmul.f32 %v5479, %v5481
        %v5483 = vadd.f32 %v5482, -0.16666654
        %v5484 = vmul.f32 %v5479, %v5483
        %v5485 = vadd.f32 %v5484, 1.0
        %v5486 = vmul.f32 %v5485, %v5470
        %vm5487 = vweird.f32 %v3318
        %v5488 = vadd.s32 %v5471, 3
        %v5489 = vand.u32 %v5488, 3
        %vm5490 = vcmp.lt.s32.totalorder %v5489, 2
        %vm5491 = vcmp.eq.s32.totalorder %v5489, 0
        %v5492 = vxor.u32 %v5486, 2147483648
        %v5493 = vsel %vm5491, %v5478, %v5492
        %vm5494 = vcmp.eq.s32.totalorder %v5489, 2
        %v5495 = vxor.u32 %v5478, 2147483648
        %v5496 = vsel %vm5494, %v5495, %v5486
        %v5497 = vsel %vm5490, %v5493, %v5496
        %v5498 = vsel %vm5487, nan, %v5497
        %v5499 = vand.u32 2147483647, %v3319
        %vm5500 = vcmp.le.f32.partialorder %v5499, 0.7853982
        %vm5501 = vcmp.lt.s32.totalorder %v3319, 0
        %v5502 = vand.u32 %v3319, 2139095040
        %v5503 = vshrl.u32 %v5502, 23
        %v5504 = vsub.s32 %v5503, 127
        %v5505 = vand.u32 2147483647, %v3319
        %v5506 = vand.u32 %v5505, 8388607
        %v5507 = vor.u32 %v5506, 8388608
        %v5508 = vsub.s32 0, %v5507
        %v5509 = vadd.s32 %v5504, 1
        %vm5510 = vcmp.gt.s32.totalorder %v5509, 0
        %v5511 = vsel %vm5510, %v5509, 0
        %v5512 = vshrl.u32 %v5511, 5
        %v5513 = vand.u32 %v5511, 31
        %v5514 = vsub.s32 32, %v5513
        %v5515 = vshrl.u32 683565275, %v5514
        %v5516 = vshll.u32 683565275, %v5513
        %v5517 = vshrl.u32 2475754826, %v5514
        %v5518 = vor.u32 %v5516, %v5517
        %v5519 = vshll.u32 2475754826, %v5513
        %v5520 = vshrl.u32 2131351028, %v5514
        %v5521 = vor.u32 %v5519, %v5520
        %v5522 = vshll.u32 2131351028, %v5513
        %v5523 = vshrl.u32 2102212464, %v5514
        %v5524 = vor.u32 %v5522, %v5523
        %v5525 = vshll.u32 2102212464, %v5513
        %v5526 = vshrl.u32 920167782, %v5514
        %v5527 = vor.u32 %v5525, %v5526
        %v5528 = vshll.u32 920167782, %v5513
        %v5529 = vshrl.u32 1326507024, %v5514
        %v5530 = vor.u32 %v5528, %v5529
        %vm5531 = vcmp.lt.s32.totalorder %v5512, 1
        %vm5532 = vcmp.lt.s32.totalorder %v5512, 2
        %vm5533 = vcmp.lt.s32.totalorder %v5512, 3
        %vm5534 = vcmp.lt.s32.totalorder %v5512, 4
        %v5535 = vsel %vm5531, %v5515, %v5518
        %v5536 = vsel %vm5534, %v5524, 2102212464
        %v5537 = vsel %vm5533, %v5521, %v5536
        %v5538 = vsel %vm5532, %v5535, %v5537
        %v5539 = vsel %vm5531, %v5518, %v5521
        %v5540 = vsel %vm5534, %v5527, 920167782
        %v5541 = vsel %vm5533, %v5524, %v5540
        %v5542 = vsel %vm5532, %v5539, %v5541
        %v5543 = vsel %vm5531, %v5521, %v5524
        %v5544 = vsel %vm5534, %v5530, 1326507024
        %v5545 = vsel %vm5533, %v5527, %v5544
        %v5546 = vsel %vm5532, %v5543, %v5545
        %v5547 = vshll.u32 %v5507, 8
        %v5548 = vand.u32 %v5547, 65535
        %v5549 = vshrl.u32 %v5547, 16
        %v5550 = vand.u32 %v5546, 65535
        %v5551 = vshrl.u32 %v5546, 16
        %v5552 = vmul.u32 %v5548, %v5550
        %v5553 = vmul.u32 %v5548, %v5551
        %v5554 = vmul.u32 %v5549, %v5550
        %v5555 = vmul.u32 %v5549, %v5551
        %v5556 = vshll.u32 %v5553, 16
        %v5557 = vshrl.u32 %v5553, 16
        %v5558 = vshll.u32 %v5554, 16
        %v5559 = vshrl.u32 %v5554, 16
        %vm5560 = vc.u32 %v5552, %v5556
        %v5561 = vsel %vm5560, 1, 0
        %v5562 = vadd.s32 %v5552, %v5556
        %v5563 = vadd.s32 %v5555, %v5561
        %vm5564 = vc.u32 %v5562, %v5558
        %v5565 = vsel %vm5564, 1, 0
        %v5566 = vadd.s32 %v5562, %v5558
        %v5567 = vadd.s32 %v5563, %v5565
        %v5568 = vadd.s32 %v5567, %v5557
        %v5569 = vadd.s32 %v5568, %v5559
        %v5570 = vand.u32 %v5547, 65535
        %v5571 = vshrl.u32 %v5547, 16
        %v5572 = vand.u32 %v5542, 65535
        %v5573 = vshrl.u32 %v5542, 16
        %v5574 = vmul.u32 %v5570, %v5572
        %v5575 = vmul.u32 %v5570, %v5573
        %v5576 = vmul.u32 %v5571, %v5572
        %v5577 = vmul.u32 %v5571, %v5573
        %v5578 = vshll.u32 %v5575, 16
        %v5579 = vshrl.u32 %v5575, 16
        %v5580 = vshll.u32 %v5576, 16
        %v5581 = vshrl.u32 %v5576, 16
        %vm5582 = vc.u32 %v5574, %v5578
        %v5583 = vsel %vm5582, 1, 0
        %v5584 = vadd.s32 %v5574, %v5578
        %v5585 = vadd.s32 %v5577, %v5583
        %vm5586 = vc.u32 %v5584, %v5580
        %v5587 = vsel %vm5586, 1, 0
        %v5588 = vadd.s32 %v5584, %v5580
        %v5589 = vadd.s32 %v5585, %v5587
        %v5590 = vadd.s32 %v5589, %v5579
        %v5591 = vadd.s32 %v5590, %v5581
        %v5592 = vmul.u32 %v5547, %v5538
        %v5593 = vadd.s32 %v5569, %v5588
        %vm5594 = vc.u32 %v5569, %v5588
        %v5595 = vadd.s32 %v5591, 1
        %v5596 = vsel %vm5594, %v5595, %v5591
        %v5597 = vadd.s32 %v5592, %v5596
        %v5598 = vadd.s32 %v5597, 536870912
        %v5599 = vshrl.u32 %v5598, 30
        %v5600 = vshll.u32 %v5599, 30
        %v5601 = vsub.s32 %v5597, %v5600
        %vm5602 = vcmp.lt.s32.totalorder %v5601, 0
        %v5603 = vsub.s32 0, %v5601
        %v5604 = vsel %vm5602, %v5603, %v5601
        %v5605 = vclz %v5604
        %v5606 = vsub.s32 %v5605, 2
        %vm5607 = vcmp.gt.s32.totalorder 0, %v5606
        %v5608 = vsel %vm5607, 0, %v5606
        %v5609 = vsub.s32 32, %v5608
        %v5610 = vshll.u32 %v5601, %v5608
        %v5611 = vshrl.u32 %v5593, %v5609
        %v5612 = vor.u32 %v5610, %v5611
        %v5613 = vsub.s32 4294967266, %v5608
        %v5614 = vadd.s32 %v5613, 127
        %v5615 = vshll.u32 %v5614, 23
        %v5616 = vor.u32 4788187, %v5615
        %v5617 = vand.u32 2147483647, %v5616
        %v5619 = vcvt.s32.f32 %v5612
        %v5620 = vmul.f32 %v5619, %v5617
        %v5621 = vxor.u32 %v5620, 2147483648
        %v5622 = vsel %vm5501, %v5621, %v5620
        %v5623 = vsub.s32 4, %v5599
        %v5624 = vsel %vm5501, %v5623, %v5599
        %v5625 = vsel %vm5500, %v3319, %v5622
        %v5626 = vsel %vm5500, 0, %v5624
        %v5627 = vmul.f32 %v5625, %v5625
        %v5628 = vmul.f32 %v5627, -0.001358992
        %v5629 = vadd.f32 %v5628, 0.041655596
        %v5630 = vmul.f32 %v5627, %v5629
        %v5631 = vadd.f32 %v5630, -0.4999988
        %v5632 = vmul.f32 %v5627, %v5631
        %v5633 = vadd.f32 1.0, %v5632
        %v5634 = vmul.f32 %v5625, %v5625
        %v5635 = vmul.f32 %v5634, -0.00019511016
        %v5636 = vadd.f32 %v5635, 0.008332121
        %v5637 = vmul.f32 %v5634, %v5636
        %v5638 = vadd.f32 %v5637, -0.16666654
        %v5639 = vmul.f32 %v5634, %v5638
        %v5640 = vadd.f32 %v5639, 1.0
        %v5641 = vmul.f32 %v5640, %v5625
        %vm5642 = vweird.f32 %v3319
        %v5643 = vadd.s32 %v5626, 3
        %v5644 = vand.u32 %v5643, 3
        %vm5645 = vcmp.lt.s32.totalorder %v5644, 2
        %vm5646 = vcmp.eq.s32.totalorder %v5644, 0
        %v5647 = vxor.u32 %v5641, 2147483648
        %v5648 = vsel %vm5646, %v5633, %v5647
        %vm5649 = vcmp.eq.s32.totalorder %v5644, 2
        %v5650 = vxor.u32 %v5633, 2147483648
        %v5651 = vsel %vm5649, %v5650, %v5641
        %v5652 = vsel %vm5645, %v5648, %v5651
        %v5653 = vsel %vm5642, nan, %v5652
        %v5654 = vand.u32 2147483647, %v3320
        %vm5655 = vcmp.le.f32.partialorder %v5654, 0.7853982
        %vm5656 = vcmp.lt.s32.totalorder %v3320, 0
        %v5657 = vand.u32 %v3320, 2139095040
        %v5658 = vshrl.u32 %v5657, 23
        %v5659 = vsub.s32 %v5658, 127
        %v5660 = vand.u32 2147483647, %v3320
        %v5661 = vand.u32 %v5660, 8388607
        %v5662 = vor.u32 %v5661, 8388608
        %v5663 = vsub.s32 0, %v5662
        %v5664 = vadd.s32 %v5659, 1
        %vm5665 = vcmp.gt.s32.totalorder %v5664, 0
        %v5666 = vsel %vm5665, %v5664, 0
        %v5667 = vshrl.u32 %v5666, 5
        %v5668 = vand.u32 %v5666, 31
        %v5669 = vsub.s32 32, %v5668
        %v5670 = vshrl.u32 683565275, %v5669
        %v5671 = vshll.u32 683565275, %v5668
        %v5672 = vshrl.u32 2475754826, %v5669
        %v5673 = vor.u32 %v5671, %v5672
        %v5674 = vshll.u32 2475754826, %v5668
        %v5675 = vshrl.u32 2131351028, %v5669
        %v5676 = vor.u32 %v5674, %v5675
        %v5677 = vshll.u32 2131351028, %v5668
        %v5678 = vshrl.u32 2102212464, %v5669
        %v5679 = vor.u32 %v5677, %v5678
        %v5680 = vshll.u32 2102212464, %v5668
        %v5681 = vshrl.u32 920167782, %v5669
        %v5682 = vor.u32 %v5680, %v5681
        %v5683 = vshll.u32 920167782, %v5668
        %v5684 = vshrl.u32 1326507024, %v5669
        %v5685 = vor.u32 %v5683, %v5684
        %vm5686 = vcmp.lt.s32.totalorder %v5667, 1
        %vm5687 = vcmp.lt.s32.totalorder %v5667, 2
        %vm5688 = vcmp.lt.s32.totalorder %v5667, 3
        %vm5689 = vcmp.lt.s32.totalorder %v5667, 4
        %v5690 = vsel %vm5686, %v5670, %v5673
        %v5691 = vsel %vm5689, %v5679, 2102212464
        %v5692 = vsel %vm5688, %v5676, %v5691
        %v5693 = vsel %vm5687, %v5690, %v5692
        %v5694 = vsel %vm5686, %v5673, %v5676
        %v5695 = vsel %vm5689, %v5682, 920167782
        %v5696 = vsel %vm5688, %v5679, %v5695
        %v5697 = vsel %vm5687, %v5694, %v5696
        %v5698 = vsel %vm5686, %v5676, %v5679
        %v5699 = vsel %vm5689, %v5685, 1326507024
        %v5700 = vsel %vm5688, %v5682, %v5699
        %v5701 = vsel %vm5687, %v5698, %v5700
        %v5702 = vshll.u32 %v5662, 8
        %v5703 = vand.u32 %v5702, 65535
        %v5704 = vshrl.u32 %v5702, 16
        %v5705 = vand.u32 %v5701, 65535
        %v5706 = vshrl.u32 %v5701, 16
        %v5707 = vmul.u32 %v5703, %v5705
        %v5708 = vmul.u32 %v5703, %v5706
        %v5709 = vmul.u32 %v5704, %v5705
        %v5710 = vmul.u32 %v5704, %v5706
        %v5711 = vshll.u32 %v5708, 16
        %v5712 = vshrl.u32 %v5708, 16
        %v5713 = vshll.u32 %v5709, 16
        %v5714 = vshrl.u32 %v5709, 16
        %vm5715 = vc.u32 %v5707, %v5711
        %v5716 = vsel %vm5715, 1, 0
        %v5717 = vadd.s32 %v5707, %v5711
        %v5718 = vadd.s32 %v5710, %v5716
        %vm5719 = vc.u32 %v5717, %v5713
        %v5720 = vsel %vm5719, 1, 0
        %v5721 = vadd.s32 %v5717, %v5713
        %v5722 = vadd.s32 %v5718, %v5720
        %v5723 = vadd.s32 %v5722, %v5712
        %v5724 = vadd.s32 %v5723, %v5714
        %v5725 = vand.u32 %v5702, 65535
        %v5726 = vshrl.u32 %v5702, 16
        %v5727 = vand.u32 %v5697, 65535
        %v5728 = vshrl.u32 %v5697, 16
        %v5729 = vmul.u32 %v5725, %v5727
        %v5730 = vmul.u32 %v5725, %v5728
        %v5731 = vmul.u32 %v5726, %v5727
        %v5732 = vmul.u32 %v5726, %v5728
        %v5733 = vshll.u32 %v5730, 16
        %v5734 = vshrl.u32 %v5730, 16
        %v5735 = vshll.u32 %v5731, 16
        %v5736 = vshrl.u32 %v5731, 16
        %vm5737 = vc.u32 %v5729, %v5733
        %v5738 = vsel %vm5737, 1, 0
        %v5739 = vadd.s32 %v5729, %v5733
        %v5740 = vadd.s32 %v5732, %v5738
        %vm5741 = vc.u32 %v5739, %v5735
        %v5742 = vsel %vm5741, 1, 0
        %v5743 = vadd.s32 %v5739, %v5735
        %v5744 = vadd.s32 %v5740, %v5742
        %v5745 = vadd.s32 %v5744, %v5734
        %v5746 = vadd.s32 %v5745, %v5736
        %v5747 = vmul.u32 %v5702, %v5693
        %v5748 = vadd.s32 %v5724, %v5743
        %vm5749 = vc.u32 %v5724, %v5743
        %v5750 = vadd.s32 %v5746, 1
        %v5751 = vsel %vm5749, %v5750, %v5746
        %v5752 = vadd.s32 %v5747, %v5751
        %v5753 = vadd.s32 %v5752, 536870912
        %v5754 = vshrl.u32 %v5753, 30
        %v5755 = vshll.u32 %v5754, 30
        %v5756 = vsub.s32 %v5752, %v5755
        %vm5757 = vcmp.lt.s32.totalorder %v5756, 0
        %v5758 = vsub.s32 0, %v5756
        %v5759 = vsel %vm5757, %v5758, %v5756
        %v5760 = vclz %v5759
        %v5761 = vsub.s32 %v5760, 2
        %vm5762 = vcmp.gt.s32.totalorder 0, %v5761
        %v5763 = vsel %vm5762, 0, %v5761
        %v5764 = vsub.s32 32, %v5763
        %v5765 = vshll.u32 %v5756, %v5763
        %v5766 = vshrl.u32 %v5748, %v5764
        %v5767 = vor.u32 %v5765, %v5766
        %v5768 = vsub.s32 4294967266, %v5763
        %v5769 = vadd.s32 %v5768, 127
        %v5770 = vshll.u32 %v5769, 23
        %v5771 = vor.u32 4788187, %v5770
        %v5772 = vand.u32 2147483647, %v5771
        %v5774 = vcvt.s32.f32 %v5767
        %v5775 = vmul.f32 %v5774, %v5772
        %v5776 = vxor.u32 %v5775, 2147483648
        %v5777 = vsel %vm5656, %v5776, %v5775
        %v5778 = vsub.s32 4, %v5754
        %v5779 = vsel %vm5656, %v5778, %v5754
        %v5780 = vsel %vm5655, %v3320, %v5777
        %v5781 = vsel %vm5655, 0, %v5779
        %v5782 = vmul.f32 %v5780, %v5780
        %v5783 = vmul.f32 %v5782, -0.001358992
        %v5784 = vadd.f32 %v5783, 0.041655596
        %v5785 = vmul.f32 %v5782, %v5784
        %v5786 = vadd.f32 %v5785, -0.4999988
        %v5787 = vmul.f32 %v5782, %v5786
        %v5788 = vadd.f32 1.0, %v5787
        %v5789 = vmul.f32 %v5780, %v5780
        %v5790 = vmul.f32 %v5789, -0.00019511016
        %v5791 = vadd.f32 %v5790, 0.008332121
        %v5792 = vmul.f32 %v5789, %v5791
        %v5793 = vadd.f32 %v5792, -0.16666654
        %v5794 = vmul.f32 %v5789, %v5793
        %v5795 = vadd.f32 %v5794, 1.0
        %v5796 = vmul.f32 %v5795, %v5780
        %vm5797 = vweird.f32 %v3320
        %v5798 = vadd.s32 %v5781, 3
        %v5799 = vand.u32 %v5798, 3
        %vm5800 = vcmp.lt.s32.totalorder %v5799, 2
        %vm5801 = vcmp.eq.s32.totalorder %v5799, 0
        %v5802 = vxor.u32 %v5796, 2147483648
        %v5803 = vsel %vm5801, %v5788, %v5802
        %vm5804 = vcmp.eq.s32.totalorder %v5799, 2
        %v5805 = vxor.u32 %v5788, 2147483648
        %v5806 = vsel %vm5804, %v5805, %v5796
        %v5807 = vsel %vm5800, %v5803, %v5806
        %v5808 = vsel %vm5797, nan, %v5807
        %v5809 = vmul.f32 %v3262, %v4723
        %v5810 = vmul.f32 %v3262, %v4878
        %v5811 = vmul.f32 %v3262, %v5033
        %v5812 = vmul.f32 %v3262, %v5188
        %v5813 = vmul.f32 %v3262, %v5343
        %v5814 = vmul.f32 %v3262, %v5498
        %v5815 = vmul.f32 %v3262, %v5653
        %v5816 = vmul.f32 %v3262, %v5808
        %5817 = vst [vmem:[#allocation2 + $0x110] sm:$0xff] %v5809
        %5818 = vst [vmem:[#allocation2 + $0x118] sm:$0xff] %v5810
        %5819 = vst [vmem:[#allocation2 + $0x120] sm:$0xff] %v5811
        %5820 = vst [vmem:[#allocation2 + $0x128] sm:$0xff] %v5812
        %5821 = vst [vmem:[#allocation2 + $0x130] sm:$0xff] %v5813
        %5822 = vst [vmem:[#allocation2 + $0x138] sm:$0xff] %v5814
        %5823 = vst [vmem:[#allocation2 + $0x140] sm:$0xff] %v5815
        %5824 = vst [vmem:[#allocation2 + $0x148] sm:$0xff] %v5816
        %v5827 = vrot.slane %v443, 1
        %v5828 = vrot.slane %v443, 2
        %v5829 = vrot.slane %v443, 3
        %v5830 = vrot.slane %v443, 4
        %v5831 = vrot.slane %v443, 5
        %v5832 = vrot.slane %v443, 6
        %v5833 = vrot.slane %v443, 7
        %v5834 = vrot.slane %v444, 1
        %v5835 = vstv %s3247
        %v5836 = vmul.f32 %v5835, %v3256
        %v5837 = vperm.slane %v443, 0
        %v5838 = vperm.slane %v5827, 0
        %v5839 = vperm.slane %v5828, 0
        %v5840 = vperm.slane %v5829, 0
        %v5841 = vperm.slane %v5830, 0
        %v5842 = vperm.slane %v5831, 0
        %v5843 = vperm.slane %v5832, 0
        %v5844 = vperm.slane %v5833, 0
        %v5845 = vperm.slane %v444, 0
        %v5846 = vperm.slane %v5834, 0
        %5847 = vset.pattern.permute.xlu0 0
        %5848 = vperm.xlu0 %5847, %v5837
        %v5849 = vpop.permute.xlu0 %5848
        %5851 = vset.pattern.permute.xlu0 0
        %5852 = vperm.xlu0 %5851, %v5838
        %v5853 = vpop.permute.xlu0 %5852
        %5855 = vset.pattern.permute.xlu0 0
        %5856 = vperm.xlu0 %5855, %v5839
        %v5857 = vpop.permute.xlu0 %5856
        %5859 = vset.pattern.permute.xlu0 0
        %5860 = vperm.xlu0 %5859, %v5840
        %v5861 = vpop.permute.xlu0 %5860
        %5863 = vset.pattern.permute.xlu0 0
        %5864 = vperm.xlu0 %5863, %v5841
        %v5865 = vpop.permute.xlu0 %5864
        %5867 = vset.pattern.permute.xlu0 0
        %5868 = vperm.xlu0 %5867, %v5842
        %v5869 = vpop.permute.xlu0 %5868
        %5871 = vset.pattern.permute.xlu0 0
        %5872 = vperm.xlu0 %5871, %v5843
        %v5873 = vpop.permute.xlu0 %5872
        %5875 = vset.pattern.permute.xlu0 0
        %5876 = vperm.xlu0 %5875, %v5844
        %v5877 = vpop.permute.xlu0 %5876
        %5879 = vset.pattern.permute.xlu0 0
        %5880 = vperm.xlu0 %5879, %v5845
        %v5881 = vpop.permute.xlu0 %5880
        %5883 = vset.pattern.permute.xlu0 0
        %5884 = vperm.xlu0 %5883, %v5846
        %v5885 = vpop.permute.xlu0 %5884
        %v5887 = vadd.f32 %v5849, %v5836
        %v5888 = vadd.f32 %v5853, %v5836
        %v5889 = vadd.f32 %v5857, %v5836
        %v5890 = vadd.f32 %v5861, %v5836
        %v5891 = vadd.f32 %v5865, %v5836
        %v5892 = vadd.f32 %v5869, %v5836
        %v5893 = vadd.f32 %v5873, %v5836
        %v5894 = vadd.f32 %v5877, %v5836
        %v5895 = vadd.f32 %v5881, %v5836
        %v5896 = vadd.f32 %v5885, %v5836
        %v5897 = vmul.f32 %v5887, %v5887
        %v5898 = vmul.f32 %v5888, %v5888
        %v5899 = vmul.f32 %v5889, %v5889
        %v5900 = vmul.f32 %v5890, %v5890
        %v5901 = vmul.f32 %v5891, %v5891
        %v5902 = vmul.f32 %v5892, %v5892
        %v5903 = vmul.f32 %v5893, %v5893
        %v5904 = vmul.f32 %v5894, %v5894
        %v5905 = vmul.f32 %v5895, %v5895
        %v5906 = vmul.f32 %v5896, %v5896
        %v5907 = vstv %s3249
        %v5908 = vmul.f32 %v5897, %v5907
        %v5909 = vmul.f32 %v5898, %v5907
        %v5910 = vmul.f32 %v5899, %v5907
        %v5911 = vmul.f32 %v5900, %v5907
        %v5912 = vmul.f32 %v5901, %v5907
        %v5913 = vmul.f32 %v5902, %v5907
        %v5914 = vmul.f32 %v5903, %v5907
        %v5915 = vmul.f32 %v5904, %v5907
        %v5916 = vmul.f32 %v5905, %v5907
        %v5917 = vmul.f32 %v5906, %v5907
        %v5920 = vrot.slane %v447, 1
        %v5921 = vrot.slane %v447, 2
        %v5922 = vrot.slane %v447, 3
        %v5923 = vrot.slane %v447, 4
        %v5924 = vrot.slane %v447, 5
        %v5925 = vrot.slane %v447, 6
        %v5926 = vrot.slane %v447, 7
        %v5927 = vrot.slane %v448, 1
        %v5928 = vperm.slane %v447, 0
        %v5929 = vperm.slane %v5920, 0
        %v5930 = vperm.slane %v5921, 0
        %v5931 = vperm.slane %v5922, 0
        %v5932 = vperm.slane %v5923, 0
        %v5933 = vperm.slane %v5924, 0
        %v5934 = vperm.slane %v5925, 0
        %v5935 = vperm.slane %v5926, 0
        %v5936 = vperm.slane %v448, 0
        %v5937 = vperm.slane %v5927, 0
        %5938 = vset.pattern.permute.xlu0 0
        %5939 = vperm.xlu0 %5938, %v5928
        %v5940 = vpop.permute.xlu0 %5939
        %5942 = vset.pattern.permute.xlu0 0
        %5943 = vperm.xlu0 %5942, %v5929
        %v5944 = vpop.permute.xlu0 %5943
        %5946 = vset.pattern.permute.xlu0 0
        %5947 = vperm.xlu0 %5946, %v5930
        %v5948 = vpop.permute.xlu0 %5947
        %5950 = vset.pattern.permute.xlu0 0
        %5951 = vperm.xlu0 %5950, %v5931
        %v5952 = vpop.permute.xlu0 %5951
        %5954 = vset.pattern.permute.xlu0 0
        %5955 = vperm.xlu0 %5954, %v5932
        %v5956 = vpop.permute.xlu0 %5955
        %5958 = vset.pattern.permute.xlu0 0
        %5959 = vperm.xlu0 %5958, %v5933
        %v5960 = vpop.permute.xlu0 %5959
        %5962 = vset.pattern.permute.xlu0 0
        %5963 = vperm.xlu0 %5962, %v5934
        %v5964 = vpop.permute.xlu0 %5963
        %5966 = vset.pattern.permute.xlu0 0
        %5967 = vperm.xlu0 %5966, %v5935
        %v5968 = vpop.permute.xlu0 %5967
        %5970 = vset.pattern.permute.xlu0 0
        %5971 = vperm.xlu0 %5970, %v5936
        %v5972 = vpop.permute.xlu0 %5971
        %5974 = vset.pattern.permute.xlu0 0
        %5975 = vperm.xlu0 %5974, %v5937
        %v5976 = vpop.permute.xlu0 %5975
        %v5978 = vadd.f32 %v5908, %v5940
        %v5979 = vadd.f32 %v5909, %v5944
        %v5980 = vadd.f32 %v5910, %v5948
        %v5981 = vadd.f32 %v5911, %v5952
        %v5982 = vadd.f32 %v5912, %v5956
        %v5983 = vadd.f32 %v5913, %v5960
        %v5984 = vadd.f32 %v5914, %v5964
        %v5985 = vadd.f32 %v5915, %v5968
        %v5986 = vadd.f32 %v5916, %v5972
        %v5987 = vadd.f32 %v5917, %v5976
        %v5988 = vmul.f32 %v5835, %v3257
        %v5989 = vsub.f32 %v5978, %v5988
        %v5990 = vsub.f32 %v5979, %v5988
        %v5991 = vsub.f32 %v5980, %v5988
        %v5992 = vsub.f32 %v5981, %v5988
        %v5993 = vsub.f32 %v5982, %v5988
        %v5994 = vsub.f32 %v5983, %v5988
        %v5995 = vsub.f32 %v5984, %v5988
        %v5996 = vsub.f32 %v5985, %v5988
        %v5997 = vsub.f32 %v5986, %v5988
        %v5998 = vsub.f32 %v5987, %v5988
        %v5999 = vmul.f32 %v5989, 1.442695
        %v6000 = vpow.pop %v5999
        %v6001 = vmul.f32 %v5990, 1.442695
        %v6002 = vpow.pop %v6001
        %v6003 = vmul.f32 %v5991, 1.442695
        %v6004 = vpow.pop %v6003
        %v6005 = vmul.f32 %v5992, 1.442695
        %v6006 = vpow.pop %v6005
        %v6007 = vmul.f32 %v5993, 1.442695
        %v6008 = vpow.pop %v6007
        %v6009 = vmul.f32 %v5994, 1.442695
        %v6010 = vpow.pop %v6009
        %v6011 = vmul.f32 %v5995, 1.442695
        %v6012 = vpow.pop %v6011
        %v6013 = vmul.f32 %v5996, 1.442695
        %v6014 = vpow.pop %v6013
        %v6015 = vmul.f32 %v5997, 1.442695
        %v6016 = vpow.pop %v6015
        %v6017 = vmul.f32 %v5998, 1.442695
        %v6018 = vpow.pop %v6017
        %6019 = vst [vmem:[#allocation2 + $0x150] sm:$0xff] %v6000
        %6020 = vst [vmem:[#allocation2 + $0x158] sm:$0xff] %v6002
        %6021 = vst [vmem:[#allocation2 + $0x160] sm:$0xff] %v6004
        %6022 = vst [vmem:[#allocation2 + $0x168] sm:$0xff] %v6006
        %6023 = vst [vmem:[#allocation2 + $0x170] sm:$0xff] %v6008
        %6024 = vst [vmem:[#allocation2 + $0x178] sm:$0xff] %v6010
        %6025 = vst [vmem:[#allocation2 + $0x180] sm:$0xff] %v6012
        %6026 = vst [vmem:[#allocation2 + $0x188] sm:$0xff] %v6014
        %6027 = vst [vmem:[#allocation2 + $0x190] sm:$0xff] %v6016
        %6028 = vst [vmem:[#allocation2 + $0x198] sm:$0xff] %v6018
        %v6029 = vld [vmem:[%s6] sm:$0xff]
        %v6030 = vld [vmem:[%s6 + $0x8] sm:$0xff]
        %v6031 = vld [vmem:[%s6 + $0x10] sm:$0xff]
        %v6032 = vld [vmem:[%s6 + $0x18] sm:$0xff]
        %v6033 = vld [vmem:[%s6 + $0x20] sm:$0xff]
        %v6034 = vld [vmem:[%s6 + $0x28] sm:$0xff]
        %v6035 = vld [vmem:[%s6 + $0x30] sm:$0xff]
        %v6036 = vld [vmem:[%s6 + $0x38] sm:$0xff]
        %v6037 = vld [vmem:[%s6 + $0x40] sm:$0xff]
        %v6038 = vld [vmem:[%s6 + $0x48] sm:$0xff]
        %v6039 = vld [vmem:[%s6 + $0x50] sm:$0xff]
        %v6040 = vld [vmem:[%s6 + $0x58] sm:$0xff]
        %v6041 = vld [vmem:[%s7] sm:$0xff]
        %v6042 = vld [vmem:[%s7 + $0x8] sm:$0xff]
        %v6043 = vld [vmem:[%s7 + $0x10] sm:$0xff]
        %v6044 = vld [vmem:[%s7 + $0x18] sm:$0xff]
        %v6045 = vld [vmem:[%s7 + $0x20] sm:$0xff]
        %v6046 = vld [vmem:[%s7 + $0x28] sm:$0xff]
        %v6047 = vld [vmem:[%s7 + $0x30] sm:$0xff]
        %v6048 = vld [vmem:[%s7 + $0x38] sm:$0xff]
        %v6049 = vld [vmem:[%s7 + $0x40] sm:$0xff]
        %v6050 = vld [vmem:[%s7 + $0x48] sm:$0xff]
        %v6051 = vld [vmem:[%s7 + $0x50] sm:$0xff]
        %v6052 = vld [vmem:[%s7 + $0x58] sm:$0xff]
        %6054 = vset.pattern.permute.xlu0 0
        %6055 = vperm.xlu0 %6054, %v6029
        %v6056 = vpop.permute.xlu0 %6055
        %6059 = vset.pattern.permute.xlu0 0
        %6060 = vperm.xlu0 %6059, %v6030
        %v6061 = vpop.permute.xlu0 %6060
        %v6063 = vmul.f32 %v6056, %v462
        %v6064 = vmul.f32 %v6061, %v462
        %6066 = vset.pattern.permute.xlu0 0
        %6067 = vperm.xlu0 %6066, %v6041
        %v6068 = vpop.permute.xlu0 %6067
        %6071 = vset.pattern.permute.xlu0 0
        %6072 = vperm.xlu0 %6071, %v6042
        %v6073 = vpop.permute.xlu0 %6072
        %v6075 = vadd.f32 %v6063, %v6068
        %v6076 = vadd.f32 %v6064, %v6073
        %v6077 = vand.u32 2147483647, %v6075
        %vm6078 = vcmp.le.f32.partialorder %v6077, 0.7853982
        %vm6079 = vcmp.lt.s32.totalorder %v6075, 0
        %v6080 = vand.u32 %v6075, 2139095040
        %v6081 = vshrl.u32 %v6080, 23
        %v6082 = vsub.s32 %v6081, 127
        %v6083 = vand.u32 2147483647, %v6075
        %v6084 = vand.u32 %v6083, 8388607
        %v6085 = vor.u32 %v6084, 8388608
        %v6086 = vsub.s32 0, %v6085
        %v6087 = vadd.s32 %v6082, 1
        %vm6088 = vcmp.gt.s32.totalorder %v6087, 0
        %v6089 = vsel %vm6088, %v6087, 0
        %v6090 = vshrl.u32 %v6089, 5
        %v6091 = vand.u32 %v6089, 31
        %v6092 = vsub.s32 32, %v6091
        %v6093 = vshrl.u32 683565275, %v6092
        %v6094 = vshll.u32 683565275, %v6091
        %v6095 = vshrl.u32 2475754826, %v6092
        %v6096 = vor.u32 %v6094, %v6095
        %v6097 = vshll.u32 2475754826, %v6091
        %v6098 = vshrl.u32 2131351028, %v6092
        %v6099 = vor.u32 %v6097, %v6098
        %v6100 = vshll.u32 2131351028, %v6091
        %v6101 = vshrl.u32 2102212464, %v6092
        %v6102 = vor.u32 %v6100, %v6101
        %v6103 = vshll.u32 2102212464, %v6091
        %v6104 = vshrl.u32 920167782, %v6092
        %v6105 = vor.u32 %v6103, %v6104
        %v6106 = vshll.u32 920167782, %v6091
        %v6107 = vshrl.u32 1326507024, %v6092
        %v6108 = vor.u32 %v6106, %v6107
        %vm6109 = vcmp.lt.s32.totalorder %v6090, 1
        %vm6110 = vcmp.lt.s32.totalorder %v6090, 2
        %vm6111 = vcmp.lt.s32.totalorder %v6090, 3
        %vm6112 = vcmp.lt.s32.totalorder %v6090, 4
        %v6113 = vsel %vm6109, %v6093, %v6096
        %v6114 = vsel %vm6112, %v6102, 2102212464
        %v6115 = vsel %vm6111, %v6099, %v6114
        %v6116 = vsel %vm6110, %v6113, %v6115
        %v6117 = vsel %vm6109, %v6096, %v6099
        %v6118 = vsel %vm6112, %v6105, 920167782
        %v6119 = vsel %vm6111, %v6102, %v6118
        %v6120 = vsel %vm6110, %v6117, %v6119
        %v6121 = vsel %vm6109, %v6099, %v6102
        %v6122 = vsel %vm6112, %v6108, 1326507024
        %v6123 = vsel %vm6111, %v6105, %v6122
        %v6124 = vsel %vm6110, %v6121, %v6123
        %v6125 = vshll.u32 %v6085, 8
        %v6126 = vand.u32 %v6125, 65535
        %v6127 = vshrl.u32 %v6125, 16
        %v6128 = vand.u32 %v6124, 65535
        %v6129 = vshrl.u32 %v6124, 16
        %v6130 = vmul.u32 %v6126, %v6128
        %v6131 = vmul.u32 %v6126, %v6129
        %v6132 = vmul.u32 %v6127, %v6128
        %v6133 = vmul.u32 %v6127, %v6129
        %v6134 = vshll.u32 %v6131, 16
        %v6135 = vshrl.u32 %v6131, 16
        %v6136 = vshll.u32 %v6132, 16
        %v6137 = vshrl.u32 %v6132, 16
        %vm6138 = vc.u32 %v6130, %v6134
        %v6139 = vsel %vm6138, 1, 0
        %v6140 = vadd.s32 %v6130, %v6134
        %v6141 = vadd.s32 %v6133, %v6139
        %vm6142 = vc.u32 %v6140, %v6136
        %v6143 = vsel %vm6142, 1, 0
        %v6144 = vadd.s32 %v6140, %v6136
        %v6145 = vadd.s32 %v6141, %v6143
        %v6146 = vadd.s32 %v6145, %v6135
        %v6147 = vadd.s32 %v6146, %v6137
        %v6148 = vand.u32 %v6125, 65535
        %v6149 = vshrl.u32 %v6125, 16
        %v6150 = vand.u32 %v6120, 65535
        %v6151 = vshrl.u32 %v6120, 16
        %v6152 = vmul.u32 %v6148, %v6150
        %v6153 = vmul.u32 %v6148, %v6151
        %v6154 = vmul.u32 %v6149, %v6150
        %v6155 = vmul.u32 %v6149, %v6151
        %v6156 = vshll.u32 %v6153, 16
        %v6157 = vshrl.u32 %v6153, 16
        %v6158 = vshll.u32 %v6154, 16
        %v6159 = vshrl.u32 %v6154, 16
        %vm6160 = vc.u32 %v6152, %v6156
        %v6161 = vsel %vm6160, 1, 0
        %v6162 = vadd.s32 %v6152, %v6156
        %v6163 = vadd.s32 %v6155, %v6161
        %vm6164 = vc.u32 %v6162, %v6158
        %v6165 = vsel %vm6164, 1, 0
        %v6166 = vadd.s32 %v6162, %v6158
        %v6167 = vadd.s32 %v6163, %v6165
        %v6168 = vadd.s32 %v6167, %v6157
        %v6169 = vadd.s32 %v6168, %v6159
        %v6170 = vmul.u32 %v6125, %v6116
        %v6171 = vadd.s32 %v6147, %v6166
        %vm6172 = vc.u32 %v6147, %v6166
        %v6173 = vadd.s32 %v6169, 1
        %v6174 = vsel %vm6172, %v6173, %v6169
        %v6175 = vadd.s32 %v6170, %v6174
        %v6176 = vadd.s32 %v6175, 536870912
        %v6177 = vshrl.u32 %v6176, 30
        %v6178 = vshll.u32 %v6177, 30
        %v6179 = vsub.s32 %v6175, %v6178
        %vm6180 = vcmp.lt.s32.totalorder %v6179, 0
        %v6181 = vsub.s32 0, %v6179
        %v6182 = vsel %vm6180, %v6181, %v6179
        %v6183 = vclz %v6182
        %v6184 = vsub.s32 %v6183, 2
        %vm6185 = vcmp.gt.s32.totalorder 0, %v6184
        %v6186 = vsel %vm6185, 0, %v6184
        %v6187 = vsub.s32 32, %v6186
        %v6188 = vshll.u32 %v6179, %v6186
        %v6189 = vshrl.u32 %v6171, %v6187
        %v6190 = vor.u32 %v6188, %v6189
        %v6191 = vsub.s32 4294967266, %v6186
        %v6192 = vadd.s32 %v6191, 127
        %v6193 = vshll.u32 %v6192, 23
        %v6194 = vor.u32 4788187, %v6193
        %v6195 = vand.u32 2147483647, %v6194
        %v6197 = vcvt.s32.f32 %v6190
        %v6198 = vmul.f32 %v6197, %v6195
        %v6199 = vxor.u32 %v6198, 2147483648
        %v6200 = vsel %vm6079, %v6199, %v6198
        %v6201 = vsub.s32 4, %v6177
        %v6202 = vsel %vm6079, %v6201, %v6177
        %v6203 = vsel %vm6078, %v6075, %v6200
        %v6204 = vsel %vm6078, 0, %v6202
        %v6205 = vmul.f32 %v6203, %v6203
        %v6206 = vmul.f32 %v6205, -0.001358992
        %v6207 = vadd.f32 %v6206, 0.041655596
        %v6208 = vmul.f32 %v6205, %v6207
        %v6209 = vadd.f32 %v6208, -0.4999988
        %v6210 = vmul.f32 %v6205, %v6209
        %v6211 = vadd.f32 1.0, %v6210
        %v6212 = vmul.f32 %v6203, %v6203
        %v6213 = vmul.f32 %v6212, -0.00019511016
        %v6214 = vadd.f32 %v6213, 0.008332121
        %v6215 = vmul.f32 %v6212, %v6214
        %v6216 = vadd.f32 %v6215, -0.16666654
        %v6217 = vmul.f32 %v6212, %v6216
        %v6218 = vadd.f32 %v6217, 1.0
        %v6219 = vmul.f32 %v6218, %v6203
        %vm6220 = vweird.f32 %v6075
        %v6221 = vand.u32 %v6204, 3
        %vm6222 = vcmp.lt.s32.totalorder %v6221, 2
        %vm6223 = vcmp.eq.s32.totalorder %v6221, 0
        %v6224 = vxor.u32 %v6219, 2147483648
        %v6225 = vsel %vm6223, %v6211, %v6224
        %vm6226 = vcmp.eq.s32.totalorder %v6221, 2
        %v6227 = vxor.u32 %v6211, 2147483648
        %v6228 = vsel %vm6226, %v6227, %v6219
        %v6229 = vsel %vm6222, %v6225, %v6228
        %v6230 = vsel %vm6220, nan, %v6229
        %v6231 = vand.u32 2147483647, %v6076
        %vm6232 = vcmp.le.f32.partialorder %v6231, 0.7853982
        %vm6233 = vcmp.lt.s32.totalorder %v6076, 0
        %v6234 = vand.u32 %v6076, 2139095040
        %v6235 = vshrl.u32 %v6234, 23
        %v6236 = vsub.s32 %v6235, 127
        %v6237 = vand.u32 2147483647, %v6076
        %v6238 = vand.u32 %v6237, 8388607
        %v6239 = vor.u32 %v6238, 8388608
        %v6240 = vsub.s32 0, %v6239
        %v6241 = vadd.s32 %v6236, 1
        %vm6242 = vcmp.gt.s32.totalorder %v6241, 0
        %v6243 = vsel %vm6242, %v6241, 0
        %v6244 = vshrl.u32 %v6243, 5
        %v6245 = vand.u32 %v6243, 31
        %v6246 = vsub.s32 32, %v6245
        %v6247 = vshrl.u32 683565275, %v6246
        %v6248 = vshll.u32 683565275, %v6245
        %v6249 = vshrl.u32 2475754826, %v6246
        %v6250 = vor.u32 %v6248, %v6249
        %v6251 = vshll.u32 2475754826, %v6245
        %v6252 = vshrl.u32 2131351028, %v6246
        %v6253 = vor.u32 %v6251, %v6252
        %v6254 = vshll.u32 2131351028, %v6245
        %v6255 = vshrl.u32 2102212464, %v6246
        %v6256 = vor.u32 %v6254, %v6255
        %v6257 = vshll.u32 2102212464, %v6245
        %v6258 = vshrl.u32 920167782, %v6246
        %v6259 = vor.u32 %v6257, %v6258
        %v6260 = vshll.u32 920167782, %v6245
        %v6261 = vshrl.u32 1326507024, %v6246
        %v6262 = vor.u32 %v6260, %v6261
        %vm6263 = vcmp.lt.s32.totalorder %v6244, 1
        %vm6264 = vcmp.lt.s32.totalorder %v6244, 2
        %vm6265 = vcmp.lt.s32.totalorder %v6244, 3
        %vm6266 = vcmp.lt.s32.totalorder %v6244, 4
        %v6267 = vsel %vm6263, %v6247, %v6250
        %v6268 = vsel %vm6266, %v6256, 2102212464
        %v6269 = vsel %vm6265, %v6253, %v6268
        %v6270 = vsel %vm6264, %v6267, %v6269
        %v6271 = vsel %vm6263, %v6250, %v6253
        %v6272 = vsel %vm6266, %v6259, 920167782
        %v6273 = vsel %vm6265, %v6256, %v6272
        %v6274 = vsel %vm6264, %v6271, %v6273
        %v6275 = vsel %vm6263, %v6253, %v6256
        %v6276 = vsel %vm6266, %v6262, 1326507024
        %v6277 = vsel %vm6265, %v6259, %v6276
        %v6278 = vsel %vm6264, %v6275, %v6277
        %v6279 = vshll.u32 %v6239, 8
        %v6280 = vand.u32 %v6279, 65535
        %v6281 = vshrl.u32 %v6279, 16
        %v6282 = vand.u32 %v6278, 65535
        %v6283 = vshrl.u32 %v6278, 16
        %v6284 = vmul.u32 %v6280, %v6282
        %v6285 = vmul.u32 %v6280, %v6283
        %v6286 = vmul.u32 %v6281, %v6282
        %v6287 = vmul.u32 %v6281, %v6283
        %v6288 = vshll.u32 %v6285, 16
        %v6289 = vshrl.u32 %v6285, 16
        %v6290 = vshll.u32 %v6286, 16
        %v6291 = vshrl.u32 %v6286, 16
        %vm6292 = vc.u32 %v6284, %v6288
        %v6293 = vsel %vm6292, 1, 0
        %v6294 = vadd.s32 %v6284, %v6288
        %v6295 = vadd.s32 %v6287, %v6293
        %vm6296 = vc.u32 %v6294, %v6290
        %v6297 = vsel %vm6296, 1, 0
        %v6298 = vadd.s32 %v6294, %v6290
        %v6299 = vadd.s32 %v6295, %v6297
        %v6300 = vadd.s32 %v6299, %v6289
        %v6301 = vadd.s32 %v6300, %v6291
        %v6302 = vand.u32 %v6279, 65535
        %v6303 = vshrl.u32 %v6279, 16
        %v6304 = vand.u32 %v6274, 65535
        %v6305 = vshrl.u32 %v6274, 16
        %v6306 = vmul.u32 %v6302, %v6304
        %v6307 = vmul.u32 %v6302, %v6305
        %v6308 = vmul.u32 %v6303, %v6304
        %v6309 = vmul.u32 %v6303, %v6305
        %v6310 = vshll.u32 %v6307, 16
        %v6311 = vshrl.u32 %v6307, 16
        %v6312 = vshll.u32 %v6308, 16
        %v6313 = vshrl.u32 %v6308, 16
        %vm6314 = vc.u32 %v6306, %v6310
        %v6315 = vsel %vm6314, 1, 0
        %v6316 = vadd.s32 %v6306, %v6310
        %v6317 = vadd.s32 %v6309, %v6315
        %vm6318 = vc.u32 %v6316, %v6312
        %v6319 = vsel %vm6318, 1, 0
        %v6320 = vadd.s32 %v6316, %v6312
        %v6321 = vadd.s32 %v6317, %v6319
        %v6322 = vadd.s32 %v6321, %v6311
        %v6323 = vadd.s32 %v6322, %v6313
        %v6324 = vmul.u32 %v6279, %v6270
        %v6325 = vadd.s32 %v6301, %v6320
        %vm6326 = vc.u32 %v6301, %v6320
        %v6327 = vadd.s32 %v6323, 1
        %v6328 = vsel %vm6326, %v6327, %v6323
        %v6329 = vadd.s32 %v6324, %v6328
        %v6330 = vadd.s32 %v6329, 536870912
        %v6331 = vshrl.u32 %v6330, 30
        %v6332 = vshll.u32 %v6331, 30
        %v6333 = vsub.s32 %v6329, %v6332
        %vm6334 = vcmp.lt.s32.totalorder %v6333, 0
        %v6335 = vsub.s32 0, %v6333
        %v6336 = vsel %vm6334, %v6335, %v6333
        %v6337 = vclz %v6336
        %v6338 = vsub.s32 %v6337, 2
        %vm6339 = vcmp.gt.s32.totalorder 0, %v6338
        %v6340 = vsel %vm6339, 0, %v6338
        %v6341 = vsub.s32 32, %v6340
        %v6342 = vshll.u32 %v6333, %v6340
        %v6343 = vshrl.u32 %v6325, %v6341
        %v6344 = vor.u32 %v6342, %v6343
        %v6345 = vsub.s32 4294967266, %v6340
        %v6346 = vadd.s32 %v6345, 127
        %v6347 = vshll.u32 %v6346, 23
        %v6348 = vor.u32 4788187, %v6347
        %v6349 = vand.u32 2147483647, %v6348
        %v6351 = vcvt.s32.f32 %v6344
        %v6352 = vmul.f32 %v6351, %v6349
        %v6353 = vxor.u32 %v6352, 2147483648
        %v6354 = vsel %vm6233, %v6353, %v6352
        %v6355 = vsub.s32 4, %v6331
        %v6356 = vsel %vm6233, %v6355, %v6331
        %v6357 = vsel %vm6232, %v6076, %v6354
        %v6358 = vsel %vm6232, 0, %v6356
        %v6359 = vmul.f32 %v6357, %v6357
        %v6360 = vmul.f32 %v6359, -0.001358992
        %v6361 = vadd.f32 %v6360, 0.041655596
        %v6362 = vmul.f32 %v6359, %v6361
        %v6363 = vadd.f32 %v6362, -0.4999988
        %v6364 = vmul.f32 %v6359, %v6363
        %v6365 = vadd.f32 1.0, %v6364
        %v6366 = vmul.f32 %v6357, %v6357
        %v6367 = vmul.f32 %v6366, -0.00019511016
        %v6368 = vadd.f32 %v6367, 0.008332121
        %v6369 = vmul.f32 %v6366, %v6368
        %v6370 = vadd.f32 %v6369, -0.16666654
        %v6371 = vmul.f32 %v6366, %v6370
        %v6372 = vadd.f32 %v6371, 1.0
        %v6373 = vmul.f32 %v6372, %v6357
        %vm6374 = vweird.f32 %v6076
        %v6375 = vand.u32 %v6358, 3
        %vm6376 = vcmp.lt.s32.totalorder %v6375, 2
        %vm6377 = vcmp.eq.s32.totalorder %v6375, 0
        %v6378 = vxor.u32 %v6373, 2147483648
        %v6379 = vsel %vm6377, %v6365, %v6378
        %vm6380 = vcmp.eq.s32.totalorder %v6375, 2
        %v6381 = vxor.u32 %v6365, 2147483648
        %v6382 = vsel %vm6380, %v6381, %v6373
        %v6383 = vsel %vm6376, %v6379, %v6382
        %v6384 = vsel %vm6374, nan, %v6383
        %6385 = vst [vmem:[#allocation2 + $0x1a0] sm:$0xff] %v6230
        %6386 = vst [vmem:[#allocation2 + $0x1a8] sm:$0xff] %v6384
        %v6387 = vand.u32 2147483647, %v6075
        %vm6388 = vcmp.le.f32.partialorder %v6387, 0.7853982
        %vm6389 = vcmp.lt.s32.totalorder %v6075, 0
        %v6390 = vand.u32 %v6075, 2139095040
        %v6391 = vshrl.u32 %v6390, 23
        %v6392 = vsub.s32 %v6391, 127
        %v6393 = vand.u32 2147483647, %v6075
        %v6394 = vand.u32 %v6393, 8388607
        %v6395 = vor.u32 %v6394, 8388608
        %v6396 = vsub.s32 0, %v6395
        %v6397 = vadd.s32 %v6392, 1
        %vm6398 = vcmp.gt.s32.totalorder %v6397, 0
        %v6399 = vsel %vm6398, %v6397, 0
        %v6400 = vshrl.u32 %v6399, 5
        %v6401 = vand.u32 %v6399, 31
        %v6402 = vsub.s32 32, %v6401
        %v6403 = vshrl.u32 683565275, %v6402
        %v6404 = vshll.u32 683565275, %v6401
        %v6405 = vshrl.u32 2475754826, %v6402
        %v6406 = vor.u32 %v6404, %v6405
        %v6407 = vshll.u32 2475754826, %v6401
        %v6408 = vshrl.u32 2131351028, %v6402
        %v6409 = vor.u32 %v6407, %v6408
        %v6410 = vshll.u32 2131351028, %v6401
        %v6411 = vshrl.u32 2102212464, %v6402
        %v6412 = vor.u32 %v6410, %v6411
        %v6413 = vshll.u32 2102212464, %v6401
        %v6414 = vshrl.u32 920167782, %v6402
        %v6415 = vor.u32 %v6413, %v6414
        %v6416 = vshll.u32 920167782, %v6401
        %v6417 = vshrl.u32 1326507024, %v6402
        %v6418 = vor.u32 %v6416, %v6417
        %vm6419 = vcmp.lt.s32.totalorder %v6400, 1
        %vm6420 = vcmp.lt.s32.totalorder %v6400, 2
        %vm6421 = vcmp.lt.s32.totalorder %v6400, 3
        %vm6422 = vcmp.lt.s32.totalorder %v6400, 4
        %v6423 = vsel %vm6419, %v6403, %v6406
        %v6424 = vsel %vm6422, %v6412, 2102212464
        %v6425 = vsel %vm6421, %v6409, %v6424
        %v6426 = vsel %vm6420, %v6423, %v6425
        %v6427 = vsel %vm6419, %v6406, %v6409
        %v6428 = vsel %vm6422, %v6415, 920167782
        %v6429 = vsel %vm6421, %v6412, %v6428
        %v6430 = vsel %vm6420, %v6427, %v6429
        %v6431 = vsel %vm6419, %v6409, %v6412
        %v6432 = vsel %vm6422, %v6418, 1326507024
        %v6433 = vsel %vm6421, %v6415, %v6432
        %v6434 = vsel %vm6420, %v6431, %v6433
        %v6435 = vshll.u32 %v6395, 8
        %v6436 = vand.u32 %v6435, 65535
        %v6437 = vshrl.u32 %v6435, 16
        %v6438 = vand.u32 %v6434, 65535
        %v6439 = vshrl.u32 %v6434, 16
        %v6440 = vmul.u32 %v6436, %v6438
        %v6441 = vmul.u32 %v6436, %v6439
        %v6442 = vmul.u32 %v6437, %v6438
        %v6443 = vmul.u32 %v6437, %v6439
        %v6444 = vshll.u32 %v6441, 16
        %v6445 = vshrl.u32 %v6441, 16
        %v6446 = vshll.u32 %v6442, 16
        %v6447 = vshrl.u32 %v6442, 16
        %vm6448 = vc.u32 %v6440, %v6444
        %v6449 = vsel %vm6448, 1, 0
        %v6450 = vadd.s32 %v6440, %v6444
        %v6451 = vadd.s32 %v6443, %v6449
        %vm6452 = vc.u32 %v6450, %v6446
        %v6453 = vsel %vm6452, 1, 0
        %v6454 = vadd.s32 %v6450, %v6446
        %v6455 = vadd.s32 %v6451, %v6453
        %v6456 = vadd.s32 %v6455, %v6445
        %v6457 = vadd.s32 %v6456, %v6447
        %v6458 = vand.u32 %v6435, 65535
        %v6459 = vshrl.u32 %v6435, 16
        %v6460 = vand.u32 %v6430, 65535
        %v6461 = vshrl.u32 %v6430, 16
        %v6462 = vmul.u32 %v6458, %v6460
        %v6463 = vmul.u32 %v6458, %v6461
        %v6464 = vmul.u32 %v6459, %v6460
        %v6465 = vmul.u32 %v6459, %v6461
        %v6466 = vshll.u32 %v6463, 16
        %v6467 = vshrl.u32 %v6463, 16
        %v6468 = vshll.u32 %v6464, 16
        %v6469 = vshrl.u32 %v6464, 16
        %vm6470 = vc.u32 %v6462, %v6466
        %v6471 = vsel %vm6470, 1, 0
        %v6472 = vadd.s32 %v6462, %v6466
        %v6473 = vadd.s32 %v6465, %v6471
        %vm6474 = vc.u32 %v6472, %v6468
        %v6475 = vsel %vm6474, 1, 0
        %v6476 = vadd.s32 %v6472, %v6468
        %v6477 = vadd.s32 %v6473, %v6475
        %v6478 = vadd.s32 %v6477, %v6467
        %v6479 = vadd.s32 %v6478, %v6469
        %v6480 = vmul.u32 %v6435, %v6426
        %v6481 = vadd.s32 %v6457, %v6476
        %vm6482 = vc.u32 %v6457, %v6476
        %v6483 = vadd.s32 %v6479, 1
        %v6484 = vsel %vm6482, %v6483, %v6479
        %v6485 = vadd.s32 %v6480, %v6484
        %v6486 = vadd.s32 %v6485, 536870912
        %v6487 = vshrl.u32 %v6486, 30
        %v6488 = vshll.u32 %v6487, 30
        %v6489 = vsub.s32 %v6485, %v6488
        %vm6490 = vcmp.lt.s32.totalorder %v6489, 0
        %v6491 = vsub.s32 0, %v6489
        %v6492 = vsel %vm6490, %v6491, %v6489
        %v6493 = vclz %v6492
        %v6494 = vsub.s32 %v6493, 2
        %vm6495 = vcmp.gt.s32.totalorder 0, %v6494
        %v6496 = vsel %vm6495, 0, %v6494
        %v6497 = vsub.s32 32, %v6496
        %v6498 = vshll.u32 %v6489, %v6496
        %v6499 = vshrl.u32 %v6481, %v6497
        %v6500 = vor.u32 %v6498, %v6499
        %v6501 = vsub.s32 4294967266, %v6496
        %v6502 = vadd.s32 %v6501, 127
        %v6503 = vshll.u32 %v6502, 23
        %v6504 = vor.u32 4788187, %v6503
        %v6505 = vand.u32 2147483647, %v6504
        %v6507 = vcvt.s32.f32 %v6500
        %v6508 = vmul.f32 %v6507, %v6505
        %v6509 = vxor.u32 %v6508, 2147483648
        %v6510 = vsel %vm6389, %v6509, %v6508
        %v6511 = vsub.s32 4, %v6487
        %v6512 = vsel %vm6389, %v6511, %v6487
        %v6513 = vsel %vm6388, %v6075, %v6510
        %v6514 = vsel %vm6388, 0, %v6512
        %v6515 = vmul.f32 %v6513, %v6513
        %v6516 = vmul.f32 %v6515, -0.001358992
        %v6517 = vadd.f32 %v6516, 0.041655596
        %v6518 = vmul.f32 %v6515, %v6517
        %v6519 = vadd.f32 %v6518, -0.4999988
        %v6520 = vmul.f32 %v6515, %v6519
        %v6521 = vadd.f32 1.0, %v6520
        %v6522 = vmul.f32 %v6513, %v6513
        %v6523 = vmul.f32 %v6522, -0.00019511016
        %v6524 = vadd.f32 %v6523, 0.008332121
        %v6525 = vmul.f32 %v6522, %v6524
        %v6526 = vadd.f32 %v6525, -0.16666654
        %v6527 = vmul.f32 %v6522, %v6526
        %v6528 = vadd.f32 %v6527, 1.0
        %v6529 = vmul.f32 %v6528, %v6513
        %vm6530 = vweird.f32 %v6075
        %v6531 = vadd.s32 %v6514, 3
        %v6532 = vand.u32 %v6531, 3
        %vm6533 = vcmp.lt.s32.totalorder %v6532, 2
        %vm6534 = vcmp.eq.s32.totalorder %v6532, 0
        %v6535 = vxor.u32 %v6529, 2147483648
        %v6536 = vsel %vm6534, %v6521, %v6535
        %vm6537 = vcmp.eq.s32.totalorder %v6532, 2
        %v6538 = vxor.u32 %v6521, 2147483648
        %v6539 = vsel %vm6537, %v6538, %v6529
        %v6540 = vsel %vm6533, %v6536, %v6539
        %v6541 = vsel %vm6530, nan, %v6540
        %v6542 = vand.u32 2147483647, %v6076
        %vm6543 = vcmp.le.f32.partialorder %v6542, 0.7853982
        %vm6544 = vcmp.lt.s32.totalorder %v6076, 0
        %v6545 = vand.u32 %v6076, 2139095040
        %v6546 = vshrl.u32 %v6545, 23
        %v6547 = vsub.s32 %v6546, 127
        %v6548 = vand.u32 2147483647, %v6076
        %v6549 = vand.u32 %v6548, 8388607
        %v6550 = vor.u32 %v6549, 8388608
        %v6551 = vsub.s32 0, %v6550
        %v6552 = vadd.s32 %v6547, 1
        %vm6553 = vcmp.gt.s32.totalorder %v6552, 0
        %v6554 = vsel %vm6553, %v6552, 0
        %v6555 = vshrl.u32 %v6554, 5
        %v6556 = vand.u32 %v6554, 31
        %v6557 = vsub.s32 32, %v6556
        %v6558 = vshrl.u32 683565275, %v6557
        %v6559 = vshll.u32 683565275, %v6556
        %v6560 = vshrl.u32 2475754826, %v6557
        %v6561 = vor.u32 %v6559, %v6560
        %v6562 = vshll.u32 2475754826, %v6556
        %v6563 = vshrl.u32 2131351028, %v6557
        %v6564 = vor.u32 %v6562, %v6563
        %v6565 = vshll.u32 2131351028, %v6556
        %v6566 = vshrl.u32 2102212464, %v6557
        %v6567 = vor.u32 %v6565, %v6566
        %v6568 = vshll.u32 2102212464, %v6556
        %v6569 = vshrl.u32 920167782, %v6557
        %v6570 = vor.u32 %v6568, %v6569
        %v6571 = vshll.u32 920167782, %v6556
        %v6572 = vshrl.u32 1326507024, %v6557
        %v6573 = vor.u32 %v6571, %v6572
        %vm6574 = vcmp.lt.s32.totalorder %v6555, 1
        %vm6575 = vcmp.lt.s32.totalorder %v6555, 2
        %vm6576 = vcmp.lt.s32.totalorder %v6555, 3
        %vm6577 = vcmp.lt.s32.totalorder %v6555, 4
        %v6578 = vsel %vm6574, %v6558, %v6561
        %v6579 = vsel %vm6577, %v6567, 2102212464
        %v6580 = vsel %vm6576, %v6564, %v6579
        %v6581 = vsel %vm6575, %v6578, %v6580
        %v6582 = vsel %vm6574, %v6561, %v6564
        %v6583 = vsel %vm6577, %v6570, 920167782
        %v6584 = vsel %vm6576, %v6567, %v6583
        %v6585 = vsel %vm6575, %v6582, %v6584
        %v6586 = vsel %vm6574, %v6564, %v6567
        %v6587 = vsel %vm6577, %v6573, 1326507024
        %v6588 = vsel %vm6576, %v6570, %v6587
        %v6589 = vsel %vm6575, %v6586, %v6588
        %v6590 = vshll.u32 %v6550, 8
        %v6591 = vand.u32 %v6590, 65535
        %v6592 = vshrl.u32 %v6590, 16
        %v6593 = vand.u32 %v6589, 65535
        %v6594 = vshrl.u32 %v6589, 16
        %v6595 = vmul.u32 %v6591, %v6593
        %v6596 = vmul.u32 %v6591, %v6594
        %v6597 = vmul.u32 %v6592, %v6593
        %v6598 = vmul.u32 %v6592, %v6594
        %v6599 = vshll.u32 %v6596, 16
        %v6600 = vshrl.u32 %v6596, 16
        %v6601 = vshll.u32 %v6597, 16
        %v6602 = vshrl.u32 %v6597, 16
        %vm6603 = vc.u32 %v6595, %v6599
        %v6604 = vsel %vm6603, 1, 0
        %v6605 = vadd.s32 %v6595, %v6599
        %v6606 = vadd.s32 %v6598, %v6604
        %vm6607 = vc.u32 %v6605, %v6601
        %v6608 = vsel %vm6607, 1, 0
        %v6609 = vadd.s32 %v6605, %v6601
        %v6610 = vadd.s32 %v6606, %v6608
        %v6611 = vadd.s32 %v6610, %v6600
        %v6612 = vadd.s32 %v6611, %v6602
        %v6613 = vand.u32 %v6590, 65535
        %v6614 = vshrl.u32 %v6590, 16
        %v6615 = vand.u32 %v6585, 65535
        %v6616 = vshrl.u32 %v6585, 16
        %v6617 = vmul.u32 %v6613, %v6615
        %v6618 = vmul.u32 %v6613, %v6616
        %v6619 = vmul.u32 %v6614, %v6615
        %v6620 = vmul.u32 %v6614, %v6616
        %v6621 = vshll.u32 %v6618, 16
        %v6622 = vshrl.u32 %v6618, 16
        %v6623 = vshll.u32 %v6619, 16
        %v6624 = vshrl.u32 %v6619, 16
        %vm6625 = vc.u32 %v6617, %v6621
        %v6626 = vsel %vm6625, 1, 0
        %v6627 = vadd.s32 %v6617, %v6621
        %v6628 = vadd.s32 %v6620, %v6626
        %vm6629 = vc.u32 %v6627, %v6623
        %v6630 = vsel %vm6629, 1, 0
        %v6631 = vadd.s32 %v6627, %v6623
        %v6632 = vadd.s32 %v6628, %v6630
        %v6633 = vadd.s32 %v6632, %v6622
        %v6634 = vadd.s32 %v6633, %v6624
        %v6635 = vmul.u32 %v6590, %v6581
        %v6636 = vadd.s32 %v6612, %v6631
        %vm6637 = vc.u32 %v6612, %v6631
        %v6638 = vadd.s32 %v6634, 1
        %v6639 = vsel %vm6637, %v6638, %v6634
        %v6640 = vadd.s32 %v6635, %v6639
        %v6641 = vadd.s32 %v6640, 536870912
        %v6642 = vshrl.u32 %v6641, 30
        %v6643 = vshll.u32 %v6642, 30
        %v6644 = vsub.s32 %v6640, %v6643
        %vm6645 = vcmp.lt.s32.totalorder %v6644, 0
        %v6646 = vsub.s32 0, %v6644
        %v6647 = vsel %vm6645, %v6646, %v6644
        %v6648 = vclz %v6647
        %v6649 = vsub.s32 %v6648, 2
        %vm6650 = vcmp.gt.s32.totalorder 0, %v6649
        %v6651 = vsel %vm6650, 0, %v6649
        %v6652 = vsub.s32 32, %v6651
        %v6653 = vshll.u32 %v6644, %v6651
        %v6654 = vshrl.u32 %v6636, %v6652
        %v6655 = vor.u32 %v6653, %v6654
        %v6656 = vsub.s32 4294967266, %v6651
        %v6657 = vadd.s32 %v6656, 127
        %v6658 = vshll.u32 %v6657, 23
        %v6659 = vor.u32 4788187, %v6658
        %v6660 = vand.u32 2147483647, %v6659
        %v6662 = vcvt.s32.f32 %v6655
        %v6663 = vmul.f32 %v6662, %v6660
        %v6664 = vxor.u32 %v6663, 2147483648
        %v6665 = vsel %vm6544, %v6664, %v6663
        %v6666 = vsub.s32 4, %v6642
        %v6667 = vsel %vm6544, %v6666, %v6642
        %v6668 = vsel %vm6543, %v6076, %v6665
        %v6669 = vsel %vm6543, 0, %v6667
        %v6670 = vmul.f32 %v6668, %v6668
        %v6671 = vmul.f32 %v6670, -0.001358992
        %v6672 = vadd.f32 %v6671, 0.041655596
        %v6673 = vmul.f32 %v6670, %v6672
        %v6674 = vadd.f32 %v6673, -0.4999988
        %v6675 = vmul.f32 %v6670, %v6674
        %v6676 = vadd.f32 1.0, %v6675
        %v6677 = vmul.f32 %v6668, %v6668
        %v6678 = vmul.f32 %v6677, -0.00019511016
        %v6679 = vadd.f32 %v6678, 0.008332121
        %v6680 = vmul.f32 %v6677, %v6679
        %v6681 = vadd.f32 %v6680, -0.16666654
        %v6682 = vmul.f32 %v6677, %v6681
        %v6683 = vadd.f32 %v6682, 1.0
        %v6684 = vmul.f32 %v6683, %v6668
        %vm6685 = vweird.f32 %v6076
        %v6686 = vadd.s32 %v6669, 3
        %v6687 = vand.u32 %v6686, 3
        %vm6688 = vcmp.lt.s32.totalorder %v6687, 2
        %vm6689 = vcmp.eq.s32.totalorder %v6687, 0
        %v6690 = vxor.u32 %v6684, 2147483648
        %v6691 = vsel %vm6689, %v6676, %v6690
        %vm6692 = vcmp.eq.s32.totalorder %v6687, 2
        %v6693 = vxor.u32 %v6676, 2147483648
        %v6694 = vsel %vm6692, %v6693, %v6684
        %v6695 = vsel %vm6688, %v6691, %v6694
        %v6696 = vsel %vm6685, nan, %v6695
        %6697 = vst [vmem:[#allocation2 + $0x1b0] sm:$0xff] %v6541
        %6698 = vst [vmem:[#allocation2 + $0x1b8] sm:$0xff] %v6696
        %6700 = vset.pattern.permute.xlu0 0
        %6701 = vperm.xlu0 %6700, %v6031
        %v6702 = vpop.permute.xlu0 %6701
        %6705 = vset.pattern.permute.xlu0 0
        %6706 = vperm.xlu0 %6705, %v6032
        %v6707 = vpop.permute.xlu0 %6706
        %v6709 = vmul.f32 %v6702, %v3250
        %v6710 = vmul.f32 %v6707, %v3250
        %6712 = vset.pattern.permute.xlu0 0
        %6713 = vperm.xlu0 %6712, %v6043
        %v6714 = vpop.permute.xlu0 %6713
        %6717 = vset.pattern.permute.xlu0 0
        %6718 = vperm.xlu0 %6717, %v6044
        %v6719 = vpop.permute.xlu0 %6718
        %v6721 = vadd.f32 %v6709, %v6714
        %v6722 = vadd.f32 %v6710, %v6719
        %v6723 = vand.u32 2147483647, %v6721
        %vm6724 = vcmp.le.f32.partialorder %v6723, 0.7853982
        %vm6725 = vcmp.lt.s32.totalorder %v6721, 0
        %v6726 = vand.u32 %v6721, 2139095040
        %v6727 = vshrl.u32 %v6726, 23
        %v6728 = vsub.s32 %v6727, 127
        %v6729 = vand.u32 2147483647, %v6721
        %v6730 = vand.u32 %v6729, 8388607
        %v6731 = vor.u32 %v6730, 8388608
        %v6732 = vsub.s32 0, %v6731
        %v6733 = vadd.s32 %v6728, 1
        %vm6734 = vcmp.gt.s32.totalorder %v6733, 0
        %v6735 = vsel %vm6734, %v6733, 0
        %v6736 = vshrl.u32 %v6735, 5
        %v6737 = vand.u32 %v6735, 31
        %v6738 = vsub.s32 32, %v6737
        %v6739 = vshrl.u32 683565275, %v6738
        %v6740 = vshll.u32 683565275, %v6737
        %v6741 = vshrl.u32 2475754826, %v6738
        %v6742 = vor.u32 %v6740, %v6741
        %v6743 = vshll.u32 2475754826, %v6737
        %v6744 = vshrl.u32 2131351028, %v6738
        %v6745 = vor.u32 %v6743, %v6744
        %v6746 = vshll.u32 2131351028, %v6737
        %v6747 = vshrl.u32 2102212464, %v6738
        %v6748 = vor.u32 %v6746, %v6747
        %v6749 = vshll.u32 2102212464, %v6737
        %v6750 = vshrl.u32 920167782, %v6738
        %v6751 = vor.u32 %v6749, %v6750
        %v6752 = vshll.u32 920167782, %v6737
        %v6753 = vshrl.u32 1326507024, %v6738
        %v6754 = vor.u32 %v6752, %v6753
        %vm6755 = vcmp.lt.s32.totalorder %v6736, 1
        %vm6756 = vcmp.lt.s32.totalorder %v6736, 2
        %vm6757 = vcmp.lt.s32.totalorder %v6736, 3
        %vm6758 = vcmp.lt.s32.totalorder %v6736, 4
        %v6759 = vsel %vm6755, %v6739, %v6742
        %v6760 = vsel %vm6758, %v6748, 2102212464
        %v6761 = vsel %vm6757, %v6745, %v6760
        %v6762 = vsel %vm6756, %v6759, %v6761
        %v6763 = vsel %vm6755, %v6742, %v6745
        %v6764 = vsel %vm6758, %v6751, 920167782
        %v6765 = vsel %vm6757, %v6748, %v6764
        %v6766 = vsel %vm6756, %v6763, %v6765
        %v6767 = vsel %vm6755, %v6745, %v6748
        %v6768 = vsel %vm6758, %v6754, 1326507024
        %v6769 = vsel %vm6757, %v6751, %v6768
        %v6770 = vsel %vm6756, %v6767, %v6769
        %v6771 = vshll.u32 %v6731, 8
        %v6772 = vand.u32 %v6771, 65535
        %v6773 = vshrl.u32 %v6771, 16
        %v6774 = vand.u32 %v6770, 65535
        %v6775 = vshrl.u32 %v6770, 16
        %v6776 = vmul.u32 %v6772, %v6774
        %v6777 = vmul.u32 %v6772, %v6775
        %v6778 = vmul.u32 %v6773, %v6774
        %v6779 = vmul.u32 %v6773, %v6775
        %v6780 = vshll.u32 %v6777, 16
        %v6781 = vshrl.u32 %v6777, 16
        %v6782 = vshll.u32 %v6778, 16
        %v6783 = vshrl.u32 %v6778, 16
        %vm6784 = vc.u32 %v6776, %v6780
        %v6785 = vsel %vm6784, 1, 0
        %v6786 = vadd.s32 %v6776, %v6780
        %v6787 = vadd.s32 %v6779, %v6785
        %vm6788 = vc.u32 %v6786, %v6782
        %v6789 = vsel %vm6788, 1, 0
        %v6790 = vadd.s32 %v6786, %v6782
        %v6791 = vadd.s32 %v6787, %v6789
        %v6792 = vadd.s32 %v6791, %v6781
        %v6793 = vadd.s32 %v6792, %v6783
        %v6794 = vand.u32 %v6771, 65535
        %v6795 = vshrl.u32 %v6771, 16
        %v6796 = vand.u32 %v6766, 65535
        %v6797 = vshrl.u32 %v6766, 16
        %v6798 = vmul.u32 %v6794, %v6796
        %v6799 = vmul.u32 %v6794, %v6797
        %v6800 = vmul.u32 %v6795, %v6796
        %v6801 = vmul.u32 %v6795, %v6797
        %v6802 = vshll.u32 %v6799, 16
        %v6803 = vshrl.u32 %v6799, 16
        %v6804 = vshll.u32 %v6800, 16
        %v6805 = vshrl.u32 %v6800, 16
        %vm6806 = vc.u32 %v6798, %v6802
        %v6807 = vsel %vm6806, 1, 0
        %v6808 = vadd.s32 %v6798, %v6802
        %v6809 = vadd.s32 %v6801, %v6807
        %vm6810 = vc.u32 %v6808, %v6804
        %v6811 = vsel %vm6810, 1, 0
        %v6812 = vadd.s32 %v6808, %v6804
        %v6813 = vadd.s32 %v6809, %v6811
        %v6814 = vadd.s32 %v6813, %v6803
        %v6815 = vadd.s32 %v6814, %v6805
        %v6816 = vmul.u32 %v6771, %v6762
        %v6817 = vadd.s32 %v6793, %v6812
        %vm6818 = vc.u32 %v6793, %v6812
        %v6819 = vadd.s32 %v6815, 1
        %v6820 = vsel %vm6818, %v6819, %v6815
        %v6821 = vadd.s32 %v6816, %v6820
        %v6822 = vadd.s32 %v6821, 536870912
        %v6823 = vshrl.u32 %v6822, 30
        %v6824 = vshll.u32 %v6823, 30
        %v6825 = vsub.s32 %v6821, %v6824
        %vm6826 = vcmp.lt.s32.totalorder %v6825, 0
        %v6827 = vsub.s32 0, %v6825
        %v6828 = vsel %vm6826, %v6827, %v6825
        %v6829 = vclz %v6828
        %v6830 = vsub.s32 %v6829, 2
        %vm6831 = vcmp.gt.s32.totalorder 0, %v6830
        %v6832 = vsel %vm6831, 0, %v6830
        %v6833 = vsub.s32 32, %v6832
        %v6834 = vshll.u32 %v6825, %v6832
        %v6835 = vshrl.u32 %v6817, %v6833
        %v6836 = vor.u32 %v6834, %v6835
        %v6837 = vsub.s32 4294967266, %v6832
        %v6838 = vadd.s32 %v6837, 127
        %v6839 = vshll.u32 %v6838, 23
        %v6840 = vor.u32 4788187, %v6839
        %v6841 = vand.u32 2147483647, %v6840
        %v6843 = vcvt.s32.f32 %v6836
        %v6844 = vmul.f32 %v6843, %v6841
        %v6845 = vxor.u32 %v6844, 2147483648
        %v6846 = vsel %vm6725, %v6845, %v6844
        %v6847 = vsub.s32 4, %v6823
        %v6848 = vsel %vm6725, %v6847, %v6823
        %v6849 = vsel %vm6724, %v6721, %v6846
        %v6850 = vsel %vm6724, 0, %v6848
        %v6851 = vmul.f32 %v6849, %v6849
        %v6852 = vmul.f32 %v6851, -0.001358992
        %v6853 = vadd.f32 %v6852, 0.041655596
        %v6854 = vmul.f32 %v6851, %v6853
        %v6855 = vadd.f32 %v6854, -0.4999988
        %v6856 = vmul.f32 %v6851, %v6855
        %v6857 = vadd.f32 1.0, %v6856
        %v6858 = vmul.f32 %v6849, %v6849
        %v6859 = vmul.f32 %v6858, -0.00019511016
        %v6860 = vadd.f32 %v6859, 0.008332121
        %v6861 = vmul.f32 %v6858, %v6860
        %v6862 = vadd.f32 %v6861, -0.16666654
        %v6863 = vmul.f32 %v6858, %v6862
        %v6864 = vadd.f32 %v6863, 1.0
        %v6865 = vmul.f32 %v6864, %v6849
        %vm6866 = vweird.f32 %v6721
        %v6867 = vand.u32 %v6850, 3
        %vm6868 = vcmp.lt.s32.totalorder %v6867, 2
        %vm6869 = vcmp.eq.s32.totalorder %v6867, 0
        %v6870 = vxor.u32 %v6865, 2147483648
        %v6871 = vsel %vm6869, %v6857, %v6870
        %vm6872 = vcmp.eq.s32.totalorder %v6867, 2
        %v6873 = vxor.u32 %v6857, 2147483648
        %v6874 = vsel %vm6872, %v6873, %v6865
        %v6875 = vsel %vm6868, %v6871, %v6874
        %v6876 = vsel %vm6866, nan, %v6875
        %v6877 = vand.u32 2147483647, %v6722
        %vm6878 = vcmp.le.f32.partialorder %v6877, 0.7853982
        %vm6879 = vcmp.lt.s32.totalorder %v6722, 0
        %v6880 = vand.u32 %v6722, 2139095040
        %v6881 = vshrl.u32 %v6880, 23
        %v6882 = vsub.s32 %v6881, 127
        %v6883 = vand.u32 2147483647, %v6722
        %v6884 = vand.u32 %v6883, 8388607
        %v6885 = vor.u32 %v6884, 8388608
        %v6886 = vsub.s32 0, %v6885
        %v6887 = vadd.s32 %v6882, 1
        %vm6888 = vcmp.gt.s32.totalorder %v6887, 0
        %v6889 = vsel %vm6888, %v6887, 0
        %v6890 = vshrl.u32 %v6889, 5
        %v6891 = vand.u32 %v6889, 31
        %v6892 = vsub.s32 32, %v6891
        %v6893 = vshrl.u32 683565275, %v6892
        %v6894 = vshll.u32 683565275, %v6891
        %v6895 = vshrl.u32 2475754826, %v6892
        %v6896 = vor.u32 %v6894, %v6895
        %v6897 = vshll.u32 2475754826, %v6891
        %v6898 = vshrl.u32 2131351028, %v6892
        %v6899 = vor.u32 %v6897, %v6898
        %v6900 = vshll.u32 2131351028, %v6891
        %v6901 = vshrl.u32 2102212464, %v6892
        %v6902 = vor.u32 %v6900, %v6901
        %v6903 = vshll.u32 2102212464, %v6891
        %v6904 = vshrl.u32 920167782, %v6892
        %v6905 = vor.u32 %v6903, %v6904
        %v6906 = vshll.u32 920167782, %v6891
        %v6907 = vshrl.u32 1326507024, %v6892
        %v6908 = vor.u32 %v6906, %v6907
        %vm6909 = vcmp.lt.s32.totalorder %v6890, 1
        %vm6910 = vcmp.lt.s32.totalorder %v6890, 2
        %vm6911 = vcmp.lt.s32.totalorder %v6890, 3
        %vm6912 = vcmp.lt.s32.totalorder %v6890, 4
        %v6913 = vsel %vm6909, %v6893, %v6896
        %v6914 = vsel %vm6912, %v6902, 2102212464
        %v6915 = vsel %vm6911, %v6899, %v6914
        %v6916 = vsel %vm6910, %v6913, %v6915
        %v6917 = vsel %vm6909, %v6896, %v6899
        %v6918 = vsel %vm6912, %v6905, 920167782
        %v6919 = vsel %vm6911, %v6902, %v6918
        %v6920 = vsel %vm6910, %v6917, %v6919
        %v6921 = vsel %vm6909, %v6899, %v6902
        %v6922 = vsel %vm6912, %v6908, 1326507024
        %v6923 = vsel %vm6911, %v6905, %v6922
        %v6924 = vsel %vm6910, %v6921, %v6923
        %v6925 = vshll.u32 %v6885, 8
        %v6926 = vand.u32 %v6925, 65535
        %v6927 = vshrl.u32 %v6925, 16
        %v6928 = vand.u32 %v6924, 65535
        %v6929 = vshrl.u32 %v6924, 16
        %v6930 = vmul.u32 %v6926, %v6928
        %v6931 = vmul.u32 %v6926, %v6929
        %v6932 = vmul.u32 %v6927, %v6928
        %v6933 = vmul.u32 %v6927, %v6929
        %v6934 = vshll.u32 %v6931, 16
        %v6935 = vshrl.u32 %v6931, 16
        %v6936 = vshll.u32 %v6932, 16
        %v6937 = vshrl.u32 %v6932, 16
        %vm6938 = vc.u32 %v6930, %v6934
        %v6939 = vsel %vm6938, 1, 0
        %v6940 = vadd.s32 %v6930, %v6934
        %v6941 = vadd.s32 %v6933, %v6939
        %vm6942 = vc.u32 %v6940, %v6936
        %v6943 = vsel %vm6942, 1, 0
        %v6944 = vadd.s32 %v6940, %v6936
        %v6945 = vadd.s32 %v6941, %v6943
        %v6946 = vadd.s32 %v6945, %v6935
        %v6947 = vadd.s32 %v6946, %v6937
        %v6948 = vand.u32 %v6925, 65535
        %v6949 = vshrl.u32 %v6925, 16
        %v6950 = vand.u32 %v6920, 65535
        %v6951 = vshrl.u32 %v6920, 16
        %v6952 = vmul.u32 %v6948, %v6950
        %v6953 = vmul.u32 %v6948, %v6951
        %v6954 = vmul.u32 %v6949, %v6950
        %v6955 = vmul.u32 %v6949, %v6951
        %v6956 = vshll.u32 %v6953, 16
        %v6957 = vshrl.u32 %v6953, 16
        %v6958 = vshll.u32 %v6954, 16
        %v6959 = vshrl.u32 %v6954, 16
        %vm6960 = vc.u32 %v6952, %v6956
        %v6961 = vsel %vm6960, 1, 0
        %v6962 = vadd.s32 %v6952, %v6956
        %v6963 = vadd.s32 %v6955, %v6961
        %vm6964 = vc.u32 %v6962, %v6958
        %v6965 = vsel %vm6964, 1, 0
        %v6966 = vadd.s32 %v6962, %v6958
        %v6967 = vadd.s32 %v6963, %v6965
        %v6968 = vadd.s32 %v6967, %v6957
        %v6969 = vadd.s32 %v6968, %v6959
        %v6970 = vmul.u32 %v6925, %v6916
        %v6971 = vadd.s32 %v6947, %v6966
        %vm6972 = vc.u32 %v6947, %v6966
        %v6973 = vadd.s32 %v6969, 1
        %v6974 = vsel %vm6972, %v6973, %v6969
        %v6975 = vadd.s32 %v6970, %v6974
        %v6976 = vadd.s32 %v6975, 536870912
        %v6977 = vshrl.u32 %v6976, 30
        %v6978 = vshll.u32 %v6977, 30
        %v6979 = vsub.s32 %v6975, %v6978
        %vm6980 = vcmp.lt.s32.totalorder %v6979, 0
        %v6981 = vsub.s32 0, %v6979
        %v6982 = vsel %vm6980, %v6981, %v6979
        %v6983 = vclz %v6982
        %v6984 = vsub.s32 %v6983, 2
        %vm6985 = vcmp.gt.s32.totalorder 0, %v6984
        %v6986 = vsel %vm6985, 0, %v6984
        %v6987 = vsub.s32 32, %v6986
        %v6988 = vshll.u32 %v6979, %v6986
        %v6989 = vshrl.u32 %v6971, %v6987
        %v6990 = vor.u32 %v6988, %v6989
        %v6991 = vsub.s32 4294967266, %v6986
        %v6992 = vadd.s32 %v6991, 127
        %v6993 = vshll.u32 %v6992, 23
        %v6994 = vor.u32 4788187, %v6993
        %v6995 = vand.u32 2147483647, %v6994
        %v6997 = vcvt.s32.f32 %v6990
        %v6998 = vmul.f32 %v6997, %v6995
        %v6999 = vxor.u32 %v6998, 2147483648
        %v7000 = vsel %vm6879, %v6999, %v6998
        %v7001 = vsub.s32 4, %v6977
        %v7002 = vsel %vm6879, %v7001, %v6977
        %v7003 = vsel %vm6878, %v6722, %v7000
        %v7004 = vsel %vm6878, 0, %v7002
        %v7005 = vmul.f32 %v7003, %v7003
        %v7006 = vmul.f32 %v7005, -0.001358992
        %v7007 = vadd.f32 %v7006, 0.041655596
        %v7008 = vmul.f32 %v7005, %v7007
        %v7009 = vadd.f32 %v7008, -0.4999988
        %v7010 = vmul.f32 %v7005, %v7009
        %v7011 = vadd.f32 1.0, %v7010
        %v7012 = vmul.f32 %v7003, %v7003
        %v7013 = vmul.f32 %v7012, -0.00019511016
        %v7014 = vadd.f32 %v7013, 0.008332121
        %v7015 = vmul.f32 %v7012, %v7014
        %v7016 = vadd.f32 %v7015, -0.16666654
        %v7017 = vmul.f32 %v7012, %v7016
        %v7018 = vadd.f32 %v7017, 1.0
        %v7019 = vmul.f32 %v7018, %v7003
        %vm7020 = vweird.f32 %v6722
        %v7021 = vand.u32 %v7004, 3
        %vm7022 = vcmp.lt.s32.totalorder %v7021, 2
        %vm7023 = vcmp.eq.s32.totalorder %v7021, 0
        %v7024 = vxor.u32 %v7019, 2147483648
        %v7025 = vsel %vm7023, %v7011, %v7024
        %vm7026 = vcmp.eq.s32.totalorder %v7021, 2
        %v7027 = vxor.u32 %v7011, 2147483648
        %v7028 = vsel %vm7026, %v7027, %v7019
        %v7029 = vsel %vm7022, %v7025, %v7028
        %v7030 = vsel %vm7020, nan, %v7029
        %7031 = vst [vmem:[#allocation2 + $0x1c0] sm:$0xff] %v6876
        %7032 = vst [vmem:[#allocation2 + $0x1c8] sm:$0xff] %v7030
        %v7033 = vand.u32 2147483647, %v6721
        %vm7034 = vcmp.le.f32.partialorder %v7033, 0.7853982
        %vm7035 = vcmp.lt.s32.totalorder %v6721, 0
        %v7036 = vand.u32 %v6721, 2139095040
        %v7037 = vshrl.u32 %v7036, 23
        %v7038 = vsub.s32 %v7037, 127
        %v7039 = vand.u32 2147483647, %v6721
        %v7040 = vand.u32 %v7039, 8388607
        %v7041 = vor.u32 %v7040, 8388608
        %v7042 = vsub.s32 0, %v7041
        %v7043 = vadd.s32 %v7038, 1
        %vm7044 = vcmp.gt.s32.totalorder %v7043, 0
        %v7045 = vsel %vm7044, %v7043, 0
        %v7046 = vshrl.u32 %v7045, 5
        %v7047 = vand.u32 %v7045, 31
        %v7048 = vsub.s32 32, %v7047
        %v7049 = vshrl.u32 683565275, %v7048
        %v7050 = vshll.u32 683565275, %v7047
        %v7051 = vshrl.u32 2475754826, %v7048
        %v7052 = vor.u32 %v7050, %v7051
        %v7053 = vshll.u32 2475754826, %v7047
        %v7054 = vshrl.u32 2131351028, %v7048
        %v7055 = vor.u32 %v7053, %v7054
        %v7056 = vshll.u32 2131351028, %v7047
        %v7057 = vshrl.u32 2102212464, %v7048
        %v7058 = vor.u32 %v7056, %v7057
        %v7059 = vshll.u32 2102212464, %v7047
        %v7060 = vshrl.u32 920167782, %v7048
        %v7061 = vor.u32 %v7059, %v7060
        %v7062 = vshll.u32 920167782, %v7047
        %v7063 = vshrl.u32 1326507024, %v7048
        %v7064 = vor.u32 %v7062, %v7063
        %vm7065 = vcmp.lt.s32.totalorder %v7046, 1
        %vm7066 = vcmp.lt.s32.totalorder %v7046, 2
        %vm7067 = vcmp.lt.s32.totalorder %v7046, 3
        %vm7068 = vcmp.lt.s32.totalorder %v7046, 4
        %v7069 = vsel %vm7065, %v7049, %v7052
        %v7070 = vsel %vm7068, %v7058, 2102212464
        %v7071 = vsel %vm7067, %v7055, %v7070
        %v7072 = vsel %vm7066, %v7069, %v7071
        %v7073 = vsel %vm7065, %v7052, %v7055
        %v7074 = vsel %vm7068, %v7061, 920167782
        %v7075 = vsel %vm7067, %v7058, %v7074
        %v7076 = vsel %vm7066, %v7073, %v7075
        %v7077 = vsel %vm7065, %v7055, %v7058
        %v7078 = vsel %vm7068, %v7064, 1326507024
        %v7079 = vsel %vm7067, %v7061, %v7078
        %v7080 = vsel %vm7066, %v7077, %v7079
        %v7081 = vshll.u32 %v7041, 8
        %v7082 = vand.u32 %v7081, 65535
        %v7083 = vshrl.u32 %v7081, 16
        %v7084 = vand.u32 %v7080, 65535
        %v7085 = vshrl.u32 %v7080, 16
        %v7086 = vmul.u32 %v7082, %v7084
        %v7087 = vmul.u32 %v7082, %v7085
        %v7088 = vmul.u32 %v7083, %v7084
        %v7089 = vmul.u32 %v7083, %v7085
        %v7090 = vshll.u32 %v7087, 16
        %v7091 = vshrl.u32 %v7087, 16
        %v7092 = vshll.u32 %v7088, 16
        %v7093 = vshrl.u32 %v7088, 16
        %vm7094 = vc.u32 %v7086, %v7090
        %v7095 = vsel %vm7094, 1, 0
        %v7096 = vadd.s32 %v7086, %v7090
        %v7097 = vadd.s32 %v7089, %v7095
        %vm7098 = vc.u32 %v7096, %v7092
        %v7099 = vsel %vm7098, 1, 0
        %v7100 = vadd.s32 %v7096, %v7092
        %v7101 = vadd.s32 %v7097, %v7099
        %v7102 = vadd.s32 %v7101, %v7091
        %v7103 = vadd.s32 %v7102, %v7093
        %v7104 = vand.u32 %v7081, 65535
        %v7105 = vshrl.u32 %v7081, 16
        %v7106 = vand.u32 %v7076, 65535
        %v7107 = vshrl.u32 %v7076, 16
        %v7108 = vmul.u32 %v7104, %v7106
        %v7109 = vmul.u32 %v7104, %v7107
        %v7110 = vmul.u32 %v7105, %v7106
        %v7111 = vmul.u32 %v7105, %v7107
        %v7112 = vshll.u32 %v7109, 16
        %v7113 = vshrl.u32 %v7109, 16
        %v7114 = vshll.u32 %v7110, 16
        %v7115 = vshrl.u32 %v7110, 16
        %vm7116 = vc.u32 %v7108, %v7112
        %v7117 = vsel %vm7116, 1, 0
        %v7118 = vadd.s32 %v7108, %v7112
        %v7119 = vadd.s32 %v7111, %v7117
        %vm7120 = vc.u32 %v7118, %v7114
        %v7121 = vsel %vm7120, 1, 0
        %v7122 = vadd.s32 %v7118, %v7114
        %v7123 = vadd.s32 %v7119, %v7121
        %v7124 = vadd.s32 %v7123, %v7113
        %v7125 = vadd.s32 %v7124, %v7115
        %v7126 = vmul.u32 %v7081, %v7072
        %v7127 = vadd.s32 %v7103, %v7122
        %vm7128 = vc.u32 %v7103, %v7122
        %v7129 = vadd.s32 %v7125, 1
        %v7130 = vsel %vm7128, %v7129, %v7125
        %v7131 = vadd.s32 %v7126, %v7130
        %v7132 = vadd.s32 %v7131, 536870912
        %v7133 = vshrl.u32 %v7132, 30
        %v7134 = vshll.u32 %v7133, 30
        %v7135 = vsub.s32 %v7131, %v7134
        %vm7136 = vcmp.lt.s32.totalorder %v7135, 0
        %v7137 = vsub.s32 0, %v7135
        %v7138 = vsel %vm7136, %v7137, %v7135
        %v7139 = vclz %v7138
        %v7140 = vsub.s32 %v7139, 2
        %vm7141 = vcmp.gt.s32.totalorder 0, %v7140
        %v7142 = vsel %vm7141, 0, %v7140
        %v7143 = vsub.s32 32, %v7142
        %v7144 = vshll.u32 %v7135, %v7142
        %v7145 = vshrl.u32 %v7127, %v7143
        %v7146 = vor.u32 %v7144, %v7145
        %v7147 = vsub.s32 4294967266, %v7142
        %v7148 = vadd.s32 %v7147, 127
        %v7149 = vshll.u32 %v7148, 23
        %v7150 = vor.u32 4788187, %v7149
        %v7151 = vand.u32 2147483647, %v7150
        %v7153 = vcvt.s32.f32 %v7146
        %v7154 = vmul.f32 %v7153, %v7151
        %v7155 = vxor.u32 %v7154, 2147483648
        %v7156 = vsel %vm7035, %v7155, %v7154
        %v7157 = vsub.s32 4, %v7133
        %v7158 = vsel %vm7035, %v7157, %v7133
        %v7159 = vsel %vm7034, %v6721, %v7156
        %v7160 = vsel %vm7034, 0, %v7158
        %v7161 = vmul.f32 %v7159, %v7159
        %v7162 = vmul.f32 %v7161, -0.001358992
        %v7163 = vadd.f32 %v7162, 0.041655596
        %v7164 = vmul.f32 %v7161, %v7163
        %v7165 = vadd.f32 %v7164, -0.4999988
        %v7166 = vmul.f32 %v7161, %v7165
        %v7167 = vadd.f32 1.0, %v7166
        %v7168 = vmul.f32 %v7159, %v7159
        %v7169 = vmul.f32 %v7168, -0.00019511016
        %v7170 = vadd.f32 %v7169, 0.008332121
        %v7171 = vmul.f32 %v7168, %v7170
        %v7172 = vadd.f32 %v7171, -0.16666654
        %v7173 = vmul.f32 %v7168, %v7172
        %v7174 = vadd.f32 %v7173, 1.0
        %v7175 = vmul.f32 %v7174, %v7159
        %vm7176 = vweird.f32 %v6721
        %v7177 = vadd.s32 %v7160, 3
        %v7178 = vand.u32 %v7177, 3
        %vm7179 = vcmp.lt.s32.totalorder %v7178, 2
        %vm7180 = vcmp.eq.s32.totalorder %v7178, 0
        %v7181 = vxor.u32 %v7175, 2147483648
        %v7182 = vsel %vm7180, %v7167, %v7181
        %vm7183 = vcmp.eq.s32.totalorder %v7178, 2
        %v7184 = vxor.u32 %v7167, 2147483648
        %v7185 = vsel %vm7183, %v7184, %v7175
        %v7186 = vsel %vm7179, %v7182, %v7185
        %v7187 = vsel %vm7176, nan, %v7186
        %v7188 = vand.u32 2147483647, %v6722
        %vm7189 = vcmp.le.f32.partialorder %v7188, 0.7853982
        %vm7190 = vcmp.lt.s32.totalorder %v6722, 0
        %v7191 = vand.u32 %v6722, 2139095040
        %v7192 = vshrl.u32 %v7191, 23
        %v7193 = vsub.s32 %v7192, 127
        %v7194 = vand.u32 2147483647, %v6722
        %v7195 = vand.u32 %v7194, 8388607
        %v7196 = vor.u32 %v7195, 8388608
        %v7197 = vsub.s32 0, %v7196
        %v7198 = vadd.s32 %v7193, 1
        %vm7199 = vcmp.gt.s32.totalorder %v7198, 0
        %v7200 = vsel %vm7199, %v7198, 0
        %v7201 = vshrl.u32 %v7200, 5
        %v7202 = vand.u32 %v7200, 31
        %v7203 = vsub.s32 32, %v7202
        %v7204 = vshrl.u32 683565275, %v7203
        %v7205 = vshll.u32 683565275, %v7202
        %v7206 = vshrl.u32 2475754826, %v7203
        %v7207 = vor.u32 %v7205, %v7206
        %v7208 = vshll.u32 2475754826, %v7202
        %v7209 = vshrl.u32 2131351028, %v7203
        %v7210 = vor.u32 %v7208, %v7209
        %v7211 = vshll.u32 2131351028, %v7202
        %v7212 = vshrl.u32 2102212464, %v7203
        %v7213 = vor.u32 %v7211, %v7212
        %v7214 = vshll.u32 2102212464, %v7202
        %v7215 = vshrl.u32 920167782, %v7203
        %v7216 = vor.u32 %v7214, %v7215
        %v7217 = vshll.u32 920167782, %v7202
        %v7218 = vshrl.u32 1326507024, %v7203
        %v7219 = vor.u32 %v7217, %v7218
        %vm7220 = vcmp.lt.s32.totalorder %v7201, 1
        %vm7221 = vcmp.lt.s32.totalorder %v7201, 2
        %vm7222 = vcmp.lt.s32.totalorder %v7201, 3
        %vm7223 = vcmp.lt.s32.totalorder %v7201, 4
        %v7224 = vsel %vm7220, %v7204, %v7207
        %v7225 = vsel %vm7223, %v7213, 2102212464
        %v7226 = vsel %vm7222, %v7210, %v7225
        %v7227 = vsel %vm7221, %v7224, %v7226
        %v7228 = vsel %vm7220, %v7207, %v7210
        %v7229 = vsel %vm7223, %v7216, 920167782
        %v7230 = vsel %vm7222, %v7213, %v7229
        %v7231 = vsel %vm7221, %v7228, %v7230
        %v7232 = vsel %vm7220, %v7210, %v7213
        %v7233 = vsel %vm7223, %v7219, 1326507024
        %v7234 = vsel %vm7222, %v7216, %v7233
        %v7235 = vsel %vm7221, %v7232, %v7234
        %v7236 = vshll.u32 %v7196, 8
        %v7237 = vand.u32 %v7236, 65535
        %v7238 = vshrl.u32 %v7236, 16
        %v7239 = vand.u32 %v7235, 65535
        %v7240 = vshrl.u32 %v7235, 16
        %v7241 = vmul.u32 %v7237, %v7239
        %v7242 = vmul.u32 %v7237, %v7240
        %v7243 = vmul.u32 %v7238, %v7239
        %v7244 = vmul.u32 %v7238, %v7240
        %v7245 = vshll.u32 %v7242, 16
        %v7246 = vshrl.u32 %v7242, 16
        %v7247 = vshll.u32 %v7243, 16
        %v7248 = vshrl.u32 %v7243, 16
        %vm7249 = vc.u32 %v7241, %v7245
        %v7250 = vsel %vm7249, 1, 0
        %v7251 = vadd.s32 %v7241, %v7245
        %v7252 = vadd.s32 %v7244, %v7250
        %vm7253 = vc.u32 %v7251, %v7247
        %v7254 = vsel %vm7253, 1, 0
        %v7255 = vadd.s32 %v7251, %v7247
        %v7256 = vadd.s32 %v7252, %v7254
        %v7257 = vadd.s32 %v7256, %v7246
        %v7258 = vadd.s32 %v7257, %v7248
        %v7259 = vand.u32 %v7236, 65535
        %v7260 = vshrl.u32 %v7236, 16
        %v7261 = vand.u32 %v7231, 65535
        %v7262 = vshrl.u32 %v7231, 16
        %v7263 = vmul.u32 %v7259, %v7261
        %v7264 = vmul.u32 %v7259, %v7262
        %v7265 = vmul.u32 %v7260, %v7261
        %v7266 = vmul.u32 %v7260, %v7262
        %v7267 = vshll.u32 %v7264, 16
        %v7268 = vshrl.u32 %v7264, 16
        %v7269 = vshll.u32 %v7265, 16
        %v7270 = vshrl.u32 %v7265, 16
        %vm7271 = vc.u32 %v7263, %v7267
        %v7272 = vsel %vm7271, 1, 0
        %v7273 = vadd.s32 %v7263, %v7267
        %v7274 = vadd.s32 %v7266, %v7272
        %vm7275 = vc.u32 %v7273, %v7269
        %v7276 = vsel %vm7275, 1, 0
        %v7277 = vadd.s32 %v7273, %v7269
        %v7278 = vadd.s32 %v7274, %v7276
        %v7279 = vadd.s32 %v7278, %v7268
        %v7280 = vadd.s32 %v7279, %v7270
        %v7281 = vmul.u32 %v7236, %v7227
        %v7282 = vadd.s32 %v7258, %v7277
        %vm7283 = vc.u32 %v7258, %v7277
        %v7284 = vadd.s32 %v7280, 1
        %v7285 = vsel %vm7283, %v7284, %v7280
        %v7286 = vadd.s32 %v7281, %v7285
        %v7287 = vadd.s32 %v7286, 536870912
        %v7288 = vshrl.u32 %v7287, 30
        %v7289 = vshll.u32 %v7288, 30
        %v7290 = vsub.s32 %v7286, %v7289
        %vm7291 = vcmp.lt.s32.totalorder %v7290, 0
        %v7292 = vsub.s32 0, %v7290
        %v7293 = vsel %vm7291, %v7292, %v7290
        %v7294 = vclz %v7293
        %v7295 = vsub.s32 %v7294, 2
        %vm7296 = vcmp.gt.s32.totalorder 0, %v7295
        %v7297 = vsel %vm7296, 0, %v7295
        %v7298 = vsub.s32 32, %v7297
        %v7299 = vshll.u32 %v7290, %v7297
        %v7300 = vshrl.u32 %v7282, %v7298
        %v7301 = vor.u32 %v7299, %v7300
        %v7302 = vsub.s32 4294967266, %v7297
        %v7303 = vadd.s32 %v7302, 127
        %v7304 = vshll.u32 %v7303, 23
        %v7305 = vor.u32 4788187, %v7304
        %v7306 = vand.u32 2147483647, %v7305
        %v7308 = vcvt.s32.f32 %v7301
        %v7309 = vmul.f32 %v7308, %v7306
        %v7310 = vxor.u32 %v7309, 2147483648
        %v7311 = vsel %vm7190, %v7310, %v7309
        %v7312 = vsub.s32 4, %v7288
        %v7313 = vsel %vm7190, %v7312, %v7288
        %v7314 = vsel %vm7189, %v6722, %v7311
        %v7315 = vsel %vm7189, 0, %v7313
        %v7316 = vmul.f32 %v7314, %v7314
        %v7317 = vmul.f32 %v7316, -0.001358992
        %v7318 = vadd.f32 %v7317, 0.041655596
        %v7319 = vmul.f32 %v7316, %v7318
        %v7320 = vadd.f32 %v7319, -0.4999988
        %v7321 = vmul.f32 %v7316, %v7320
        %v7322 = vadd.f32 1.0, %v7321
        %v7323 = vmul.f32 %v7314, %v7314
        %v7324 = vmul.f32 %v7323, -0.00019511016
        %v7325 = vadd.f32 %v7324, 0.008332121
        %v7326 = vmul.f32 %v7323, %v7325
        %v7327 = vadd.f32 %v7326, -0.16666654
        %v7328 = vmul.f32 %v7323, %v7327
        %v7329 = vadd.f32 %v7328, 1.0
        %v7330 = vmul.f32 %v7329, %v7314
        %vm7331 = vweird.f32 %v6722
        %v7332 = vadd.s32 %v7315, 3
        %v7333 = vand.u32 %v7332, 3
        %vm7334 = vcmp.lt.s32.totalorder %v7333, 2
        %vm7335 = vcmp.eq.s32.totalorder %v7333, 0
        %v7336 = vxor.u32 %v7330, 2147483648
        %v7337 = vsel %vm7335, %v7322, %v7336
        %vm7338 = vcmp.eq.s32.totalorder %v7333, 2
        %v7339 = vxor.u32 %v7322, 2147483648
        %v7340 = vsel %vm7338, %v7339, %v7330
        %v7341 = vsel %vm7334, %v7337, %v7340
        %v7342 = vsel %vm7331, nan, %v7341
        %7343 = vst [vmem:[#allocation2 + $0x1d0] sm:$0xff] %v7187
        %7344 = vst [vmem:[#allocation2 + $0x1d8] sm:$0xff] %v7342
        %7346 = vset.pattern.permute.xlu0 0
        %7347 = vperm.xlu0 %7346, %v6033
        %v7348 = vpop.permute.xlu0 %7347
        %7351 = vset.pattern.permute.xlu0 0
        %7352 = vperm.xlu0 %7351, %v6034
        %v7353 = vpop.permute.xlu0 %7352
        %v7355 = vmul.f32 %v7348, %v462
        %v7356 = vmul.f32 %v7353, %v462
        %7358 = vset.pattern.permute.xlu0 0
        %7359 = vperm.xlu0 %7358, %v6045
        %v7360 = vpop.permute.xlu0 %7359
        %7363 = vset.pattern.permute.xlu0 0
        %7364 = vperm.xlu0 %7363, %v6046
        %v7365 = vpop.permute.xlu0 %7364
        %v7367 = vadd.f32 %v7355, %v7360
        %v7368 = vadd.f32 %v7356, %v7365
        %v7369 = vand.u32 2147483647, %v7367
        %vm7370 = vcmp.le.f32.partialorder %v7369, 0.7853982
        %vm7371 = vcmp.lt.s32.totalorder %v7367, 0
        %v7372 = vand.u32 %v7367, 2139095040
        %v7373 = vshrl.u32 %v7372, 23
        %v7374 = vsub.s32 %v7373, 127
        %v7375 = vand.u32 2147483647, %v7367
        %v7376 = vand.u32 %v7375, 8388607
        %v7377 = vor.u32 %v7376, 8388608
        %v7378 = vsub.s32 0, %v7377
        %v7379 = vadd.s32 %v7374, 1
        %vm7380 = vcmp.gt.s32.totalorder %v7379, 0
        %v7381 = vsel %vm7380, %v7379, 0
        %v7382 = vshrl.u32 %v7381, 5
        %v7383 = vand.u32 %v7381, 31
        %v7384 = vsub.s32 32, %v7383
        %v7385 = vshrl.u32 683565275, %v7384
        %v7386 = vshll.u32 683565275, %v7383
        %v7387 = vshrl.u32 2475754826, %v7384
        %v7388 = vor.u32 %v7386, %v7387
        %v7389 = vshll.u32 2475754826, %v7383
        %v7390 = vshrl.u32 2131351028, %v7384
        %v7391 = vor.u32 %v7389, %v7390
        %v7392 = vshll.u32 2131351028, %v7383
        %v7393 = vshrl.u32 2102212464, %v7384
        %v7394 = vor.u32 %v7392, %v7393
        %v7395 = vshll.u32 2102212464, %v7383
        %v7396 = vshrl.u32 920167782, %v7384
        %v7397 = vor.u32 %v7395, %v7396
        %v7398 = vshll.u32 920167782, %v7383
        %v7399 = vshrl.u32 1326507024, %v7384
        %v7400 = vor.u32 %v7398, %v7399
        %vm7401 = vcmp.lt.s32.totalorder %v7382, 1
        %vm7402 = vcmp.lt.s32.totalorder %v7382, 2
        %vm7403 = vcmp.lt.s32.totalorder %v7382, 3
        %vm7404 = vcmp.lt.s32.totalorder %v7382, 4
        %v7405 = vsel %vm7401, %v7385, %v7388
        %v7406 = vsel %vm7404, %v7394, 2102212464
        %v7407 = vsel %vm7403, %v7391, %v7406
        %v7408 = vsel %vm7402, %v7405, %v7407
        %v7409 = vsel %vm7401, %v7388, %v7391
        %v7410 = vsel %vm7404, %v7397, 920167782
        %v7411 = vsel %vm7403, %v7394, %v7410
        %v7412 = vsel %vm7402, %v7409, %v7411
        %v7413 = vsel %vm7401, %v7391, %v7394
        %v7414 = vsel %vm7404, %v7400, 1326507024
        %v7415 = vsel %vm7403, %v7397, %v7414
        %v7416 = vsel %vm7402, %v7413, %v7415
        %v7417 = vshll.u32 %v7377, 8
        %v7418 = vand.u32 %v7417, 65535
        %v7419 = vshrl.u32 %v7417, 16
        %v7420 = vand.u32 %v7416, 65535
        %v7421 = vshrl.u32 %v7416, 16
        %v7422 = vmul.u32 %v7418, %v7420
        %v7423 = vmul.u32 %v7418, %v7421
        %v7424 = vmul.u32 %v7419, %v7420
        %v7425 = vmul.u32 %v7419, %v7421
        %v7426 = vshll.u32 %v7423, 16
        %v7427 = vshrl.u32 %v7423, 16
        %v7428 = vshll.u32 %v7424, 16
        %v7429 = vshrl.u32 %v7424, 16
        %vm7430 = vc.u32 %v7422, %v7426
        %v7431 = vsel %vm7430, 1, 0
        %v7432 = vadd.s32 %v7422, %v7426
        %v7433 = vadd.s32 %v7425, %v7431
        %vm7434 = vc.u32 %v7432, %v7428
        %v7435 = vsel %vm7434, 1, 0
        %v7436 = vadd.s32 %v7432, %v7428
        %v7437 = vadd.s32 %v7433, %v7435
        %v7438 = vadd.s32 %v7437, %v7427
        %v7439 = vadd.s32 %v7438, %v7429
        %v7440 = vand.u32 %v7417, 65535
        %v7441 = vshrl.u32 %v7417, 16
        %v7442 = vand.u32 %v7412, 65535
        %v7443 = vshrl.u32 %v7412, 16
        %v7444 = vmul.u32 %v7440, %v7442
        %v7445 = vmul.u32 %v7440, %v7443
        %v7446 = vmul.u32 %v7441, %v7442
        %v7447 = vmul.u32 %v7441, %v7443
        %v7448 = vshll.u32 %v7445, 16
        %v7449 = vshrl.u32 %v7445, 16
        %v7450 = vshll.u32 %v7446, 16
        %v7451 = vshrl.u32 %v7446, 16
        %vm7452 = vc.u32 %v7444, %v7448
        %v7453 = vsel %vm7452, 1, 0
        %v7454 = vadd.s32 %v7444, %v7448
        %v7455 = vadd.s32 %v7447, %v7453
        %vm7456 = vc.u32 %v7454, %v7450
        %v7457 = vsel %vm7456, 1, 0
        %v7458 = vadd.s32 %v7454, %v7450
        %v7459 = vadd.s32 %v7455, %v7457
        %v7460 = vadd.s32 %v7459, %v7449
        %v7461 = vadd.s32 %v7460, %v7451
        %v7462 = vmul.u32 %v7417, %v7408
        %v7463 = vadd.s32 %v7439, %v7458
        %vm7464 = vc.u32 %v7439, %v7458
        %v7465 = vadd.s32 %v7461, 1
        %v7466 = vsel %vm7464, %v7465, %v7461
        %v7467 = vadd.s32 %v7462, %v7466
        %v7468 = vadd.s32 %v7467, 536870912
        %v7469 = vshrl.u32 %v7468, 30
        %v7470 = vshll.u32 %v7469, 30
        %v7471 = vsub.s32 %v7467, %v7470
        %vm7472 = vcmp.lt.s32.totalorder %v7471, 0
        %v7473 = vsub.s32 0, %v7471
        %v7474 = vsel %vm7472, %v7473, %v7471
        %v7475 = vclz %v7474
        %v7476 = vsub.s32 %v7475, 2
        %vm7477 = vcmp.gt.s32.totalorder 0, %v7476
        %v7478 = vsel %vm7477, 0, %v7476
        %v7479 = vsub.s32 32, %v7478
        %v7480 = vshll.u32 %v7471, %v7478
        %v7481 = vshrl.u32 %v7463, %v7479
        %v7482 = vor.u32 %v7480, %v7481
        %v7483 = vsub.s32 4294967266, %v7478
        %v7484 = vadd.s32 %v7483, 127
        %v7485 = vshll.u32 %v7484, 23
        %v7486 = vor.u32 4788187, %v7485
        %v7487 = vand.u32 2147483647, %v7486
        %v7489 = vcvt.s32.f32 %v7482
        %v7490 = vmul.f32 %v7489, %v7487
        %v7491 = vxor.u32 %v7490, 2147483648
        %v7492 = vsel %vm7371, %v7491, %v7490
        %v7493 = vsub.s32 4, %v7469
        %v7494 = vsel %vm7371, %v7493, %v7469
        %v7495 = vsel %vm7370, %v7367, %v7492
        %v7496 = vsel %vm7370, 0, %v7494
        %v7497 = vmul.f32 %v7495, %v7495
        %v7498 = vmul.f32 %v7497, -0.001358992
        %v7499 = vadd.f32 %v7498, 0.041655596
        %v7500 = vmul.f32 %v7497, %v7499
        %v7501 = vadd.f32 %v7500, -0.4999988
        %v7502 = vmul.f32 %v7497, %v7501
        %v7503 = vadd.f32 1.0, %v7502
        %v7504 = vmul.f32 %v7495, %v7495
        %v7505 = vmul.f32 %v7504, -0.00019511016
        %v7506 = vadd.f32 %v7505, 0.008332121
        %v7507 = vmul.f32 %v7504, %v7506
        %v7508 = vadd.f32 %v7507, -0.16666654
        %v7509 = vmul.f32 %v7504, %v7508
        %v7510 = vadd.f32 %v7509, 1.0
        %v7511 = vmul.f32 %v7510, %v7495
        %vm7512 = vweird.f32 %v7367
        %v7513 = vand.u32 %v7496, 3
        %vm7514 = vcmp.lt.s32.totalorder %v7513, 2
        %vm7515 = vcmp.eq.s32.totalorder %v7513, 0
        %v7516 = vxor.u32 %v7511, 2147483648
        %v7517 = vsel %vm7515, %v7503, %v7516
        %vm7518 = vcmp.eq.s32.totalorder %v7513, 2
        %v7519 = vxor.u32 %v7503, 2147483648
        %v7520 = vsel %vm7518, %v7519, %v7511
        %v7521 = vsel %vm7514, %v7517, %v7520
        %v7522 = vsel %vm7512, nan, %v7521
        %v7523 = vand.u32 2147483647, %v7368
        %vm7524 = vcmp.le.f32.partialorder %v7523, 0.7853982
        %vm7525 = vcmp.lt.s32.totalorder %v7368, 0
        %v7526 = vand.u32 %v7368, 2139095040
        %v7527 = vshrl.u32 %v7526, 23
        %v7528 = vsub.s32 %v7527, 127
        %v7529 = vand.u32 2147483647, %v7368
        %v7530 = vand.u32 %v7529, 8388607
        %v7531 = vor.u32 %v7530, 8388608
        %v7532 = vsub.s32 0, %v7531
        %v7533 = vadd.s32 %v7528, 1
        %vm7534 = vcmp.gt.s32.totalorder %v7533, 0
        %v7535 = vsel %vm7534, %v7533, 0
        %v7536 = vshrl.u32 %v7535, 5
        %v7537 = vand.u32 %v7535, 31
        %v7538 = vsub.s32 32, %v7537
        %v7539 = vshrl.u32 683565275, %v7538
        %v7540 = vshll.u32 683565275, %v7537
        %v7541 = vshrl.u32 2475754826, %v7538
        %v7542 = vor.u32 %v7540, %v7541
        %v7543 = vshll.u32 2475754826, %v7537
        %v7544 = vshrl.u32 2131351028, %v7538
        %v7545 = vor.u32 %v7543, %v7544
        %v7546 = vshll.u32 2131351028, %v7537
        %v7547 = vshrl.u32 2102212464, %v7538
        %v7548 = vor.u32 %v7546, %v7547
        %v7549 = vshll.u32 2102212464, %v7537
        %v7550 = vshrl.u32 920167782, %v7538
        %v7551 = vor.u32 %v7549, %v7550
        %v7552 = vshll.u32 920167782, %v7537
        %v7553 = vshrl.u32 1326507024, %v7538
        %v7554 = vor.u32 %v7552, %v7553
        %vm7555 = vcmp.lt.s32.totalorder %v7536, 1
        %vm7556 = vcmp.lt.s32.totalorder %v7536, 2
        %vm7557 = vcmp.lt.s32.totalorder %v7536, 3
        %vm7558 = vcmp.lt.s32.totalorder %v7536, 4
        %v7559 = vsel %vm7555, %v7539, %v7542
        %v7560 = vsel %vm7558, %v7548, 2102212464
        %v7561 = vsel %vm7557, %v7545, %v7560
        %v7562 = vsel %vm7556, %v7559, %v7561
        %v7563 = vsel %vm7555, %v7542, %v7545
        %v7564 = vsel %vm7558, %v7551, 920167782
        %v7565 = vsel %vm7557, %v7548, %v7564
        %v7566 = vsel %vm7556, %v7563, %v7565
        %v7567 = vsel %vm7555, %v7545, %v7548
        %v7568 = vsel %vm7558, %v7554, 1326507024
        %v7569 = vsel %vm7557, %v7551, %v7568
        %v7570 = vsel %vm7556, %v7567, %v7569
        %v7571 = vshll.u32 %v7531, 8
        %v7572 = vand.u32 %v7571, 65535
        %v7573 = vshrl.u32 %v7571, 16
        %v7574 = vand.u32 %v7570, 65535
        %v7575 = vshrl.u32 %v7570, 16
        %v7576 = vmul.u32 %v7572, %v7574
        %v7577 = vmul.u32 %v7572, %v7575
        %v7578 = vmul.u32 %v7573, %v7574
        %v7579 = vmul.u32 %v7573, %v7575
        %v7580 = vshll.u32 %v7577, 16
        %v7581 = vshrl.u32 %v7577, 16
        %v7582 = vshll.u32 %v7578, 16
        %v7583 = vshrl.u32 %v7578, 16
        %vm7584 = vc.u32 %v7576, %v7580
        %v7585 = vsel %vm7584, 1, 0
        %v7586 = vadd.s32 %v7576, %v7580
        %v7587 = vadd.s32 %v7579, %v7585
        %vm7588 = vc.u32 %v7586, %v7582
        %v7589 = vsel %vm7588, 1, 0
        %v7590 = vadd.s32 %v7586, %v7582
        %v7591 = vadd.s32 %v7587, %v7589
        %v7592 = vadd.s32 %v7591, %v7581
        %v7593 = vadd.s32 %v7592, %v7583
        %v7594 = vand.u32 %v7571, 65535
        %v7595 = vshrl.u32 %v7571, 16
        %v7596 = vand.u32 %v7566, 65535
        %v7597 = vshrl.u32 %v7566, 16
        %v7598 = vmul.u32 %v7594, %v7596
        %v7599 = vmul.u32 %v7594, %v7597
        %v7600 = vmul.u32 %v7595, %v7596
        %v7601 = vmul.u32 %v7595, %v7597
        %v7602 = vshll.u32 %v7599, 16
        %v7603 = vshrl.u32 %v7599, 16
        %v7604 = vshll.u32 %v7600, 16
        %v7605 = vshrl.u32 %v7600, 16
        %vm7606 = vc.u32 %v7598, %v7602
        %v7607 = vsel %vm7606, 1, 0
        %v7608 = vadd.s32 %v7598, %v7602
        %v7609 = vadd.s32 %v7601, %v7607
        %vm7610 = vc.u32 %v7608, %v7604
        %v7611 = vsel %vm7610, 1, 0
        %v7612 = vadd.s32 %v7608, %v7604
        %v7613 = vadd.s32 %v7609, %v7611
        %v7614 = vadd.s32 %v7613, %v7603
        %v7615 = vadd.s32 %v7614, %v7605
        %v7616 = vmul.u32 %v7571, %v7562
        %v7617 = vadd.s32 %v7593, %v7612
        %vm7618 = vc.u32 %v7593, %v7612
        %v7619 = vadd.s32 %v7615, 1
        %v7620 = vsel %vm7618, %v7619, %v7615
        %v7621 = vadd.s32 %v7616, %v7620
        %v7622 = vadd.s32 %v7621, 536870912
        %v7623 = vshrl.u32 %v7622, 30
        %v7624 = vshll.u32 %v7623, 30
        %v7625 = vsub.s32 %v7621, %v7624
        %vm7626 = vcmp.lt.s32.totalorder %v7625, 0
        %v7627 = vsub.s32 0, %v7625
        %v7628 = vsel %vm7626, %v7627, %v7625
        %v7629 = vclz %v7628
        %v7630 = vsub.s32 %v7629, 2
        %vm7631 = vcmp.gt.s32.totalorder 0, %v7630
        %v7632 = vsel %vm7631, 0, %v7630
        %v7633 = vsub.s32 32, %v7632
        %v7634 = vshll.u32 %v7625, %v7632
        %v7635 = vshrl.u32 %v7617, %v7633
        %v7636 = vor.u32 %v7634, %v7635
        %v7637 = vsub.s32 4294967266, %v7632
        %v7638 = vadd.s32 %v7637, 127
        %v7639 = vshll.u32 %v7638, 23
        %v7640 = vor.u32 4788187, %v7639
        %v7641 = vand.u32 2147483647, %v7640
        %v7643 = vcvt.s32.f32 %v7636
        %v7644 = vmul.f32 %v7643, %v7641
        %v7645 = vxor.u32 %v7644, 2147483648
        %v7646 = vsel %vm7525, %v7645, %v7644
        %v7647 = vsub.s32 4, %v7623
        %v7648 = vsel %vm7525, %v7647, %v7623
        %v7649 = vsel %vm7524, %v7368, %v7646
        %v7650 = vsel %vm7524, 0, %v7648
        %v7651 = vmul.f32 %v7649, %v7649
        %v7652 = vmul.f32 %v7651, -0.001358992
        %v7653 = vadd.f32 %v7652, 0.041655596
        %v7654 = vmul.f32 %v7651, %v7653
        %v7655 = vadd.f32 %v7654, -0.4999988
        %v7656 = vmul.f32 %v7651, %v7655
        %v7657 = vadd.f32 1.0, %v7656
        %v7658 = vmul.f32 %v7649, %v7649
        %v7659 = vmul.f32 %v7658, -0.00019511016
        %v7660 = vadd.f32 %v7659, 0.008332121
        %v7661 = vmul.f32 %v7658, %v7660
        %v7662 = vadd.f32 %v7661, -0.16666654
        %v7663 = vmul.f32 %v7658, %v7662
        %v7664 = vadd.f32 %v7663, 1.0
        %v7665 = vmul.f32 %v7664, %v7649
        %vm7666 = vweird.f32 %v7368
        %v7667 = vand.u32 %v7650, 3
        %vm7668 = vcmp.lt.s32.totalorder %v7667, 2
        %vm7669 = vcmp.eq.s32.totalorder %v7667, 0
        %v7670 = vxor.u32 %v7665, 2147483648
        %v7671 = vsel %vm7669, %v7657, %v7670
        %vm7672 = vcmp.eq.s32.totalorder %v7667, 2
        %v7673 = vxor.u32 %v7657, 2147483648
        %v7674 = vsel %vm7672, %v7673, %v7665
        %v7675 = vsel %vm7668, %v7671, %v7674
        %v7676 = vsel %vm7666, nan, %v7675
        %7677 = vst [vmem:[#allocation2 + $0x1e0] sm:$0xff] %v7522
        %7678 = vst [vmem:[#allocation2 + $0x1e8] sm:$0xff] %v7676
        %v7679 = vand.u32 2147483647, %v7367
        %vm7680 = vcmp.le.f32.partialorder %v7679, 0.7853982
        %vm7681 = vcmp.lt.s32.totalorder %v7367, 0
        %v7682 = vand.u32 %v7367, 2139095040
        %v7683 = vshrl.u32 %v7682, 23
        %v7684 = vsub.s32 %v7683, 127
        %v7685 = vand.u32 2147483647, %v7367
        %v7686 = vand.u32 %v7685, 8388607
        %v7687 = vor.u32 %v7686, 8388608
        %v7688 = vsub.s32 0, %v7687
        %v7689 = vadd.s32 %v7684, 1
        %vm7690 = vcmp.gt.s32.totalorder %v7689, 0
        %v7691 = vsel %vm7690, %v7689, 0
        %v7692 = vshrl.u32 %v7691, 5
        %v7693 = vand.u32 %v7691, 31
        %v7694 = vsub.s32 32, %v7693
        %v7695 = vshrl.u32 683565275, %v7694
        %v7696 = vshll.u32 683565275, %v7693
        %v7697 = vshrl.u32 2475754826, %v7694
        %v7698 = vor.u32 %v7696, %v7697
        %v7699 = vshll.u32 2475754826, %v7693
        %v7700 = vshrl.u32 2131351028, %v7694
        %v7701 = vor.u32 %v7699, %v7700
        %v7702 = vshll.u32 2131351028, %v7693
        %v7703 = vshrl.u32 2102212464, %v7694
        %v7704 = vor.u32 %v7702, %v7703
        %v7705 = vshll.u32 2102212464, %v7693
        %v7706 = vshrl.u32 920167782, %v7694
        %v7707 = vor.u32 %v7705, %v7706
        %v7708 = vshll.u32 920167782, %v7693
        %v7709 = vshrl.u32 1326507024, %v7694
        %v7710 = vor.u32 %v7708, %v7709
        %vm7711 = vcmp.lt.s32.totalorder %v7692, 1
        %vm7712 = vcmp.lt.s32.totalorder %v7692, 2
        %vm7713 = vcmp.lt.s32.totalorder %v7692, 3
        %vm7714 = vcmp.lt.s32.totalorder %v7692, 4
        %v7715 = vsel %vm7711, %v7695, %v7698
        %v7716 = vsel %vm7714, %v7704, 2102212464
        %v7717 = vsel %vm7713, %v7701, %v7716
        %v7718 = vsel %vm7712, %v7715, %v7717
        %v7719 = vsel %vm7711, %v7698, %v7701
        %v7720 = vsel %vm7714, %v7707, 920167782
        %v7721 = vsel %vm7713, %v7704, %v7720
        %v7722 = vsel %vm7712, %v7719, %v7721
        %v7723 = vsel %vm7711, %v7701, %v7704
        %v7724 = vsel %vm7714, %v7710, 1326507024
        %v7725 = vsel %vm7713, %v7707, %v7724
        %v7726 = vsel %vm7712, %v7723, %v7725
        %v7727 = vshll.u32 %v7687, 8
        %v7728 = vand.u32 %v7727, 65535
        %v7729 = vshrl.u32 %v7727, 16
        %v7730 = vand.u32 %v7726, 65535
        %v7731 = vshrl.u32 %v7726, 16
        %v7732 = vmul.u32 %v7728, %v7730
        %v7733 = vmul.u32 %v7728, %v7731
        %v7734 = vmul.u32 %v7729, %v7730
        %v7735 = vmul.u32 %v7729, %v7731
        %v7736 = vshll.u32 %v7733, 16
        %v7737 = vshrl.u32 %v7733, 16
        %v7738 = vshll.u32 %v7734, 16
        %v7739 = vshrl.u32 %v7734, 16
        %vm7740 = vc.u32 %v7732, %v7736
        %v7741 = vsel %vm7740, 1, 0
        %v7742 = vadd.s32 %v7732, %v7736
        %v7743 = vadd.s32 %v7735, %v7741
        %vm7744 = vc.u32 %v7742, %v7738
        %v7745 = vsel %vm7744, 1, 0
        %v7746 = vadd.s32 %v7742, %v7738
        %v7747 = vadd.s32 %v7743, %v7745
        %v7748 = vadd.s32 %v7747, %v7737
        %v7749 = vadd.s32 %v7748, %v7739
        %v7750 = vand.u32 %v7727, 65535
        %v7751 = vshrl.u32 %v7727, 16
        %v7752 = vand.u32 %v7722, 65535
        %v7753 = vshrl.u32 %v7722, 16
        %v7754 = vmul.u32 %v7750, %v7752
        %v7755 = vmul.u32 %v7750, %v7753
        %v7756 = vmul.u32 %v7751, %v7752
        %v7757 = vmul.u32 %v7751, %v7753
        %v7758 = vshll.u32 %v7755, 16
        %v7759 = vshrl.u32 %v7755, 16
        %v7760 = vshll.u32 %v7756, 16
        %v7761 = vshrl.u32 %v7756, 16
        %vm7762 = vc.u32 %v7754, %v7758
        %v7763 = vsel %vm7762, 1, 0
        %v7764 = vadd.s32 %v7754, %v7758
        %v7765 = vadd.s32 %v7757, %v7763
        %vm7766 = vc.u32 %v7764, %v7760
        %v7767 = vsel %vm7766, 1, 0
        %v7768 = vadd.s32 %v7764, %v7760
        %v7769 = vadd.s32 %v7765, %v7767
        %v7770 = vadd.s32 %v7769, %v7759
        %v7771 = vadd.s32 %v7770, %v7761
        %v7772 = vmul.u32 %v7727, %v7718
        %v7773 = vadd.s32 %v7749, %v7768
        %vm7774 = vc.u32 %v7749, %v7768
        %v7775 = vadd.s32 %v7771, 1
        %v7776 = vsel %vm7774, %v7775, %v7771
        %v7777 = vadd.s32 %v7772, %v7776
        %v7778 = vadd.s32 %v7777, 536870912
        %v7779 = vshrl.u32 %v7778, 30
        %v7780 = vshll.u32 %v7779, 30
        %v7781 = vsub.s32 %v7777, %v7780
        %vm7782 = vcmp.lt.s32.totalorder %v7781, 0
        %v7783 = vsub.s32 0, %v7781
        %v7784 = vsel %vm7782, %v7783, %v7781
        %v7785 = vclz %v7784
        %v7786 = vsub.s32 %v7785, 2
        %vm7787 = vcmp.gt.s32.totalorder 0, %v7786
        %v7788 = vsel %vm7787, 0, %v7786
        %v7789 = vsub.s32 32, %v7788
        %v7790 = vshll.u32 %v7781, %v7788
        %v7791 = vshrl.u32 %v7773, %v7789
        %v7792 = vor.u32 %v7790, %v7791
        %v7793 = vsub.s32 4294967266, %v7788
        %v7794 = vadd.s32 %v7793, 127
        %v7795 = vshll.u32 %v7794, 23
        %v7796 = vor.u32 4788187, %v7795
        %v7797 = vand.u32 2147483647, %v7796
        %v7799 = vcvt.s32.f32 %v7792
        %v7800 = vmul.f32 %v7799, %v7797
        %v7801 = vxor.u32 %v7800, 2147483648
        %v7802 = vsel %vm7681, %v7801, %v7800
        %v7803 = vsub.s32 4, %v7779
        %v7804 = vsel %vm7681, %v7803, %v7779
        %v7805 = vsel %vm7680, %v7367, %v7802
        %v7806 = vsel %vm7680, 0, %v7804
        %v7807 = vmul.f32 %v7805, %v7805
        %v7808 = vmul.f32 %v7807, -0.001358992
        %v7809 = vadd.f32 %v7808, 0.041655596
        %v7810 = vmul.f32 %v7807, %v7809
        %v7811 = vadd.f32 %v7810, -0.4999988
        %v7812 = vmul.f32 %v7807, %v7811
        %v7813 = vadd.f32 1.0, %v7812
        %v7814 = vmul.f32 %v7805, %v7805
        %v7815 = vmul.f32 %v7814, -0.00019511016
        %v7816 = vadd.f32 %v7815, 0.008332121
        %v7817 = vmul.f32 %v7814, %v7816
        %v7818 = vadd.f32 %v7817, -0.16666654
        %v7819 = vmul.f32 %v7814, %v7818
        %v7820 = vadd.f32 %v7819, 1.0
        %v7821 = vmul.f32 %v7820, %v7805
        %vm7822 = vweird.f32 %v7367
        %v7823 = vadd.s32 %v7806, 3
        %v7824 = vand.u32 %v7823, 3
        %vm7825 = vcmp.lt.s32.totalorder %v7824, 2
        %vm7826 = vcmp.eq.s32.totalorder %v7824, 0
        %v7827 = vxor.u32 %v7821, 2147483648
        %v7828 = vsel %vm7826, %v7813, %v7827
        %vm7829 = vcmp.eq.s32.totalorder %v7824, 2
        %v7830 = vxor.u32 %v7813, 2147483648
        %v7831 = vsel %vm7829, %v7830, %v7821
        %v7832 = vsel %vm7825, %v7828, %v7831
        %v7833 = vsel %vm7822, nan, %v7832
        %v7834 = vand.u32 2147483647, %v7368
        %vm7835 = vcmp.le.f32.partialorder %v7834, 0.7853982
        %vm7836 = vcmp.lt.s32.totalorder %v7368, 0
        %v7837 = vand.u32 %v7368, 2139095040
        %v7838 = vshrl.u32 %v7837, 23
        %v7839 = vsub.s32 %v7838, 127
        %v7840 = vand.u32 2147483647, %v7368
        %v7841 = vand.u32 %v7840, 8388607
        %v7842 = vor.u32 %v7841, 8388608
        %v7843 = vsub.s32 0, %v7842
        %v7844 = vadd.s32 %v7839, 1
        %vm7845 = vcmp.gt.s32.totalorder %v7844, 0
        %v7846 = vsel %vm7845, %v7844, 0
        %v7847 = vshrl.u32 %v7846, 5
        %v7848 = vand.u32 %v7846, 31
        %v7849 = vsub.s32 32, %v7848
        %v7850 = vshrl.u32 683565275, %v7849
        %v7851 = vshll.u32 683565275, %v7848
        %v7852 = vshrl.u32 2475754826, %v7849
        %v7853 = vor.u32 %v7851, %v7852
        %v7854 = vshll.u32 2475754826, %v7848
        %v7855 = vshrl.u32 2131351028, %v7849
        %v7856 = vor.u32 %v7854, %v7855
        %v7857 = vshll.u32 2131351028, %v7848
        %v7858 = vshrl.u32 2102212464, %v7849
        %v7859 = vor.u32 %v7857, %v7858
        %v7860 = vshll.u32 2102212464, %v7848
        %v7861 = vshrl.u32 920167782, %v7849
        %v7862 = vor.u32 %v7860, %v7861
        %v7863 = vshll.u32 920167782, %v7848
        %v7864 = vshrl.u32 1326507024, %v7849
        %v7865 = vor.u32 %v7863, %v7864
        %vm7866 = vcmp.lt.s32.totalorder %v7847, 1
        %vm7867 = vcmp.lt.s32.totalorder %v7847, 2
        %vm7868 = vcmp.lt.s32.totalorder %v7847, 3
        %vm7869 = vcmp.lt.s32.totalorder %v7847, 4
        %v7870 = vsel %vm7866, %v7850, %v7853
        %v7871 = vsel %vm7869, %v7859, 2102212464
        %v7872 = vsel %vm7868, %v7856, %v7871
        %v7873 = vsel %vm7867, %v7870, %v7872
        %v7874 = vsel %vm7866, %v7853, %v7856
        %v7875 = vsel %vm7869, %v7862, 920167782
        %v7876 = vsel %vm7868, %v7859, %v7875
        %v7877 = vsel %vm7867, %v7874, %v7876
        %v7878 = vsel %vm7866, %v7856, %v7859
        %v7879 = vsel %vm7869, %v7865, 1326507024
        %v7880 = vsel %vm7868, %v7862, %v7879
        %v7881 = vsel %vm7867, %v7878, %v7880
        %v7882 = vshll.u32 %v7842, 8
        %v7883 = vand.u32 %v7882, 65535
        %v7884 = vshrl.u32 %v7882, 16
        %v7885 = vand.u32 %v7881, 65535
        %v7886 = vshrl.u32 %v7881, 16
        %v7887 = vmul.u32 %v7883, %v7885
        %v7888 = vmul.u32 %v7883, %v7886
        %v7889 = vmul.u32 %v7884, %v7885
        %v7890 = vmul.u32 %v7884, %v7886
        %v7891 = vshll.u32 %v7888, 16
        %v7892 = vshrl.u32 %v7888, 16
        %v7893 = vshll.u32 %v7889, 16
        %v7894 = vshrl.u32 %v7889, 16
        %vm7895 = vc.u32 %v7887, %v7891
        %v7896 = vsel %vm7895, 1, 0
        %v7897 = vadd.s32 %v7887, %v7891
        %v7898 = vadd.s32 %v7890, %v7896
        %vm7899 = vc.u32 %v7897, %v7893
        %v7900 = vsel %vm7899, 1, 0
        %v7901 = vadd.s32 %v7897, %v7893
        %v7902 = vadd.s32 %v7898, %v7900
        %v7903 = vadd.s32 %v7902, %v7892
        %v7904 = vadd.s32 %v7903, %v7894
        %v7905 = vand.u32 %v7882, 65535
        %v7906 = vshrl.u32 %v7882, 16
        %v7907 = vand.u32 %v7877, 65535
        %v7908 = vshrl.u32 %v7877, 16
        %v7909 = vmul.u32 %v7905, %v7907
        %v7910 = vmul.u32 %v7905, %v7908
        %v7911 = vmul.u32 %v7906, %v7907
        %v7912 = vmul.u32 %v7906, %v7908
        %v7913 = vshll.u32 %v7910, 16
        %v7914 = vshrl.u32 %v7910, 16
        %v7915 = vshll.u32 %v7911, 16
        %v7916 = vshrl.u32 %v7911, 16
        %vm7917 = vc.u32 %v7909, %v7913
        %v7918 = vsel %vm7917, 1, 0
        %v7919 = vadd.s32 %v7909, %v7913
        %v7920 = vadd.s32 %v7912, %v7918
        %vm7921 = vc.u32 %v7919, %v7915
        %v7922 = vsel %vm7921, 1, 0
        %v7923 = vadd.s32 %v7919, %v7915
        %v7924 = vadd.s32 %v7920, %v7922
        %v7925 = vadd.s32 %v7924, %v7914
        %v7926 = vadd.s32 %v7925, %v7916
        %v7927 = vmul.u32 %v7882, %v7873
        %v7928 = vadd.s32 %v7904, %v7923
        %vm7929 = vc.u32 %v7904, %v7923
        %v7930 = vadd.s32 %v7926, 1
        %v7931 = vsel %vm7929, %v7930, %v7926
        %v7932 = vadd.s32 %v7927, %v7931
        %v7933 = vadd.s32 %v7932, 536870912
        %v7934 = vshrl.u32 %v7933, 30
        %v7935 = vshll.u32 %v7934, 30
        %v7936 = vsub.s32 %v7932, %v7935
        %vm7937 = vcmp.lt.s32.totalorder %v7936, 0
        %v7938 = vsub.s32 0, %v7936
        %v7939 = vsel %vm7937, %v7938, %v7936
        %v7940 = vclz %v7939
        %v7941 = vsub.s32 %v7940, 2
        %vm7942 = vcmp.gt.s32.totalorder 0, %v7941
        %v7943 = vsel %vm7942, 0, %v7941
        %v7944 = vsub.s32 32, %v7943
        %v7945 = vshll.u32 %v7936, %v7943
        %v7946 = vshrl.u32 %v7928, %v7944
        %v7947 = vor.u32 %v7945, %v7946
        %v7948 = vsub.s32 4294967266, %v7943
        %v7949 = vadd.s32 %v7948, 127
        %v7950 = vshll.u32 %v7949, 23
        %v7951 = vor.u32 4788187, %v7950
        %v7952 = vand.u32 2147483647, %v7951
        %v7954 = vcvt.s32.f32 %v7947
        %v7955 = vmul.f32 %v7954, %v7952
        %v7956 = vxor.u32 %v7955, 2147483648
        %v7957 = vsel %vm7836, %v7956, %v7955
        %v7958 = vsub.s32 4, %v7934
        %v7959 = vsel %vm7836, %v7958, %v7934
        %v7960 = vsel %vm7835, %v7368, %v7957
        %v7961 = vsel %vm7835, 0, %v7959
        %v7962 = vmul.f32 %v7960, %v7960
        %v7963 = vmul.f32 %v7962, -0.001358992
        %v7964 = vadd.f32 %v7963, 0.041655596
        %v7965 = vmul.f32 %v7962, %v7964
        %v7966 = vadd.f32 %v7965, -0.4999988
        %v7967 = vmul.f32 %v7962, %v7966
        %v7968 = vadd.f32 1.0, %v7967
        %v7969 = vmul.f32 %v7960, %v7960
        %v7970 = vmul.f32 %v7969, -0.00019511016
        %v7971 = vadd.f32 %v7970, 0.008332121
        %v7972 = vmul.f32 %v7969, %v7971
        %v7973 = vadd.f32 %v7972, -0.16666654
        %v7974 = vmul.f32 %v7969, %v7973
        %v7975 = vadd.f32 %v7974, 1.0
        %v7976 = vmul.f32 %v7975, %v7960
        %vm7977 = vweird.f32 %v7368
        %v7978 = vadd.s32 %v7961, 3
        %v7979 = vand.u32 %v7978, 3
        %vm7980 = vcmp.lt.s32.totalorder %v7979, 2
        %vm7981 = vcmp.eq.s32.totalorder %v7979, 0
        %v7982 = vxor.u32 %v7976, 2147483648
        %v7983 = vsel %vm7981, %v7968, %v7982
        %vm7984 = vcmp.eq.s32.totalorder %v7979, 2
        %v7985 = vxor.u32 %v7968, 2147483648
        %v7986 = vsel %vm7984, %v7985, %v7976
        %v7987 = vsel %vm7980, %v7983, %v7986
        %v7988 = vsel %vm7977, nan, %v7987
        %7989 = vst [vmem:[#allocation2 + $0x1f0] sm:$0xff] %v7833
        %7990 = vst [vmem:[#allocation2 + $0x1f8] sm:$0xff] %v7988
        %7992 = vset.pattern.permute.xlu0 0
        %7993 = vperm.xlu0 %7992, %v6035
        %v7994 = vpop.permute.xlu0 %7993
        %7997 = vset.pattern.permute.xlu0 0
        %7998 = vperm.xlu0 %7997, %v6036
        %v7999 = vpop.permute.xlu0 %7998
        %v8001 = vmul.f32 %v7994, %v3250
        %v8002 = vmul.f32 %v7999, %v3250
        %8004 = vset.pattern.permute.xlu0 0
        %8005 = vperm.xlu0 %8004, %v6047
        %v8006 = vpop.permute.xlu0 %8005
        %8009 = vset.pattern.permute.xlu0 0
        %8010 = vperm.xlu0 %8009, %v6048
        %v8011 = vpop.permute.xlu0 %8010
        %v8013 = vadd.f32 %v8001, %v8006
        %v8014 = vadd.f32 %v8002, %v8011
        %v8015 = vand.u32 2147483647, %v8013
        %vm8016 = vcmp.le.f32.partialorder %v8015, 0.7853982
        %vm8017 = vcmp.lt.s32.totalorder %v8013, 0
        %v8018 = vand.u32 %v8013, 2139095040
        %v8019 = vshrl.u32 %v8018, 23
        %v8020 = vsub.s32 %v8019, 127
        %v8021 = vand.u32 2147483647, %v8013
        %v8022 = vand.u32 %v8021, 8388607
        %v8023 = vor.u32 %v8022, 8388608
        %v8024 = vsub.s32 0, %v8023
        %v8025 = vadd.s32 %v8020, 1
        %vm8026 = vcmp.gt.s32.totalorder %v8025, 0
        %v8027 = vsel %vm8026, %v8025, 0
        %v8028 = vshrl.u32 %v8027, 5
        %v8029 = vand.u32 %v8027, 31
        %v8030 = vsub.s32 32, %v8029
        %v8031 = vshrl.u32 683565275, %v8030
        %v8032 = vshll.u32 683565275, %v8029
        %v8033 = vshrl.u32 2475754826, %v8030
        %v8034 = vor.u32 %v8032, %v8033
        %v8035 = vshll.u32 2475754826, %v8029
        %v8036 = vshrl.u32 2131351028, %v8030
        %v8037 = vor.u32 %v8035, %v8036
        %v8038 = vshll.u32 2131351028, %v8029
        %v8039 = vshrl.u32 2102212464, %v8030
        %v8040 = vor.u32 %v8038, %v8039
        %v8041 = vshll.u32 2102212464, %v8029
        %v8042 = vshrl.u32 920167782, %v8030
        %v8043 = vor.u32 %v8041, %v8042
        %v8044 = vshll.u32 920167782, %v8029
        %v8045 = vshrl.u32 1326507024, %v8030
        %v8046 = vor.u32 %v8044, %v8045
        %vm8047 = vcmp.lt.s32.totalorder %v8028, 1
        %vm8048 = vcmp.lt.s32.totalorder %v8028, 2
        %vm8049 = vcmp.lt.s32.totalorder %v8028, 3
        %vm8050 = vcmp.lt.s32.totalorder %v8028, 4
        %v8051 = vsel %vm8047, %v8031, %v8034
        %v8052 = vsel %vm8050, %v8040, 2102212464
        %v8053 = vsel %vm8049, %v8037, %v8052
        %v8054 = vsel %vm8048, %v8051, %v8053
        %v8055 = vsel %vm8047, %v8034, %v8037
        %v8056 = vsel %vm8050, %v8043, 920167782
        %v8057 = vsel %vm8049, %v8040, %v8056
        %v8058 = vsel %vm8048, %v8055, %v8057
        %v8059 = vsel %vm8047, %v8037, %v8040
        %v8060 = vsel %vm8050, %v8046, 1326507024
        %v8061 = vsel %vm8049, %v8043, %v8060
        %v8062 = vsel %vm8048, %v8059, %v8061
        %v8063 = vshll.u32 %v8023, 8
        %v8064 = vand.u32 %v8063, 65535
        %v8065 = vshrl.u32 %v8063, 16
        %v8066 = vand.u32 %v8062, 65535
        %v8067 = vshrl.u32 %v8062, 16
        %v8068 = vmul.u32 %v8064, %v8066
        %v8069 = vmul.u32 %v8064, %v8067
        %v8070 = vmul.u32 %v8065, %v8066
        %v8071 = vmul.u32 %v8065, %v8067
        %v8072 = vshll.u32 %v8069, 16
        %v8073 = vshrl.u32 %v8069, 16
        %v8074 = vshll.u32 %v8070, 16
        %v8075 = vshrl.u32 %v8070, 16
        %vm8076 = vc.u32 %v8068, %v8072
        %v8077 = vsel %vm8076, 1, 0
        %v8078 = vadd.s32 %v8068, %v8072
        %v8079 = vadd.s32 %v8071, %v8077
        %vm8080 = vc.u32 %v8078, %v8074
        %v8081 = vsel %vm8080, 1, 0
        %v8082 = vadd.s32 %v8078, %v8074
        %v8083 = vadd.s32 %v8079, %v8081
        %v8084 = vadd.s32 %v8083, %v8073
        %v8085 = vadd.s32 %v8084, %v8075
        %v8086 = vand.u32 %v8063, 65535
        %v8087 = vshrl.u32 %v8063, 16
        %v8088 = vand.u32 %v8058, 65535
        %v8089 = vshrl.u32 %v8058, 16
        %v8090 = vmul.u32 %v8086, %v8088
        %v8091 = vmul.u32 %v8086, %v8089
        %v8092 = vmul.u32 %v8087, %v8088
        %v8093 = vmul.u32 %v8087, %v8089
        %v8094 = vshll.u32 %v8091, 16
        %v8095 = vshrl.u32 %v8091, 16
        %v8096 = vshll.u32 %v8092, 16
        %v8097 = vshrl.u32 %v8092, 16
        %vm8098 = vc.u32 %v8090, %v8094
        %v8099 = vsel %vm8098, 1, 0
        %v8100 = vadd.s32 %v8090, %v8094
        %v8101 = vadd.s32 %v8093, %v8099
        %vm8102 = vc.u32 %v8100, %v8096
        %v8103 = vsel %vm8102, 1, 0
        %v8104 = vadd.s32 %v8100, %v8096
        %v8105 = vadd.s32 %v8101, %v8103
        %v8106 = vadd.s32 %v8105, %v8095
        %v8107 = vadd.s32 %v8106, %v8097
        %v8108 = vmul.u32 %v8063, %v8054
        %v8109 = vadd.s32 %v8085, %v8104
        %vm8110 = vc.u32 %v8085, %v8104
        %v8111 = vadd.s32 %v8107, 1
        %v8112 = vsel %vm8110, %v8111, %v8107
        %v8113 = vadd.s32 %v8108, %v8112
        %v8114 = vadd.s32 %v8113, 536870912
        %v8115 = vshrl.u32 %v8114, 30
        %v8116 = vshll.u32 %v8115, 30
        %v8117 = vsub.s32 %v8113, %v8116
        %vm8118 = vcmp.lt.s32.totalorder %v8117, 0
        %v8119 = vsub.s32 0, %v8117
        %v8120 = vsel %vm8118, %v8119, %v8117
        %v8121 = vclz %v8120
        %v8122 = vsub.s32 %v8121, 2
        %vm8123 = vcmp.gt.s32.totalorder 0, %v8122
        %v8124 = vsel %vm8123, 0, %v8122
        %v8125 = vsub.s32 32, %v8124
        %v8126 = vshll.u32 %v8117, %v8124
        %v8127 = vshrl.u32 %v8109, %v8125
        %v8128 = vor.u32 %v8126, %v8127
        %v8129 = vsub.s32 4294967266, %v8124
        %v8130 = vadd.s32 %v8129, 127
        %v8131 = vshll.u32 %v8130, 23
        %v8132 = vor.u32 4788187, %v8131
        %v8133 = vand.u32 2147483647, %v8132
        %v8135 = vcvt.s32.f32 %v8128
        %v8136 = vmul.f32 %v8135, %v8133
        %v8137 = vxor.u32 %v8136, 2147483648
        %v8138 = vsel %vm8017, %v8137, %v8136
        %v8139 = vsub.s32 4, %v8115
        %v8140 = vsel %vm8017, %v8139, %v8115
        %v8141 = vsel %vm8016, %v8013, %v8138
        %v8142 = vsel %vm8016, 0, %v8140
        %v8143 = vmul.f32 %v8141, %v8141
        %v8144 = vmul.f32 %v8143, -0.001358992
        %v8145 = vadd.f32 %v8144, 0.041655596
        %v8146 = vmul.f32 %v8143, %v8145
        %v8147 = vadd.f32 %v8146, -0.4999988
        %v8148 = vmul.f32 %v8143, %v8147
        %v8149 = vadd.f32 1.0, %v8148
        %v8150 = vmul.f32 %v8141, %v8141
        %v8151 = vmul.f32 %v8150, -0.00019511016
        %v8152 = vadd.f32 %v8151, 0.008332121
        %v8153 = vmul.f32 %v8150, %v8152
        %v8154 = vadd.f32 %v8153, -0.16666654
        %v8155 = vmul.f32 %v8150, %v8154
        %v8156 = vadd.f32 %v8155, 1.0
        %v8157 = vmul.f32 %v8156, %v8141
        %vm8158 = vweird.f32 %v8013
        %v8159 = vand.u32 %v8142, 3
        %vm8160 = vcmp.lt.s32.totalorder %v8159, 2
        %vm8161 = vcmp.eq.s32.totalorder %v8159, 0
        %v8162 = vxor.u32 %v8157, 2147483648
        %v8163 = vsel %vm8161, %v8149, %v8162
        %vm8164 = vcmp.eq.s32.totalorder %v8159, 2
        %v8165 = vxor.u32 %v8149, 2147483648
        %v8166 = vsel %vm8164, %v8165, %v8157
        %v8167 = vsel %vm8160, %v8163, %v8166
        %v8168 = vsel %vm8158, nan, %v8167
        %v8169 = vand.u32 2147483647, %v8014
        %vm8170 = vcmp.le.f32.partialorder %v8169, 0.7853982
        %vm8171 = vcmp.lt.s32.totalorder %v8014, 0
        %v8172 = vand.u32 %v8014, 2139095040
        %v8173 = vshrl.u32 %v8172, 23
        %v8174 = vsub.s32 %v8173, 127
        %v8175 = vand.u32 2147483647, %v8014
        %v8176 = vand.u32 %v8175, 8388607
        %v8177 = vor.u32 %v8176, 8388608
        %v8178 = vsub.s32 0, %v8177
        %v8179 = vadd.s32 %v8174, 1
        %vm8180 = vcmp.gt.s32.totalorder %v8179, 0
        %v8181 = vsel %vm8180, %v8179, 0
        %v8182 = vshrl.u32 %v8181, 5
        %v8183 = vand.u32 %v8181, 31
        %v8184 = vsub.s32 32, %v8183
        %v8185 = vshrl.u32 683565275, %v8184
        %v8186 = vshll.u32 683565275, %v8183
        %v8187 = vshrl.u32 2475754826, %v8184
        %v8188 = vor.u32 %v8186, %v8187
        %v8189 = vshll.u32 2475754826, %v8183
        %v8190 = vshrl.u32 2131351028, %v8184
        %v8191 = vor.u32 %v8189, %v8190
        %v8192 = vshll.u32 2131351028, %v8183
        %v8193 = vshrl.u32 2102212464, %v8184
        %v8194 = vor.u32 %v8192, %v8193
        %v8195 = vshll.u32 2102212464, %v8183
        %v8196 = vshrl.u32 920167782, %v8184
        %v8197 = vor.u32 %v8195, %v8196
        %v8198 = vshll.u32 920167782, %v8183
        %v8199 = vshrl.u32 1326507024, %v8184
        %v8200 = vor.u32 %v8198, %v8199
        %vm8201 = vcmp.lt.s32.totalorder %v8182, 1
        %vm8202 = vcmp.lt.s32.totalorder %v8182, 2
        %vm8203 = vcmp.lt.s32.totalorder %v8182, 3
        %vm8204 = vcmp.lt.s32.totalorder %v8182, 4
        %v8205 = vsel %vm8201, %v8185, %v8188
        %v8206 = vsel %vm8204, %v8194, 2102212464
        %v8207 = vsel %vm8203, %v8191, %v8206
        %v8208 = vsel %vm8202, %v8205, %v8207
        %v8209 = vsel %vm8201, %v8188, %v8191
        %v8210 = vsel %vm8204, %v8197, 920167782
        %v8211 = vsel %vm8203, %v8194, %v8210
        %v8212 = vsel %vm8202, %v8209, %v8211
        %v8213 = vsel %vm8201, %v8191, %v8194
        %v8214 = vsel %vm8204, %v8200, 1326507024
        %v8215 = vsel %vm8203, %v8197, %v8214
        %v8216 = vsel %vm8202, %v8213, %v8215
        %v8217 = vshll.u32 %v8177, 8
        %v8218 = vand.u32 %v8217, 65535
        %v8219 = vshrl.u32 %v8217, 16
        %v8220 = vand.u32 %v8216, 65535
        %v8221 = vshrl.u32 %v8216, 16
        %v8222 = vmul.u32 %v8218, %v8220
        %v8223 = vmul.u32 %v8218, %v8221
        %v8224 = vmul.u32 %v8219, %v8220
        %v8225 = vmul.u32 %v8219, %v8221
        %v8226 = vshll.u32 %v8223, 16
        %v8227 = vshrl.u32 %v8223, 16
        %v8228 = vshll.u32 %v8224, 16
        %v8229 = vshrl.u32 %v8224, 16
        %vm8230 = vc.u32 %v8222, %v8226
        %v8231 = vsel %vm8230, 1, 0
        %v8232 = vadd.s32 %v8222, %v8226
        %v8233 = vadd.s32 %v8225, %v8231
        %vm8234 = vc.u32 %v8232, %v8228
        %v8235 = vsel %vm8234, 1, 0
        %v8236 = vadd.s32 %v8232, %v8228
        %v8237 = vadd.s32 %v8233, %v8235
        %v8238 = vadd.s32 %v8237, %v8227
        %v8239 = vadd.s32 %v8238, %v8229
        %v8240 = vand.u32 %v8217, 65535
        %v8241 = vshrl.u32 %v8217, 16
        %v8242 = vand.u32 %v8212, 65535
        %v8243 = vshrl.u32 %v8212, 16
        %v8244 = vmul.u32 %v8240, %v8242
        %v8245 = vmul.u32 %v8240, %v8243
        %v8246 = vmul.u32 %v8241, %v8242
        %v8247 = vmul.u32 %v8241, %v8243
        %v8248 = vshll.u32 %v8245, 16
        %v8249 = vshrl.u32 %v8245, 16
        %v8250 = vshll.u32 %v8246, 16
        %v8251 = vshrl.u32 %v8246, 16
        %vm8252 = vc.u32 %v8244, %v8248
        %v8253 = vsel %vm8252, 1, 0
        %v8254 = vadd.s32 %v8244, %v8248
        %v8255 = vadd.s32 %v8247, %v8253
        %vm8256 = vc.u32 %v8254, %v8250
        %v8257 = vsel %vm8256, 1, 0
        %v8258 = vadd.s32 %v8254, %v8250
        %v8259 = vadd.s32 %v8255, %v8257
        %v8260 = vadd.s32 %v8259, %v8249
        %v8261 = vadd.s32 %v8260, %v8251
        %v8262 = vmul.u32 %v8217, %v8208
        %v8263 = vadd.s32 %v8239, %v8258
        %vm8264 = vc.u32 %v8239, %v8258
        %v8265 = vadd.s32 %v8261, 1
        %v8266 = vsel %vm8264, %v8265, %v8261
        %v8267 = vadd.s32 %v8262, %v8266
        %v8268 = vadd.s32 %v8267, 536870912
        %v8269 = vshrl.u32 %v8268, 30
        %v8270 = vshll.u32 %v8269, 30
        %v8271 = vsub.s32 %v8267, %v8270
        %vm8272 = vcmp.lt.s32.totalorder %v8271, 0
        %v8273 = vsub.s32 0, %v8271
        %v8274 = vsel %vm8272, %v8273, %v8271
        %v8275 = vclz %v8274
        %v8276 = vsub.s32 %v8275, 2
        %vm8277 = vcmp.gt.s32.totalorder 0, %v8276
        %v8278 = vsel %vm8277, 0, %v8276
        %v8279 = vsub.s32 32, %v8278
        %v8280 = vshll.u32 %v8271, %v8278
        %v8281 = vshrl.u32 %v8263, %v8279
        %v8282 = vor.u32 %v8280, %v8281
        %v8283 = vsub.s32 4294967266, %v8278
        %v8284 = vadd.s32 %v8283, 127
        %v8285 = vshll.u32 %v8284, 23
        %v8286 = vor.u32 4788187, %v8285
        %v8287 = vand.u32 2147483647, %v8286
        %v8289 = vcvt.s32.f32 %v8282
        %v8290 = vmul.f32 %v8289, %v8287
        %v8291 = vxor.u32 %v8290, 2147483648
        %v8292 = vsel %vm8171, %v8291, %v8290
        %v8293 = vsub.s32 4, %v8269
        %v8294 = vsel %vm8171, %v8293, %v8269
        %v8295 = vsel %vm8170, %v8014, %v8292
        %v8296 = vsel %vm8170, 0, %v8294
        %v8297 = vmul.f32 %v8295, %v8295
        %v8298 = vmul.f32 %v8297, -0.001358992
        %v8299 = vadd.f32 %v8298, 0.041655596
        %v8300 = vmul.f32 %v8297, %v8299
        %v8301 = vadd.f32 %v8300, -0.4999988
        %v8302 = vmul.f32 %v8297, %v8301
        %v8303 = vadd.f32 1.0, %v8302
        %v8304 = vmul.f32 %v8295, %v8295
        %v8305 = vmul.f32 %v8304, -0.00019511016
        %v8306 = vadd.f32 %v8305, 0.008332121
        %v8307 = vmul.f32 %v8304, %v8306
        %v8308 = vadd.f32 %v8307, -0.16666654
        %v8309 = vmul.f32 %v8304, %v8308
        %v8310 = vadd.f32 %v8309, 1.0
        %v8311 = vmul.f32 %v8310, %v8295
        %vm8312 = vweird.f32 %v8014
        %v8313 = vand.u32 %v8296, 3
        %vm8314 = vcmp.lt.s32.totalorder %v8313, 2
        %vm8315 = vcmp.eq.s32.totalorder %v8313, 0
        %v8316 = vxor.u32 %v8311, 2147483648
        %v8317 = vsel %vm8315, %v8303, %v8316
        %vm8318 = vcmp.eq.s32.totalorder %v8313, 2
        %v8319 = vxor.u32 %v8303, 2147483648
        %v8320 = vsel %vm8318, %v8319, %v8311
        %v8321 = vsel %vm8314, %v8317, %v8320
        %v8322 = vsel %vm8312, nan, %v8321
        %8323 = vst [vmem:[#allocation2 + $0x200] sm:$0xff] %v8168
        %8324 = vst [vmem:[#allocation2 + $0x208] sm:$0xff] %v8322
        %v8325 = vand.u32 2147483647, %v8013
        %vm8326 = vcmp.le.f32.partialorder %v8325, 0.7853982
        %vm8327 = vcmp.lt.s32.totalorder %v8013, 0
        %v8328 = vand.u32 %v8013, 2139095040
        %v8329 = vshrl.u32 %v8328, 23
        %v8330 = vsub.s32 %v8329, 127
        %v8331 = vand.u32 2147483647, %v8013
        %v8332 = vand.u32 %v8331, 8388607
        %v8333 = vor.u32 %v8332, 8388608
        %v8334 = vsub.s32 0, %v8333
        %v8335 = vadd.s32 %v8330, 1
        %vm8336 = vcmp.gt.s32.totalorder %v8335, 0
        %v8337 = vsel %vm8336, %v8335, 0
        %v8338 = vshrl.u32 %v8337, 5
        %v8339 = vand.u32 %v8337, 31
        %v8340 = vsub.s32 32, %v8339
        %v8341 = vshrl.u32 683565275, %v8340
        %v8342 = vshll.u32 683565275, %v8339
        %v8343 = vshrl.u32 2475754826, %v8340
        %v8344 = vor.u32 %v8342, %v8343
        %v8345 = vshll.u32 2475754826, %v8339
        %v8346 = vshrl.u32 2131351028, %v8340
        %v8347 = vor.u32 %v8345, %v8346
        %v8348 = vshll.u32 2131351028, %v8339
        %v8349 = vshrl.u32 2102212464, %v8340
        %v8350 = vor.u32 %v8348, %v8349
        %v8351 = vshll.u32 2102212464, %v8339
        %v8352 = vshrl.u32 920167782, %v8340
        %v8353 = vor.u32 %v8351, %v8352
        %v8354 = vshll.u32 920167782, %v8339
        %v8355 = vshrl.u32 1326507024, %v8340
        %v8356 = vor.u32 %v8354, %v8355
        %vm8357 = vcmp.lt.s32.totalorder %v8338, 1
        %vm8358 = vcmp.lt.s32.totalorder %v8338, 2
        %vm8359 = vcmp.lt.s32.totalorder %v8338, 3
        %vm8360 = vcmp.lt.s32.totalorder %v8338, 4
        %v8361 = vsel %vm8357, %v8341, %v8344
        %v8362 = vsel %vm8360, %v8350, 2102212464
        %v8363 = vsel %vm8359, %v8347, %v8362
        %v8364 = vsel %vm8358, %v8361, %v8363
        %v8365 = vsel %vm8357, %v8344, %v8347
        %v8366 = vsel %vm8360, %v8353, 920167782
        %v8367 = vsel %vm8359, %v8350, %v8366
        %v8368 = vsel %vm8358, %v8365, %v8367
        %v8369 = vsel %vm8357, %v8347, %v8350
        %v8370 = vsel %vm8360, %v8356, 1326507024
        %v8371 = vsel %vm8359, %v8353, %v8370
        %v8372 = vsel %vm8358, %v8369, %v8371
        %v8373 = vshll.u32 %v8333, 8
        %v8374 = vand.u32 %v8373, 65535
        %v8375 = vshrl.u32 %v8373, 16
        %v8376 = vand.u32 %v8372, 65535
        %v8377 = vshrl.u32 %v8372, 16
        %v8378 = vmul.u32 %v8374, %v8376
        %v8379 = vmul.u32 %v8374, %v8377
        %v8380 = vmul.u32 %v8375, %v8376
        %v8381 = vmul.u32 %v8375, %v8377
        %v8382 = vshll.u32 %v8379, 16
        %v8383 = vshrl.u32 %v8379, 16
        %v8384 = vshll.u32 %v8380, 16
        %v8385 = vshrl.u32 %v8380, 16
        %vm8386 = vc.u32 %v8378, %v8382
        %v8387 = vsel %vm8386, 1, 0
        %v8388 = vadd.s32 %v8378, %v8382
        %v8389 = vadd.s32 %v8381, %v8387
        %vm8390 = vc.u32 %v8388, %v8384
        %v8391 = vsel %vm8390, 1, 0
        %v8392 = vadd.s32 %v8388, %v8384
        %v8393 = vadd.s32 %v8389, %v8391
        %v8394 = vadd.s32 %v8393, %v8383
        %v8395 = vadd.s32 %v8394, %v8385
        %v8396 = vand.u32 %v8373, 65535
        %v8397 = vshrl.u32 %v8373, 16
        %v8398 = vand.u32 %v8368, 65535
        %v8399 = vshrl.u32 %v8368, 16
        %v8400 = vmul.u32 %v8396, %v8398
        %v8401 = vmul.u32 %v8396, %v8399
        %v8402 = vmul.u32 %v8397, %v8398
        %v8403 = vmul.u32 %v8397, %v8399
        %v8404 = vshll.u32 %v8401, 16
        %v8405 = vshrl.u32 %v8401, 16
        %v8406 = vshll.u32 %v8402, 16
        %v8407 = vshrl.u32 %v8402, 16
        %vm8408 = vc.u32 %v8400, %v8404
        %v8409 = vsel %vm8408, 1, 0
        %v8410 = vadd.s32 %v8400, %v8404
        %v8411 = vadd.s32 %v8403, %v8409
        %vm8412 = vc.u32 %v8410, %v8406
        %v8413 = vsel %vm8412, 1, 0
        %v8414 = vadd.s32 %v8410, %v8406
        %v8415 = vadd.s32 %v8411, %v8413
        %v8416 = vadd.s32 %v8415, %v8405
        %v8417 = vadd.s32 %v8416, %v8407
        %v8418 = vmul.u32 %v8373, %v8364
        %v8419 = vadd.s32 %v8395, %v8414
        %vm8420 = vc.u32 %v8395, %v8414
        %v8421 = vadd.s32 %v8417, 1
        %v8422 = vsel %vm8420, %v8421, %v8417
        %v8423 = vadd.s32 %v8418, %v8422
        %v8424 = vadd.s32 %v8423, 536870912
        %v8425 = vshrl.u32 %v8424, 30
        %v8426 = vshll.u32 %v8425, 30
        %v8427 = vsub.s32 %v8423, %v8426
        %vm8428 = vcmp.lt.s32.totalorder %v8427, 0
        %v8429 = vsub.s32 0, %v8427
        %v8430 = vsel %vm8428, %v8429, %v8427
        %v8431 = vclz %v8430
        %v8432 = vsub.s32 %v8431, 2
        %vm8433 = vcmp.gt.s32.totalorder 0, %v8432
        %v8434 = vsel %vm8433, 0, %v8432
        %v8435 = vsub.s32 32, %v8434
        %v8436 = vshll.u32 %v8427, %v8434
        %v8437 = vshrl.u32 %v8419, %v8435
        %v8438 = vor.u32 %v8436, %v8437
        %v8439 = vsub.s32 4294967266, %v8434
        %v8440 = vadd.s32 %v8439, 127
        %v8441 = vshll.u32 %v8440, 23
        %v8442 = vor.u32 4788187, %v8441
        %v8443 = vand.u32 2147483647, %v8442
        %v8445 = vcvt.s32.f32 %v8438
        %v8446 = vmul.f32 %v8445, %v8443
        %v8447 = vxor.u32 %v8446, 2147483648
        %v8448 = vsel %vm8327, %v8447, %v8446
        %v8449 = vsub.s32 4, %v8425
        %v8450 = vsel %vm8327, %v8449, %v8425
        %v8451 = vsel %vm8326, %v8013, %v8448
        %v8452 = vsel %vm8326, 0, %v8450
        %v8453 = vmul.f32 %v8451, %v8451
        %v8454 = vmul.f32 %v8453, -0.001358992
        %v8455 = vadd.f32 %v8454, 0.041655596
        %v8456 = vmul.f32 %v8453, %v8455
        %v8457 = vadd.f32 %v8456, -0.4999988
        %v8458 = vmul.f32 %v8453, %v8457
        %v8459 = vadd.f32 1.0, %v8458
        %v8460 = vmul.f32 %v8451, %v8451
        %v8461 = vmul.f32 %v8460, -0.00019511016
        %v8462 = vadd.f32 %v8461, 0.008332121
        %v8463 = vmul.f32 %v8460, %v8462
        %v8464 = vadd.f32 %v8463, -0.16666654
        %v8465 = vmul.f32 %v8460, %v8464
        %v8466 = vadd.f32 %v8465, 1.0
        %v8467 = vmul.f32 %v8466, %v8451
        %vm8468 = vweird.f32 %v8013
        %v8469 = vadd.s32 %v8452, 3
        %v8470 = vand.u32 %v8469, 3
        %vm8471 = vcmp.lt.s32.totalorder %v8470, 2
        %vm8472 = vcmp.eq.s32.totalorder %v8470, 0
        %v8473 = vxor.u32 %v8467, 2147483648
        %v8474 = vsel %vm8472, %v8459, %v8473
        %vm8475 = vcmp.eq.s32.totalorder %v8470, 2
        %v8476 = vxor.u32 %v8459, 2147483648
        %v8477 = vsel %vm8475, %v8476, %v8467
        %v8478 = vsel %vm8471, %v8474, %v8477
        %v8479 = vsel %vm8468, nan, %v8478
        %v8480 = vand.u32 2147483647, %v8014
        %vm8481 = vcmp.le.f32.partialorder %v8480, 0.7853982
        %vm8482 = vcmp.lt.s32.totalorder %v8014, 0
        %v8483 = vand.u32 %v8014, 2139095040
        %v8484 = vshrl.u32 %v8483, 23
        %v8485 = vsub.s32 %v8484, 127
        %v8486 = vand.u32 2147483647, %v8014
        %v8487 = vand.u32 %v8486, 8388607
        %v8488 = vor.u32 %v8487, 8388608
        %v8489 = vsub.s32 0, %v8488
        %v8490 = vadd.s32 %v8485, 1
        %vm8491 = vcmp.gt.s32.totalorder %v8490, 0
        %v8492 = vsel %vm8491, %v8490, 0
        %v8493 = vshrl.u32 %v8492, 5
        %v8494 = vand.u32 %v8492, 31
        %v8495 = vsub.s32 32, %v8494
        %v8496 = vshrl.u32 683565275, %v8495
        %v8497 = vshll.u32 683565275, %v8494
        %v8498 = vshrl.u32 2475754826, %v8495
        %v8499 = vor.u32 %v8497, %v8498
        %v8500 = vshll.u32 2475754826, %v8494
        %v8501 = vshrl.u32 2131351028, %v8495
        %v8502 = vor.u32 %v8500, %v8501
        %v8503 = vshll.u32 2131351028, %v8494
        %v8504 = vshrl.u32 2102212464, %v8495
        %v8505 = vor.u32 %v8503, %v8504
        %v8506 = vshll.u32 2102212464, %v8494
        %v8507 = vshrl.u32 920167782, %v8495
        %v8508 = vor.u32 %v8506, %v8507
        %v8509 = vshll.u32 920167782, %v8494
        %v8510 = vshrl.u32 1326507024, %v8495
        %v8511 = vor.u32 %v8509, %v8510
        %vm8512 = vcmp.lt.s32.totalorder %v8493, 1
        %vm8513 = vcmp.lt.s32.totalorder %v8493, 2
        %vm8514 = vcmp.lt.s32.totalorder %v8493, 3
        %vm8515 = vcmp.lt.s32.totalorder %v8493, 4
        %v8516 = vsel %vm8512, %v8496, %v8499
        %v8517 = vsel %vm8515, %v8505, 2102212464
        %v8518 = vsel %vm8514, %v8502, %v8517
        %v8519 = vsel %vm8513, %v8516, %v8518
        %v8520 = vsel %vm8512, %v8499, %v8502
        %v8521 = vsel %vm8515, %v8508, 920167782
        %v8522 = vsel %vm8514, %v8505, %v8521
        %v8523 = vsel %vm8513, %v8520, %v8522
        %v8524 = vsel %vm8512, %v8502, %v8505
        %v8525 = vsel %vm8515, %v8511, 1326507024
        %v8526 = vsel %vm8514, %v8508, %v8525
        %v8527 = vsel %vm8513, %v8524, %v8526
        %v8528 = vshll.u32 %v8488, 8
        %v8529 = vand.u32 %v8528, 65535
        %v8530 = vshrl.u32 %v8528, 16
        %v8531 = vand.u32 %v8527, 65535
        %v8532 = vshrl.u32 %v8527, 16
        %v8533 = vmul.u32 %v8529, %v8531
        %v8534 = vmul.u32 %v8529, %v8532
        %v8535 = vmul.u32 %v8530, %v8531
        %v8536 = vmul.u32 %v8530, %v8532
        %v8537 = vshll.u32 %v8534, 16
        %v8538 = vshrl.u32 %v8534, 16
        %v8539 = vshll.u32 %v8535, 16
        %v8540 = vshrl.u32 %v8535, 16
        %vm8541 = vc.u32 %v8533, %v8537
        %v8542 = vsel %vm8541, 1, 0
        %v8543 = vadd.s32 %v8533, %v8537
        %v8544 = vadd.s32 %v8536, %v8542
        %vm8545 = vc.u32 %v8543, %v8539
        %v8546 = vsel %vm8545, 1, 0
        %v8547 = vadd.s32 %v8543, %v8539
        %v8548 = vadd.s32 %v8544, %v8546
        %v8549 = vadd.s32 %v8548, %v8538
        %v8550 = vadd.s32 %v8549, %v8540
        %v8551 = vand.u32 %v8528, 65535
        %v8552 = vshrl.u32 %v8528, 16
        %v8553 = vand.u32 %v8523, 65535
        %v8554 = vshrl.u32 %v8523, 16
        %v8555 = vmul.u32 %v8551, %v8553
        %v8556 = vmul.u32 %v8551, %v8554
        %v8557 = vmul.u32 %v8552, %v8553
        %v8558 = vmul.u32 %v8552, %v8554
        %v8559 = vshll.u32 %v8556, 16
        %v8560 = vshrl.u32 %v8556, 16
        %v8561 = vshll.u32 %v8557, 16
        %v8562 = vshrl.u32 %v8557, 16
        %vm8563 = vc.u32 %v8555, %v8559
        %v8564 = vsel %vm8563, 1, 0
        %v8565 = vadd.s32 %v8555, %v8559
        %v8566 = vadd.s32 %v8558, %v8564
        %vm8567 = vc.u32 %v8565, %v8561
        %v8568 = vsel %vm8567, 1, 0
        %v8569 = vadd.s32 %v8565, %v8561
        %v8570 = vadd.s32 %v8566, %v8568
        %v8571 = vadd.s32 %v8570, %v8560
        %v8572 = vadd.s32 %v8571, %v8562
        %v8573 = vmul.u32 %v8528, %v8519
        %v8574 = vadd.s32 %v8550, %v8569
        %vm8575 = vc.u32 %v8550, %v8569
        %v8576 = vadd.s32 %v8572, 1
        %v8577 = vsel %vm8575, %v8576, %v8572
        %v8578 = vadd.s32 %v8573, %v8577
        %v8579 = vadd.s32 %v8578, 536870912
        %v8580 = vshrl.u32 %v8579, 30
        %v8581 = vshll.u32 %v8580, 30
        %v8582 = vsub.s32 %v8578, %v8581
        %vm8583 = vcmp.lt.s32.totalorder %v8582, 0
        %v8584 = vsub.s32 0, %v8582
        %v8585 = vsel %vm8583, %v8584, %v8582
        %v8586 = vclz %v8585
        %v8587 = vsub.s32 %v8586, 2
        %vm8588 = vcmp.gt.s32.totalorder 0, %v8587
        %v8589 = vsel %vm8588, 0, %v8587
        %v8590 = vsub.s32 32, %v8589
        %v8591 = vshll.u32 %v8582, %v8589
        %v8592 = vshrl.u32 %v8574, %v8590
        %v8593 = vor.u32 %v8591, %v8592
        %v8594 = vsub.s32 4294967266, %v8589
        %v8595 = vadd.s32 %v8594, 127
        %v8596 = vshll.u32 %v8595, 23
        %v8597 = vor.u32 4788187, %v8596
        %v8598 = vand.u32 2147483647, %v8597
        %v8600 = vcvt.s32.f32 %v8593
        %v8601 = vmul.f32 %v8600, %v8598
        %v8602 = vxor.u32 %v8601, 2147483648
        %v8603 = vsel %vm8482, %v8602, %v8601
        %v8604 = vsub.s32 4, %v8580
        %v8605 = vsel %vm8482, %v8604, %v8580
        %v8606 = vsel %vm8481, %v8014, %v8603
        %v8607 = vsel %vm8481, 0, %v8605
        %v8608 = vmul.f32 %v8606, %v8606
        %v8609 = vmul.f32 %v8608, -0.001358992
        %v8610 = vadd.f32 %v8609, 0.041655596
        %v8611 = vmul.f32 %v8608, %v8610
        %v8612 = vadd.f32 %v8611, -0.4999988
        %v8613 = vmul.f32 %v8608, %v8612
        %v8614 = vadd.f32 1.0, %v8613
        %v8615 = vmul.f32 %v8606, %v8606
        %v8616 = vmul.f32 %v8615, -0.00019511016
        %v8617 = vadd.f32 %v8616, 0.008332121
        %v8618 = vmul.f32 %v8615, %v8617
        %v8619 = vadd.f32 %v8618, -0.16666654
        %v8620 = vmul.f32 %v8615, %v8619
        %v8621 = vadd.f32 %v8620, 1.0
        %v8622 = vmul.f32 %v8621, %v8606
        %vm8623 = vweird.f32 %v8014
        %v8624 = vadd.s32 %v8607, 3
        %v8625 = vand.u32 %v8624, 3
        %vm8626 = vcmp.lt.s32.totalorder %v8625, 2
        %vm8627 = vcmp.eq.s32.totalorder %v8625, 0
        %v8628 = vxor.u32 %v8622, 2147483648
        %v8629 = vsel %vm8627, %v8614, %v8628
        %vm8630 = vcmp.eq.s32.totalorder %v8625, 2
        %v8631 = vxor.u32 %v8614, 2147483648
        %v8632 = vsel %vm8630, %v8631, %v8622
        %v8633 = vsel %vm8626, %v8629, %v8632
        %v8634 = vsel %vm8623, nan, %v8633
        %8635 = vst [vmem:[#allocation2 + $0x210] sm:$0xff] %v8479
        %8636 = vst [vmem:[#allocation2 + $0x218] sm:$0xff] %v8634
        %8638 = vset.pattern.permute.xlu0 0
        %8639 = vperm.xlu0 %8638, %v6037
        %v8640 = vpop.permute.xlu0 %8639
        %8643 = vset.pattern.permute.xlu0 0
        %8644 = vperm.xlu0 %8643, %v6038
        %v8645 = vpop.permute.xlu0 %8644
        %v8647 = vmul.f32 %v8640, %v462
        %v8648 = vmul.f32 %v8645, %v462
        %8650 = vset.pattern.permute.xlu0 0
        %8651 = vperm.xlu0 %8650, %v6049
        %v8652 = vpop.permute.xlu0 %8651
        %8655 = vset.pattern.permute.xlu0 0
        %8656 = vperm.xlu0 %8655, %v6050
        %v8657 = vpop.permute.xlu0 %8656
        %v8659 = vadd.f32 %v8647, %v8652
        %v8660 = vadd.f32 %v8648, %v8657
        %v8661 = vand.u32 2147483647, %v8659
        %vm8662 = vcmp.le.f32.partialorder %v8661, 0.7853982
        %vm8663 = vcmp.lt.s32.totalorder %v8659, 0
        %v8664 = vand.u32 %v8659, 2139095040
        %v8665 = vshrl.u32 %v8664, 23
        %v8666 = vsub.s32 %v8665, 127
        %v8667 = vand.u32 2147483647, %v8659
        %v8668 = vand.u32 %v8667, 8388607
        %v8669 = vor.u32 %v8668, 8388608
        %v8670 = vsub.s32 0, %v8669
        %v8671 = vadd.s32 %v8666, 1
        %vm8672 = vcmp.gt.s32.totalorder %v8671, 0
        %v8673 = vsel %vm8672, %v8671, 0
        %v8674 = vshrl.u32 %v8673, 5
        %v8675 = vand.u32 %v8673, 31
        %v8676 = vsub.s32 32, %v8675
        %v8677 = vshrl.u32 683565275, %v8676
        %v8678 = vshll.u32 683565275, %v8675
        %v8679 = vshrl.u32 2475754826, %v8676
        %v8680 = vor.u32 %v8678, %v8679
        %v8681 = vshll.u32 2475754826, %v8675
        %v8682 = vshrl.u32 2131351028, %v8676
        %v8683 = vor.u32 %v8681, %v8682
        %v8684 = vshll.u32 2131351028, %v8675
        %v8685 = vshrl.u32 2102212464, %v8676
        %v8686 = vor.u32 %v8684, %v8685
        %v8687 = vshll.u32 2102212464, %v8675
        %v8688 = vshrl.u32 920167782, %v8676
        %v8689 = vor.u32 %v8687, %v8688
        %v8690 = vshll.u32 920167782, %v8675
        %v8691 = vshrl.u32 1326507024, %v8676
        %v8692 = vor.u32 %v8690, %v8691
        %vm8693 = vcmp.lt.s32.totalorder %v8674, 1
        %vm8694 = vcmp.lt.s32.totalorder %v8674, 2
        %vm8695 = vcmp.lt.s32.totalorder %v8674, 3
        %vm8696 = vcmp.lt.s32.totalorder %v8674, 4
        %v8697 = vsel %vm8693, %v8677, %v8680
        %v8698 = vsel %vm8696, %v8686, 2102212464
        %v8699 = vsel %vm8695, %v8683, %v8698
        %v8700 = vsel %vm8694, %v8697, %v8699
        %v8701 = vsel %vm8693, %v8680, %v8683
        %v8702 = vsel %vm8696, %v8689, 920167782
        %v8703 = vsel %vm8695, %v8686, %v8702
        %v8704 = vsel %vm8694, %v8701, %v8703
        %v8705 = vsel %vm8693, %v8683, %v8686
        %v8706 = vsel %vm8696, %v8692, 1326507024
        %v8707 = vsel %vm8695, %v8689, %v8706
        %v8708 = vsel %vm8694, %v8705, %v8707
        %v8709 = vshll.u32 %v8669, 8
        %v8710 = vand.u32 %v8709, 65535
        %v8711 = vshrl.u32 %v8709, 16
        %v8712 = vand.u32 %v8708, 65535
        %v8713 = vshrl.u32 %v8708, 16
        %v8714 = vmul.u32 %v8710, %v8712
        %v8715 = vmul.u32 %v8710, %v8713
        %v8716 = vmul.u32 %v8711, %v8712
        %v8717 = vmul.u32 %v8711, %v8713
        %v8718 = vshll.u32 %v8715, 16
        %v8719 = vshrl.u32 %v8715, 16
        %v8720 = vshll.u32 %v8716, 16
        %v8721 = vshrl.u32 %v8716, 16
        %vm8722 = vc.u32 %v8714, %v8718
        %v8723 = vsel %vm8722, 1, 0
        %v8724 = vadd.s32 %v8714, %v8718
        %v8725 = vadd.s32 %v8717, %v8723
        %vm8726 = vc.u32 %v8724, %v8720
        %v8727 = vsel %vm8726, 1, 0
        %v8728 = vadd.s32 %v8724, %v8720
        %v8729 = vadd.s32 %v8725, %v8727
        %v8730 = vadd.s32 %v8729, %v8719
        %v8731 = vadd.s32 %v8730, %v8721
        %v8732 = vand.u32 %v8709, 65535
        %v8733 = vshrl.u32 %v8709, 16
        %v8734 = vand.u32 %v8704, 65535
        %v8735 = vshrl.u32 %v8704, 16
        %v8736 = vmul.u32 %v8732, %v8734
        %v8737 = vmul.u32 %v8732, %v8735
        %v8738 = vmul.u32 %v8733, %v8734
        %v8739 = vmul.u32 %v8733, %v8735
        %v8740 = vshll.u32 %v8737, 16
        %v8741 = vshrl.u32 %v8737, 16
        %v8742 = vshll.u32 %v8738, 16
        %v8743 = vshrl.u32 %v8738, 16
        %vm8744 = vc.u32 %v8736, %v8740
        %v8745 = vsel %vm8744, 1, 0
        %v8746 = vadd.s32 %v8736, %v8740
        %v8747 = vadd.s32 %v8739, %v8745
        %vm8748 = vc.u32 %v8746, %v8742
        %v8749 = vsel %vm8748, 1, 0
        %v8750 = vadd.s32 %v8746, %v8742
        %v8751 = vadd.s32 %v8747, %v8749
        %v8752 = vadd.s32 %v8751, %v8741
        %v8753 = vadd.s32 %v8752, %v8743
        %v8754 = vmul.u32 %v8709, %v8700
        %v8755 = vadd.s32 %v8731, %v8750
        %vm8756 = vc.u32 %v8731, %v8750
        %v8757 = vadd.s32 %v8753, 1
        %v8758 = vsel %vm8756, %v8757, %v8753
        %v8759 = vadd.s32 %v8754, %v8758
        %v8760 = vadd.s32 %v8759, 536870912
        %v8761 = vshrl.u32 %v8760, 30
        %v8762 = vshll.u32 %v8761, 30
        %v8763 = vsub.s32 %v8759, %v8762
        %vm8764 = vcmp.lt.s32.totalorder %v8763, 0
        %v8765 = vsub.s32 0, %v8763
        %v8766 = vsel %vm8764, %v8765, %v8763
        %v8767 = vclz %v8766
        %v8768 = vsub.s32 %v8767, 2
        %vm8769 = vcmp.gt.s32.totalorder 0, %v8768
        %v8770 = vsel %vm8769, 0, %v8768
        %v8771 = vsub.s32 32, %v8770
        %v8772 = vshll.u32 %v8763, %v8770
        %v8773 = vshrl.u32 %v8755, %v8771
        %v8774 = vor.u32 %v8772, %v8773
        %v8775 = vsub.s32 4294967266, %v8770
        %v8776 = vadd.s32 %v8775, 127
        %v8777 = vshll.u32 %v8776, 23
        %v8778 = vor.u32 4788187, %v8777
        %v8779 = vand.u32 2147483647, %v8778
        %v8781 = vcvt.s32.f32 %v8774
        %v8782 = vmul.f32 %v8781, %v8779
        %v8783 = vxor.u32 %v8782, 2147483648
        %v8784 = vsel %vm8663, %v8783, %v8782
        %v8785 = vsub.s32 4, %v8761
        %v8786 = vsel %vm8663, %v8785, %v8761
        %v8787 = vsel %vm8662, %v8659, %v8784
        %v8788 = vsel %vm8662, 0, %v8786
        %v8789 = vmul.f32 %v8787, %v8787
        %v8790 = vmul.f32 %v8789, -0.001358992
        %v8791 = vadd.f32 %v8790, 0.041655596
        %v8792 = vmul.f32 %v8789, %v8791
        %v8793 = vadd.f32 %v8792, -0.4999988
        %v8794 = vmul.f32 %v8789, %v8793
        %v8795 = vadd.f32 1.0, %v8794
        %v8796 = vmul.f32 %v8787, %v8787
        %v8797 = vmul.f32 %v8796, -0.00019511016
        %v8798 = vadd.f32 %v8797, 0.008332121
        %v8799 = vmul.f32 %v8796, %v8798
        %v8800 = vadd.f32 %v8799, -0.16666654
        %v8801 = vmul.f32 %v8796, %v8800
        %v8802 = vadd.f32 %v8801, 1.0
        %v8803 = vmul.f32 %v8802, %v8787
        %vm8804 = vweird.f32 %v8659
        %v8805 = vand.u32 %v8788, 3
        %vm8806 = vcmp.lt.s32.totalorder %v8805, 2
        %vm8807 = vcmp.eq.s32.totalorder %v8805, 0
        %v8808 = vxor.u32 %v8803, 2147483648
        %v8809 = vsel %vm8807, %v8795, %v8808
        %vm8810 = vcmp.eq.s32.totalorder %v8805, 2
        %v8811 = vxor.u32 %v8795, 2147483648
        %v8812 = vsel %vm8810, %v8811, %v8803
        %v8813 = vsel %vm8806, %v8809, %v8812
        %v8814 = vsel %vm8804, nan, %v8813
        %v8815 = vand.u32 2147483647, %v8660
        %vm8816 = vcmp.le.f32.partialorder %v8815, 0.7853982
        %vm8817 = vcmp.lt.s32.totalorder %v8660, 0
        %v8818 = vand.u32 %v8660, 2139095040
        %v8819 = vshrl.u32 %v8818, 23
        %v8820 = vsub.s32 %v8819, 127
        %v8821 = vand.u32 2147483647, %v8660
        %v8822 = vand.u32 %v8821, 8388607
        %v8823 = vor.u32 %v8822, 8388608
        %v8824 = vsub.s32 0, %v8823
        %v8825 = vadd.s32 %v8820, 1
        %vm8826 = vcmp.gt.s32.totalorder %v8825, 0
        %v8827 = vsel %vm8826, %v8825, 0
        %v8828 = vshrl.u32 %v8827, 5
        %v8829 = vand.u32 %v8827, 31
        %v8830 = vsub.s32 32, %v8829
        %v8831 = vshrl.u32 683565275, %v8830
        %v8832 = vshll.u32 683565275, %v8829
        %v8833 = vshrl.u32 2475754826, %v8830
        %v8834 = vor.u32 %v8832, %v8833
        %v8835 = vshll.u32 2475754826, %v8829
        %v8836 = vshrl.u32 2131351028, %v8830
        %v8837 = vor.u32 %v8835, %v8836
        %v8838 = vshll.u32 2131351028, %v8829
        %v8839 = vshrl.u32 2102212464, %v8830
        %v8840 = vor.u32 %v8838, %v8839
        %v8841 = vshll.u32 2102212464, %v8829
        %v8842 = vshrl.u32 920167782, %v8830
        %v8843 = vor.u32 %v8841, %v8842
        %v8844 = vshll.u32 920167782, %v8829
        %v8845 = vshrl.u32 1326507024, %v8830
        %v8846 = vor.u32 %v8844, %v8845
        %vm8847 = vcmp.lt.s32.totalorder %v8828, 1
        %vm8848 = vcmp.lt.s32.totalorder %v8828, 2
        %vm8849 = vcmp.lt.s32.totalorder %v8828, 3
        %vm8850 = vcmp.lt.s32.totalorder %v8828, 4
        %v8851 = vsel %vm8847, %v8831, %v8834
        %v8852 = vsel %vm8850, %v8840, 2102212464
        %v8853 = vsel %vm8849, %v8837, %v8852
        %v8854 = vsel %vm8848, %v8851, %v8853
        %v8855 = vsel %vm8847, %v8834, %v8837
        %v8856 = vsel %vm8850, %v8843, 920167782
        %v8857 = vsel %vm8849, %v8840, %v8856
        %v8858 = vsel %vm8848, %v8855, %v8857
        %v8859 = vsel %vm8847, %v8837, %v8840
        %v8860 = vsel %vm8850, %v8846, 1326507024
        %v8861 = vsel %vm8849, %v8843, %v8860
        %v8862 = vsel %vm8848, %v8859, %v8861
        %v8863 = vshll.u32 %v8823, 8
        %v8864 = vand.u32 %v8863, 65535
        %v8865 = vshrl.u32 %v8863, 16
        %v8866 = vand.u32 %v8862, 65535
        %v8867 = vshrl.u32 %v8862, 16
        %v8868 = vmul.u32 %v8864, %v8866
        %v8869 = vmul.u32 %v8864, %v8867
        %v8870 = vmul.u32 %v8865, %v8866
        %v8871 = vmul.u32 %v8865, %v8867
        %v8872 = vshll.u32 %v8869, 16
        %v8873 = vshrl.u32 %v8869, 16
        %v8874 = vshll.u32 %v8870, 16
        %v8875 = vshrl.u32 %v8870, 16
        %vm8876 = vc.u32 %v8868, %v8872
        %v8877 = vsel %vm8876, 1, 0
        %v8878 = vadd.s32 %v8868, %v8872
        %v8879 = vadd.s32 %v8871, %v8877
        %vm8880 = vc.u32 %v8878, %v8874
        %v8881 = vsel %vm8880, 1, 0
        %v8882 = vadd.s32 %v8878, %v8874
        %v8883 = vadd.s32 %v8879, %v8881
        %v8884 = vadd.s32 %v8883, %v8873
        %v8885 = vadd.s32 %v8884, %v8875
        %v8886 = vand.u32 %v8863, 65535
        %v8887 = vshrl.u32 %v8863, 16
        %v8888 = vand.u32 %v8858, 65535
        %v8889 = vshrl.u32 %v8858, 16
        %v8890 = vmul.u32 %v8886, %v8888
        %v8891 = vmul.u32 %v8886, %v8889
        %v8892 = vmul.u32 %v8887, %v8888
        %v8893 = vmul.u32 %v8887, %v8889
        %v8894 = vshll.u32 %v8891, 16
        %v8895 = vshrl.u32 %v8891, 16
        %v8896 = vshll.u32 %v8892, 16
        %v8897 = vshrl.u32 %v8892, 16
        %vm8898 = vc.u32 %v8890, %v8894
        %v8899 = vsel %vm8898, 1, 0
        %v8900 = vadd.s32 %v8890, %v8894
        %v8901 = vadd.s32 %v8893, %v8899
        %vm8902 = vc.u32 %v8900, %v8896
        %v8903 = vsel %vm8902, 1, 0
        %v8904 = vadd.s32 %v8900, %v8896
        %v8905 = vadd.s32 %v8901, %v8903
        %v8906 = vadd.s32 %v8905, %v8895
        %v8907 = vadd.s32 %v8906, %v8897
        %v8908 = vmul.u32 %v8863, %v8854
        %v8909 = vadd.s32 %v8885, %v8904
        %vm8910 = vc.u32 %v8885, %v8904
        %v8911 = vadd.s32 %v8907, 1
        %v8912 = vsel %vm8910, %v8911, %v8907
        %v8913 = vadd.s32 %v8908, %v8912
        %v8914 = vadd.s32 %v8913, 536870912
        %v8915 = vshrl.u32 %v8914, 30
        %v8916 = vshll.u32 %v8915, 30
        %v8917 = vsub.s32 %v8913, %v8916
        %vm8918 = vcmp.lt.s32.totalorder %v8917, 0
        %v8919 = vsub.s32 0, %v8917
        %v8920 = vsel %vm8918, %v8919, %v8917
        %v8921 = vclz %v8920
        %v8922 = vsub.s32 %v8921, 2
        %vm8923 = vcmp.gt.s32.totalorder 0, %v8922
        %v8924 = vsel %vm8923, 0, %v8922
        %v8925 = vsub.s32 32, %v8924
        %v8926 = vshll.u32 %v8917, %v8924
        %v8927 = vshrl.u32 %v8909, %v8925
        %v8928 = vor.u32 %v8926, %v8927
        %v8929 = vsub.s32 4294967266, %v8924
        %v8930 = vadd.s32 %v8929, 127
        %v8931 = vshll.u32 %v8930, 23
        %v8932 = vor.u32 4788187, %v8931
        %v8933 = vand.u32 2147483647, %v8932
        %v8935 = vcvt.s32.f32 %v8928
        %v8936 = vmul.f32 %v8935, %v8933
        %v8937 = vxor.u32 %v8936, 2147483648
        %v8938 = vsel %vm8817, %v8937, %v8936
        %v8939 = vsub.s32 4, %v8915
        %v8940 = vsel %vm8817, %v8939, %v8915
        %v8941 = vsel %vm8816, %v8660, %v8938
        %v8942 = vsel %vm8816, 0, %v8940
        %v8943 = vmul.f32 %v8941, %v8941
        %v8944 = vmul.f32 %v8943, -0.001358992
        %v8945 = vadd.f32 %v8944, 0.041655596
        %v8946 = vmul.f32 %v8943, %v8945
        %v8947 = vadd.f32 %v8946, -0.4999988
        %v8948 = vmul.f32 %v8943, %v8947
        %v8949 = vadd.f32 1.0, %v8948
        %v8950 = vmul.f32 %v8941, %v8941
        %v8951 = vmul.f32 %v8950, -0.00019511016
        %v8952 = vadd.f32 %v8951, 0.008332121
        %v8953 = vmul.f32 %v8950, %v8952
        %v8954 = vadd.f32 %v8953, -0.16666654
        %v8955 = vmul.f32 %v8950, %v8954
        %v8956 = vadd.f32 %v8955, 1.0
        %v8957 = vmul.f32 %v8956, %v8941
        %vm8958 = vweird.f32 %v8660
        %v8959 = vand.u32 %v8942, 3
        %vm8960 = vcmp.lt.s32.totalorder %v8959, 2
        %vm8961 = vcmp.eq.s32.totalorder %v8959, 0
        %v8962 = vxor.u32 %v8957, 2147483648
        %v8963 = vsel %vm8961, %v8949, %v8962
        %vm8964 = vcmp.eq.s32.totalorder %v8959, 2
        %v8965 = vxor.u32 %v8949, 2147483648
        %v8966 = vsel %vm8964, %v8965, %v8957
        %v8967 = vsel %vm8960, %v8963, %v8966
        %v8968 = vsel %vm8958, nan, %v8967
        %8969 = vst [vmem:[#allocation2 + $0x220] sm:$0xff] %v8814
        %8970 = vst [vmem:[#allocation2 + $0x228] sm:$0xff] %v8968
        %v8971 = vand.u32 2147483647, %v8659
        %vm8972 = vcmp.le.f32.partialorder %v8971, 0.7853982
        %vm8973 = vcmp.lt.s32.totalorder %v8659, 0
        %v8974 = vand.u32 %v8659, 2139095040
        %v8975 = vshrl.u32 %v8974, 23
        %v8976 = vsub.s32 %v8975, 127
        %v8977 = vand.u32 2147483647, %v8659
        %v8978 = vand.u32 %v8977, 8388607
        %v8979 = vor.u32 %v8978, 8388608
        %v8980 = vsub.s32 0, %v8979
        %v8981 = vadd.s32 %v8976, 1
        %vm8982 = vcmp.gt.s32.totalorder %v8981, 0
        %v8983 = vsel %vm8982, %v8981, 0
        %v8984 = vshrl.u32 %v8983, 5
        %v8985 = vand.u32 %v8983, 31
        %v8986 = vsub.s32 32, %v8985
        %v8987 = vshrl.u32 683565275, %v8986
        %v8988 = vshll.u32 683565275, %v8985
        %v8989 = vshrl.u32 2475754826, %v8986
        %v8990 = vor.u32 %v8988, %v8989
        %v8991 = vshll.u32 2475754826, %v8985
        %v8992 = vshrl.u32 2131351028, %v8986
        %v8993 = vor.u32 %v8991, %v8992
        %v8994 = vshll.u32 2131351028, %v8985
        %v8995 = vshrl.u32 2102212464, %v8986
        %v8996 = vor.u32 %v8994, %v8995
        %v8997 = vshll.u32 2102212464, %v8985
        %v8998 = vshrl.u32 920167782, %v8986
        %v8999 = vor.u32 %v8997, %v8998
        %v9000 = vshll.u32 920167782, %v8985
        %v9001 = vshrl.u32 1326507024, %v8986
        %v9002 = vor.u32 %v9000, %v9001
        %vm9003 = vcmp.lt.s32.totalorder %v8984, 1
        %vm9004 = vcmp.lt.s32.totalorder %v8984, 2
        %vm9005 = vcmp.lt.s32.totalorder %v8984, 3
        %vm9006 = vcmp.lt.s32.totalorder %v8984, 4
        %v9007 = vsel %vm9003, %v8987, %v8990
        %v9008 = vsel %vm9006, %v8996, 2102212464
        %v9009 = vsel %vm9005, %v8993, %v9008
        %v9010 = vsel %vm9004, %v9007, %v9009
        %v9011 = vsel %vm9003, %v8990, %v8993
        %v9012 = vsel %vm9006, %v8999, 920167782
        %v9013 = vsel %vm9005, %v8996, %v9012
        %v9014 = vsel %vm9004, %v9011, %v9013
        %v9015 = vsel %vm9003, %v8993, %v8996
        %v9016 = vsel %vm9006, %v9002, 1326507024
        %v9017 = vsel %vm9005, %v8999, %v9016
        %v9018 = vsel %vm9004, %v9015, %v9017
        %v9019 = vshll.u32 %v8979, 8
        %v9020 = vand.u32 %v9019, 65535
        %v9021 = vshrl.u32 %v9019, 16
        %v9022 = vand.u32 %v9018, 65535
        %v9023 = vshrl.u32 %v9018, 16
        %v9024 = vmul.u32 %v9020, %v9022
        %v9025 = vmul.u32 %v9020, %v9023
        %v9026 = vmul.u32 %v9021, %v9022
        %v9027 = vmul.u32 %v9021, %v9023
        %v9028 = vshll.u32 %v9025, 16
        %v9029 = vshrl.u32 %v9025, 16
        %v9030 = vshll.u32 %v9026, 16
        %v9031 = vshrl.u32 %v9026, 16
        %vm9032 = vc.u32 %v9024, %v9028
        %v9033 = vsel %vm9032, 1, 0
        %v9034 = vadd.s32 %v9024, %v9028
        %v9035 = vadd.s32 %v9027, %v9033
        %vm9036 = vc.u32 %v9034, %v9030
        %v9037 = vsel %vm9036, 1, 0
        %v9038 = vadd.s32 %v9034, %v9030
        %v9039 = vadd.s32 %v9035, %v9037
        %v9040 = vadd.s32 %v9039, %v9029
        %v9041 = vadd.s32 %v9040, %v9031
        %v9042 = vand.u32 %v9019, 65535
        %v9043 = vshrl.u32 %v9019, 16
        %v9044 = vand.u32 %v9014, 65535
        %v9045 = vshrl.u32 %v9014, 16
        %v9046 = vmul.u32 %v9042, %v9044
        %v9047 = vmul.u32 %v9042, %v9045
        %v9048 = vmul.u32 %v9043, %v9044
        %v9049 = vmul.u32 %v9043, %v9045
        %v9050 = vshll.u32 %v9047, 16
        %v9051 = vshrl.u32 %v9047, 16
        %v9052 = vshll.u32 %v9048, 16
        %v9053 = vshrl.u32 %v9048, 16
        %vm9054 = vc.u32 %v9046, %v9050
        %v9055 = vsel %vm9054, 1, 0
        %v9056 = vadd.s32 %v9046, %v9050
        %v9057 = vadd.s32 %v9049, %v9055
        %vm9058 = vc.u32 %v9056, %v9052
        %v9059 = vsel %vm9058, 1, 0
        %v9060 = vadd.s32 %v9056, %v9052
        %v9061 = vadd.s32 %v9057, %v9059
        %v9062 = vadd.s32 %v9061, %v9051
        %v9063 = vadd.s32 %v9062, %v9053
        %v9064 = vmul.u32 %v9019, %v9010
        %v9065 = vadd.s32 %v9041, %v9060
        %vm9066 = vc.u32 %v9041, %v9060
        %v9067 = vadd.s32 %v9063, 1
        %v9068 = vsel %vm9066, %v9067, %v9063
        %v9069 = vadd.s32 %v9064, %v9068
        %v9070 = vadd.s32 %v9069, 536870912
        %v9071 = vshrl.u32 %v9070, 30
        %v9072 = vshll.u32 %v9071, 30
        %v9073 = vsub.s32 %v9069, %v9072
        %vm9074 = vcmp.lt.s32.totalorder %v9073, 0
        %v9075 = vsub.s32 0, %v9073
        %v9076 = vsel %vm9074, %v9075, %v9073
        %v9077 = vclz %v9076
        %v9078 = vsub.s32 %v9077, 2
        %vm9079 = vcmp.gt.s32.totalorder 0, %v9078
        %v9080 = vsel %vm9079, 0, %v9078
        %v9081 = vsub.s32 32, %v9080
        %v9082 = vshll.u32 %v9073, %v9080
        %v9083 = vshrl.u32 %v9065, %v9081
        %v9084 = vor.u32 %v9082, %v9083
        %v9085 = vsub.s32 4294967266, %v9080
        %v9086 = vadd.s32 %v9085, 127
        %v9087 = vshll.u32 %v9086, 23
        %v9088 = vor.u32 4788187, %v9087
        %v9089 = vand.u32 2147483647, %v9088
        %v9091 = vcvt.s32.f32 %v9084
        %v9092 = vmul.f32 %v9091, %v9089
        %v9093 = vxor.u32 %v9092, 2147483648
        %v9094 = vsel %vm8973, %v9093, %v9092
        %v9095 = vsub.s32 4, %v9071
        %v9096 = vsel %vm8973, %v9095, %v9071
        %v9097 = vsel %vm8972, %v8659, %v9094
        %v9098 = vsel %vm8972, 0, %v9096
        %v9099 = vmul.f32 %v9097, %v9097
        %v9100 = vmul.f32 %v9099, -0.001358992
        %v9101 = vadd.f32 %v9100, 0.041655596
        %v9102 = vmul.f32 %v9099, %v9101
        %v9103 = vadd.f32 %v9102, -0.4999988
        %v9104 = vmul.f32 %v9099, %v9103
        %v9105 = vadd.f32 1.0, %v9104
        %v9106 = vmul.f32 %v9097, %v9097
        %v9107 = vmul.f32 %v9106, -0.00019511016
        %v9108 = vadd.f32 %v9107, 0.008332121
        %v9109 = vmul.f32 %v9106, %v9108
        %v9110 = vadd.f32 %v9109, -0.16666654
        %v9111 = vmul.f32 %v9106, %v9110
        %v9112 = vadd.f32 %v9111, 1.0
        %v9113 = vmul.f32 %v9112, %v9097
        %vm9114 = vweird.f32 %v8659
        %v9115 = vadd.s32 %v9098, 3
        %v9116 = vand.u32 %v9115, 3
        %vm9117 = vcmp.lt.s32.totalorder %v9116, 2
        %vm9118 = vcmp.eq.s32.totalorder %v9116, 0
        %v9119 = vxor.u32 %v9113, 2147483648
        %v9120 = vsel %vm9118, %v9105, %v9119
        %vm9121 = vcmp.eq.s32.totalorder %v9116, 2
        %v9122 = vxor.u32 %v9105, 2147483648
        %v9123 = vsel %vm9121, %v9122, %v9113
        %v9124 = vsel %vm9117, %v9120, %v9123
        %v9125 = vsel %vm9114, nan, %v9124
        %v9126 = vand.u32 2147483647, %v8660
        %vm9127 = vcmp.le.f32.partialorder %v9126, 0.7853982
        %vm9128 = vcmp.lt.s32.totalorder %v8660, 0
        %v9129 = vand.u32 %v8660, 2139095040
        %v9130 = vshrl.u32 %v9129, 23
        %v9131 = vsub.s32 %v9130, 127
        %v9132 = vand.u32 2147483647, %v8660
        %v9133 = vand.u32 %v9132, 8388607
        %v9134 = vor.u32 %v9133, 8388608
        %v9135 = vsub.s32 0, %v9134
        %v9136 = vadd.s32 %v9131, 1
        %vm9137 = vcmp.gt.s32.totalorder %v9136, 0
        %v9138 = vsel %vm9137, %v9136, 0
        %v9139 = vshrl.u32 %v9138, 5
        %v9140 = vand.u32 %v9138, 31
        %v9141 = vsub.s32 32, %v9140
        %v9142 = vshrl.u32 683565275, %v9141
        %v9143 = vshll.u32 683565275, %v9140
        %v9144 = vshrl.u32 2475754826, %v9141
        %v9145 = vor.u32 %v9143, %v9144
        %v9146 = vshll.u32 2475754826, %v9140
        %v9147 = vshrl.u32 2131351028, %v9141
        %v9148 = vor.u32 %v9146, %v9147
        %v9149 = vshll.u32 2131351028, %v9140
        %v9150 = vshrl.u32 2102212464, %v9141
        %v9151 = vor.u32 %v9149, %v9150
        %v9152 = vshll.u32 2102212464, %v9140
        %v9153 = vshrl.u32 920167782, %v9141
        %v9154 = vor.u32 %v9152, %v9153
        %v9155 = vshll.u32 920167782, %v9140
        %v9156 = vshrl.u32 1326507024, %v9141
        %v9157 = vor.u32 %v9155, %v9156
        %vm9158 = vcmp.lt.s32.totalorder %v9139, 1
        %vm9159 = vcmp.lt.s32.totalorder %v9139, 2
        %vm9160 = vcmp.lt.s32.totalorder %v9139, 3
        %vm9161 = vcmp.lt.s32.totalorder %v9139, 4
        %v9162 = vsel %vm9158, %v9142, %v9145
        %v9163 = vsel %vm9161, %v9151, 2102212464
        %v9164 = vsel %vm9160, %v9148, %v9163
        %v9165 = vsel %vm9159, %v9162, %v9164
        %v9166 = vsel %vm9158, %v9145, %v9148
        %v9167 = vsel %vm9161, %v9154, 920167782
        %v9168 = vsel %vm9160, %v9151, %v9167
        %v9169 = vsel %vm9159, %v9166, %v9168
        %v9170 = vsel %vm9158, %v9148, %v9151
        %v9171 = vsel %vm9161, %v9157, 1326507024
        %v9172 = vsel %vm9160, %v9154, %v9171
        %v9173 = vsel %vm9159, %v9170, %v9172
        %v9174 = vshll.u32 %v9134, 8
        %v9175 = vand.u32 %v9174, 65535
        %v9176 = vshrl.u32 %v9174, 16
        %v9177 = vand.u32 %v9173, 65535
        %v9178 = vshrl.u32 %v9173, 16
        %v9179 = vmul.u32 %v9175, %v9177
        %v9180 = vmul.u32 %v9175, %v9178
        %v9181 = vmul.u32 %v9176, %v9177
        %v9182 = vmul.u32 %v9176, %v9178
        %v9183 = vshll.u32 %v9180, 16
        %v9184 = vshrl.u32 %v9180, 16
        %v9185 = vshll.u32 %v9181, 16
        %v9186 = vshrl.u32 %v9181, 16
        %vm9187 = vc.u32 %v9179, %v9183
        %v9188 = vsel %vm9187, 1, 0
        %v9189 = vadd.s32 %v9179, %v9183
        %v9190 = vadd.s32 %v9182, %v9188
        %vm9191 = vc.u32 %v9189, %v9185
        %v9192 = vsel %vm9191, 1, 0
        %v9193 = vadd.s32 %v9189, %v9185
        %v9194 = vadd.s32 %v9190, %v9192
        %v9195 = vadd.s32 %v9194, %v9184
        %v9196 = vadd.s32 %v9195, %v9186
        %v9197 = vand.u32 %v9174, 65535
        %v9198 = vshrl.u32 %v9174, 16
        %v9199 = vand.u32 %v9169, 65535
        %v9200 = vshrl.u32 %v9169, 16
        %v9201 = vmul.u32 %v9197, %v9199
        %v9202 = vmul.u32 %v9197, %v9200
        %v9203 = vmul.u32 %v9198, %v9199
        %v9204 = vmul.u32 %v9198, %v9200
        %v9205 = vshll.u32 %v9202, 16
        %v9206 = vshrl.u32 %v9202, 16
        %v9207 = vshll.u32 %v9203, 16
        %v9208 = vshrl.u32 %v9203, 16
        %vm9209 = vc.u32 %v9201, %v9205
        %v9210 = vsel %vm9209, 1, 0
        %v9211 = vadd.s32 %v9201, %v9205
        %v9212 = vadd.s32 %v9204, %v9210
        %vm9213 = vc.u32 %v9211, %v9207
        %v9214 = vsel %vm9213, 1, 0
        %v9215 = vadd.s32 %v9211, %v9207
        %v9216 = vadd.s32 %v9212, %v9214
        %v9217 = vadd.s32 %v9216, %v9206
        %v9218 = vadd.s32 %v9217, %v9208
        %v9219 = vmul.u32 %v9174, %v9165
        %v9220 = vadd.s32 %v9196, %v9215
        %vm9221 = vc.u32 %v9196, %v9215
        %v9222 = vadd.s32 %v9218, 1
        %v9223 = vsel %vm9221, %v9222, %v9218
        %v9224 = vadd.s32 %v9219, %v9223
        %v9225 = vadd.s32 %v9224, 536870912
        %v9226 = vshrl.u32 %v9225, 30
        %v9227 = vshll.u32 %v9226, 30
        %v9228 = vsub.s32 %v9224, %v9227
        %vm9229 = vcmp.lt.s32.totalorder %v9228, 0
        %v9230 = vsub.s32 0, %v9228
        %v9231 = vsel %vm9229, %v9230, %v9228
        %v9232 = vclz %v9231
        %v9233 = vsub.s32 %v9232, 2
        %vm9234 = vcmp.gt.s32.totalorder 0, %v9233
        %v9235 = vsel %vm9234, 0, %v9233
        %v9236 = vsub.s32 32, %v9235
        %v9237 = vshll.u32 %v9228, %v9235
        %v9238 = vshrl.u32 %v9220, %v9236
        %v9239 = vor.u32 %v9237, %v9238
        %v9240 = vsub.s32 4294967266, %v9235
        %v9241 = vadd.s32 %v9240, 127
        %v9242 = vshll.u32 %v9241, 23
        %v9243 = vor.u32 4788187, %v9242
        %v9244 = vand.u32 2147483647, %v9243
        %v9246 = vcvt.s32.f32 %v9239
        %v9247 = vmul.f32 %v9246, %v9244
        %v9248 = vxor.u32 %v9247, 2147483648
        %v9249 = vsel %vm9128, %v9248, %v9247
        %v9250 = vsub.s32 4, %v9226
        %v9251 = vsel %vm9128, %v9250, %v9226
        %v9252 = vsel %vm9127, %v8660, %v9249
        %v9253 = vsel %vm9127, 0, %v9251
        %v9254 = vmul.f32 %v9252, %v9252
        %v9255 = vmul.f32 %v9254, -0.001358992
        %v9256 = vadd.f32 %v9255, 0.041655596
        %v9257 = vmul.f32 %v9254, %v9256
        %v9258 = vadd.f32 %v9257, -0.4999988
        %v9259 = vmul.f32 %v9254, %v9258
        %v9260 = vadd.f32 1.0, %v9259
        %v9261 = vmul.f32 %v9252, %v9252
        %v9262 = vmul.f32 %v9261, -0.00019511016
        %v9263 = vadd.f32 %v9262, 0.008332121
        %v9264 = vmul.f32 %v9261, %v9263
        %v9265 = vadd.f32 %v9264, -0.16666654
        %v9266 = vmul.f32 %v9261, %v9265
        %v9267 = vadd.f32 %v9266, 1.0
        %v9268 = vmul.f32 %v9267, %v9252
        %vm9269 = vweird.f32 %v8660
        %v9270 = vadd.s32 %v9253, 3
        %v9271 = vand.u32 %v9270, 3
        %vm9272 = vcmp.lt.s32.totalorder %v9271, 2
        %vm9273 = vcmp.eq.s32.totalorder %v9271, 0
        %v9274 = vxor.u32 %v9268, 2147483648
        %v9275 = vsel %vm9273, %v9260, %v9274
        %vm9276 = vcmp.eq.s32.totalorder %v9271, 2
        %v9277 = vxor.u32 %v9260, 2147483648
        %v9278 = vsel %vm9276, %v9277, %v9268
        %v9279 = vsel %vm9272, %v9275, %v9278
        %v9280 = vsel %vm9269, nan, %v9279
        %9281 = vst [vmem:[#allocation2 + $0x230] sm:$0xff] %v9125
        %9282 = vst [vmem:[#allocation2 + $0x238] sm:$0xff] %v9280
        %9284 = vset.pattern.permute.xlu0 0
        %9285 = vperm.xlu0 %9284, %v6039
        %v9286 = vpop.permute.xlu0 %9285
        %9289 = vset.pattern.permute.xlu0 0
        %9290 = vperm.xlu0 %9289, %v6040
        %v9291 = vpop.permute.xlu0 %9290
        %v9293 = vmul.f32 %v9286, %v3250
        %v9294 = vmul.f32 %v9291, %v3250
        %9296 = vset.pattern.permute.xlu0 0
        %9297 = vperm.xlu0 %9296, %v6051
        %v9298 = vpop.permute.xlu0 %9297
        %9301 = vset.pattern.permute.xlu0 0
        %9302 = vperm.xlu0 %9301, %v6052
        %v9303 = vpop.permute.xlu0 %9302
        %v9305 = vadd.f32 %v9293, %v9298
        %v9306 = vadd.f32 %v9294, %v9303
        %v9307 = vand.u32 2147483647, %v9305
        %vm9308 = vcmp.le.f32.partialorder %v9307, 0.7853982
        %vm9309 = vcmp.lt.s32.totalorder %v9305, 0
        %v9310 = vand.u32 %v9305, 2139095040
        %v9311 = vshrl.u32 %v9310, 23
        %v9312 = vsub.s32 %v9311, 127
        %v9313 = vand.u32 2147483647, %v9305
        %v9314 = vand.u32 %v9313, 8388607
        %v9315 = vor.u32 %v9314, 8388608
        %v9316 = vsub.s32 0, %v9315
        %v9317 = vadd.s32 %v9312, 1
        %vm9318 = vcmp.gt.s32.totalorder %v9317, 0
        %v9319 = vsel %vm9318, %v9317, 0
        %v9320 = vshrl.u32 %v9319, 5
        %v9321 = vand.u32 %v9319, 31
        %v9322 = vsub.s32 32, %v9321
        %v9323 = vshrl.u32 683565275, %v9322
        %v9324 = vshll.u32 683565275, %v9321
        %v9325 = vshrl.u32 2475754826, %v9322
        %v9326 = vor.u32 %v9324, %v9325
        %v9327 = vshll.u32 2475754826, %v9321
        %v9328 = vshrl.u32 2131351028, %v9322
        %v9329 = vor.u32 %v9327, %v9328
        %v9330 = vshll.u32 2131351028, %v9321
        %v9331 = vshrl.u32 2102212464, %v9322
        %v9332 = vor.u32 %v9330, %v9331
        %v9333 = vshll.u32 2102212464, %v9321
        %v9334 = vshrl.u32 920167782, %v9322
        %v9335 = vor.u32 %v9333, %v9334
        %v9336 = vshll.u32 920167782, %v9321
        %v9337 = vshrl.u32 1326507024, %v9322
        %v9338 = vor.u32 %v9336, %v9337
        %vm9339 = vcmp.lt.s32.totalorder %v9320, 1
        %vm9340 = vcmp.lt.s32.totalorder %v9320, 2
        %vm9341 = vcmp.lt.s32.totalorder %v9320, 3
        %vm9342 = vcmp.lt.s32.totalorder %v9320, 4
        %v9343 = vsel %vm9339, %v9323, %v9326
        %v9344 = vsel %vm9342, %v9332, 2102212464
        %v9345 = vsel %vm9341, %v9329, %v9344
        %v9346 = vsel %vm9340, %v9343, %v9345
        %v9347 = vsel %vm9339, %v9326, %v9329
        %v9348 = vsel %vm9342, %v9335, 920167782
        %v9349 = vsel %vm9341, %v9332, %v9348
        %v9350 = vsel %vm9340, %v9347, %v9349
        %v9351 = vsel %vm9339, %v9329, %v9332
        %v9352 = vsel %vm9342, %v9338, 1326507024
        %v9353 = vsel %vm9341, %v9335, %v9352
        %v9354 = vsel %vm9340, %v9351, %v9353
        %v9355 = vshll.u32 %v9315, 8
        %v9356 = vand.u32 %v9355, 65535
        %v9357 = vshrl.u32 %v9355, 16
        %v9358 = vand.u32 %v9354, 65535
        %v9359 = vshrl.u32 %v9354, 16
        %v9360 = vmul.u32 %v9356, %v9358
        %v9361 = vmul.u32 %v9356, %v9359
        %v9362 = vmul.u32 %v9357, %v9358
        %v9363 = vmul.u32 %v9357, %v9359
        %v9364 = vshll.u32 %v9361, 16
        %v9365 = vshrl.u32 %v9361, 16
        %v9366 = vshll.u32 %v9362, 16
        %v9367 = vshrl.u32 %v9362, 16
        %vm9368 = vc.u32 %v9360, %v9364
        %v9369 = vsel %vm9368, 1, 0
        %v9370 = vadd.s32 %v9360, %v9364
        %v9371 = vadd.s32 %v9363, %v9369
        %vm9372 = vc.u32 %v9370, %v9366
        %v9373 = vsel %vm9372, 1, 0
        %v9374 = vadd.s32 %v9370, %v9366
        %v9375 = vadd.s32 %v9371, %v9373
        %v9376 = vadd.s32 %v9375, %v9365
        %v9377 = vadd.s32 %v9376, %v9367
        %v9378 = vand.u32 %v9355, 65535
        %v9379 = vshrl.u32 %v9355, 16
        %v9380 = vand.u32 %v9350, 65535
        %v9381 = vshrl.u32 %v9350, 16
        %v9382 = vmul.u32 %v9378, %v9380
        %v9383 = vmul.u32 %v9378, %v9381
        %v9384 = vmul.u32 %v9379, %v9380
        %v9385 = vmul.u32 %v9379, %v9381
        %v9386 = vshll.u32 %v9383, 16
        %v9387 = vshrl.u32 %v9383, 16
        %v9388 = vshll.u32 %v9384, 16
        %v9389 = vshrl.u32 %v9384, 16
        %vm9390 = vc.u32 %v9382, %v9386
        %v9391 = vsel %vm9390, 1, 0
        %v9392 = vadd.s32 %v9382, %v9386
        %v9393 = vadd.s32 %v9385, %v9391
        %vm9394 = vc.u32 %v9392, %v9388
        %v9395 = vsel %vm9394, 1, 0
        %v9396 = vadd.s32 %v9392, %v9388
        %v9397 = vadd.s32 %v9393, %v9395
        %v9398 = vadd.s32 %v9397, %v9387
        %v9399 = vadd.s32 %v9398, %v9389
        %v9400 = vmul.u32 %v9355, %v9346
        %v9401 = vadd.s32 %v9377, %v9396
        %vm9402 = vc.u32 %v9377, %v9396
        %v9403 = vadd.s32 %v9399, 1
        %v9404 = vsel %vm9402, %v9403, %v9399
        %v9405 = vadd.s32 %v9400, %v9404
        %v9406 = vadd.s32 %v9405, 536870912
        %v9407 = vshrl.u32 %v9406, 30
        %v9408 = vshll.u32 %v9407, 30
        %v9409 = vsub.s32 %v9405, %v9408
        %vm9410 = vcmp.lt.s32.totalorder %v9409, 0
        %v9411 = vsub.s32 0, %v9409
        %v9412 = vsel %vm9410, %v9411, %v9409
        %v9413 = vclz %v9412
        %v9414 = vsub.s32 %v9413, 2
        %vm9415 = vcmp.gt.s32.totalorder 0, %v9414
        %v9416 = vsel %vm9415, 0, %v9414
        %v9417 = vsub.s32 32, %v9416
        %v9418 = vshll.u32 %v9409, %v9416
        %v9419 = vshrl.u32 %v9401, %v9417
        %v9420 = vor.u32 %v9418, %v9419
        %v9421 = vsub.s32 4294967266, %v9416
        %v9422 = vadd.s32 %v9421, 127
        %v9423 = vshll.u32 %v9422, 23
        %v9424 = vor.u32 4788187, %v9423
        %v9425 = vand.u32 2147483647, %v9424
        %v9427 = vcvt.s32.f32 %v9420
        %v9428 = vmul.f32 %v9427, %v9425
        %v9429 = vxor.u32 %v9428, 2147483648
        %v9430 = vsel %vm9309, %v9429, %v9428
        %v9431 = vsub.s32 4, %v9407
        %v9432 = vsel %vm9309, %v9431, %v9407
        %v9433 = vsel %vm9308, %v9305, %v9430
        %v9434 = vsel %vm9308, 0, %v9432
        %v9435 = vmul.f32 %v9433, %v9433
        %v9436 = vmul.f32 %v9435, -0.001358992
        %v9437 = vadd.f32 %v9436, 0.041655596
        %v9438 = vmul.f32 %v9435, %v9437
        %v9439 = vadd.f32 %v9438, -0.4999988
        %v9440 = vmul.f32 %v9435, %v9439
        %v9441 = vadd.f32 1.0, %v9440
        %v9442 = vmul.f32 %v9433, %v9433
        %v9443 = vmul.f32 %v9442, -0.00019511016
        %v9444 = vadd.f32 %v9443, 0.008332121
        %v9445 = vmul.f32 %v9442, %v9444
        %v9446 = vadd.f32 %v9445, -0.16666654
        %v9447 = vmul.f32 %v9442, %v9446
        %v9448 = vadd.f32 %v9447, 1.0
        %v9449 = vmul.f32 %v9448, %v9433
        %vm9450 = vweird.f32 %v9305
        %v9451 = vand.u32 %v9434, 3
        %vm9452 = vcmp.lt.s32.totalorder %v9451, 2
        %vm9453 = vcmp.eq.s32.totalorder %v9451, 0
        %v9454 = vxor.u32 %v9449, 2147483648
        %v9455 = vsel %vm9453, %v9441, %v9454
        %vm9456 = vcmp.eq.s32.totalorder %v9451, 2
        %v9457 = vxor.u32 %v9441, 2147483648
        %v9458 = vsel %vm9456, %v9457, %v9449
        %v9459 = vsel %vm9452, %v9455, %v9458
        %v9460 = vsel %vm9450, nan, %v9459
        %v9461 = vand.u32 2147483647, %v9306
        %vm9462 = vcmp.le.f32.partialorder %v9461, 0.7853982
        %vm9463 = vcmp.lt.s32.totalorder %v9306, 0
        %v9464 = vand.u32 %v9306, 2139095040
        %v9465 = vshrl.u32 %v9464, 23
        %v9466 = vsub.s32 %v9465, 127
        %v9467 = vand.u32 2147483647, %v9306
        %v9468 = vand.u32 %v9467, 8388607
        %v9469 = vor.u32 %v9468, 8388608
        %v9470 = vsub.s32 0, %v9469
        %v9471 = vadd.s32 %v9466, 1
        %vm9472 = vcmp.gt.s32.totalorder %v9471, 0
        %v9473 = vsel %vm9472, %v9471, 0
        %v9474 = vshrl.u32 %v9473, 5
        %v9475 = vand.u32 %v9473, 31
        %v9476 = vsub.s32 32, %v9475
        %v9477 = vshrl.u32 683565275, %v9476
        %v9478 = vshll.u32 683565275, %v9475
        %v9479 = vshrl.u32 2475754826, %v9476
        %v9480 = vor.u32 %v9478, %v9479
        %v9481 = vshll.u32 2475754826, %v9475
        %v9482 = vshrl.u32 2131351028, %v9476
        %v9483 = vor.u32 %v9481, %v9482
        %v9484 = vshll.u32 2131351028, %v9475
        %v9485 = vshrl.u32 2102212464, %v9476
        %v9486 = vor.u32 %v9484, %v9485
        %v9487 = vshll.u32 2102212464, %v9475
        %v9488 = vshrl.u32 920167782, %v9476
        %v9489 = vor.u32 %v9487, %v9488
        %v9490 = vshll.u32 920167782, %v9475
        %v9491 = vshrl.u32 1326507024, %v9476
        %v9492 = vor.u32 %v9490, %v9491
        %vm9493 = vcmp.lt.s32.totalorder %v9474, 1
        %vm9494 = vcmp.lt.s32.totalorder %v9474, 2
        %vm9495 = vcmp.lt.s32.totalorder %v9474, 3
        %vm9496 = vcmp.lt.s32.totalorder %v9474, 4
        %v9497 = vsel %vm9493, %v9477, %v9480
        %v9498 = vsel %vm9496, %v9486, 2102212464
        %v9499 = vsel %vm9495, %v9483, %v9498
        %v9500 = vsel %vm9494, %v9497, %v9499
        %v9501 = vsel %vm9493, %v9480, %v9483
        %v9502 = vsel %vm9496, %v9489, 920167782
        %v9503 = vsel %vm9495, %v9486, %v9502
        %v9504 = vsel %vm9494, %v9501, %v9503
        %v9505 = vsel %vm9493, %v9483, %v9486
        %v9506 = vsel %vm9496, %v9492, 1326507024
        %v9507 = vsel %vm9495, %v9489, %v9506
        %v9508 = vsel %vm9494, %v9505, %v9507
        %v9509 = vshll.u32 %v9469, 8
        %v9510 = vand.u32 %v9509, 65535
        %v9511 = vshrl.u32 %v9509, 16
        %v9512 = vand.u32 %v9508, 65535
        %v9513 = vshrl.u32 %v9508, 16
        %v9514 = vmul.u32 %v9510, %v9512
        %v9515 = vmul.u32 %v9510, %v9513
        %v9516 = vmul.u32 %v9511, %v9512
        %v9517 = vmul.u32 %v9511, %v9513
        %v9518 = vshll.u32 %v9515, 16
        %v9519 = vshrl.u32 %v9515, 16
        %v9520 = vshll.u32 %v9516, 16
        %v9521 = vshrl.u32 %v9516, 16
        %vm9522 = vc.u32 %v9514, %v9518
        %v9523 = vsel %vm9522, 1, 0
        %v9524 = vadd.s32 %v9514, %v9518
        %v9525 = vadd.s32 %v9517, %v9523
        %vm9526 = vc.u32 %v9524, %v9520
        %v9527 = vsel %vm9526, 1, 0
        %v9528 = vadd.s32 %v9524, %v9520
        %v9529 = vadd.s32 %v9525, %v9527
        %v9530 = vadd.s32 %v9529, %v9519
        %v9531 = vadd.s32 %v9530, %v9521
        %v9532 = vand.u32 %v9509, 65535
        %v9533 = vshrl.u32 %v9509, 16
        %v9534 = vand.u32 %v9504, 65535
        %v9535 = vshrl.u32 %v9504, 16
        %v9536 = vmul.u32 %v9532, %v9534
        %v9537 = vmul.u32 %v9532, %v9535
        %v9538 = vmul.u32 %v9533, %v9534
        %v9539 = vmul.u32 %v9533, %v9535
        %v9540 = vshll.u32 %v9537, 16
        %v9541 = vshrl.u32 %v9537, 16
        %v9542 = vshll.u32 %v9538, 16
        %v9543 = vshrl.u32 %v9538, 16
        %vm9544 = vc.u32 %v9536, %v9540
        %v9545 = vsel %vm9544, 1, 0
        %v9546 = vadd.s32 %v9536, %v9540
        %v9547 = vadd.s32 %v9539, %v9545
        %vm9548 = vc.u32 %v9546, %v9542
        %v9549 = vsel %vm9548, 1, 0
        %v9550 = vadd.s32 %v9546, %v9542
        %v9551 = vadd.s32 %v9547, %v9549
        %v9552 = vadd.s32 %v9551, %v9541
        %v9553 = vadd.s32 %v9552, %v9543
        %v9554 = vmul.u32 %v9509, %v9500
        %v9555 = vadd.s32 %v9531, %v9550
        %vm9556 = vc.u32 %v9531, %v9550
        %v9557 = vadd.s32 %v9553, 1
        %v9558 = vsel %vm9556, %v9557, %v9553
        %v9559 = vadd.s32 %v9554, %v9558
        %v9560 = vadd.s32 %v9559, 536870912
        %v9561 = vshrl.u32 %v9560, 30
        %v9562 = vshll.u32 %v9561, 30
        %v9563 = vsub.s32 %v9559, %v9562
        %vm9564 = vcmp.lt.s32.totalorder %v9563, 0
        %v9565 = vsub.s32 0, %v9563
        %v9566 = vsel %vm9564, %v9565, %v9563
        %v9567 = vclz %v9566
        %v9568 = vsub.s32 %v9567, 2
        %vm9569 = vcmp.gt.s32.totalorder 0, %v9568
        %v9570 = vsel %vm9569, 0, %v9568
        %v9571 = vsub.s32 32, %v9570
        %v9572 = vshll.u32 %v9563, %v9570
        %v9573 = vshrl.u32 %v9555, %v9571
        %v9574 = vor.u32 %v9572, %v9573
        %v9575 = vsub.s32 4294967266, %v9570
        %v9576 = vadd.s32 %v9575, 127
        %v9577 = vshll.u32 %v9576, 23
        %v9578 = vor.u32 4788187, %v9577
        %v9579 = vand.u32 2147483647, %v9578
        %v9581 = vcvt.s32.f32 %v9574
        %v9582 = vmul.f32 %v9581, %v9579
        %v9583 = vxor.u32 %v9582, 2147483648
        %v9584 = vsel %vm9463, %v9583, %v9582
        %v9585 = vsub.s32 4, %v9561
        %v9586 = vsel %vm9463, %v9585, %v9561
        %v9587 = vsel %vm9462, %v9306, %v9584
        %v9588 = vsel %vm9462, 0, %v9586
        %v9589 = vmul.f32 %v9587, %v9587
        %v9590 = vmul.f32 %v9589, -0.001358992
        %v9591 = vadd.f32 %v9590, 0.041655596
        %v9592 = vmul.f32 %v9589, %v9591
        %v9593 = vadd.f32 %v9592, -0.4999988
        %v9594 = vmul.f32 %v9589, %v9593
        %v9595 = vadd.f32 1.0, %v9594
        %v9596 = vmul.f32 %v9587, %v9587
        %v9597 = vmul.f32 %v9596, -0.00019511016
        %v9598 = vadd.f32 %v9597, 0.008332121
        %v9599 = vmul.f32 %v9596, %v9598
        %v9600 = vadd.f32 %v9599, -0.16666654
        %v9601 = vmul.f32 %v9596, %v9600
        %v9602 = vadd.f32 %v9601, 1.0
        %v9603 = vmul.f32 %v9602, %v9587
        %vm9604 = vweird.f32 %v9306
        %v9605 = vand.u32 %v9588, 3
        %vm9606 = vcmp.lt.s32.totalorder %v9605, 2
        %vm9607 = vcmp.eq.s32.totalorder %v9605, 0
        %v9608 = vxor.u32 %v9603, 2147483648
        %v9609 = vsel %vm9607, %v9595, %v9608
        %vm9610 = vcmp.eq.s32.totalorder %v9605, 2
        %v9611 = vxor.u32 %v9595, 2147483648
        %v9612 = vsel %vm9610, %v9611, %v9603
        %v9613 = vsel %vm9606, %v9609, %v9612
        %v9614 = vsel %vm9604, nan, %v9613
        %9615 = vst [vmem:[#allocation2 + $0x240] sm:$0xff] %v9460
        %9616 = vst [vmem:[#allocation2 + $0x248] sm:$0xff] %v9614
        %v9617 = vand.u32 2147483647, %v9305
        %vm9618 = vcmp.le.f32.partialorder %v9617, 0.7853982
        %vm9619 = vcmp.lt.s32.totalorder %v9305, 0
        %v9620 = vand.u32 %v9305, 2139095040
        %v9621 = vshrl.u32 %v9620, 23
        %v9622 = vsub.s32 %v9621, 127
        %v9623 = vand.u32 2147483647, %v9305
        %v9624 = vand.u32 %v9623, 8388607
        %v9625 = vor.u32 %v9624, 8388608
        %v9626 = vsub.s32 0, %v9625
        %v9627 = vadd.s32 %v9622, 1
        %vm9628 = vcmp.gt.s32.totalorder %v9627, 0
        %v9629 = vsel %vm9628, %v9627, 0
        %v9630 = vshrl.u32 %v9629, 5
        %v9631 = vand.u32 %v9629, 31
        %v9632 = vsub.s32 32, %v9631
        %v9633 = vshrl.u32 683565275, %v9632
        %v9634 = vshll.u32 683565275, %v9631
        %v9635 = vshrl.u32 2475754826, %v9632
        %v9636 = vor.u32 %v9634, %v9635
        %v9637 = vshll.u32 2475754826, %v9631
        %v9638 = vshrl.u32 2131351028, %v9632
        %v9639 = vor.u32 %v9637, %v9638
        %v9640 = vshll.u32 2131351028, %v9631
        %v9641 = vshrl.u32 2102212464, %v9632
        %v9642 = vor.u32 %v9640, %v9641
        %v9643 = vshll.u32 2102212464, %v9631
        %v9644 = vshrl.u32 920167782, %v9632
        %v9645 = vor.u32 %v9643, %v9644
        %v9646 = vshll.u32 920167782, %v9631
        %v9647 = vshrl.u32 1326507024, %v9632
        %v9648 = vor.u32 %v9646, %v9647
        %vm9649 = vcmp.lt.s32.totalorder %v9630, 1
        %vm9650 = vcmp.lt.s32.totalorder %v9630, 2
        %vm9651 = vcmp.lt.s32.totalorder %v9630, 3
        %vm9652 = vcmp.lt.s32.totalorder %v9630, 4
        %v9653 = vsel %vm9649, %v9633, %v9636
        %v9654 = vsel %vm9652, %v9642, 2102212464
        %v9655 = vsel %vm9651, %v9639, %v9654
        %v9656 = vsel %vm9650, %v9653, %v9655
        %v9657 = vsel %vm9649, %v9636, %v9639
        %v9658 = vsel %vm9652, %v9645, 920167782
        %v9659 = vsel %vm9651, %v9642, %v9658
        %v9660 = vsel %vm9650, %v9657, %v9659
        %v9661 = vsel %vm9649, %v9639, %v9642
        %v9662 = vsel %vm9652, %v9648, 1326507024
        %v9663 = vsel %vm9651, %v9645, %v9662
        %v9664 = vsel %vm9650, %v9661, %v9663
        %v9665 = vshll.u32 %v9625, 8
        %v9666 = vand.u32 %v9665, 65535
        %v9667 = vshrl.u32 %v9665, 16
        %v9668 = vand.u32 %v9664, 65535
        %v9669 = vshrl.u32 %v9664, 16
        %v9670 = vmul.u32 %v9666, %v9668
        %v9671 = vmul.u32 %v9666, %v9669
        %v9672 = vmul.u32 %v9667, %v9668
        %v9673 = vmul.u32 %v9667, %v9669
        %v9674 = vshll.u32 %v9671, 16
        %v9675 = vshrl.u32 %v9671, 16
        %v9676 = vshll.u32 %v9672, 16
        %v9677 = vshrl.u32 %v9672, 16
        %vm9678 = vc.u32 %v9670, %v9674
        %v9679 = vsel %vm9678, 1, 0
        %v9680 = vadd.s32 %v9670, %v9674
        %v9681 = vadd.s32 %v9673, %v9679
        %vm9682 = vc.u32 %v9680, %v9676
        %v9683 = vsel %vm9682, 1, 0
        %v9684 = vadd.s32 %v9680, %v9676
        %v9685 = vadd.s32 %v9681, %v9683
        %v9686 = vadd.s32 %v9685, %v9675
        %v9687 = vadd.s32 %v9686, %v9677
        %v9688 = vand.u32 %v9665, 65535
        %v9689 = vshrl.u32 %v9665, 16
        %v9690 = vand.u32 %v9660, 65535
        %v9691 = vshrl.u32 %v9660, 16
        %v9692 = vmul.u32 %v9688, %v9690
        %v9693 = vmul.u32 %v9688, %v9691
        %v9694 = vmul.u32 %v9689, %v9690
        %v9695 = vmul.u32 %v9689, %v9691
        %v9696 = vshll.u32 %v9693, 16
        %v9697 = vshrl.u32 %v9693, 16
        %v9698 = vshll.u32 %v9694, 16
        %v9699 = vshrl.u32 %v9694, 16
        %vm9700 = vc.u32 %v9692, %v9696
        %v9701 = vsel %vm9700, 1, 0
        %v9702 = vadd.s32 %v9692, %v9696
        %v9703 = vadd.s32 %v9695, %v9701
        %vm9704 = vc.u32 %v9702, %v9698
        %v9705 = vsel %vm9704, 1, 0
        %v9706 = vadd.s32 %v9702, %v9698
        %v9707 = vadd.s32 %v9703, %v9705
        %v9708 = vadd.s32 %v9707, %v9697
        %v9709 = vadd.s32 %v9708, %v9699
        %v9710 = vmul.u32 %v9665, %v9656
        %v9711 = vadd.s32 %v9687, %v9706
        %vm9712 = vc.u32 %v9687, %v9706
        %v9713 = vadd.s32 %v9709, 1
        %v9714 = vsel %vm9712, %v9713, %v9709
        %v9715 = vadd.s32 %v9710, %v9714
        %v9716 = vadd.s32 %v9715, 536870912
        %v9717 = vshrl.u32 %v9716, 30
        %v9718 = vshll.u32 %v9717, 30
        %v9719 = vsub.s32 %v9715, %v9718
        %vm9720 = vcmp.lt.s32.totalorder %v9719, 0
        %v9721 = vsub.s32 0, %v9719
        %v9722 = vsel %vm9720, %v9721, %v9719
        %v9723 = vclz %v9722
        %v9724 = vsub.s32 %v9723, 2
        %vm9725 = vcmp.gt.s32.totalorder 0, %v9724
        %v9726 = vsel %vm9725, 0, %v9724
        %v9727 = vsub.s32 32, %v9726
        %v9728 = vshll.u32 %v9719, %v9726
        %v9729 = vshrl.u32 %v9711, %v9727
        %v9730 = vor.u32 %v9728, %v9729
        %v9731 = vsub.s32 4294967266, %v9726
        %v9732 = vadd.s32 %v9731, 127
        %v9733 = vshll.u32 %v9732, 23
        %v9734 = vor.u32 4788187, %v9733
        %v9735 = vand.u32 2147483647, %v9734
        %v9737 = vcvt.s32.f32 %v9730
        %v9738 = vmul.f32 %v9737, %v9735
        %v9739 = vxor.u32 %v9738, 2147483648
        %v9740 = vsel %vm9619, %v9739, %v9738
        %v9741 = vsub.s32 4, %v9717
        %v9742 = vsel %vm9619, %v9741, %v9717
        %v9743 = vsel %vm9618, %v9305, %v9740
        %v9744 = vsel %vm9618, 0, %v9742
        %v9745 = vmul.f32 %v9743, %v9743
        %v9746 = vmul.f32 %v9745, -0.001358992
        %v9747 = vadd.f32 %v9746, 0.041655596
        %v9748 = vmul.f32 %v9745, %v9747
        %v9749 = vadd.f32 %v9748, -0.4999988
        %v9750 = vmul.f32 %v9745, %v9749
        %v9751 = vadd.f32 1.0, %v9750
        %v9752 = vmul.f32 %v9743, %v9743
        %v9753 = vmul.f32 %v9752, -0.00019511016
        %v9754 = vadd.f32 %v9753, 0.008332121
        %v9755 = vmul.f32 %v9752, %v9754
        %v9756 = vadd.f32 %v9755, -0.16666654
        %v9757 = vmul.f32 %v9752, %v9756
        %v9758 = vadd.f32 %v9757, 1.0
        %v9759 = vmul.f32 %v9758, %v9743
        %vm9760 = vweird.f32 %v9305
        %v9761 = vadd.s32 %v9744, 3
        %v9762 = vand.u32 %v9761, 3
        %vm9763 = vcmp.lt.s32.totalorder %v9762, 2
        %vm9764 = vcmp.eq.s32.totalorder %v9762, 0
        %v9765 = vxor.u32 %v9759, 2147483648
        %v9766 = vsel %vm9764, %v9751, %v9765
        %vm9767 = vcmp.eq.s32.totalorder %v9762, 2
        %v9768 = vxor.u32 %v9751, 2147483648
        %v9769 = vsel %vm9767, %v9768, %v9759
        %v9770 = vsel %vm9763, %v9766, %v9769
        %v9771 = vsel %vm9760, nan, %v9770
        %v9772 = vand.u32 2147483647, %v9306
        %vm9773 = vcmp.le.f32.partialorder %v9772, 0.7853982
        %vm9774 = vcmp.lt.s32.totalorder %v9306, 0
        %v9775 = vand.u32 %v9306, 2139095040
        %v9776 = vshrl.u32 %v9775, 23
        %v9777 = vsub.s32 %v9776, 127
        %v9778 = vand.u32 2147483647, %v9306
        %v9779 = vand.u32 %v9778, 8388607
        %v9780 = vor.u32 %v9779, 8388608
        %v9781 = vsub.s32 0, %v9780
        %v9782 = vadd.s32 %v9777, 1
        %vm9783 = vcmp.gt.s32.totalorder %v9782, 0
        %v9784 = vsel %vm9783, %v9782, 0
        %v9785 = vshrl.u32 %v9784, 5
        %v9786 = vand.u32 %v9784, 31
        %v9787 = vsub.s32 32, %v9786
        %v9788 = vshrl.u32 683565275, %v9787
        %v9789 = vshll.u32 683565275, %v9786
        %v9790 = vshrl.u32 2475754826, %v9787
        %v9791 = vor.u32 %v9789, %v9790
        %v9792 = vshll.u32 2475754826, %v9786
        %v9793 = vshrl.u32 2131351028, %v9787
        %v9794 = vor.u32 %v9792, %v9793
        %v9795 = vshll.u32 2131351028, %v9786
        %v9796 = vshrl.u32 2102212464, %v9787
        %v9797 = vor.u32 %v9795, %v9796
        %v9798 = vshll.u32 2102212464, %v9786
        %v9799 = vshrl.u32 920167782, %v9787
        %v9800 = vor.u32 %v9798, %v9799
        %v9801 = vshll.u32 920167782, %v9786
        %v9802 = vshrl.u32 1326507024, %v9787
        %v9803 = vor.u32 %v9801, %v9802
        %vm9804 = vcmp.lt.s32.totalorder %v9785, 1
        %vm9805 = vcmp.lt.s32.totalorder %v9785, 2
        %vm9806 = vcmp.lt.s32.totalorder %v9785, 3
        %vm9807 = vcmp.lt.s32.totalorder %v9785, 4
        %v9808 = vsel %vm9804, %v9788, %v9791
        %v9809 = vsel %vm9807, %v9797, 2102212464
        %v9810 = vsel %vm9806, %v9794, %v9809
        %v9811 = vsel %vm9805, %v9808, %v9810
        %v9812 = vsel %vm9804, %v9791, %v9794
        %v9813 = vsel %vm9807, %v9800, 920167782
        %v9814 = vsel %vm9806, %v9797, %v9813
        %v9815 = vsel %vm9805, %v9812, %v9814
        %v9816 = vsel %vm9804, %v9794, %v9797
        %v9817 = vsel %vm9807, %v9803, 1326507024
        %v9818 = vsel %vm9806, %v9800, %v9817
        %v9819 = vsel %vm9805, %v9816, %v9818
        %v9820 = vshll.u32 %v9780, 8
        %v9821 = vand.u32 %v9820, 65535
        %v9822 = vshrl.u32 %v9820, 16
        %v9823 = vand.u32 %v9819, 65535
        %v9824 = vshrl.u32 %v9819, 16
        %v9825 = vmul.u32 %v9821, %v9823
        %v9826 = vmul.u32 %v9821, %v9824
        %v9827 = vmul.u32 %v9822, %v9823
        %v9828 = vmul.u32 %v9822, %v9824
        %v9829 = vshll.u32 %v9826, 16
        %v9830 = vshrl.u32 %v9826, 16
        %v9831 = vshll.u32 %v9827, 16
        %v9832 = vshrl.u32 %v9827, 16
        %vm9833 = vc.u32 %v9825, %v9829
        %v9834 = vsel %vm9833, 1, 0
        %v9835 = vadd.s32 %v9825, %v9829
        %v9836 = vadd.s32 %v9828, %v9834
        %vm9837 = vc.u32 %v9835, %v9831
        %v9838 = vsel %vm9837, 1, 0
        %v9839 = vadd.s32 %v9835, %v9831
        %v9840 = vadd.s32 %v9836, %v9838
        %v9841 = vadd.s32 %v9840, %v9830
        %v9842 = vadd.s32 %v9841, %v9832
        %v9843 = vand.u32 %v9820, 65535
        %v9844 = vshrl.u32 %v9820, 16
        %v9845 = vand.u32 %v9815, 65535
        %v9846 = vshrl.u32 %v9815, 16
        %v9847 = vmul.u32 %v9843, %v9845
        %v9848 = vmul.u32 %v9843, %v9846
        %v9849 = vmul.u32 %v9844, %v9845
        %v9850 = vmul.u32 %v9844, %v9846
        %v9851 = vshll.u32 %v9848, 16
        %v9852 = vshrl.u32 %v9848, 16
        %v9853 = vshll.u32 %v9849, 16
        %v9854 = vshrl.u32 %v9849, 16
        %vm9855 = vc.u32 %v9847, %v9851
        %v9856 = vsel %vm9855, 1, 0
        %v9857 = vadd.s32 %v9847, %v9851
        %v9858 = vadd.s32 %v9850, %v9856
        %vm9859 = vc.u32 %v9857, %v9853
        %v9860 = vsel %vm9859, 1, 0
        %v9861 = vadd.s32 %v9857, %v9853
        %v9862 = vadd.s32 %v9858, %v9860
        %v9863 = vadd.s32 %v9862, %v9852
        %v9864 = vadd.s32 %v9863, %v9854
        %v9865 = vmul.u32 %v9820, %v9811
        %v9866 = vadd.s32 %v9842, %v9861
        %vm9867 = vc.u32 %v9842, %v9861
        %v9868 = vadd.s32 %v9864, 1
        %v9869 = vsel %vm9867, %v9868, %v9864
        %v9870 = vadd.s32 %v9865, %v9869
        %v9871 = vadd.s32 %v9870, 536870912
        %v9872 = vshrl.u32 %v9871, 30
        %v9873 = vshll.u32 %v9872, 30
        %v9874 = vsub.s32 %v9870, %v9873
        %vm9875 = vcmp.lt.s32.totalorder %v9874, 0
        %v9876 = vsub.s32 0, %v9874
        %v9877 = vsel %vm9875, %v9876, %v9874
        %v9878 = vclz %v9877
        %v9879 = vsub.s32 %v9878, 2
        %vm9880 = vcmp.gt.s32.totalorder 0, %v9879
        %v9881 = vsel %vm9880, 0, %v9879
        %v9882 = vsub.s32 32, %v9881
        %v9883 = vshll.u32 %v9874, %v9881
        %v9884 = vshrl.u32 %v9866, %v9882
        %v9885 = vor.u32 %v9883, %v9884
        %v9886 = vsub.s32 4294967266, %v9881
        %v9887 = vadd.s32 %v9886, 127
        %v9888 = vshll.u32 %v9887, 23
        %v9889 = vor.u32 4788187, %v9888
        %v9890 = vand.u32 2147483647, %v9889
        %v9892 = vcvt.s32.f32 %v9885
        %v9893 = vmul.f32 %v9892, %v9890
        %v9894 = vxor.u32 %v9893, 2147483648
        %v9895 = vsel %vm9774, %v9894, %v9893
        %v9896 = vsub.s32 4, %v9872
        %v9897 = vsel %vm9774, %v9896, %v9872
        %v9898 = vsel %vm9773, %v9306, %v9895
        %v9899 = vsel %vm9773, 0, %v9897
        %v9900 = vmul.f32 %v9898, %v9898
        %v9901 = vmul.f32 %v9900, -0.001358992
        %v9902 = vadd.f32 %v9901, 0.041655596
        %v9903 = vmul.f32 %v9900, %v9902
        %v9904 = vadd.f32 %v9903, -0.4999988
        %v9905 = vmul.f32 %v9900, %v9904
        %v9906 = vadd.f32 1.0, %v9905
        %v9907 = vmul.f32 %v9898, %v9898
        %v9908 = vmul.f32 %v9907, -0.00019511016
        %v9909 = vadd.f32 %v9908, 0.008332121
        %v9910 = vmul.f32 %v9907, %v9909
        %v9911 = vadd.f32 %v9910, -0.16666654
        %v9912 = vmul.f32 %v9907, %v9911
        %v9913 = vadd.f32 %v9912, 1.0
        %v9914 = vmul.f32 %v9913, %v9898
        %vm9915 = vweird.f32 %v9306
        %v9916 = vadd.s32 %v9899, 3
        %v9917 = vand.u32 %v9916, 3
        %vm9918 = vcmp.lt.s32.totalorder %v9917, 2
        %vm9919 = vcmp.eq.s32.totalorder %v9917, 0
        %v9920 = vxor.u32 %v9914, 2147483648
        %v9921 = vsel %vm9919, %v9906, %v9920
        %vm9922 = vcmp.eq.s32.totalorder %v9917, 2
        %v9923 = vxor.u32 %v9906, 2147483648
        %v9924 = vsel %vm9922, %v9923, %v9914
        %v9925 = vsel %vm9918, %v9921, %v9924
        %v9926 = vsel %vm9915, nan, %v9925
        %9927 = vst [vmem:[#allocation2 + $0x250] sm:$0xff] %v9771
        %9928 = vst [vmem:[#allocation2 + $0x258] sm:$0xff] %v9926
        %v9929 = vld [vmem:[%s435] sm:$0xff]
        %v9930 = vld [vmem:[%s435 + $0x8] sm:$0xff]
        %v9931 = vld [vmem:[%s435 + $0x10] sm:$0xff]
        %v9932 = vld [vmem:[%s435 + $0x18] sm:$0xff]
        %v9933 = vld [vmem:[%s435 + $0x20] sm:$0xff]
        %v9934 = vld [vmem:[#allocation2] sm:$0xff]
        %v9935 = vld [vmem:[#allocation2 + $0x8] sm:$0xff]
        %v9936 = vld [vmem:[#allocation2 + $0x10] sm:$0xff]
        %v9937 = vld [vmem:[#allocation2 + $0x18] sm:$0xff]
        %v9938 = vld [vmem:[#allocation2 + $0x20] sm:$0xff]
        %v9939 = vld [vmem:[#allocation2 + $0x28] sm:$0xff]
        %v9940 = vld [vmem:[#allocation2 + $0x30] sm:$0xff]
        %v9941 = vld [vmem:[#allocation2 + $0x38] sm:$0xff]
        %v9942 = vld [vmem:[#allocation2 + $0x40] sm:$0xff]
        %v9943 = vld [vmem:[#allocation2 + $0x48] sm:$0xff]
        %v9944 = vld [vmem:[#allocation2 + $0x50] sm:$0xff]
        %v9945 = vld [vmem:[#allocation2 + $0x58] sm:$0xff]
        %v9946 = vld [vmem:[#allocation2 + $0x60] sm:$0xff]
        %v9947 = vld [vmem:[#allocation2 + $0x68] sm:$0xff]
        %v9948 = vld [vmem:[#allocation2 + $0x70] sm:$0xff]
        %v9949 = vld [vmem:[#allocation2 + $0x78] sm:$0xff]
        %v9950 = vld [vmem:[#allocation2 + $0x80] sm:$0xff]
        %v9951 = vld [vmem:[#allocation2 + $0x88] sm:$0xff]
        %v9952 = vld [vmem:[#allocation2 + $0x90] sm:$0xff]
        %v9953 = vld [vmem:[#allocation2 + $0x98] sm:$0xff]
        %v9954 = vld [vmem:[#allocation2 + $0xa0] sm:$0xff]
        %v9955 = vld [vmem:[#allocation2 + $0xa8] sm:$0xff]
        %v9956 = vld [vmem:[#allocation2 + $0xb0] sm:$0xff]
        %v9957 = vld [vmem:[#allocation2 + $0xb8] sm:$0xff]
        %v9958 = vld [vmem:[#allocation2 + $0xc0] sm:$0xff]
        %v9959 = vld [vmem:[#allocation2 + $0xc8] sm:$0xff]
        %v9960 = vld [vmem:[#allocation2 + $0xd0] sm:$0xff]
        %v9961 = vld [vmem:[#allocation2 + $0xd8] sm:$0xff]
        %v9962 = vld [vmem:[#allocation2 + $0xe0] sm:$0xff]
        %v9963 = vld [vmem:[#allocation2 + $0xe8] sm:$0xff]
        %v9964 = vld [vmem:[#allocation2 + $0xf0] sm:$0xff]
        %v9965 = vld [vmem:[#allocation2 + $0xf8] sm:$0xff]
        %v9966 = vld [vmem:[#allocation2 + $0x100] sm:$0xff]
        %v9967 = vld [vmem:[#allocation2 + $0x108] sm:$0xff]
        %v9968 = vld [vmem:[#allocation2 + $0x110] sm:$0xff]
        %v9969 = vld [vmem:[#allocation2 + $0x118] sm:$0xff]
        %v9970 = vld [vmem:[#allocation2 + $0x120] sm:$0xff]
        %v9971 = vld [vmem:[#allocation2 + $0x128] sm:$0xff]
        %v9972 = vld [vmem:[#allocation2 + $0x130] sm:$0xff]
        %v9973 = vld [vmem:[#allocation2 + $0x138] sm:$0xff]
        %v9974 = vld [vmem:[#allocation2 + $0x140] sm:$0xff]
        %v9975 = vld [vmem:[#allocation2 + $0x148] sm:$0xff]
        %v9976 = vld [vmem:[#allocation2 + $0x150] sm:$0xff]
        %v9977 = vld [vmem:[#allocation2 + $0x158] sm:$0xff]
        %v9978 = vld [vmem:[#allocation2 + $0x160] sm:$0xff]
        %v9979 = vld [vmem:[#allocation2 + $0x168] sm:$0xff]
        %v9980 = vld [vmem:[#allocation2 + $0x170] sm:$0xff]
        %v9981 = vld [vmem:[#allocation2 + $0x178] sm:$0xff]
        %v9982 = vld [vmem:[#allocation2 + $0x180] sm:$0xff]
        %v9983 = vld [vmem:[#allocation2 + $0x188] sm:$0xff]
        %v9984 = vld [vmem:[#allocation2 + $0x190] sm:$0xff]
        %v9985 = vld [vmem:[#allocation2 + $0x198] sm:$0xff]
        %v9986 = vld [vmem:[#allocation2 + $0x1a0] sm:$0xff]
        %v9987 = vld [vmem:[#allocation2 + $0x1a8] sm:$0xff]
        %v9988 = vld [vmem:[#allocation2 + $0x1b0] sm:$0xff]
        %v9989 = vld [vmem:[#allocation2 + $0x1b8] sm:$0xff]
        %v9990 = vld [vmem:[#allocation2 + $0x1c0] sm:$0xff]
        %v9991 = vld [vmem:[#allocation2 + $0x1c8] sm:$0xff]
        %v9992 = vld [vmem:[#allocation2 + $0x1d0] sm:$0xff]
        %v9993 = vld [vmem:[#allocation2 + $0x1d8] sm:$0xff]
        %v9994 = vld [vmem:[#allocation2 + $0x1e0] sm:$0xff]
        %v9995 = vld [vmem:[#allocation2 + $0x1e8] sm:$0xff]
        %v9996 = vld [vmem:[#allocation2 + $0x1f0] sm:$0xff]
        %v9997 = vld [vmem:[#allocation2 + $0x1f8] sm:$0xff]
        %v9998 = vld [vmem:[#allocation2 + $0x200] sm:$0xff]
        %v9999 = vld [vmem:[#allocation2 + $0x208] sm:$0xff]
        %v10000 = vld [vmem:[#allocation2 + $0x210] sm:$0xff]
        %v10001 = vld [vmem:[#allocation2 + $0x218] sm:$0xff]
        %v10002 = vld [vmem:[#allocation2 + $0x220] sm:$0xff]
        %v10003 = vld [vmem:[#allocation2 + $0x228] sm:$0xff]
        %v10004 = vld [vmem:[#allocation2 + $0x230] sm:$0xff]
        %v10005 = vld [vmem:[#allocation2 + $0x238] sm:$0xff]
        %v10006 = vld [vmem:[#allocation2 + $0x240] sm:$0xff]
        %v10007 = vld [vmem:[#allocation2 + $0x248] sm:$0xff]
        %v10008 = vld [vmem:[#allocation2 + $0x250] sm:$0xff]
        %v10009 = vld [vmem:[#allocation2 + $0x258] sm:$0xff]
        %v10010 = vld [vmem:[#allocation2 + $0x260] sm:$0xff]
        %v10011 = vld [vmem:[#allocation2 + $0x268] sm:$0xff]
        %v10012 = vld [vmem:[#allocation2 + $0x270] sm:$0xff]
        %v10013 = vld [vmem:[#allocation2 + $0x278] sm:$0xff]
        %10014 = vmatpush.msra.mxu0 %v9949
        %10015 = vmatpush.msra.mxu0 %v9948
        %10016 = vmatpush.msra.mxu0 %v9947
        %10017 = vmatpush.msra.mxu0 %v9946
        %10018 = vmatpush.msra.mxu0 %v9945
        %10019 = vmatpush.msra.mxu0 %v9944
        %10020 = vmatpush.msra.mxu0 %v9943
        %10021 = vmatpush.msra.mxu0 %v9942
        %10022 = vmatpush.msra.mxu0 %v9941
        %10023 = vmatpush.msra.mxu0 %v9940
        %10024 = vmatpush.msra.mxu0 %v9939
        %10025 = vmatpush.msra.mxu0 %v9938
        %10026 = vmatpush.msra.mxu0 %v9937
        %10027 = vmatpush.msra.mxu0 %v9936
        %10028 = vmatpush.msra.mxu0 %v9935
        %10029 = vmatpush.msra.mxu0 %v9934
        %10030 = vmatmul.f32.gmra.mxu0 %v9929
        %v10031 = vpop.f32.mrf.mxu0
        %v10032 = vadd.f32 0.0, %v10031
        %10033 = vdwg.mxu0
        %10034 = vmatpush.msra.mxu0 %v9965
        %10035 = vmatpush.msra.mxu0 %v9964
        %10036 = vmatpush.msra.mxu0 %v9963
        %10037 = vmatpush.msra.mxu0 %v9962
        %10038 = vmatpush.msra.mxu0 %v9961
        %10039 = vmatpush.msra.mxu0 %v9960
        %10040 = vmatpush.msra.mxu0 %v9959
        %10041 = vmatpush.msra.mxu0 %v9958
        %10042 = vmatpush.msra.mxu0 %v9957
        %10043 = vmatpush.msra.mxu0 %v9956
        %10044 = vmatpush.msra.mxu0 %v9955
        %10045 = vmatpush.msra.mxu0 %v9954
        %10046 = vmatpush.msra.mxu0 %v9953
        %10047 = vmatpush.msra.mxu0 %v9952
        %10048 = vmatpush.msra.mxu0 %v9951
        %10049 = vmatpush.msra.mxu0 %v9950
        %10050 = vmatmul.f32.gmra.mxu0 %v9930
        %v10051 = vpop.f32.mrf.mxu0
        %v10052 = vadd.f32 %v10032, %v10051
        %10053 = vdwg.mxu0
        %10054 = vmatpush.msra.mxu0 %v9981
        %10055 = vmatpush.msra.mxu0 %v9980
        %10056 = vmatpush.msra.mxu0 %v9979
        %10057 = vmatpush.msra.mxu0 %v9978
        %10058 = vmatpush.msra.mxu0 %v9977
        %10059 = vmatpush.msra.mxu0 %v9976
        %10060 = vmatpush.msra.mxu0 %v9975
        %10061 = vmatpush.msra.mxu0 %v9974
        %10062 = vmatpush.msra.mxu0 %v9973
        %10063 = vmatpush.msra.mxu0 %v9972
        %10064 = vmatpush.msra.mxu0 %v9971
        %10065 = vmatpush.msra.mxu0 %v9970
        %10066 = vmatpush.msra.mxu0 %v9969
        %10067 = vmatpush.msra.mxu0 %v9968
        %10068 = vmatpush.msra.mxu0 %v9967
        %10069 = vmatpush.msra.mxu0 %v9966
        %10070 = vmatmul.f32.gmra.mxu0 %v9931
        %v10071 = vpop.f32.mrf.mxu0
        %v10072 = vadd.f32 %v10052, %v10071
        %10073 = vdwg.mxu0
        %10074 = vmatpush.msra.mxu0 %v9997
        %10075 = vmatpush.msra.mxu0 %v9996
        %10076 = vmatpush.msra.mxu0 %v9995
        %10077 = vmatpush.msra.mxu0 %v9994
        %10078 = vmatpush.msra.mxu0 %v9993
        %10079 = vmatpush.msra.mxu0 %v9992
        %10080 = vmatpush.msra.mxu0 %v9991
        %10081 = vmatpush.msra.mxu0 %v9990
        %10082 = vmatpush.msra.mxu0 %v9989
        %10083 = vmatpush.msra.mxu0 %v9988
        %10084 = vmatpush.msra.mxu0 %v9987
        %10085 = vmatpush.msra.mxu0 %v9986
        %10086 = vmatpush.msra.mxu0 %v9985
        %10087 = vmatpush.msra.mxu0 %v9984
        %10088 = vmatpush.msra.mxu0 %v9983
        %10089 = vmatpush.msra.mxu0 %v9982
        %10090 = vmatmul.f32.gmra.mxu0 %v9932
        %v10091 = vpop.f32.mrf.mxu0
        %v10092 = vadd.f32 %v10072, %v10091
        %10093 = vdwg.mxu0
        %10094 = vmatpush.msra.mxu0 %v10013
        %10095 = vmatpush.msra.mxu0 %v10012
        %10096 = vmatpush.msra.mxu0 %v10011
        %10097 = vmatpush.msra.mxu0 %v10010
        %10098 = vmatpush.msra.mxu0 %v10009
        %10099 = vmatpush.msra.mxu0 %v10008
        %10100 = vmatpush.msra.mxu0 %v10007
        %10101 = vmatpush.msra.mxu0 %v10006
        %10102 = vmatpush.msra.mxu0 %v10005
        %10103 = vmatpush.msra.mxu0 %v10004
        %10104 = vmatpush.msra.mxu0 %v10003
        %10105 = vmatpush.msra.mxu0 %v10002
        %10106 = vmatpush.msra.mxu0 %v10001
        %10107 = vmatpush.msra.mxu0 %v10000
        %10108 = vmatpush.msra.mxu0 %v9999
        %10109 = vmatpush.msra.mxu0 %v9998
        %10110 = vmatmul.f32.gmra.mxu0 %v9933
        %v10111 = vpop.f32.mrf.mxu0
        %v10112 = vadd.f32 %v10092, %v10111
        %10113 = vdwg.mxu0
        %10114 = vst [vmem:[%s411] sm:$0xff] %v10112
        %s10115 = sand.u32 %s260, 1
        %s10116 = scalar_lea.sflag [#allocation4], %s10115
        %s10117 = sand.u32 %s260, 1
        %s10118 = smul.addr %s10117, 8
        %s10119 = scalar_lea.vmem [#allocation6], %s10118
        // Predicated region
        $region61: #{tpu_custom_call.1} parent=55 // pred_check
          %p10120 = pneg %p270
        $region62: #{tpu_custom_call.1} parent=55 // pred_check_branch
          %10122 = sbr.rel (%p10120) target = $region64
        $region63: #{tpu_custom_call.1} parent=55 // pred_region
          %10124 = vsyncadd %s10116, 0
          %s10125 = sadd.s32 %s29, %s28
          %s10126 = smul.addr %s10125, 8
          %s10127 = scalar_lea.hbm %s9, %s10126
          %s10129 = sshll.u32 %s10119, 4
          %s10130 = int_to_ptr.vmem [resolvable:$true] %s10129
          %s10131 = sshll.u32 %s10127, 4
          %s10132 = int_to_ptr.hbm [resolvable:$true] %s10131
          %10134 = dma.vmem_to_hbm [thread:$0]  %s10130, 128, %s10132, %s10116
        $region64: #{tpu_custom_call.1} parent=55 // pred_fallthru
          _
      $region56: #{tpu_custom_call.1} parent=5 // pred_fallthru
        _
      %p10135 = scmp.le.s32.totalorder 2, %s19
      // Predicated region
      $region65: #{tpu_custom_call.1} parent=5 // pred_check
        %p10136 = pneg %p10135
      $region66: #{tpu_custom_call.1} parent=5 // pred_check_branch
        %10138 = sbr.rel (%p10136) target = $region68
      $region67: #{tpu_custom_call.1} parent=5 // pred_region
        %s10139 = ssub.s32 %s19, 2
        // Predicated region
        $region69: #{tpu_custom_call.1} parent=67 // pred_check
          %p10140 = pneg %p276
        $region70: #{tpu_custom_call.1} parent=67 // pred_check_branch
          %10142 = sbr.rel (%p10140) target = $region72
        $region71: #{tpu_custom_call.1} parent=67 // pred_region
          %s10143 = sand.u32 %s261, 1
          %s10144 = scalar_lea.sflag [#allocation4], %s10143
          %s10145 = sand.u32 %s261, 1
          %s10146 = smul.addr %s10145, 8
          %s10147 = scalar_lea.vmem [#allocation6], %s10146
          %10149 = dma.done %s10144, 128
        $region72: #{tpu_custom_call.1} parent=67 // pred_fallthru
          _
      $region68: #{tpu_custom_call.1} parent=5 // pred_fallthru
        _
    $region6: #{tpu_custom_call.1} parent=1 // loop_footer
      %s23 = sadd.s32 1, %s19
    $region7: #{tpu_custom_call.1} parent=1 // loop_footer_branch
      %18 = sbr.rel target = $region3
    $region8: #{tpu_custom_call.1} parent=1 // loop_exit
      _
    %10150 = vsyncpa [#allocation4], 1
    %s10151 = scalar_lea.sflag [#allocation4], 1
    %10152 = vsyncpa %s10151, 1
    %10153 = vsyncpa [#allocation5], 1
    %s10154 = scalar_lea.sflag [#allocation5], 1
    %10155 = vsyncpa %s10154, 1

</llo_original>
